<compile_context>
chip_gen: v5e
topology: v5e:2x2
jax: 0.10.0
libtpu: 0.0.40
codegen_flags: <defaults>
</compile_context>

<pallas_src>
import numpy as np
import jax
import jax.numpy as jnp
from jax.experimental import pallas as pl
from jax.experimental.pallas import tpu as pltpu

# ------------------------- small config (consistent with the module) --------
B = 2                      # batch
C = 3                      # in_chans
IMG = 32                   # img_size
PATCH = 8                  # patch_size
HP = IMG // PATCH          # 4 patches per side
NP = HP * HP               # 16 = num_patches
CPP = C * PATCH * PATCH    # 192 = patch vector length
D = 128                    # embed_dim
HEADS = 4                  # num_heads
HD = D // HEADS            # 32 head dim
DEPTH = 2                  # depth
MLP = 4 * D                # 512 mlp hidden (mlp_ratio=4)
F = NP * D                 # 2048, flat_op='flatten' feature dim
H1 = 256                   # fc1 / fc1_z hidden (1024 in the original)
H2 = 128                   # fc2 / fc2_z hidden (256 in the original)
OUTP = 16                  # lane-padded fused [rot(6) | t(2) | z(1) | pad(7)]
SCALE = HD ** -0.5
EPS = 1e-5                 # nn.LayerNorm default
BF16 = jnp.bfloat16


# ------------------------- shared math helpers -------------------------------
def _gelu_exact(x):
    # exact (erf) GELU, matching nn.GELU() default — used in the reference only
    return 0.5 * x * (1.0 + jax.lax.erf(x * (1.0 / np.sqrt(2.0))))


def _gelu_tanh(x):
    # tanh approximation (EUP tanh slot); small deviation vs. exact erf GELU
    c = 0.7978845608028654  # sqrt(2/pi)
    return 0.5 * x * (1.0 + jnp.tanh(c * (x + 0.044715 * x * x * x)))


def _layer_norm(x, g, b):
    mu = jnp.mean(x, axis=-1, keepdims=True)
    var = jnp.mean(jnp.square(x - mu), axis=-1, keepdims=True)
    return (x - mu) * jax.lax.rsqrt(var + EPS) * g + b


def extract_patches(x_nchw):
    # (B, C, H, W) -> (B, Np, C*P*P), patch order row-major over (Hp, Wp)
    b = x_nchw.shape[0]
    x = x_nchw.reshape(b, C, HP, PATCH, HP, PATCH)
    x = x.transpose(0, 2, 4, 1, 3, 5)          # (B, Hp, Wp, C, Ph, Pw)
    return x.reshape(b, NP, CPP)


# ------------------------- fused Pallas kernel --------------------------------
def pnp_kernel(patches_ref, pe_w_ref, pe_b_ref, pos_ref,
               ln1_g_ref, ln1_b_ref, qkv_w_ref, qkv_b_ref,
               proj_w_ref, proj_b_ref, ln2_g_ref, ln2_b_ref,
               mlp1_w_ref, mlp1_b_ref, mlp2_w_ref, mlp2_b_ref,
               nrm_g_ref, nrm_b_ref,
               fc1_w_hbm_ref, fc1_b_ref, fc2_w_ref, fc2_b_ref,
               out_w_ref, out_b_ref,
               out_ref, feat_ref,
               fc1_vmem, fc1_sem):
    # ---- start prefetching the big fused fc1|fc1_z weight (2 MiB bf16) ----
    # It is only needed after both transformer blocks, so the DMA overlaps the
    # whole transformer body; the wait sits right before the head.
    fc1_copy = pltpu.make_async_copy(fc1_w_hbm_ref, fc1_vmem, fc1_sem)
    fc1_copy.start()

    # ---- patch embedding (Conv2d k=s=patch == matmul) + bias + pos_embed ----
    # B folded into rows: x is (B*NP, D) = (32, 128), residual stream in f32.
    x = jnp.dot(patches_ref[...], pe_w_ref[...],
                preferred_element_type=jnp.float32)
    x = x + pe_b_ref[...] + pos_ref[...]

    for d in range(DEPTH):                               # static unroll
        # ---- multi-head self-attention (pre-norm) ----
        h = _layer_norm(x, ln1_g_ref[d:d + 1, :], ln1_b_ref[d:d + 1, :])
        # attention scale is pre-folded into the Q columns of qkv_w / qkv_b
        qkv = jnp.dot(h.astype(BF16), qkv_w_ref[d],
                      preferred_element_type=jnp.float32) + qkv_b_ref[d:d + 1, :]
        qkvb = qkv.astype(BF16)

        # fold all heads into ONE batched contraction: batch g = (head, batch)
        q = jnp.concatenate(
            [qkvb[:, hh * HD:(hh + 1) * HD].reshape(B, NP, HD)
             for hh in range(HEADS)], axis=0)                       # (8,16,32)
        k = jnp.concatenate(
            [qkvb[:, D + hh * HD:D + (hh + 1) * HD].reshape(B, NP, HD)
             for hh in range(HEADS)], axis=0)
        v = jnp.concatenate(
            [qkvb[:, 2 * D + hh * HD:2 * D + (hh + 1) * HD].reshape(B, NP, HD)
             for hh in range(HEADS)], axis=0)

        s = jnp.einsum('gnd,gmd->gnm', q, k,
                       preferred_element_type=jnp.float32)          # (8,16,16)
        s = s - jnp.max(s, axis=-1, keepdims=True)
        p = jnp.exp(s)
        p = p * pl.reciprocal(jnp.sum(p, axis=-1, keepdims=True), approx=True)
        o = jnp.einsum('gnm,gmd->gnd', p.astype(BF16), v,
                       preferred_element_type=jnp.float32)          # (8,16,32)

        # lane-concat the 4 head outputs, then ONE full-K output projection
        o_cat = jnp.concatenate([o[hh * B:(hh + 1) * B]
                                 for hh in range(HEADS)], axis=-1)  # (2,16,128)
        attn = jnp.dot(o_cat.reshape(B * NP, D).astype(BF16), proj_w_ref[d],
                       preferred_element_type=jnp.float32)
        x = x + attn + proj_b_ref[d:d + 1, :]

        # ---- MLP (pre-norm) ----
        h = _layer_norm(x, ln2_g_ref[d:d + 1, :], ln2_b_ref[d:d + 1, :])
        h = _gelu_tanh(jnp.dot(h.astype(BF16), mlp1_w_ref[d],
                               preferred_element_type=jnp.float32)
                       + mlp1_b_ref[d:d + 1, :])
        h = jnp.dot(h.astype(BF16), mlp2_w_ref[d],
                    preferred_element_type=jnp.float32) + mlp2_b_ref[d:d + 1, :]
        x = x + h

    # ---- final LayerNorm + feature output (f32, pure store) ----
    xn = _layer_norm(x, nrm_g_ref[...], nrm_b_ref[...])
    feat3 = xn.reshape(B, NP, D)
    feat_ref[...] = feat3          # output DMA overlaps the head below

    # ---- head: make sure the prefetched fc1|fc1_z weight has landed ----
    fc1_copy.wait()

    # flat @ [fc1|fc1_z] as a sum over per-patch slabs of the LIVE value
    xb = feat3.astype(BF16)
    acc = jnp.zeros((B, 2 * H1), jnp.float32)
    for n in range(NP):                                  # static unroll
        acc = acc + jnp.dot(xb[:, n, :], fc1_vmem[n],
                            preferred_element_type=jnp.float32)
    hcat = _gelu_tanh(acc + fc1_b_ref[...])              # (B, 2*H1)

    # block-diagonal [fc2 | fc2_z] in one matmul
    h2 = _gelu_tanh(jnp.dot(hcat.astype(BF16), fc2_w_ref[...],
                            preferred_element_type=jnp.float32)
                    + fc2_b_ref[...])                    # (B, 2*H2)

    # fused [fc_r | fc_t | fc_z | pad] -> single lane-padded (B, 16) store
    out_ref[...] = jnp.dot(h2.astype(BF16), out_w_ref[...],
                           preferred_element_type=jnp.float32) + out_b_ref[...]


# ------------------------- one-time weight fusion (hoisted out of jit) -------
def prepare_params(p):
    qscale = jnp.concatenate([jnp.full((D,), SCALE, jnp.float32),
                              jnp.ones((2 * D,), jnp.float32)])
    fp = {}
    fp['pe_w'] = p['pe_w'].astype(BF16)
    fp['pe_b'] = p['pe_b']
    fp['pos'] = jnp.tile(p['pos'], (B, 1))                           # (B*NP, D)
    fp['ln1_g'], fp['ln1_b'] = p['ln1_g'], p['ln1_b']
    fp['qkv_w'] = (p['qkv_w'] * qscale).astype(BF16)                 # scale folded
    fp['qkv_b'] = p['qkv_b'] * qscale
    fp['proj_w'] = p['proj_w'].astype(BF16)
    fp['proj_b'] = p['proj_b']
    fp['ln2_g'], fp['ln2_b'] = p['ln2_g'], p['ln2_b']
    fp['mlp1_w'] = p['mlp1_w'].astype(BF16)
    fp['mlp1_b'] = p['mlp1_b']
    fp['mlp2_w'] = p['mlp2_w'].astype(BF16)
    fp['mlp2_b'] = p['mlp2_b']
    fp['nrm_g'], fp['nrm_b'] = p['nrm_g'], p['nrm_b']
    # fused fc1|fc1_z, laid out as per-patch slabs (NP, D, 2*H1)
    fp['fc1_w'] = jnp.concatenate([p['fc1_w'], p['fc1z_w']],
                                  axis=1).reshape(NP, D, 2 * H1).astype(BF16)
    fp['fc1_b'] = jnp.concatenate([p['fc1_b'], p['fc1z_b']], axis=1)
    z1 = jnp.zeros((H1, H2), jnp.float32)
    fp['fc2_w'] = jnp.concatenate(
        [jnp.concatenate([p['fc2_w'], z1], axis=1),
         jnp.concatenate([z1, p['fc2z_w']], axis=1)], axis=0).astype(BF16)
    fp['fc2_b'] = jnp.concatenate([p['fc2_b'], p['fc2z_b']], axis=1)
    out_w = jnp.zeros((2 * H2, OUTP), jnp.float32)
    out_w = out_w.at[:H2, 0:6].set(p['fcr_w'])
    out_w = out_w.at[:H2, 6:8].set(p['fct_w'])
    out_w = out_w.at[H2:, 8:9].set(p['fcz_w'])
    fp['out_w'] = out_w.astype(BF16)
    out_b = jnp.zeros((1, OUTP), jnp.float32)
    out_b = out_b.at[:, 0:6].set(p['fcr_b'])
    out_b = out_b.at[:, 6:8].set(p['fct_b'])
    out_b = out_b.at[:, 8:9].set(p['fcz_b'])
    fp['out_b'] = out_b
    return fp


# ------------------------- wrapper --------------------------------------------
def attention_pnp_forward(x_nchw, fp):
    patches = extract_patches(x_nchw).reshape(B * NP, CPP).astype(BF16)

    full = lambda shape: pl.BlockSpec(shape, lambda i: (0,) * len(shape))

    out16, feat = pl.pallas_call(
        pnp_kernel,
        out_shape=(jax.ShapeDtypeStruct((B, OUTP), jnp.float32),
                   jax.ShapeDtypeStruct((B, NP, D), jnp.float32)),
        grid=(1,),
        in_specs=[
            full((B * NP, CPP)),              # patches (bf16)
            full((CPP, D)),                   # pe_w
            full((1, D)),                     # pe_b
            full((B * NP, D)),                # pos (pre-tiled over batch)
            full((DEPTH, D)),                 # ln1_g
            full((DEPTH, D)),                 # ln1_b
            full((DEPTH, D, 3 * D)),          # qkv_w (scale folded, bf16)
            full((DEPTH, 3 * D)),             # qkv_b (scale folded)
            full((DEPTH, D, D)),              # proj_w
            full((DEPTH, D)),                 # proj_b
            full((DEPTH, D)),                 # ln2_g
            full((DEPTH, D)),                 # ln2_b
            full((DEPTH, D, MLP)),            # mlp1_w
            full((DEPTH, MLP)),               # mlp1_b
            full((DEPTH, MLP, D)),            # mlp2_w
            full((DEPTH, D)),                 # mlp2_b
            full((1, D)),                     # nrm_g
            full((1, D)),                     # nrm_b
            pl.BlockSpec(memory_space=pl.ANY),  # fc1|fc1_z weight (manual DMA)
            full((1, 2 * H1)),                # fc1|fc1_z bias
            full((2 * H1, 2 * H2)),           # block-diag fc2|fc2_z weight
            full((1, 2 * H2)),                # fc2|fc2_z bias
            full((2 * H2, OUTP)),             # fused fc_r|fc_t|fc_z weight
            full((1, OUTP)),                  # fused fc_r|fc_t|fc_z bias
        ],
        out_specs=(pl.BlockSpec((B, OUTP), lambda i: (0, 0)),
                   pl.BlockSpec((B, NP, D), lambda i: (0, 0, 0))),
        scratch_shapes=[pltpu.VMEM((NP, D, 2 * H1), BF16),   # fc1 staging buf
                        pltpu.SemaphoreType.DMA],            # fc1 DMA sem
        compiler_params=pltpu.CompilerParams(
            dimension_semantics=("arbitrary",),
            vmem_limit_bytes=32 * 1024 * 1024),
    )(patches, fp['pe_w'], fp['pe_b'], fp['pos'],
      fp['ln1_g'], fp['ln1_b'], fp['qkv_w'], fp['qkv_b'],
      fp['proj_w'], fp['proj_b'], fp['ln2_g'], fp['ln2_b'],
      fp['mlp1_w'], fp['mlp1_b'], fp['mlp2_w'], fp['mlp2_b'],
      fp['nrm_g'], fp['nrm_b'],
      fp['fc1_w'], fp['fc1_b'], fp['fc2_w'], fp['fc2_b'],
      fp['out_w'], fp['out_b'])

    rot = out16[:, 0:6]
    t = out16[:, 6:9]
    # (B, NP, D) and (B, F) share the same HBM layout -> free reshape
    return rot, t, feat.reshape(B, F)


# ------------------------- pure-JAX reference (f32, exact erf GELU) ----------
def reference_forward(x_nchw, p):
    patches = extract_patches(x_nchw)
    x = jnp.einsum('bnc,cd->bnd', patches, p['pe_w']) + p['pe_b'][0]
    x = x + p['pos'][None]
    for d in range(DEPTH):
        h = _layer_norm(x, p['ln1_g'][d], p['ln1_b'][d])
        qkv = jnp.einsum('bnd,de->bne', h, p['qkv_w'][d]) + p['qkv_b'][d]
        q = qkv[..., :D].reshape(B, NP, HEADS, HD).transpose(0, 2, 1, 3)
        k = qkv[..., D:2 * D].reshape(B, NP, HEADS, HD).transpose(0, 2, 1, 3)
        v = qkv[..., 2 * D:].reshape(B, NP, HEADS, HD).transpose(0, 2, 1, 3)
        s = jnp.einsum('bhnd,bhmd->bhnm', q, k) * SCALE
        a = jax.nn.softmax(s, axis=-1)
        o = jnp.einsum('bhnm,bhmd->bhnd', a, v)
        o = o.transpose(0, 2, 1, 3).reshape(B, NP, D)
        o = jnp.einsum('bnd,de->bne', o, p['proj_w'][d]) + p['proj_b'][d]
        x = x + o
        h = _layer_norm(x, p['ln2_g'][d], p['ln2_b'][d])
        h = _gelu_exact(jnp.einsum('bnd,de->bne', h, p['mlp1_w'][d]) + p['mlp1_b'][d])
        h = jnp.einsum('bne,ed->bnd', h, p['mlp2_w'][d]) + p['mlp2_b'][d]
        x = x + h
    x = _layer_norm(x, p['nrm_g'][0], p['nrm_b'][0])
    flat = x.reshape(B, F)
    h = _gelu_exact(flat @ p['fc1_w'] + p['fc1_b'][0])
    h = _gelu_exact(h @ p['fc2_w'] + p['fc2_b'][0])
    rot = h @ p['fcr_w'] + p['fcr_b'][0]
    t2 = h @ p['fct_w'] + p['fct_b'][0]
    hz = _gelu_exact(flat @ p['fc1z_w'] + p['fc1z_b'][0])
    hz = _gelu_exact(hz @ p['fc2z_w'] + p['fc2z_b'][0])
    z = hz @ p['fcz_w'] + p['fcz_b'][0]
    return rot, jnp.concatenate([t2, z], axis=1), flat


# ------------------------- deterministic parameter init ----------------------
def init_params(key):
    ks = jax.random.split(key, 24)
    n = lambda i, shape, std: jax.random.normal(ks[i], shape, jnp.float32) * std
    p = {}
    # patch embed (Conv2d k=s=patch, stored as (C*P*P, D) matmul weight)
    p['pe_w'] = n(0, (CPP, D), 0.02)
    p['pe_b'] = n(1, (1, D), 0.01)
    p['pos'] = n(2, (NP, D), 0.02)           # trunc_normal std=0.02 (approx)
    # transformer blocks (stacked over depth)
    p['ln1_g'] = jnp.ones((DEPTH, D), jnp.float32)
    p['ln1_b'] = jnp.zeros((DEPTH, D), jnp.float32)
    p['qkv_w'] = n(3, (DEPTH, D, 3 * D), 0.02)
    p['qkv_b'] = n(4, (DEPTH, 3 * D), 0.01)
    p['proj_w'] = n(5, (DEPTH, D, D), 0.02)
    p['proj_b'] = n(6, (DEPTH, D), 0.01)
    p['ln2_g'] = jnp.ones((DEPTH, D), jnp.float32)
    p['ln2_b'] = jnp.zeros((DEPTH, D), jnp.float32)
    p['mlp1_w'] = n(7, (DEPTH, D, MLP), 0.02)
    p['mlp1_b'] = n(8, (DEPTH, MLP), 0.01)
    p['mlp2_w'] = n(9, (DEPTH, MLP, D), 0.02)
    p['mlp2_b'] = n(10, (DEPTH, D), 0.01)
    p['nrm_g'] = jnp.ones((1, D), jnp.float32)
    p['nrm_b'] = jnp.zeros((1, D), jnp.float32)
    # head MLPs (Linear weights stored as (in, out))
    p['fc1_w'] = n(11, (F, H1), 0.02);  p['fc1_b'] = n(12, (1, H1), 0.01)
    p['fc2_w'] = n(13, (H1, H2), 0.02); p['fc2_b'] = n(14, (1, H2), 0.01)
    p['fc1z_w'] = n(15, (F, H1), 0.02); p['fc1z_b'] = n(16, (1, H1), 0.01)
    p['fc2z_w'] = n(17, (H1, H2), 0.02); p['fc2z_b'] = n(18, (1, H2), 0.01)
    p['fcr_w'] = n(19, (H2, 6), 0.01);  p['fcr_b'] = n(20, (1, 6), 0.01)
    p['fct_w'] = n(21, (H2, 2), 0.01);  p['fct_b'] = n(22, (1, 2), 0.01)
    p['fcz_w'] = n(23, (H2, 1), 0.01);  p['fcz_b'] = jnp.zeros((1, 1), jnp.float32)
    return p


# ------------------------- main ----------------------------------------------
if __name__ == "__main__":
    key = jax.random.PRNGKey(0)
    kx, kp = jax.random.split(key)
    x = jax.random.normal(kx, (B, C, IMG, IMG), jnp.float32)   # NCHW like torch
    params = init_params(kp)
    fused = prepare_params(params)          # one-time fusion + bf16 cast

    fwd = jax.jit(attention_pnp_forward)
    rot, t, flat = fwd(x, fused)
    jax.block_until_ready((rot, t, flat))

    rot_r, t_r, flat_r = reference_forward(x, params)
    # tolerance covers bf16 matmul operands + tanh-GELU approximation
    np.testing.assert_allclose(np.asarray(rot), np.asarray(rot_r),
                               rtol=1e-2, atol=1e-2)
    np.testing.assert_allclose(np.asarray(t), np.asarray(t_r),
                               rtol=1e-2, atol=1e-2)
    np.testing.assert_allclose(np.asarray(flat), np.asarray(flat_r),
                               rtol=1e-2, atol=1e-2)
    assert rot.shape == (B, 6) and t.shape == (B, 3) and flat.shape == (B, F)
    print("KERNEL_OK")
</pallas_src>

<mosaic_0001>
module attributes {stable_mosaic.version = 11 : i64} {
  func.func @pnp_kernel(%arg0: i32, %arg1: memref<32x192xbf16, #tpu.memory_space<vmem>>, %arg2: memref<192x128xbf16, #tpu.memory_space<vmem>>, %arg3: memref<1x128xf32, #tpu.memory_space<vmem>>, %arg4: memref<32x128xf32, #tpu.memory_space<vmem>>, %arg5: memref<2x128xf32, #tpu.memory_space<vmem>>, %arg6: memref<2x128xf32, #tpu.memory_space<vmem>>, %arg7: memref<2x128x384xbf16, #tpu.memory_space<vmem>>, %arg8: memref<2x384xf32, #tpu.memory_space<vmem>>, %arg9: memref<2x128x128xbf16, #tpu.memory_space<vmem>>, %arg10: memref<2x128xf32, #tpu.memory_space<vmem>>, %arg11: memref<2x128xf32, #tpu.memory_space<vmem>>, %arg12: memref<2x128xf32, #tpu.memory_space<vmem>>, %arg13: memref<2x128x512xbf16, #tpu.memory_space<vmem>>, %arg14: memref<2x512xf32, #tpu.memory_space<vmem>>, %arg15: memref<2x512x128xbf16, #tpu.memory_space<vmem>>, %arg16: memref<2x128xf32, #tpu.memory_space<vmem>>, %arg17: memref<1x128xf32, #tpu.memory_space<vmem>>, %arg18: memref<1x128xf32, #tpu.memory_space<vmem>>, %arg19: memref<16x128x512xbf16, #tpu.memory_space<any>>, %arg20: memref<1x512xf32, #tpu.memory_space<vmem>>, %arg21: memref<512x256xbf16, #tpu.memory_space<vmem>>, %arg22: memref<1x256xf32, #tpu.memory_space<vmem>>, %arg23: memref<256x16xbf16, #tpu.memory_space<vmem>>, %arg24: memref<1x16xf32, #tpu.memory_space<vmem>>, %arg25: memref<2x16xf32, #tpu.memory_space<vmem>>, %arg26: memref<2x16x128xf32, #tpu.memory_space<vmem>>, %arg27: memref<16x128x512xbf16, #tpu.memory_space<vmem>>, %arg28: memref<!tpu.dma_semaphore, #tpu.memory_space<semaphore_mem>>) attributes {dimension_semantics = [#tpu.dimension_semantics<arbitrary>], iteration_bounds = array<i64: 1>, scalar_prefetch = 0 : i64, scratch_operands = 2 : i64, tpu.core_type = #tpu.core_type<tc>, window_params = [{pipeline_mode = #tpu.pipeline_mode<synchronous>, transform_indices = @transform_0, window_bounds = array<i64: 32, 192>}, {pipeline_mode = #tpu.pipeline_mode<synchronous>, transform_indices = @transform_1, window_bounds = array<i64: 192, 128>}, {pipeline_mode = #tpu.pipeline_mode<synchronous>, transform_indices = @transform_2, window_bounds = array<i64: 1, 128>}, {pipeline_mode = #tpu.pipeline_mode<synchronous>, transform_indices = @transform_3, window_bounds = array<i64: 32, 128>}, {pipeline_mode = #tpu.pipeline_mode<synchronous>, transform_indices = @transform_4, window_bounds = array<i64: 2, 128>}, {pipeline_mode = #tpu.pipeline_mode<synchronous>, transform_indices = @transform_5, window_bounds = array<i64: 2, 128>}, {pipeline_mode = #tpu.pipeline_mode<synchronous>, transform_indices = @transform_6, window_bounds = array<i64: 2, 128, 384>}, {pipeline_mode = #tpu.pipeline_mode<synchronous>, transform_indices = @transform_7, window_bounds = array<i64: 2, 384>}, {pipeline_mode = #tpu.pipeline_mode<synchronous>, transform_indices = @transform_8, window_bounds = array<i64: 2, 128, 128>}, {pipeline_mode = #tpu.pipeline_mode<synchronous>, transform_indices = @transform_9, window_bounds = array<i64: 2, 128>}, {pipeline_mode = #tpu.pipeline_mode<synchronous>, transform_indices = @transform_10, window_bounds = array<i64: 2, 128>}, {pipeline_mode = #tpu.pipeline_mode<synchronous>, transform_indices = @transform_11, window_bounds = array<i64: 2, 128>}, {pipeline_mode = #tpu.pipeline_mode<synchronous>, transform_indices = @transform_12, window_bounds = array<i64: 2, 128, 512>}, {pipeline_mode = #tpu.pipeline_mode<synchronous>, transform_indices = @transform_13, window_bounds = array<i64: 2, 512>}, {pipeline_mode = #tpu.pipeline_mode<synchronous>, transform_indices = @transform_14, window_bounds = array<i64: 2, 512, 128>}, {pipeline_mode = #tpu.pipeline_mode<synchronous>, transform_indices = @transform_15, window_bounds = array<i64: 2, 128>}, {pipeline_mode = #tpu.pipeline_mode<synchronous>, transform_indices = @transform_16, window_bounds = array<i64: 1, 128>}, {pipeline_mode = #tpu.pipeline_mode<synchronous>, transform_indices = @transform_17, window_bounds = array<i64: 1, 128>}, {}, {pipeline_mode = #tpu.pipeline_mode<synchronous>, transform_indices = @transform_19, window_bounds = array<i64: 1, 512>}, {pipeline_mode = #tpu.pipeline_mode<synchronous>, transform_indices = @transform_20, window_bounds = array<i64: 512, 256>}, {pipeline_mode = #tpu.pipeline_mode<synchronous>, transform_indices = @transform_21, window_bounds = array<i64: 1, 256>}, {pipeline_mode = #tpu.pipeline_mode<synchronous>, transform_indices = @transform_22, window_bounds = array<i64: 256, 16>}, {pipeline_mode = #tpu.pipeline_mode<synchronous>, transform_indices = @transform_23, window_bounds = array<i64: 1, 16>}, {pipeline_mode = #tpu.pipeline_mode<synchronous>, transform_indices = @transform_24, window_bounds = array<i64: 2, 16>}, {pipeline_mode = #tpu.pipeline_mode<synchronous>, transform_indices = @transform_25, window_bounds = array<i64: 2, 16, 128>}]} {
    tpu.enqueue_dma source(%arg19 : memref<16x128x512xbf16, #tpu.memory_space<any>>) target(%arg27 : memref<16x128x512xbf16, #tpu.memory_space<vmem>>) target_semaphore(%arg28 : memref<!tpu.dma_semaphore, #tpu.memory_space<semaphore_mem>>)
    %c0 = arith.constant 0 : index
    %c0_0 = arith.constant 0 : index
    %0 = vector.load %arg1[%c0, %c0_0] : memref<32x192xbf16, #tpu.memory_space<vmem>>, vector<32x192xbf16>
    %c0_1 = arith.constant 0 : index
    %c0_2 = arith.constant 0 : index
    %1 = vector.load %arg2[%c0_1, %c0_2] : memref<192x128xbf16, #tpu.memory_space<vmem>>, vector<192x128xbf16>
    %cst = arith.constant dense<0.000000e+00> : vector<32x128xf32>
    %2 = tpu.matmul %0, %1, %cst {dimension_numbers = #tpu.dot_dimension_numbers<[1], [0], [0], [1], [0, 0, 1, 1], [], []>} : vector<32x192xbf16>, vector<192x128xbf16>, vector<32x128xf32> -> vector<32x128xf32>
    %c0_3 = arith.constant 0 : index
    %c0_4 = arith.constant 0 : index
    %3 = vector.load %arg3[%c0_3, %c0_4] : memref<1x128xf32, #tpu.memory_space<vmem>>, vector<1x128xf32>
    %4 = vector.broadcast %3 : vector<1x128xf32> to vector<32x128xf32>
    %5 = arith.addf %2, %4 : vector<32x128xf32>
    %c0_5 = arith.constant 0 : index
    %c0_6 = arith.constant 0 : index
    %6 = vector.load %arg4[%c0_5, %c0_6] : memref<32x128xf32, #tpu.memory_space<vmem>>, vector<32x128xf32>
    %7 = arith.addf %5, %6 : vector<32x128xf32>
    %c0_7 = arith.constant 0 : index
    %c0_8 = arith.constant 0 : index
    %8 = vector.load %arg5[%c0_7, %c0_8] : memref<2x128xf32, #tpu.memory_space<vmem>>, vector<1x128xf32>
    %c0_9 = arith.constant 0 : index
    %c0_10 = arith.constant 0 : index
    %9 = vector.load %arg6[%c0_9, %c0_10] : memref<2x128xf32, #tpu.memory_space<vmem>>, vector<1x128xf32>
    %cst_11 = arith.constant dense<0.000000e+00> : vector<32xf32>
    %10 = vector.multi_reduction <add>, %7, %cst_11 [1] : vector<32x128xf32> to vector<32xf32>
    %11 = vector.shape_cast %10 : vector<32xf32> to vector<32x1xf32>
    %cst_12 = arith.constant 1.280000e+02 : f32
    %12 = vector.broadcast %cst_12 : f32 to vector<32x1xf32>
    %13 = arith.divf %11, %12 : vector<32x1xf32>
    %14 = vector.broadcast %13 : vector<32x1xf32> to vector<32x128xf32>
    %15 = arith.subf %7, %14 : vector<32x128xf32>
    %16 = arith.mulf %15, %15 : vector<32x128xf32>
    %cst_13 = arith.constant dense<0.000000e+00> : vector<32xf32>
    %17 = vector.multi_reduction <add>, %16, %cst_13 [1] : vector<32x128xf32> to vector<32xf32>
    %18 = vector.shape_cast %17 : vector<32xf32> to vector<32x1xf32>
    %cst_14 = arith.constant 1.280000e+02 : f32
    %19 = vector.broadcast %cst_14 : f32 to vector<32x1xf32>
    %20 = arith.divf %18, %19 : vector<32x1xf32>
    %21 = vector.broadcast %13 : vector<32x1xf32> to vector<32x128xf32>
    %22 = arith.subf %7, %21 : vector<32x128xf32>
    %cst_15 = arith.constant 9.99999974E-6 : f32
    %23 = vector.broadcast %cst_15 : f32 to vector<32x1xf32>
    %24 = arith.addf %20, %23 : vector<32x1xf32>
    %25 = math.rsqrt %24 : vector<32x1xf32>
    %26 = vector.broadcast %25 : vector<32x1xf32> to vector<32x128xf32>
    %27 = arith.mulf %22, %26 : vector<32x128xf32>
    %28 = vector.broadcast %8 : vector<1x128xf32> to vector<32x128xf32>
    %29 = arith.mulf %27, %28 : vector<32x128xf32>
    %30 = vector.broadcast %9 : vector<1x128xf32> to vector<32x128xf32>
    %31 = arith.addf %29, %30 : vector<32x128xf32>
    %32 = arith.truncf %31 : vector<32x128xf32> to vector<32x128xbf16>
    %c0_16 = arith.constant 0 : index
    %c0_17 = arith.constant 0 : index
    %c0_18 = arith.constant 0 : index
    %33 = vector.load %arg7[%c0_16, %c0_17, %c0_18] : memref<2x128x384xbf16, #tpu.memory_space<vmem>>, vector<1x128x384xbf16>
    %34 = vector.shape_cast %33 : vector<1x128x384xbf16> to vector<128x384xbf16>
    %cst_19 = arith.constant dense<0.000000e+00> : vector<32x384xf32>
    %35 = tpu.matmul %32, %34, %cst_19 {dimension_numbers = #tpu.dot_dimension_numbers<[1], [0], [0], [1], [0, 0, 1, 1], [], []>} : vector<32x128xbf16>, vector<128x384xbf16>, vector<32x384xf32> -> vector<32x384xf32>
    %c0_20 = arith.constant 0 : index
    %c0_21 = arith.constant 0 : index
    %36 = vector.load %arg8[%c0_20, %c0_21] : memref<2x384xf32, #tpu.memory_space<vmem>>, vector<1x384xf32>
    %37 = vector.broadcast %36 : vector<1x384xf32> to vector<32x384xf32>
    %38 = arith.addf %35, %37 : vector<32x384xf32>
    %39 = arith.truncf %38 : vector<32x384xf32> to vector<32x384xbf16>
    %40 = vector.extract_strided_slice %39 {offsets = [0, 0], sizes = [32, 32], strides = [1, 1]} : vector<32x384xbf16> to vector<32x32xbf16>
    %41 = vector.shape_cast %40 : vector<32x32xbf16> to vector<2x16x32xbf16>
    %42 = vector.extract_strided_slice %39 {offsets = [0, 32], sizes = [32, 32], strides = [1, 1]} : vector<32x384xbf16> to vector<32x32xbf16>
    %43 = vector.shape_cast %42 : vector<32x32xbf16> to vector<2x16x32xbf16>
    %44 = vector.extract_strided_slice %39 {offsets = [0, 64], sizes = [32, 32], strides = [1, 1]} : vector<32x384xbf16> to vector<32x32xbf16>
    %45 = vector.shape_cast %44 : vector<32x32xbf16> to vector<2x16x32xbf16>
    %46 = vector.extract_strided_slice %39 {offsets = [0, 96], sizes = [32, 32], strides = [1, 1]} : vector<32x384xbf16> to vector<32x32xbf16>
    %47 = vector.shape_cast %46 : vector<32x32xbf16> to vector<2x16x32xbf16>
    %48 = tpu.concatenate %41, %43, %45, %47 in 0 : vector<2x16x32xbf16>, vector<2x16x32xbf16>, vector<2x16x32xbf16>, vector<2x16x32xbf16> -> vector<8x16x32xbf16>
    %49 = vector.extract_strided_slice %39 {offsets = [0, 128], sizes = [32, 32], strides = [1, 1]} : vector<32x384xbf16> to vector<32x32xbf16>
    %50 = vector.shape_cast %49 : vector<32x32xbf16> to vector<2x16x32xbf16>
    %51 = vector.extract_strided_slice %39 {offsets = [0, 160], sizes = [32, 32], strides = [1, 1]} : vector<32x384xbf16> to vector<32x32xbf16>
    %52 = vector.shape_cast %51 : vector<32x32xbf16> to vector<2x16x32xbf16>
    %53 = vector.extract_strided_slice %39 {offsets = [0, 192], sizes = [32, 32], strides = [1, 1]} : vector<32x384xbf16> to vector<32x32xbf16>
    %54 = vector.shape_cast %53 : vector<32x32xbf16> to vector<2x16x32xbf16>
    %55 = vector.extract_strided_slice %39 {offsets = [0, 224], sizes = [32, 32], strides = [1, 1]} : vector<32x384xbf16> to vector<32x32xbf16>
    %56 = vector.shape_cast %55 : vector<32x32xbf16> to vector<2x16x32xbf16>
    %57 = tpu.concatenate %50, %52, %54, %56 in 0 : vector<2x16x32xbf16>, vector<2x16x32xbf16>, vector<2x16x32xbf16>, vector<2x16x32xbf16> -> vector<8x16x32xbf16>
    %58 = vector.extract_strided_slice %39 {offsets = [0, 256], sizes = [32, 32], strides = [1, 1]} : vector<32x384xbf16> to vector<32x32xbf16>
    %59 = vector.shape_cast %58 : vector<32x32xbf16> to vector<2x16x32xbf16>
    %60 = vector.extract_strided_slice %39 {offsets = [0, 288], sizes = [32, 32], strides = [1, 1]} : vector<32x384xbf16> to vector<32x32xbf16>
    %61 = vector.shape_cast %60 : vector<32x32xbf16> to vector<2x16x32xbf16>
    %62 = vector.extract_strided_slice %39 {offsets = [0, 320], sizes = [32, 32], strides = [1, 1]} : vector<32x384xbf16> to vector<32x32xbf16>
    %63 = vector.shape_cast %62 : vector<32x32xbf16> to vector<2x16x32xbf16>
    %64 = vector.extract_strided_slice %39 {offsets = [0, 352], sizes = [32, 32], strides = [1, 1]} : vector<32x384xbf16> to vector<32x32xbf16>
    %65 = vector.shape_cast %64 : vector<32x32xbf16> to vector<2x16x32xbf16>
    %66 = tpu.concatenate %59, %61, %63, %65 in 0 : vector<2x16x32xbf16>, vector<2x16x32xbf16>, vector<2x16x32xbf16>, vector<2x16x32xbf16> -> vector<8x16x32xbf16>
    "tpu.trace_start"() <{level = 10 : i32, message = "gnd,gmd->gnm"}> : () -> ()
    %cst_22 = arith.constant dense<0.000000e+00> : vector<8x16x16xf32>
    %67 = tpu.matmul %48, %57, %cst_22 {dimension_numbers = #tpu.dot_dimension_numbers<[2], [2], [1], [1], [0, 0, 0, 1, 1, 1], [0], [0]>} : vector<8x16x32xbf16>, vector<8x16x32xbf16>, vector<8x16x16xf32> -> vector<8x16x16xf32>
    "tpu.trace_stop"() : () -> ()
    %cst_23 = arith.constant dense<0xFF800000> : vector<8x16xf32>
    %68 = vector.multi_reduction <maximumf>, %67, %cst_23 [2] : vector<8x16x16xf32> to vector<8x16xf32>
    %69 = vector.shape_cast %68 : vector<8x16xf32> to vector<8x16x1xf32>
    %70 = vector.broadcast %69 : vector<8x16x1xf32> to vector<8x16x16xf32>
    %71 = arith.subf %67, %70 : vector<8x16x16xf32>
    %72 = math.exp %71 : vector<8x16x16xf32>
    %cst_24 = arith.constant dense<0.000000e+00> : vector<8x16xf32>
    %73 = vector.multi_reduction <add>, %72, %cst_24 [2] : vector<8x16x16xf32> to vector<8x16xf32>
    %74 = vector.shape_cast %73 : vector<8x16xf32> to vector<8x16x1xf32>
    %75 = tpu.reciprocal %74 {approx = true} : vector<8x16x1xf32> -> vector<8x16x1xf32>
    %76 = vector.broadcast %75 : vector<8x16x1xf32> to vector<8x16x16xf32>
    %77 = arith.mulf %72, %76 : vector<8x16x16xf32>
    %78 = arith.truncf %77 : vector<8x16x16xf32> to vector<8x16x16xbf16>
    "tpu.trace_start"() <{level = 10 : i32, message = "gnm,gmd->gnd"}> : () -> ()
    %cst_25 = arith.constant dense<0.000000e+00> : vector<8x16x32xf32>
    %79 = tpu.matmul %78, %66, %cst_25 {dimension_numbers = #tpu.dot_dimension_numbers<[2], [1], [1], [2], [0, 0, 0, 1, 1, 2], [0], [0]>} : vector<8x16x16xbf16>, vector<8x16x32xbf16>, vector<8x16x32xf32> -> vector<8x16x32xf32>
    "tpu.trace_stop"() : () -> ()
    %80 = vector.extract_strided_slice %79 {offsets = [0, 0, 0], sizes = [2, 16, 32], strides = [1, 1, 1]} : vector<8x16x32xf32> to vector<2x16x32xf32>
    %81 = vector.extract_strided_slice %79 {offsets = [2, 0, 0], sizes = [2, 16, 32], strides = [1, 1, 1]} : vector<8x16x32xf32> to vector<2x16x32xf32>
    %82 = vector.extract_strided_slice %79 {offsets = [4, 0, 0], sizes = [2, 16, 32], strides = [1, 1, 1]} : vector<8x16x32xf32> to vector<2x16x32xf32>
    %83 = vector.extract_strided_slice %79 {offsets = [6, 0, 0], sizes = [2, 16, 32], strides = [1, 1, 1]} : vector<8x16x32xf32> to vector<2x16x32xf32>
    %84 = tpu.concatenate %80, %81, %82, %83 in 2 : vector<2x16x32xf32>, vector<2x16x32xf32>, vector<2x16x32xf32>, vector<2x16x32xf32> -> vector<2x16x128xf32>
    %85 = vector.shape_cast %84 : vector<2x16x128xf32> to vector<32x128xf32>
    %86 = arith.truncf %85 : vector<32x128xf32> to vector<32x128xbf16>
    %c0_26 = arith.constant 0 : index
    %c0_27 = arith.constant 0 : index
    %c0_28 = arith.constant 0 : index
    %87 = vector.load %arg9[%c0_26, %c0_27, %c0_28] : memref<2x128x128xbf16, #tpu.memory_space<vmem>>, vector<1x128x128xbf16>
    %88 = vector.shape_cast %87 : vector<1x128x128xbf16> to vector<128x128xbf16>
    %cst_29 = arith.constant dense<0.000000e+00> : vector<32x128xf32>
    %89 = tpu.matmul %86, %88, %cst_29 {dimension_numbers = #tpu.dot_dimension_numbers<[1], [0], [0], [1], [0, 0, 1, 1], [], []>} : vector<32x128xbf16>, vector<128x128xbf16>, vector<32x128xf32> -> vector<32x128xf32>
    %90 = arith.addf %7, %89 : vector<32x128xf32>
    %c0_30 = arith.constant 0 : index
    %c0_31 = arith.constant 0 : index
    %91 = vector.load %arg10[%c0_30, %c0_31] : memref<2x128xf32, #tpu.memory_space<vmem>>, vector<1x128xf32>
    %92 = vector.broadcast %91 : vector<1x128xf32> to vector<32x128xf32>
    %93 = arith.addf %90, %92 : vector<32x128xf32>
    %c0_32 = arith.constant 0 : index
    %c0_33 = arith.constant 0 : index
    %94 = vector.load %arg11[%c0_32, %c0_33] : memref<2x128xf32, #tpu.memory_space<vmem>>, vector<1x128xf32>
    %c0_34 = arith.constant 0 : index
    %c0_35 = arith.constant 0 : index
    %95 = vector.load %arg12[%c0_34, %c0_35] : memref<2x128xf32, #tpu.memory_space<vmem>>, vector<1x128xf32>
    %cst_36 = arith.constant dense<0.000000e+00> : vector<32xf32>
    %96 = vector.multi_reduction <add>, %93, %cst_36 [1] : vector<32x128xf32> to vector<32xf32>
    %97 = vector.shape_cast %96 : vector<32xf32> to vector<32x1xf32>
    %cst_37 = arith.constant 1.280000e+02 : f32
    %98 = vector.broadcast %cst_37 : f32 to vector<32x1xf32>
    %99 = arith.divf %97, %98 : vector<32x1xf32>
    %100 = vector.broadcast %99 : vector<32x1xf32> to vector<32x128xf32>
    %101 = arith.subf %93, %100 : vector<32x128xf32>
    %102 = arith.mulf %101, %101 : vector<32x128xf32>
    %cst_38 = arith.constant dense<0.000000e+00> : vector<32xf32>
    %103 = vector.multi_reduction <add>, %102, %cst_38 [1] : vector<32x128xf32> to vector<32xf32>
    %104 = vector.shape_cast %103 : vector<32xf32> to vector<32x1xf32>
    %cst_39 = arith.constant 1.280000e+02 : f32
    %105 = vector.broadcast %cst_39 : f32 to vector<32x1xf32>
    %106 = arith.divf %104, %105 : vector<32x1xf32>
    %107 = vector.broadcast %99 : vector<32x1xf32> to vector<32x128xf32>
    %108 = arith.subf %93, %107 : vector<32x128xf32>
    %cst_40 = arith.constant 9.99999974E-6 : f32
    %109 = vector.broadcast %cst_40 : f32 to vector<32x1xf32>
    %110 = arith.addf %106, %109 : vector<32x1xf32>
    %111 = math.rsqrt %110 : vector<32x1xf32>
    %112 = vector.broadcast %111 : vector<32x1xf32> to vector<32x128xf32>
    %113 = arith.mulf %108, %112 : vector<32x128xf32>
    %114 = vector.broadcast %94 : vector<1x128xf32> to vector<32x128xf32>
    %115 = arith.mulf %113, %114 : vector<32x128xf32>
    %116 = vector.broadcast %95 : vector<1x128xf32> to vector<32x128xf32>
    %117 = arith.addf %115, %116 : vector<32x128xf32>
    %118 = arith.truncf %117 : vector<32x128xf32> to vector<32x128xbf16>
    %c0_41 = arith.constant 0 : index
    %c0_42 = arith.constant 0 : index
    %c0_43 = arith.constant 0 : index
    %119 = vector.load %arg13[%c0_41, %c0_42, %c0_43] : memref<2x128x512xbf16, #tpu.memory_space<vmem>>, vector<1x128x512xbf16>
    %120 = vector.shape_cast %119 : vector<1x128x512xbf16> to vector<128x512xbf16>
    %cst_44 = arith.constant dense<0.000000e+00> : vector<32x512xf32>
    %121 = tpu.matmul %118, %120, %cst_44 {dimension_numbers = #tpu.dot_dimension_numbers<[1], [0], [0], [1], [0, 0, 1, 1], [], []>} : vector<32x128xbf16>, vector<128x512xbf16>, vector<32x512xf32> -> vector<32x512xf32>
    %c0_45 = arith.constant 0 : index
    %c0_46 = arith.constant 0 : index
    %122 = vector.load %arg14[%c0_45, %c0_46] : memref<2x512xf32, #tpu.memory_space<vmem>>, vector<1x512xf32>
    %123 = vector.broadcast %122 : vector<1x512xf32> to vector<32x512xf32>
    %124 = arith.addf %121, %123 : vector<32x512xf32>
    %cst_47 = arith.constant 5.000000e-01 : f32
    %125 = vector.broadcast %cst_47 : f32 to vector<32x512xf32>
    %126 = arith.mulf %125, %124 : vector<32x512xf32>
    %cst_48 = arith.constant 4.471500e-02 : f32
    %127 = vector.broadcast %cst_48 : f32 to vector<32x512xf32>
    %128 = arith.mulf %127, %124 : vector<32x512xf32>
    %129 = arith.mulf %128, %124 : vector<32x512xf32>
    %130 = arith.mulf %129, %124 : vector<32x512xf32>
    %131 = arith.addf %124, %130 : vector<32x512xf32>
    %cst_49 = arith.constant 0.797884583 : f32
    %132 = vector.broadcast %cst_49 : f32 to vector<32x512xf32>
    %133 = arith.mulf %132, %131 : vector<32x512xf32>
    %134 = math.tanh %133 : vector<32x512xf32>
    %cst_50 = arith.constant 1.000000e+00 : f32
    %135 = vector.broadcast %cst_50 : f32 to vector<32x512xf32>
    %136 = arith.addf %135, %134 : vector<32x512xf32>
    %137 = arith.mulf %126, %136 : vector<32x512xf32>
    %138 = arith.truncf %137 : vector<32x512xf32> to vector<32x512xbf16>
    %c0_51 = arith.constant 0 : index
    %c0_52 = arith.constant 0 : index
    %c0_53 = arith.constant 0 : index
    %139 = vector.load %arg15[%c0_51, %c0_52, %c0_53] : memref<2x512x128xbf16, #tpu.memory_space<vmem>>, vector<1x512x128xbf16>
    %140 = vector.shape_cast %139 : vector<1x512x128xbf16> to vector<512x128xbf16>
    %cst_54 = arith.constant dense<0.000000e+00> : vector<32x128xf32>
    %141 = tpu.matmul %138, %140, %cst_54 {dimension_numbers = #tpu.dot_dimension_numbers<[1], [0], [0], [1], [0, 0, 1, 1], [], []>} : vector<32x512xbf16>, vector<512x128xbf16>, vector<32x128xf32> -> vector<32x128xf32>
    %c0_55 = arith.constant 0 : index
    %c0_56 = arith.constant 0 : index
    %142 = vector.load %arg16[%c0_55, %c0_56] : memref<2x128xf32, #tpu.memory_space<vmem>>, vector<1x128xf32>
    %143 = vector.broadcast %142 : vector<1x128xf32> to vector<32x128xf32>
    %144 = arith.addf %141, %143 : vector<32x128xf32>
    %145 = arith.addf %93, %144 : vector<32x128xf32>
    %c1 = arith.constant 1 : index
    %c0_57 = arith.constant 0 : index
    %146 = vector.load %arg5[%c1, %c0_57] : memref<2x128xf32, #tpu.memory_space<vmem>>, vector<1x128xf32>
    %c1_58 = arith.constant 1 : index
    %c0_59 = arith.constant 0 : index
    %147 = vector.load %arg6[%c1_58, %c0_59] : memref<2x128xf32, #tpu.memory_space<vmem>>, vector<1x128xf32>
    %cst_60 = arith.constant dense<0.000000e+00> : vector<32xf32>
    %148 = vector.multi_reduction <add>, %145, %cst_60 [1] : vector<32x128xf32> to vector<32xf32>
    %149 = vector.shape_cast %148 : vector<32xf32> to vector<32x1xf32>
    %cst_61 = arith.constant 1.280000e+02 : f32
    %150 = vector.broadcast %cst_61 : f32 to vector<32x1xf32>
    %151 = arith.divf %149, %150 : vector<32x1xf32>
    %152 = vector.broadcast %151 : vector<32x1xf32> to vector<32x128xf32>
    %153 = arith.subf %145, %152 : vector<32x128xf32>
    %154 = arith.mulf %153, %153 : vector<32x128xf32>
    %cst_62 = arith.constant dense<0.000000e+00> : vector<32xf32>
    %155 = vector.multi_reduction <add>, %154, %cst_62 [1] : vector<32x128xf32> to vector<32xf32>
    %156 = vector.shape_cast %155 : vector<32xf32> to vector<32x1xf32>
    %cst_63 = arith.constant 1.280000e+02 : f32
    %157 = vector.broadcast %cst_63 : f32 to vector<32x1xf32>
    %158 = arith.divf %156, %157 : vector<32x1xf32>
    %159 = vector.broadcast %151 : vector<32x1xf32> to vector<32x128xf32>
    %160 = arith.subf %145, %159 : vector<32x128xf32>
    %cst_64 = arith.constant 9.99999974E-6 : f32
    %161 = vector.broadcast %cst_64 : f32 to vector<32x1xf32>
    %162 = arith.addf %158, %161 : vector<32x1xf32>
    %163 = math.rsqrt %162 : vector<32x1xf32>
    %164 = vector.broadcast %163 : vector<32x1xf32> to vector<32x128xf32>
    %165 = arith.mulf %160, %164 : vector<32x128xf32>
    %166 = vector.broadcast %146 : vector<1x128xf32> to vector<32x128xf32>
    %167 = arith.mulf %165, %166 : vector<32x128xf32>
    %168 = vector.broadcast %147 : vector<1x128xf32> to vector<32x128xf32>
    %169 = arith.addf %167, %168 : vector<32x128xf32>
    %170 = arith.truncf %169 : vector<32x128xf32> to vector<32x128xbf16>
    %c1_65 = arith.constant 1 : index
    %c0_66 = arith.constant 0 : index
    %c0_67 = arith.constant 0 : index
    %171 = vector.load %arg7[%c1_65, %c0_66, %c0_67] : memref<2x128x384xbf16, #tpu.memory_space<vmem>>, vector<1x128x384xbf16>
    %172 = vector.shape_cast %171 : vector<1x128x384xbf16> to vector<128x384xbf16>
    %cst_68 = arith.constant dense<0.000000e+00> : vector<32x384xf32>
    %173 = tpu.matmul %170, %172, %cst_68 {dimension_numbers = #tpu.dot_dimension_numbers<[1], [0], [0], [1], [0, 0, 1, 1], [], []>} : vector<32x128xbf16>, vector<128x384xbf16>, vector<32x384xf32> -> vector<32x384xf32>
    %c1_69 = arith.constant 1 : index
    %c0_70 = arith.constant 0 : index
    %174 = vector.load %arg8[%c1_69, %c0_70] : memref<2x384xf32, #tpu.memory_space<vmem>>, vector<1x384xf32>
    %175 = vector.broadcast %174 : vector<1x384xf32> to vector<32x384xf32>
    %176 = arith.addf %173, %175 : vector<32x384xf32>
    %177 = arith.truncf %176 : vector<32x384xf32> to vector<32x384xbf16>
    %178 = vector.extract_strided_slice %177 {offsets = [0, 0], sizes = [32, 32], strides = [1, 1]} : vector<32x384xbf16> to vector<32x32xbf16>
    %179 = vector.shape_cast %178 : vector<32x32xbf16> to vector<2x16x32xbf16>
    %180 = vector.extract_strided_slice %177 {offsets = [0, 32], sizes = [32, 32], strides = [1, 1]} : vector<32x384xbf16> to vector<32x32xbf16>
    %181 = vector.shape_cast %180 : vector<32x32xbf16> to vector<2x16x32xbf16>
    %182 = vector.extract_strided_slice %177 {offsets = [0, 64], sizes = [32, 32], strides = [1, 1]} : vector<32x384xbf16> to vector<32x32xbf16>
    %183 = vector.shape_cast %182 : vector<32x32xbf16> to vector<2x16x32xbf16>
    %184 = vector.extract_strided_slice %177 {offsets = [0, 96], sizes = [32, 32], strides = [1, 1]} : vector<32x384xbf16> to vector<32x32xbf16>
    %185 = vector.shape_cast %184 : vector<32x32xbf16> to vector<2x16x32xbf16>
    %186 = tpu.concatenate %179, %181, %183, %185 in 0 : vector<2x16x32xbf16>, vector<2x16x32xbf16>, vector<2x16x32xbf16>, vector<2x16x32xbf16> -> vector<8x16x32xbf16>
    %187 = vector.extract_strided_slice %177 {offsets = [0, 128], sizes = [32, 32], strides = [1, 1]} : vector<32x384xbf16> to vector<32x32xbf16>
    %188 = vector.shape_cast %187 : vector<32x32xbf16> to vector<2x16x32xbf16>
    %189 = vector.extract_strided_slice %177 {offsets = [0, 160], sizes = [32, 32], strides = [1, 1]} : vector<32x384xbf16> to vector<32x32xbf16>
    %190 = vector.shape_cast %189 : vector<32x32xbf16> to vector<2x16x32xbf16>
    %191 = vector.extract_strided_slice %177 {offsets = [0, 192], sizes = [32, 32], strides = [1, 1]} : vector<32x384xbf16> to vector<32x32xbf16>
    %192 = vector.shape_cast %191 : vector<32x32xbf16> to vector<2x16x32xbf16>
    %193 = vector.extract_strided_slice %177 {offsets = [0, 224], sizes = [32, 32], strides = [1, 1]} : vector<32x384xbf16> to vector<32x32xbf16>
    %194 = vector.shape_cast %193 : vector<32x32xbf16> to vector<2x16x32xbf16>
    %195 = tpu.concatenate %188, %190, %192, %194 in 0 : vector<2x16x32xbf16>, vector<2x16x32xbf16>, vector<2x16x32xbf16>, vector<2x16x32xbf16> -> vector<8x16x32xbf16>
    %196 = vector.extract_strided_slice %177 {offsets = [0, 256], sizes = [32, 32], strides = [1, 1]} : vector<32x384xbf16> to vector<32x32xbf16>
    %197 = vector.shape_cast %196 : vector<32x32xbf16> to vector<2x16x32xbf16>
    %198 = vector.extract_strided_slice %177 {offsets = [0, 288], sizes = [32, 32], strides = [1, 1]} : vector<32x384xbf16> to vector<32x32xbf16>
    %199 = vector.shape_cast %198 : vector<32x32xbf16> to vector<2x16x32xbf16>
    %200 = vector.extract_strided_slice %177 {offsets = [0, 320], sizes = [32, 32], strides = [1, 1]} : vector<32x384xbf16> to vector<32x32xbf16>
    %201 = vector.shape_cast %200 : vector<32x32xbf16> to vector<2x16x32xbf16>
    %202 = vector.extract_strided_slice %177 {offsets = [0, 352], sizes = [32, 32], strides = [1, 1]} : vector<32x384xbf16> to vector<32x32xbf16>
    %203 = vector.shape_cast %202 : vector<32x32xbf16> to vector<2x16x32xbf16>
    %204 = tpu.concatenate %197, %199, %201, %203 in 0 : vector<2x16x32xbf16>, vector<2x16x32xbf16>, vector<2x16x32xbf16>, vector<2x16x32xbf16> -> vector<8x16x32xbf16>
    "tpu.trace_start"() <{level = 10 : i32, message = "gnd,gmd->gnm"}> : () -> ()
    %cst_71 = arith.constant dense<0.000000e+00> : vector<8x16x16xf32>
    %205 = tpu.matmul %186, %195, %cst_71 {dimension_numbers = #tpu.dot_dimension_numbers<[2], [2], [1], [1], [0, 0, 0, 1, 1, 1], [0], [0]>} : vector<8x16x32xbf16>, vector<8x16x32xbf16>, vector<8x16x16xf32> -> vector<8x16x16xf32>
    "tpu.trace_stop"() : () -> ()
    %cst_72 = arith.constant dense<0xFF800000> : vector<8x16xf32>
    %206 = vector.multi_reduction <maximumf>, %205, %cst_72 [2] : vector<8x16x16xf32> to vector<8x16xf32>
    %207 = vector.shape_cast %206 : vector<8x16xf32> to vector<8x16x1xf32>
    %208 = vector.broadcast %207 : vector<8x16x1xf32> to vector<8x16x16xf32>
    %209 = arith.subf %205, %208 : vector<8x16x16xf32>
    %210 = math.exp %209 : vector<8x16x16xf32>
    %cst_73 = arith.constant dense<0.000000e+00> : vector<8x16xf32>
    %211 = vector.multi_reduction <add>, %210, %cst_73 [2] : vector<8x16x16xf32> to vector<8x16xf32>
    %212 = vector.shape_cast %211 : vector<8x16xf32> to vector<8x16x1xf32>
    %213 = tpu.reciprocal %212 {approx = true} : vector<8x16x1xf32> -> vector<8x16x1xf32>
    %214 = vector.broadcast %213 : vector<8x16x1xf32> to vector<8x16x16xf32>
    %215 = arith.mulf %210, %214 : vector<8x16x16xf32>
    %216 = arith.truncf %215 : vector<8x16x16xf32> to vector<8x16x16xbf16>
    "tpu.trace_start"() <{level = 10 : i32, message = "gnm,gmd->gnd"}> : () -> ()
    %cst_74 = arith.constant dense<0.000000e+00> : vector<8x16x32xf32>
    %217 = tpu.matmul %216, %204, %cst_74 {dimension_numbers = #tpu.dot_dimension_numbers<[2], [1], [1], [2], [0, 0, 0, 1, 1, 2], [0], [0]>} : vector<8x16x16xbf16>, vector<8x16x32xbf16>, vector<8x16x32xf32> -> vector<8x16x32xf32>
    "tpu.trace_stop"() : () -> ()
    %218 = vector.extract_strided_slice %217 {offsets = [0, 0, 0], sizes = [2, 16, 32], strides = [1, 1, 1]} : vector<8x16x32xf32> to vector<2x16x32xf32>
    %219 = vector.extract_strided_slice %217 {offsets = [2, 0, 0], sizes = [2, 16, 32], strides = [1, 1, 1]} : vector<8x16x32xf32> to vector<2x16x32xf32>
    %220 = vector.extract_strided_slice %217 {offsets = [4, 0, 0], sizes = [2, 16, 32], strides = [1, 1, 1]} : vector<8x16x32xf32> to vector<2x16x32xf32>
    %221 = vector.extract_strided_slice %217 {offsets = [6, 0, 0], sizes = [2, 16, 32], strides = [1, 1, 1]} : vector<8x16x32xf32> to vector<2x16x32xf32>
    %222 = tpu.concatenate %218, %219, %220, %221 in 2 : vector<2x16x32xf32>, vector<2x16x32xf32>, vector<2x16x32xf32>, vector<2x16x32xf32> -> vector<2x16x128xf32>
    %223 = vector.shape_cast %222 : vector<2x16x128xf32> to vector<32x128xf32>
    %224 = arith.truncf %223 : vector<32x128xf32> to vector<32x128xbf16>
    %c1_75 = arith.constant 1 : index
    %c0_76 = arith.constant 0 : index
    %c0_77 = arith.constant 0 : index
    %225 = vector.load %arg9[%c1_75, %c0_76, %c0_77] : memref<2x128x128xbf16, #tpu.memory_space<vmem>>, vector<1x128x128xbf16>
    %226 = vector.shape_cast %225 : vector<1x128x128xbf16> to vector<128x128xbf16>
    %cst_78 = arith.constant dense<0.000000e+00> : vector<32x128xf32>
    %227 = tpu.matmul %224, %226, %cst_78 {dimension_numbers = #tpu.dot_dimension_numbers<[1], [0], [0], [1], [0, 0, 1, 1], [], []>} : vector<32x128xbf16>, vector<128x128xbf16>, vector<32x128xf32> -> vector<32x128xf32>
    %228 = arith.addf %145, %227 : vector<32x128xf32>
    %c1_79 = arith.constant 1 : index
    %c0_80 = arith.constant 0 : index
    %229 = vector.load %arg10[%c1_79, %c0_80] : memref<2x128xf32, #tpu.memory_space<vmem>>, vector<1x128xf32>
    %230 = vector.broadcast %229 : vector<1x128xf32> to vector<32x128xf32>
    %231 = arith.addf %228, %230 : vector<32x128xf32>
    %c1_81 = arith.constant 1 : index
    %c0_82 = arith.constant 0 : index
    %232 = vector.load %arg11[%c1_81, %c0_82] : memref<2x128xf32, #tpu.memory_space<vmem>>, vector<1x128xf32>
    %c1_83 = arith.constant 1 : index
    %c0_84 = arith.constant 0 : index
    %233 = vector.load %arg12[%c1_83, %c0_84] : memref<2x128xf32, #tpu.memory_space<vmem>>, vector<1x128xf32>
    %cst_85 = arith.constant dense<0.000000e+00> : vector<32xf32>
    %234 = vector.multi_reduction <add>, %231, %cst_85 [1] : vector<32x128xf32> to vector<32xf32>
    %235 = vector.shape_cast %234 : vector<32xf32> to vector<32x1xf32>
    %cst_86 = arith.constant 1.280000e+02 : f32
    %236 = vector.broadcast %cst_86 : f32 to vector<32x1xf32>
    %237 = arith.divf %235, %236 : vector<32x1xf32>
    %238 = vector.broadcast %237 : vector<32x1xf32> to vector<32x128xf32>
    %239 = arith.subf %231, %238 : vector<32x128xf32>
    %240 = arith.mulf %239, %239 : vector<32x128xf32>
    %cst_87 = arith.constant dense<0.000000e+00> : vector<32xf32>
    %241 = vector.multi_reduction <add>, %240, %cst_87 [1] : vector<32x128xf32> to vector<32xf32>
    %242 = vector.shape_cast %241 : vector<32xf32> to vector<32x1xf32>
    %cst_88 = arith.constant 1.280000e+02 : f32
    %243 = vector.broadcast %cst_88 : f32 to vector<32x1xf32>
    %244 = arith.divf %242, %243 : vector<32x1xf32>
    %245 = vector.broadcast %237 : vector<32x1xf32> to vector<32x128xf32>
    %246 = arith.subf %231, %245 : vector<32x128xf32>
    %cst_89 = arith.constant 9.99999974E-6 : f32
    %247 = vector.broadcast %cst_89 : f32 to vector<32x1xf32>
    %248 = arith.addf %244, %247 : vector<32x1xf32>
    %249 = math.rsqrt %248 : vector<32x1xf32>
    %250 = vector.broadcast %249 : vector<32x1xf32> to vector<32x128xf32>
    %251 = arith.mulf %246, %250 : vector<32x128xf32>
    %252 = vector.broadcast %232 : vector<1x128xf32> to vector<32x128xf32>
    %253 = arith.mulf %251, %252 : vector<32x128xf32>
    %254 = vector.broadcast %233 : vector<1x128xf32> to vector<32x128xf32>
    %255 = arith.addf %253, %254 : vector<32x128xf32>
    %256 = arith.truncf %255 : vector<32x128xf32> to vector<32x128xbf16>
    %c1_90 = arith.constant 1 : index
    %c0_91 = arith.constant 0 : index
    %c0_92 = arith.constant 0 : index
    %257 = vector.load %arg13[%c1_90, %c0_91, %c0_92] : memref<2x128x512xbf16, #tpu.memory_space<vmem>>, vector<1x128x512xbf16>
    %258 = vector.shape_cast %257 : vector<1x128x512xbf16> to vector<128x512xbf16>
    %cst_93 = arith.constant dense<0.000000e+00> : vector<32x512xf32>
    %259 = tpu.matmul %256, %258, %cst_93 {dimension_numbers = #tpu.dot_dimension_numbers<[1], [0], [0], [1], [0, 0, 1, 1], [], []>} : vector<32x128xbf16>, vector<128x512xbf16>, vector<32x512xf32> -> vector<32x512xf32>
    %c1_94 = arith.constant 1 : index
    %c0_95 = arith.constant 0 : index
    %260 = vector.load %arg14[%c1_94, %c0_95] : memref<2x512xf32, #tpu.memory_space<vmem>>, vector<1x512xf32>
    %261 = vector.broadcast %260 : vector<1x512xf32> to vector<32x512xf32>
    %262 = arith.addf %259, %261 : vector<32x512xf32>
    %cst_96 = arith.constant 5.000000e-01 : f32
    %263 = vector.broadcast %cst_96 : f32 to vector<32x512xf32>
    %264 = arith.mulf %263, %262 : vector<32x512xf32>
    %cst_97 = arith.constant 4.471500e-02 : f32
    %265 = vector.broadcast %cst_97 : f32 to vector<32x512xf32>
    %266 = arith.mulf %265, %262 : vector<32x512xf32>
    %267 = arith.mulf %266, %262 : vector<32x512xf32>
    %268 = arith.mulf %267, %262 : vector<32x512xf32>
    %269 = arith.addf %262, %268 : vector<32x512xf32>
    %cst_98 = arith.constant 0.797884583 : f32
    %270 = vector.broadcast %cst_98 : f32 to vector<32x512xf32>
    %271 = arith.mulf %270, %269 : vector<32x512xf32>
    %272 = math.tanh %271 : vector<32x512xf32>
    %cst_99 = arith.constant 1.000000e+00 : f32
    %273 = vector.broadcast %cst_99 : f32 to vector<32x512xf32>
    %274 = arith.addf %273, %272 : vector<32x512xf32>
    %275 = arith.mulf %264, %274 : vector<32x512xf32>
    %276 = arith.truncf %275 : vector<32x512xf32> to vector<32x512xbf16>
    %c1_100 = arith.constant 1 : index
    %c0_101 = arith.constant 0 : index
    %c0_102 = arith.constant 0 : index
    %277 = vector.load %arg15[%c1_100, %c0_101, %c0_102] : memref<2x512x128xbf16, #tpu.memory_space<vmem>>, vector<1x512x128xbf16>
    %278 = vector.shape_cast %277 : vector<1x512x128xbf16> to vector<512x128xbf16>
    %cst_103 = arith.constant dense<0.000000e+00> : vector<32x128xf32>
    %279 = tpu.matmul %276, %278, %cst_103 {dimension_numbers = #tpu.dot_dimension_numbers<[1], [0], [0], [1], [0, 0, 1, 1], [], []>} : vector<32x512xbf16>, vector<512x128xbf16>, vector<32x128xf32> -> vector<32x128xf32>
    %c1_104 = arith.constant 1 : index
    %c0_105 = arith.constant 0 : index
    %280 = vector.load %arg16[%c1_104, %c0_105] : memref<2x128xf32, #tpu.memory_space<vmem>>, vector<1x128xf32>
    %281 = vector.broadcast %280 : vector<1x128xf32> to vector<32x128xf32>
    %282 = arith.addf %279, %281 : vector<32x128xf32>
    %283 = arith.addf %231, %282 : vector<32x128xf32>
    %c0_106 = arith.constant 0 : index
    %c0_107 = arith.constant 0 : index
    %284 = vector.load %arg17[%c0_106, %c0_107] : memref<1x128xf32, #tpu.memory_space<vmem>>, vector<1x128xf32>
    %c0_108 = arith.constant 0 : index
    %c0_109 = arith.constant 0 : index
    %285 = vector.load %arg18[%c0_108, %c0_109] : memref<1x128xf32, #tpu.memory_space<vmem>>, vector<1x128xf32>
    %cst_110 = arith.constant dense<0.000000e+00> : vector<32xf32>
    %286 = vector.multi_reduction <add>, %283, %cst_110 [1] : vector<32x128xf32> to vector<32xf32>
    %287 = vector.shape_cast %286 : vector<32xf32> to vector<32x1xf32>
    %cst_111 = arith.constant 1.280000e+02 : f32
    %288 = vector.broadcast %cst_111 : f32 to vector<32x1xf32>
    %289 = arith.divf %287, %288 : vector<32x1xf32>
    %290 = vector.broadcast %289 : vector<32x1xf32> to vector<32x128xf32>
    %291 = arith.subf %283, %290 : vector<32x128xf32>
    %292 = arith.mulf %291, %291 : vector<32x128xf32>
    %cst_112 = arith.constant dense<0.000000e+00> : vector<32xf32>
    %293 = vector.multi_reduction <add>, %292, %cst_112 [1] : vector<32x128xf32> to vector<32xf32>
    %294 = vector.shape_cast %293 : vector<32xf32> to vector<32x1xf32>
    %cst_113 = arith.constant 1.280000e+02 : f32
    %295 = vector.broadcast %cst_113 : f32 to vector<32x1xf32>
    %296 = arith.divf %294, %295 : vector<32x1xf32>
    %297 = vector.broadcast %289 : vector<32x1xf32> to vector<32x128xf32>
    %298 = arith.subf %283, %297 : vector<32x128xf32>
    %cst_114 = arith.constant 9.99999974E-6 : f32
    %299 = vector.broadcast %cst_114 : f32 to vector<32x1xf32>
    %300 = arith.addf %296, %299 : vector<32x1xf32>
    %301 = math.rsqrt %300 : vector<32x1xf32>
    %302 = vector.broadcast %301 : vector<32x1xf32> to vector<32x128xf32>
    %303 = arith.mulf %298, %302 : vector<32x128xf32>
    %304 = vector.broadcast %284 : vector<1x128xf32> to vector<32x128xf32>
    %305 = arith.mulf %303, %304 : vector<32x128xf32>
    %306 = vector.broadcast %285 : vector<1x128xf32> to vector<32x128xf32>
    %307 = arith.addf %305, %306 : vector<32x128xf32>
    %308 = vector.shape_cast %307 : vector<32x128xf32> to vector<2x16x128xf32>
    %c0_115 = arith.constant 0 : index
    %c0_116 = arith.constant 0 : index
    %c0_117 = arith.constant 0 : index
    %309 = vector.load %arg26[%c0_115, %c0_116, %c0_117] : memref<2x16x128xf32, #tpu.memory_space<vmem>>, vector<2x16x128xf32>
    tpu.vector_store %arg26[%c0_115, %c0_116, %c0_117], %308 {strides = array<i32>} : memref<2x16x128xf32, #tpu.memory_space<vmem>>, vector<2x16x128xf32>,
    tpu.wait_dma2 semaphore(%arg28 : memref<!tpu.dma_semaphore, #tpu.memory_space<semaphore_mem>>) src(%arg19 : memref<16x128x512xbf16, #tpu.memory_space<any>>) dst(%arg27 : memref<16x128x512xbf16, #tpu.memory_space<vmem>>)
    %310 = arith.truncf %308 : vector<2x16x128xf32> to vector<2x16x128xbf16>
    %cst_118 = arith.constant 0.000000e+00 : f32
    %311 = vector.broadcast %cst_118 : f32 to vector<2x512xf32>
    %312 = vector.extract_strided_slice %310 {offsets = [0, 0, 0], sizes = [2, 1, 128], strides = [1, 1, 1]} : vector<2x16x128xbf16> to vector<2x1x128xbf16>
    %313 = vector.shape_cast %312 : vector<2x1x128xbf16> to vector<2x128xbf16>
    %c0_119 = arith.constant 0 : index
    %c0_120 = arith.constant 0 : index
    %c0_121 = arith.constant 0 : index
    %314 = vector.load %arg27[%c0_119, %c0_120, %c0_121] : memref<16x128x512xbf16, #tpu.memory_space<vmem>>, vector<1x128x512xbf16>
    %315 = vector.shape_cast %314 : vector<1x128x512xbf16> to vector<128x512xbf16>
    %cst_122 = arith.constant dense<0.000000e+00> : vector<2x512xf32>
    %316 = tpu.matmul %313, %315, %cst_122 {dimension_numbers = #tpu.dot_dimension_numbers<[1], [0], [0], [1], [0, 0, 1, 1], [], []>} : vector<2x128xbf16>, vector<128x512xbf16>, vector<2x512xf32> -> vector<2x512xf32>
    %317 = arith.addf %311, %316 : vector<2x512xf32>
    %318 = vector.extract_strided_slice %310 {offsets = [0, 1, 0], sizes = [2, 1, 128], strides = [1, 1, 1]} : vector<2x16x128xbf16> to vector<2x1x128xbf16>
    %319 = vector.shape_cast %318 : vector<2x1x128xbf16> to vector<2x128xbf16>
    %c1_123 = arith.constant 1 : index
    %c0_124 = arith.constant 0 : index
    %c0_125 = arith.constant 0 : index
    %320 = vector.load %arg27[%c1_123, %c0_124, %c0_125] : memref<16x128x512xbf16, #tpu.memory_space<vmem>>, vector<1x128x512xbf16>
    %321 = vector.shape_cast %320 : vector<1x128x512xbf16> to vector<128x512xbf16>
    %cst_126 = arith.constant dense<0.000000e+00> : vector<2x512xf32>
    %322 = tpu.matmul %319, %321, %cst_126 {dimension_numbers = #tpu.dot_dimension_numbers<[1], [0], [0], [1], [0, 0, 1, 1], [], []>} : vector<2x128xbf16>, vector<128x512xbf16>, vector<2x512xf32> -> vector<2x512xf32>
    %323 = arith.addf %317, %322 : vector<2x512xf32>
    %324 = vector.extract_strided_slice %310 {offsets = [0, 2, 0], sizes = [2, 1, 128], strides = [1, 1, 1]} : vector<2x16x128xbf16> to vector<2x1x128xbf16>
    %325 = vector.shape_cast %324 : vector<2x1x128xbf16> to vector<2x128xbf16>
    %c2 = arith.constant 2 : index
    %c0_127 = arith.constant 0 : index
    %c0_128 = arith.constant 0 : index
    %326 = vector.load %arg27[%c2, %c0_127, %c0_128] : memref<16x128x512xbf16, #tpu.memory_space<vmem>>, vector<1x128x512xbf16>
    %327 = vector.shape_cast %326 : vector<1x128x512xbf16> to vector<128x512xbf16>
    %cst_129 = arith.constant dense<0.000000e+00> : vector<2x512xf32>
    %328 = tpu.matmul %325, %327, %cst_129 {dimension_numbers = #tpu.dot_dimension_numbers<[1], [0], [0], [1], [0, 0, 1, 1], [], []>} : vector<2x128xbf16>, vector<128x512xbf16>, vector<2x512xf32> -> vector<2x512xf32>
    %329 = arith.addf %323, %328 : vector<2x512xf32>
    %330 = vector.extract_strided_slice %310 {offsets = [0, 3, 0], sizes = [2, 1, 128], strides = [1, 1, 1]} : vector<2x16x128xbf16> to vector<2x1x128xbf16>
    %331 = vector.shape_cast %330 : vector<2x1x128xbf16> to vector<2x128xbf16>
    %c3 = arith.constant 3 : index
    %c0_130 = arith.constant 0 : index
    %c0_131 = arith.constant 0 : index
    %332 = vector.load %arg27[%c3, %c0_130, %c0_131] : memref<16x128x512xbf16, #tpu.memory_space<vmem>>, vector<1x128x512xbf16>
    %333 = vector.shape_cast %332 : vector<1x128x512xbf16> to vector<128x512xbf16>
    %cst_132 = arith.constant dense<0.000000e+00> : vector<2x512xf32>
    %334 = tpu.matmul %331, %333, %cst_132 {dimension_numbers = #tpu.dot_dimension_numbers<[1], [0], [0], [1], [0, 0, 1, 1], [], []>} : vector<2x128xbf16>, vector<128x512xbf16>, vector<2x512xf32> -> vector<2x512xf32>
    %335 = arith.addf %329, %334 : vector<2x512xf32>
    %336 = vector.extract_strided_slice %310 {offsets = [0, 4, 0], sizes = [2, 1, 128], strides = [1, 1, 1]} : vector<2x16x128xbf16> to vector<2x1x128xbf16>
    %337 = vector.shape_cast %336 : vector<2x1x128xbf16> to vector<2x128xbf16>
    %c4 = arith.constant 4 : index
    %c0_133 = arith.constant 0 : index
    %c0_134 = arith.constant 0 : index
    %338 = vector.load %arg27[%c4, %c0_133, %c0_134] : memref<16x128x512xbf16, #tpu.memory_space<vmem>>, vector<1x128x512xbf16>
    %339 = vector.shape_cast %338 : vector<1x128x512xbf16> to vector<128x512xbf16>
    %cst_135 = arith.constant dense<0.000000e+00> : vector<2x512xf32>
    %340 = tpu.matmul %337, %339, %cst_135 {dimension_numbers = #tpu.dot_dimension_numbers<[1], [0], [0], [1], [0, 0, 1, 1], [], []>} : vector<2x128xbf16>, vector<128x512xbf16>, vector<2x512xf32> -> vector<2x512xf32>
    %341 = arith.addf %335, %340 : vector<2x512xf32>
    %342 = vector.extract_strided_slice %310 {offsets = [0, 5, 0], sizes = [2, 1, 128], strides = [1, 1, 1]} : vector<2x16x128xbf16> to vector<2x1x128xbf16>
    %343 = vector.shape_cast %342 : vector<2x1x128xbf16> to vector<2x128xbf16>
    %c5 = arith.constant 5 : index
    %c0_136 = arith.constant 0 : index
    %c0_137 = arith.constant 0 : index
    %344 = vector.load %arg27[%c5, %c0_136, %c0_137] : memref<16x128x512xbf16, #tpu.memory_space<vmem>>, vector<1x128x512xbf16>
    %345 = vector.shape_cast %344 : vector<1x128x512xbf16> to vector<128x512xbf16>
    %cst_138 = arith.constant dense<0.000000e+00> : vector<2x512xf32>
    %346 = tpu.matmul %343, %345, %cst_138 {dimension_numbers = #tpu.dot_dimension_numbers<[1], [0], [0], [1], [0, 0, 1, 1], [], []>} : vector<2x128xbf16>, vector<128x512xbf16>, vector<2x512xf32> -> vector<2x512xf32>
    %347 = arith.addf %341, %346 : vector<2x512xf32>
    %348 = vector.extract_strided_slice %310 {offsets = [0, 6, 0], sizes = [2, 1, 128], strides = [1, 1, 1]} : vector<2x16x128xbf16> to vector<2x1x128xbf16>
    %349 = vector.shape_cast %348 : vector<2x1x128xbf16> to vector<2x128xbf16>
    %c6 = arith.constant 6 : index
    %c0_139 = arith.constant 0 : index
    %c0_140 = arith.constant 0 : index
    %350 = vector.load %arg27[%c6, %c0_139, %c0_140] : memref<16x128x512xbf16, #tpu.memory_space<vmem>>, vector<1x128x512xbf16>
    %351 = vector.shape_cast %350 : vector<1x128x512xbf16> to vector<128x512xbf16>
    %cst_141 = arith.constant dense<0.000000e+00> : vector<2x512xf32>
    %352 = tpu.matmul %349, %351, %cst_141 {dimension_numbers = #tpu.dot_dimension_numbers<[1], [0], [0], [1], [0, 0, 1, 1], [], []>} : vector<2x128xbf16>, vector<128x512xbf16>, vector<2x512xf32> -> vector<2x512xf32>
    %353 = arith.addf %347, %352 : vector<2x512xf32>
    %354 = vector.extract_strided_slice %310 {offsets = [0, 7, 0], sizes = [2, 1, 128], strides = [1, 1, 1]} : vector<2x16x128xbf16> to vector<2x1x128xbf16>
    %355 = vector.shape_cast %354 : vector<2x1x128xbf16> to vector<2x128xbf16>
    %c7 = arith.constant 7 : index
    %c0_142 = arith.constant 0 : index
    %c0_143 = arith.constant 0 : index
    %356 = vector.load %arg27[%c7, %c0_142, %c0_143] : memref<16x128x512xbf16, #tpu.memory_space<vmem>>, vector<1x128x512xbf16>
    %357 = vector.shape_cast %356 : vector<1x128x512xbf16> to vector<128x512xbf16>
    %cst_144 = arith.constant dense<0.000000e+00> : vector<2x512xf32>
    %358 = tpu.matmul %355, %357, %cst_144 {dimension_numbers = #tpu.dot_dimension_numbers<[1], [0], [0], [1], [0, 0, 1, 1], [], []>} : vector<2x128xbf16>, vector<128x512xbf16>, vector<2x512xf32> -> vector<2x512xf32>
    %359 = arith.addf %353, %358 : vector<2x512xf32>
    %360 = vector.extract_strided_slice %310 {offsets = [0, 8, 0], sizes = [2, 1, 128], strides = [1, 1, 1]} : vector<2x16x128xbf16> to vector<2x1x128xbf16>
    %361 = vector.shape_cast %360 : vector<2x1x128xbf16> to vector<2x128xbf16>
    %c8 = arith.constant 8 : index
    %c0_145 = arith.constant 0 : index
    %c0_146 = arith.constant 0 : index
    %362 = vector.load %arg27[%c8, %c0_145, %c0_146] : memref<16x128x512xbf16, #tpu.memory_space<vmem>>, vector<1x128x512xbf16>
    %363 = vector.shape_cast %362 : vector<1x128x512xbf16> to vector<128x512xbf16>
    %cst_147 = arith.constant dense<0.000000e+00> : vector<2x512xf32>
    %364 = tpu.matmul %361, %363, %cst_147 {dimension_numbers = #tpu.dot_dimension_numbers<[1], [0], [0], [1], [0, 0, 1, 1], [], []>} : vector<2x128xbf16>, vector<128x512xbf16>, vector<2x512xf32> -> vector<2x512xf32>
    %365 = arith.addf %359, %364 : vector<2x512xf32>
    %366 = vector.extract_strided_slice %310 {offsets = [0, 9, 0], sizes = [2, 1, 128], strides = [1, 1, 1]} : vector<2x16x128xbf16> to vector<2x1x128xbf16>
    %367 = vector.shape_cast %366 : vector<2x1x128xbf16> to vector<2x128xbf16>
    %c9 = arith.constant 9 : index
    %c0_148 = arith.constant 0 : index
    %c0_149 = arith.constant 0 : index
    %368 = vector.load %arg27[%c9, %c0_148, %c0_149] : memref<16x128x512xbf16, #tpu.memory_space<vmem>>, vector<1x128x512xbf16>
    %369 = vector.shape_cast %368 : vector<1x128x512xbf16> to vector<128x512xbf16>
    %cst_150 = arith.constant dense<0.000000e+00> : vector<2x512xf32>
    %370 = tpu.matmul %367, %369, %cst_150 {dimension_numbers = #tpu.dot_dimension_numbers<[1], [0], [0], [1], [0, 0, 1, 1], [], []>} : vector<2x128xbf16>, vector<128x512xbf16>, vector<2x512xf32> -> vector<2x512xf32>
    %371 = arith.addf %365, %370 : vector<2x512xf32>
    %372 = vector.extract_strided_slice %310 {offsets = [0, 10, 0], sizes = [2, 1, 128], strides = [1, 1, 1]} : vector<2x16x128xbf16> to vector<2x1x128xbf16>
    %373 = vector.shape_cast %372 : vector<2x1x128xbf16> to vector<2x128xbf16>
    %c10 = arith.constant 10 : index
    %c0_151 = arith.constant 0 : index
    %c0_152 = arith.constant 0 : index
    %374 = vector.load %arg27[%c10, %c0_151, %c0_152] : memref<16x128x512xbf16, #tpu.memory_space<vmem>>, vector<1x128x512xbf16>
    %375 = vector.shape_cast %374 : vector<1x128x512xbf16> to vector<128x512xbf16>
    %cst_153 = arith.constant dense<0.000000e+00> : vector<2x512xf32>
    %376 = tpu.matmul %373, %375, %cst_153 {dimension_numbers = #tpu.dot_dimension_numbers<[1], [0], [0], [1], [0, 0, 1, 1], [], []>} : vector<2x128xbf16>, vector<128x512xbf16>, vector<2x512xf32> -> vector<2x512xf32>
    %377 = arith.addf %371, %376 : vector<2x512xf32>
    %378 = vector.extract_strided_slice %310 {offsets = [0, 11, 0], sizes = [2, 1, 128], strides = [1, 1, 1]} : vector<2x16x128xbf16> to vector<2x1x128xbf16>
    %379 = vector.shape_cast %378 : vector<2x1x128xbf16> to vector<2x128xbf16>
    %c11 = arith.constant 11 : index
    %c0_154 = arith.constant 0 : index
    %c0_155 = arith.constant 0 : index
    %380 = vector.load %arg27[%c11, %c0_154, %c0_155] : memref<16x128x512xbf16, #tpu.memory_space<vmem>>, vector<1x128x512xbf16>
    %381 = vector.shape_cast %380 : vector<1x128x512xbf16> to vector<128x512xbf16>
    %cst_156 = arith.constant dense<0.000000e+00> : vector<2x512xf32>
    %382 = tpu.matmul %379, %381, %cst_156 {dimension_numbers = #tpu.dot_dimension_numbers<[1], [0], [0], [1], [0, 0, 1, 1], [], []>} : vector<2x128xbf16>, vector<128x512xbf16>, vector<2x512xf32> -> vector<2x512xf32>
    %383 = arith.addf %377, %382 : vector<2x512xf32>
    %384 = vector.extract_strided_slice %310 {offsets = [0, 12, 0], sizes = [2, 1, 128], strides = [1, 1, 1]} : vector<2x16x128xbf16> to vector<2x1x128xbf16>
    %385 = vector.shape_cast %384 : vector<2x1x128xbf16> to vector<2x128xbf16>
    %c12 = arith.constant 12 : index
    %c0_157 = arith.constant 0 : index
    %c0_158 = arith.constant 0 : index
    %386 = vector.load %arg27[%c12, %c0_157, %c0_158] : memref<16x128x512xbf16, #tpu.memory_space<vmem>>, vector<1x128x512xbf16>
    %387 = vector.shape_cast %386 : vector<1x128x512xbf16> to vector<128x512xbf16>
    %cst_159 = arith.constant dense<0.000000e+00> : vector<2x512xf32>
    %388 = tpu.matmul %385, %387, %cst_159 {dimension_numbers = #tpu.dot_dimension_numbers<[1], [0], [0], [1], [0, 0, 1, 1], [], []>} : vector<2x128xbf16>, vector<128x512xbf16>, vector<2x512xf32> -> vector<2x512xf32>
    %389 = arith.addf %383, %388 : vector<2x512xf32>
    %390 = vector.extract_strided_slice %310 {offsets = [0, 13, 0], sizes = [2, 1, 128], strides = [1, 1, 1]} : vector<2x16x128xbf16> to vector<2x1x128xbf16>
    %391 = vector.shape_cast %390 : vector<2x1x128xbf16> to vector<2x128xbf16>
    %c13 = arith.constant 13 : index
    %c0_160 = arith.constant 0 : index
    %c0_161 = arith.constant 0 : index
    %392 = vector.load %arg27[%c13, %c0_160, %c0_161] : memref<16x128x512xbf16, #tpu.memory_space<vmem>>, vector<1x128x512xbf16>
    %393 = vector.shape_cast %392 : vector<1x128x512xbf16> to vector<128x512xbf16>
    %cst_162 = arith.constant dense<0.000000e+00> : vector<2x512xf32>
    %394 = tpu.matmul %391, %393, %cst_162 {dimension_numbers = #tpu.dot_dimension_numbers<[1], [0], [0], [1], [0, 0, 1, 1], [], []>} : vector<2x128xbf16>, vector<128x512xbf16>, vector<2x512xf32> -> vector<2x512xf32>
    %395 = arith.addf %389, %394 : vector<2x512xf32>
    %396 = vector.extract_strided_slice %310 {offsets = [0, 14, 0], sizes = [2, 1, 128], strides = [1, 1, 1]} : vector<2x16x128xbf16> to vector<2x1x128xbf16>
    %397 = vector.shape_cast %396 : vector<2x1x128xbf16> to vector<2x128xbf16>
    %c14 = arith.constant 14 : index
    %c0_163 = arith.constant 0 : index
    %c0_164 = arith.constant 0 : index
    %398 = vector.load %arg27[%c14, %c0_163, %c0_164] : memref<16x128x512xbf16, #tpu.memory_space<vmem>>, vector<1x128x512xbf16>
    %399 = vector.shape_cast %398 : vector<1x128x512xbf16> to vector<128x512xbf16>
    %cst_165 = arith.constant dense<0.000000e+00> : vector<2x512xf32>
    %400 = tpu.matmul %397, %399, %cst_165 {dimension_numbers = #tpu.dot_dimension_numbers<[1], [0], [0], [1], [0, 0, 1, 1], [], []>} : vector<2x128xbf16>, vector<128x512xbf16>, vector<2x512xf32> -> vector<2x512xf32>
    %401 = arith.addf %395, %400 : vector<2x512xf32>
    %402 = vector.extract_strided_slice %310 {offsets = [0, 15, 0], sizes = [2, 1, 128], strides = [1, 1, 1]} : vector<2x16x128xbf16> to vector<2x1x128xbf16>
    %403 = vector.shape_cast %402 : vector<2x1x128xbf16> to vector<2x128xbf16>
    %c15 = arith.constant 15 : index
    %c0_166 = arith.constant 0 : index
    %c0_167 = arith.constant 0 : index
    %404 = vector.load %arg27[%c15, %c0_166, %c0_167] : memref<16x128x512xbf16, #tpu.memory_space<vmem>>, vector<1x128x512xbf16>
    %405 = vector.shape_cast %404 : vector<1x128x512xbf16> to vector<128x512xbf16>
    %cst_168 = arith.constant dense<0.000000e+00> : vector<2x512xf32>
    %406 = tpu.matmul %403, %405, %cst_168 {dimension_numbers = #tpu.dot_dimension_numbers<[1], [0], [0], [1], [0, 0, 1, 1], [], []>} : vector<2x128xbf16>, vector<128x512xbf16>, vector<2x512xf32> -> vector<2x512xf32>
    %407 = arith.addf %401, %406 : vector<2x512xf32>
    %c0_169 = arith.constant 0 : index
    %c0_170 = arith.constant 0 : index
    %408 = vector.load %arg20[%c0_169, %c0_170] : memref<1x512xf32, #tpu.memory_space<vmem>>, vector<1x512xf32>
    %409 = vector.broadcast %408 : vector<1x512xf32> to vector<2x512xf32>
    %410 = arith.addf %407, %409 : vector<2x512xf32>
    %cst_171 = arith.constant 5.000000e-01 : f32
    %411 = vector.broadcast %cst_171 : f32 to vector<2x512xf32>
    %412 = arith.mulf %411, %410 : vector<2x512xf32>
    %cst_172 = arith.constant 4.471500e-02 : f32
    %413 = vector.broadcast %cst_172 : f32 to vector<2x512xf32>
    %414 = arith.mulf %413, %410 : vector<2x512xf32>
    %415 = arith.mulf %414, %410 : vector<2x512xf32>
    %416 = arith.mulf %415, %410 : vector<2x512xf32>
    %417 = arith.addf %410, %416 : vector<2x512xf32>
    %cst_173 = arith.constant 0.797884583 : f32
    %418 = vector.broadcast %cst_173 : f32 to vector<2x512xf32>
    %419 = arith.mulf %418, %417 : vector<2x512xf32>
    %420 = math.tanh %419 : vector<2x512xf32>
    %cst_174 = arith.constant 1.000000e+00 : f32
    %421 = vector.broadcast %cst_174 : f32 to vector<2x512xf32>
    %422 = arith.addf %421, %420 : vector<2x512xf32>
    %423 = arith.mulf %412, %422 : vector<2x512xf32>
    %424 = arith.truncf %423 : vector<2x512xf32> to vector<2x512xbf16>
    %c0_175 = arith.constant 0 : index
    %c0_176 = arith.constant 0 : index
    %425 = vector.load %arg21[%c0_175, %c0_176] : memref<512x256xbf16, #tpu.memory_space<vmem>>, vector<512x256xbf16>
    %cst_177 = arith.constant dense<0.000000e+00> : vector<2x256xf32>
    %426 = tpu.matmul %424, %425, %cst_177 {dimension_numbers = #tpu.dot_dimension_numbers<[1], [0], [0], [1], [0, 0, 1, 1], [], []>} : vector<2x512xbf16>, vector<512x256xbf16>, vector<2x256xf32> -> vector<2x256xf32>
    %c0_178 = arith.constant 0 : index
    %c0_179 = arith.constant 0 : index
    %427 = vector.load %arg22[%c0_178, %c0_179] : memref<1x256xf32, #tpu.memory_space<vmem>>, vector<1x256xf32>
    %428 = vector.broadcast %427 : vector<1x256xf32> to vector<2x256xf32>
    %429 = arith.addf %426, %428 : vector<2x256xf32>
    %cst_180 = arith.constant 5.000000e-01 : f32
    %430 = vector.broadcast %cst_180 : f32 to vector<2x256xf32>
    %431 = arith.mulf %430, %429 : vector<2x256xf32>
    %cst_181 = arith.constant 4.471500e-02 : f32
    %432 = vector.broadcast %cst_181 : f32 to vector<2x256xf32>
    %433 = arith.mulf %432, %429 : vector<2x256xf32>
    %434 = arith.mulf %433, %429 : vector<2x256xf32>
    %435 = arith.mulf %434, %429 : vector<2x256xf32>
    %436 = arith.addf %429, %435 : vector<2x256xf32>
    %cst_182 = arith.constant 0.797884583 : f32
    %437 = vector.broadcast %cst_182 : f32 to vector<2x256xf32>
    %438 = arith.mulf %437, %436 : vector<2x256xf32>
    %439 = math.tanh %438 : vector<2x256xf32>
    %cst_183 = arith.constant 1.000000e+00 : f32
    %440 = vector.broadcast %cst_183 : f32 to vector<2x256xf32>
    %441 = arith.addf %440, %439 : vector<2x256xf32>
    %442 = arith.mulf %431, %441 : vector<2x256xf32>
    %443 = arith.truncf %442 : vector<2x256xf32> to vector<2x256xbf16>
    %c0_184 = arith.constant 0 : index
    %c0_185 = arith.constant 0 : index
    %444 = vector.load %arg23[%c0_184, %c0_185] : memref<256x16xbf16, #tpu.memory_space<vmem>>, vector<256x16xbf16>
    %cst_186 = arith.constant dense<0.000000e+00> : vector<2x16xf32>
    %445 = tpu.matmul %443, %444, %cst_186 {dimension_numbers = #tpu.dot_dimension_numbers<[1], [0], [0], [1], [0, 0, 1, 1], [], []>} : vector<2x256xbf16>, vector<256x16xbf16>, vector<2x16xf32> -> vector<2x16xf32>
    %c0_187 = arith.constant 0 : index
    %c0_188 = arith.constant 0 : index
    %446 = vector.load %arg24[%c0_187, %c0_188] : memref<1x16xf32, #tpu.memory_space<vmem>>, vector<1x16xf32>
    %447 = vector.broadcast %446 : vector<1x16xf32> to vector<2x16xf32>
    %448 = arith.addf %445, %447 : vector<2x16xf32>
    %c0_189 = arith.constant 0 : index
    %c0_190 = arith.constant 0 : index
    %449 = vector.load %arg25[%c0_189, %c0_190] : memref<2x16xf32, #tpu.memory_space<vmem>>, vector<2x16xf32>
    tpu.vector_store %arg25[%c0_189, %c0_190], %448 {strides = array<i32>} : memref<2x16xf32, #tpu.memory_space<vmem>>, vector<2x16xf32>,
    return
  }
  func.func @transform_0(%arg0: i32) -> (i32, i32) {
    %c0_i32 = arith.constant 0 : i32
    %c0_i32_0 = arith.constant 0 : i32
    %c0_i32_1 = arith.constant 0 : i32
    return %c0_i32, %c0_i32_0 : i32, i32
  }
  func.func @transform_1(%arg0: i32) -> (i32, i32) {
    %c0_i32 = arith.constant 0 : i32
    %c0_i32_0 = arith.constant 0 : i32
    %c0_i32_1 = arith.constant 0 : i32
    return %c0_i32, %c0_i32_0 : i32, i32
  }
  func.func @transform_2(%arg0: i32) -> (i32, i32) {
    %c0_i32 = arith.constant 0 : i32
    %c0_i32_0 = arith.constant 0 : i32
    %c0_i32_1 = arith.constant 0 : i32
    return %c0_i32, %c0_i32_0 : i32, i32
  }
  func.func @transform_3(%arg0: i32) -> (i32, i32) {
    %c0_i32 = arith.constant 0 : i32
    %c0_i32_0 = arith.constant 0 : i32
    %c0_i32_1 = arith.constant 0 : i32
    return %c0_i32, %c0_i32_0 : i32, i32
  }
  func.func @transform_4(%arg0: i32) -> (i32, i32) {
    %c0_i32 = arith.constant 0 : i32
    %c0_i32_0 = arith.constant 0 : i32
    %c0_i32_1 = arith.constant 0 : i32
    return %c0_i32, %c0_i32_0 : i32, i32
  }
  func.func @transform_5(%arg0: i32) -> (i32, i32) {
    %c0_i32 = arith.constant 0 : i32
    %c0_i32_0 = arith.constant 0 : i32
    %c0_i32_1 = arith.constant 0 : i32
    return %c0_i32, %c0_i32_0 : i32, i32
  }
  func.func @transform_6(%arg0: i32) -> (i32, i32, i32) {
    %c0_i32 = arith.constant 0 : i32
    %c0_i32_0 = arith.constant 0 : i32
    %c0_i32_1 = arith.constant 0 : i32
    %c0_i32_2 = arith.constant 0 : i32
    return %c0_i32, %c0_i32_0, %c0_i32_1 : i32, i32, i32
  }
  func.func @transform_7(%arg0: i32) -> (i32, i32) {
    %c0_i32 = arith.constant 0 : i32
    %c0_i32_0 = arith.constant 0 : i32
    %c0_i32_1 = arith.constant 0 : i32
    return %c0_i32, %c0_i32_0 : i32, i32
  }
  func.func @transform_8(%arg0: i32) -> (i32, i32, i32) {
    %c0_i32 = arith.constant 0 : i32
    %c0_i32_0 = arith.constant 0 : i32
    %c0_i32_1 = arith.constant 0 : i32
    %c0_i32_2 = arith.constant 0 : i32
    return %c0_i32, %c0_i32_0, %c0_i32_1 : i32, i32, i32
  }
  func.func @transform_9(%arg0: i32) -> (i32, i32) {
    %c0_i32 = arith.constant 0 : i32
    %c0_i32_0 = arith.constant 0 : i32
    %c0_i32_1 = arith.constant 0 : i32
    return %c0_i32, %c0_i32_0 : i32, i32
  }
  func.func @transform_10(%arg0: i32) -> (i32, i32) {
    %c0_i32 = arith.constant 0 : i32
    %c0_i32_0 = arith.constant 0 : i32
    %c0_i32_1 = arith.constant 0 : i32
    return %c0_i32, %c0_i32_0 : i32, i32
  }
  func.func @transform_11(%arg0: i32) -> (i32, i32) {
    %c0_i32 = arith.constant 0 : i32
    %c0_i32_0 = arith.constant 0 : i32
    %c0_i32_1 = arith.constant 0 : i32
    return %c0_i32, %c0_i32_0 : i32, i32
  }
  func.func @transform_12(%arg0: i32) -> (i32, i32, i32) {
    %c0_i32 = arith.constant 0 : i32
    %c0_i32_0 = arith.constant 0 : i32
    %c0_i32_1 = arith.constant 0 : i32
    %c0_i32_2 = arith.constant 0 : i32
    return %c0_i32, %c0_i32_0, %c0_i32_1 : i32, i32, i32
  }
  func.func @transform_13(%arg0: i32) -> (i32, i32) {
    %c0_i32 = arith.constant 0 : i32
    %c0_i32_0 = arith.constant 0 : i32
    %c0_i32_1 = arith.constant 0 : i32
    return %c0_i32, %c0_i32_0 : i32, i32
  }
  func.func @transform_14(%arg0: i32) -> (i32, i32, i32) {
    %c0_i32 = arith.constant 0 : i32
    %c0_i32_0 = arith.constant 0 : i32
    %c0_i32_1 = arith.constant 0 : i32
    %c0_i32_2 = arith.constant 0 : i32
    return %c0_i32, %c0_i32_0, %c0_i32_1 : i32, i32, i32
  }
  func.func @transform_15(%arg0: i32) -> (i32, i32) {
    %c0_i32 = arith.constant 0 : i32
    %c0_i32_0 = arith.constant 0 : i32
    %c0_i32_1 = arith.constant 0 : i32
    return %c0_i32, %c0_i32_0 : i32, i32
  }
  func.func @transform_16(%arg0: i32) -> (i32, i32) {
    %c0_i32 = arith.constant 0 : i32
    %c0_i32_0 = arith.constant 0 : i32
    %c0_i32_1 = arith.constant 0 : i32
    return %c0_i32, %c0_i32_0 : i32, i32
  }
  func.func @transform_17(%arg0: i32) -> (i32, i32) {
    %c0_i32 = arith.constant 0 : i32
    %c0_i32_0 = arith.constant 0 : i32
    %c0_i32_1 = arith.constant 0 : i32
    return %c0_i32, %c0_i32_0 : i32, i32
  }
  func.func @transform_19(%arg0: i32) -> (i32, i32) {
    %c0_i32 = arith.constant 0 : i32
    %c0_i32_0 = arith.constant 0 : i32
    %c0_i32_1 = arith.constant 0 : i32
    return %c0_i32, %c0_i32_0 : i32, i32
  }
  func.func @transform_20(%arg0: i32) -> (i32, i32) {
    %c0_i32 = arith.constant 0 : i32
    %c0_i32_0 = arith.constant 0 : i32
    %c0_i32_1 = arith.constant 0 : i32
    return %c0_i32, %c0_i32_0 : i32, i32
  }
  func.func @transform_21(%arg0: i32) -> (i32, i32) {
    %c0_i32 = arith.constant 0 : i32
    %c0_i32_0 = arith.constant 0 : i32
    %c0_i32_1 = arith.constant 0 : i32
    return %c0_i32, %c0_i32_0 : i32, i32
  }
  func.func @transform_22(%arg0: i32) -> (i32, i32) {
    %c0_i32 = arith.constant 0 : i32
    %c0_i32_0 = arith.constant 0 : i32
    %c0_i32_1 = arith.constant 0 : i32
    return %c0_i32, %c0_i32_0 : i32, i32
  }
  func.func @transform_23(%arg0: i32) -> (i32, i32) {
    %c0_i32 = arith.constant 0 : i32
    %c0_i32_0 = arith.constant 0 : i32
    %c0_i32_1 = arith.constant 0 : i32
    return %c0_i32, %c0_i32_0 : i32, i32
  }
  func.func @transform_24(%arg0: i32) -> (i32, i32) {
    %c0_i32 = arith.constant 0 : i32
    %c0_i32_0 = arith.constant 0 : i32
    %c0_i32_1 = arith.constant 0 : i32
    return %c0_i32, %c0_i32_0 : i32, i32
  }
  func.func @transform_25(%arg0: i32) -> (i32, i32, i32) {
    %c0_i32 = arith.constant 0 : i32
    %c0_i32_0 = arith.constant 0 : i32
    %c0_i32_1 = arith.constant 0 : i32
    %c0_i32_2 = arith.constant 0 : i32
    return %c0_i32, %c0_i32_0, %c0_i32_1 : i32, i32, i32
  }
}

</mosaic_0001>

<llo_original>
// kernel: attention_pnp_forward.1
$region0: #{attention_pnp_forward.1}
  #allocation0 [shape = 'u32[]', space=smem, size = 0x4, offset = 0x4, fixed_abs, tag = 'smem constant byte address 0x4 - core index']
  #allocation1 [shape = 'u32[72,128]{1,0:T(1,128)}', space=vmem, size = 0x9000, scoped, tag = 'internal scratch']
  #allocation2 [shape = 'bf16[16,128,512]{2,1,0:T(8,128)(2,1)}', space=vmem, size = 0x200000, scoped, tag = 'scratch operand']
  #allocation3 [shape = 's32[1]{0}', space=sflag, size = 0x4, scoped, tag = 'scratch operand']
  #allocation36 [shape = 's32[]', space=sflag, size = 0x4, offset = 0, fixed_abs, tag = 'sflag constant byte address 0x0 - dummy sync flag']
  #allocation37 [shape = 's32[]', space=sflag, size = 0x4, offset = 0, fixed_abs, tag = 'sflag constant byte address 0x0 - dummy sync flag']
  #allocation38 [shape = 'u32[]', space=smem, size = 0x4, offset = 0x44, fixed_abs, tag = 'smem constant byte address 0x44 - assertion arg 0']
  #allocation39 [shape = 'u32[]', space=smem, size = 0x4, offset = 0x48, fixed_abs, tag = 'smem constant byte address 0x48 - assertion arg 1']
  %s0 = inlined_call_operand.vmem [shape: bf16[32,192], index: 0, kind: input, shape index: {}]
  %s1 = inlined_call_operand.hbm [shape: bf16[192,128], index: 1, kind: input, shape index: {}]
  %s2 = inlined_call_operand.hbm [shape: f32[1,128], index: 2, kind: input, shape index: {}]
  %s3 = inlined_call_operand.hbm [shape: f32[32,128], index: 3, kind: input, shape index: {}]
  %s4 = inlined_call_operand.hbm [shape: f32[2,128], index: 4, kind: input, shape index: {}]
  %s5 = inlined_call_operand.hbm [shape: f32[2,128], index: 5, kind: input, shape index: {}]
  %s6 = inlined_call_operand.hbm [shape: bf16[2,128,384], index: 6, kind: input, shape index: {}]
  %s7 = inlined_call_operand.hbm [shape: f32[2,384], index: 7, kind: input, shape index: {}]
  %s8 = inlined_call_operand.hbm [shape: bf16[2,128,128], index: 8, kind: input, shape index: {}]
  %s9 = inlined_call_operand.hbm [shape: f32[2,128], index: 9, kind: input, shape index: {}]
  %s10 = inlined_call_operand.hbm [shape: f32[2,128], index: 10, kind: input, shape index: {}]
  %s11 = inlined_call_operand.hbm [shape: f32[2,128], index: 11, kind: input, shape index: {}]
  %s12 = inlined_call_operand.hbm [shape: bf16[2,128,512], index: 12, kind: input, shape index: {}]
  %s13 = inlined_call_operand.hbm [shape: f32[2,512], index: 13, kind: input, shape index: {}]
  %s14 = inlined_call_operand.hbm [shape: bf16[2,512,128], index: 14, kind: input, shape index: {}]
  %s15 = inlined_call_operand.hbm [shape: f32[2,128], index: 15, kind: input, shape index: {}]
  %s16 = inlined_call_operand.hbm [shape: f32[1,128], index: 16, kind: input, shape index: {}]
  %s17 = inlined_call_operand.hbm [shape: f32[1,128], index: 17, kind: input, shape index: {}]
  %s18 = inlined_call_operand.hbm [shape: bf16[16,128,512], index: 18, kind: input, shape index: {}]
  %s19 = inlined_call_operand.hbm [shape: f32[1,512], index: 19, kind: input, shape index: {}]
  %s20 = inlined_call_operand.hbm [shape: bf16[512,256], index: 20, kind: input, shape index: {}]
  %s21 = inlined_call_operand.hbm [shape: f32[1,256], index: 21, kind: input, shape index: {}]
  %s22 = inlined_call_operand.vmem [shape: bf16[256,16], index: 22, kind: input, shape index: {}]
  %s23 = inlined_call_operand.hbm [shape: f32[1,16], index: 23, kind: input, shape index: {}]
  %s24 = inlined_call_operand.vmem [shape: f32[2,16], index: 24, kind: output, shape index: {0}]
  %s25 = inlined_call_operand.vmem [shape: f32[2,16,128], index: 25, kind: output, shape index: {1}]
  %26 = xla_tuple %s24, %s25
  %s27 = sld [smem:[#allocation0]]
  $region198: #{attention_pnp_forward.1} parent=0
    _
  %s29 = ssub.s32 1, %s27
  %s30 = scalar_select 0, %s29, %s27
  $region1: #{attention_pnp_forward.1} parent=0
    #allocation4 [shape = 'u8[49152]{0}', space=vmem, size = 0xc000, scoped, tag = 'input window, operand 1, single buffered']
    #allocation5 [shape = 's32[1]{0}', space=sflag, size = 0x4, scoped, tag = 'scoped memory for attention_pnp_forward.1']
    #allocation6 [shape = 'u8[512]{0}', space=vmem, size = 0x400, scoped, tag = 'input window, operand 2, single buffered']
    #allocation7 [shape = 's32[1]{0}', space=sflag, size = 0x4, scoped, tag = 'scoped memory for attention_pnp_forward.1']
    #allocation8 [shape = 'u8[16384]{0}', space=vmem, size = 0x4000, scoped, tag = 'input window, operand 3, single buffered']
    #allocation9 [shape = 'u8[1024]{0}', space=vmem, size = 0x400, scoped, tag = 'input window, operand 4, single buffered']
    #allocation10 [shape = 's32[1]{0}', space=sflag, size = 0x4, scoped, tag = 'scoped memory for attention_pnp_forward.1']
    #allocation11 [shape = 'u8[1024]{0}', space=vmem, size = 0x400, scoped, tag = 'input window, operand 5, single buffered']
    #allocation12 [shape = 'u8[196608]{0}', space=vmem, size = 0x30000, scoped, tag = 'input window, operand 6, single buffered']
    #allocation13 [shape = 's32[1]{0}', space=sflag, size = 0x4, scoped, tag = 'scoped memory for attention_pnp_forward.1']
    #allocation14 [shape = 'u8[3072]{0}', space=vmem, size = 0xc00, scoped, tag = 'input window, operand 7, single buffered']
    #allocation15 [shape = 'u8[65536]{0}', space=vmem, size = 0x10000, scoped, tag = 'input window, operand 8, single buffered']
    #allocation16 [shape = 's32[1]{0}', space=sflag, size = 0x4, scoped, tag = 'scoped memory for attention_pnp_forward.1']
    #allocation17 [shape = 'u8[1024]{0}', space=vmem, size = 0x400, scoped, tag = 'input window, operand 9, single buffered']
    #allocation18 [shape = 'u8[1024]{0}', space=vmem, size = 0x400, scoped, tag = 'input window, operand 10, single buffered']
    #allocation19 [shape = 's32[1]{0}', space=sflag, size = 0x4, scoped, tag = 'scoped memory for attention_pnp_forward.1']
    #allocation20 [shape = 'u8[1024]{0}', space=vmem, size = 0x400, scoped, tag = 'input window, operand 11, single buffered']
    #allocation21 [shape = 'u8[262144]{0}', space=vmem, size = 0x40000, scoped, tag = 'input window, operand 12, single buffered']
    #allocation22 [shape = 's32[1]{0}', space=sflag, size = 0x4, scoped, tag = 'scoped memory for attention_pnp_forward.1']
    #allocation23 [shape = 'u8[4096]{0}', space=vmem, size = 0x1000, scoped, tag = 'input window, operand 13, single buffered']
    #allocation24 [shape = 'u8[262144]{0}', space=vmem, size = 0x40000, scoped, tag = 'input window, operand 14, single buffered']
    #allocation25 [shape = 's32[1]{0}', space=sflag, size = 0x4, scoped, tag = 'scoped memory for attention_pnp_forward.1']
    #allocation26 [shape = 'u8[1024]{0}', space=vmem, size = 0x400, scoped, tag = 'input window, operand 15, single buffered']
    #allocation27 [shape = 'u8[512]{0}', space=vmem, size = 0x400, scoped, tag = 'input window, operand 16, single buffered']
    #allocation28 [shape = 's32[1]{0}', space=sflag, size = 0x4, scoped, tag = 'scoped memory for attention_pnp_forward.1']
    #allocation29 [shape = 'u8[512]{0}', space=vmem, size = 0x400, scoped, tag = 'input window, operand 17, single buffered']
    #allocation30 [shape = 'u8[2048]{0}', space=vmem, size = 0x800, scoped, tag = 'input window, operand 19, single buffered']
    #allocation31 [shape = 's32[1]{0}', space=sflag, size = 0x4, scoped, tag = 'scoped memory for attention_pnp_forward.1']
    #allocation32 [shape = 'u8[262144]{0}', space=vmem, size = 0x40000, scoped, tag = 'input window, operand 20, single buffered']
    #allocation33 [shape = 'u8[1024]{0}', space=vmem, size = 0x400, scoped, tag = 'input window, operand 21, single buffered']
    #allocation34 [shape = 's32[1]{0}', space=sflag, size = 0x4, scoped, tag = 'scoped memory for attention_pnp_forward.1']
    #allocation35 [shape = 'u8[512]{0}', space=vmem, size = 0x400, scoped, tag = 'input window, operand 23, single buffered']
    %31 = vsyncpa [#allocation5], 0
    %32 = vsyncpa [#allocation7], 0
    %33 = vsyncpa [#allocation10], 0
    %34 = vsyncpa [#allocation13], 0
    %35 = vsyncpa [#allocation16], 0
    %36 = vsyncpa [#allocation19], 0
    %37 = vsyncpa [#allocation22], 0
    %38 = vsyncpa [#allocation25], 0
    %39 = vsyncpa [#allocation28], 0
    %40 = vsyncpa [#allocation31], 0
    %41 = vsyncpa [#allocation34], 0
    // Predicated region
    $region2: #{attention_pnp_forward.1} parent=1 // pred_check
      _
    $region3: #{attention_pnp_forward.1} parent=1 // pred_check_branch
      %43 = sbr.rel (0) target = $region5
    $region4: #{attention_pnp_forward.1} parent=1 // pred_region
      _
    $region5: #{attention_pnp_forward.1} parent=1 // pred_fallthru
      _
    // Predicated region
    $region6: #{attention_pnp_forward.1} parent=1 // pred_check
      _
    $region7: #{attention_pnp_forward.1} parent=1 // pred_check_branch
      %45 = sbr.rel (0) target = $region9
    $region8: #{attention_pnp_forward.1} parent=1 // pred_region
      %47 = vsyncadd [#allocation5], 0
      %s48 = sshll.u32 %s1, 4
      %s49 = int_to_ptr.hbm [resolvable:$true] %s48
      %s50 = sshll.u32 [#allocation4], 4
      %s51 = int_to_ptr.vmem [resolvable:$true] %s50
      %56 = dma.hbm_to_vmem [thread:$0]  %s49, 1536, %s51, [#allocation5], 64, 64, 4
    $region9: #{attention_pnp_forward.1} parent=1 // pred_fallthru
      _
    // Predicated region
    $region10: #{attention_pnp_forward.1} parent=1 // pred_check
      _
    $region11: #{attention_pnp_forward.1} parent=1 // pred_check_branch
      %58 = sbr.rel (0) target = $region13
    $region12: #{attention_pnp_forward.1} parent=1 // pred_region
      %60 = vsyncadd [#allocation7], 0
      %s62 = sshll.u32 %s2, 4
      %s63 = int_to_ptr.hbm [resolvable:$true] %s62
      %s64 = sshll.u32 [#allocation6], 4
      %s65 = int_to_ptr.vmem [resolvable:$true] %s64
      %67 = dma.hbm_to_vmem [thread:$0]  %s63, 16, %s65, [#allocation7]
    $region13: #{attention_pnp_forward.1} parent=1 // pred_fallthru
      _
    // Predicated region
    $region14: #{attention_pnp_forward.1} parent=1 // pred_check
      _
    $region15: #{attention_pnp_forward.1} parent=1 // pred_check_branch
      %69 = sbr.rel (0) target = $region17
    $region16: #{attention_pnp_forward.1} parent=1 // pred_region
      %71 = vsyncadd [#allocation7], 0
      %s72 = sshll.u32 %s3, 4
      %s73 = int_to_ptr.hbm [resolvable:$true] %s72
      %s74 = sshll.u32 [#allocation8], 4
      %s75 = int_to_ptr.vmem [resolvable:$true] %s74
      %80 = dma.hbm_to_vmem [thread:$0]  %s73, 512, %s75, [#allocation7], 128, 128, 8
    $region17: #{attention_pnp_forward.1} parent=1 // pred_fallthru
      _
    // Predicated region
    $region18: #{attention_pnp_forward.1} parent=1 // pred_check
      _
    $region19: #{attention_pnp_forward.1} parent=1 // pred_check_branch
      %82 = sbr.rel (0) target = $region21
    $region20: #{attention_pnp_forward.1} parent=1 // pred_region
      %84 = vsyncadd [#allocation10], 0
      %s86 = sshll.u32 %s4, 4
      %s87 = int_to_ptr.hbm [resolvable:$true] %s86
      %s88 = sshll.u32 [#allocation9], 4
      %s89 = int_to_ptr.vmem [resolvable:$true] %s88
      %91 = dma.hbm_to_vmem [thread:$0]  %s87, 32, %s89, [#allocation10]
    $region21: #{attention_pnp_forward.1} parent=1 // pred_fallthru
      _
    // Predicated region
    $region22: #{attention_pnp_forward.1} parent=1 // pred_check
      _
    $region23: #{attention_pnp_forward.1} parent=1 // pred_check_branch
      %93 = sbr.rel (0) target = $region25
    $region24: #{attention_pnp_forward.1} parent=1 // pred_region
      %95 = vsyncadd [#allocation10], 0
      %s97 = sshll.u32 %s5, 4
      %s98 = int_to_ptr.hbm [resolvable:$true] %s97
      %s99 = sshll.u32 [#allocation11], 4
      %s100 = int_to_ptr.vmem [resolvable:$true] %s99
      %102 = dma.hbm_to_vmem [thread:$0]  %s98, 32, %s100, [#allocation10]
    $region25: #{attention_pnp_forward.1} parent=1 // pred_fallthru
      _
    // Predicated region
    $region26: #{attention_pnp_forward.1} parent=1 // pred_check
      _
    $region27: #{attention_pnp_forward.1} parent=1 // pred_check_branch
      %104 = sbr.rel (0) target = $region29
    $region28: #{attention_pnp_forward.1} parent=1 // pred_region
      %106 = vsyncadd [#allocation13], 0
      %s107 = sshll.u32 %s6, 4
      %s108 = int_to_ptr.hbm [resolvable:$true] %s107
      %s109 = sshll.u32 [#allocation12], 4
      %s110 = int_to_ptr.vmem [resolvable:$true] %s109
      %115 = dma.hbm_to_vmem [thread:$0]  %s108, 6144, %s110, [#allocation13], 192, 192, 12
    $region29: #{attention_pnp_forward.1} parent=1 // pred_fallthru
      _
    // Predicated region
    $region30: #{attention_pnp_forward.1} parent=1 // pred_check
      _
    $region31: #{attention_pnp_forward.1} parent=1 // pred_check_branch
      %117 = sbr.rel (0) target = $region33
    $region32: #{attention_pnp_forward.1} parent=1 // pred_region
      %119 = vsyncadd [#allocation13], 0
      %s121 = sshll.u32 %s7, 4
      %s122 = int_to_ptr.hbm [resolvable:$true] %s121
      %s123 = sshll.u32 [#allocation14], 4
      %s124 = int_to_ptr.vmem [resolvable:$true] %s123
      %126 = dma.hbm_to_vmem [thread:$0]  %s122, 96, %s124, [#allocation13]
    $region33: #{attention_pnp_forward.1} parent=1 // pred_fallthru
      _
    // Predicated region
    $region34: #{attention_pnp_forward.1} parent=1 // pred_check
      _
    $region35: #{attention_pnp_forward.1} parent=1 // pred_check_branch
      %128 = sbr.rel (0) target = $region37
    $region36: #{attention_pnp_forward.1} parent=1 // pred_region
      %130 = vsyncadd [#allocation16], 0
      %s131 = sshll.u32 %s8, 4
      %s132 = int_to_ptr.hbm [resolvable:$true] %s131
      %s133 = sshll.u32 [#allocation15], 4
      %s134 = int_to_ptr.vmem [resolvable:$true] %s133
      %139 = dma.hbm_to_vmem [thread:$0]  %s132, 2048, %s134, [#allocation16], 64, 64, 4
    $region37: #{attention_pnp_forward.1} parent=1 // pred_fallthru
      _
    // Predicated region
    $region38: #{attention_pnp_forward.1} parent=1 // pred_check
      _
    $region39: #{attention_pnp_forward.1} parent=1 // pred_check_branch
      %141 = sbr.rel (0) target = $region41
    $region40: #{attention_pnp_forward.1} parent=1 // pred_region
      %143 = vsyncadd [#allocation16], 0
      %s145 = sshll.u32 %s9, 4
      %s146 = int_to_ptr.hbm [resolvable:$true] %s145
      %s147 = sshll.u32 [#allocation17], 4
      %s148 = int_to_ptr.vmem [resolvable:$true] %s147
      %150 = dma.hbm_to_vmem [thread:$0]  %s146, 32, %s148, [#allocation16]
    $region41: #{attention_pnp_forward.1} parent=1 // pred_fallthru
      _
    // Predicated region
    $region42: #{attention_pnp_forward.1} parent=1 // pred_check
      _
    $region43: #{attention_pnp_forward.1} parent=1 // pred_check_branch
      %152 = sbr.rel (0) target = $region45
    $region44: #{attention_pnp_forward.1} parent=1 // pred_region
      %154 = vsyncadd [#allocation19], 0
      %s156 = sshll.u32 %s10, 4
      %s157 = int_to_ptr.hbm [resolvable:$true] %s156
      %s158 = sshll.u32 [#allocation18], 4
      %s159 = int_to_ptr.vmem [resolvable:$true] %s158
      %161 = dma.hbm_to_vmem [thread:$0]  %s157, 32, %s159, [#allocation19]
    $region45: #{attention_pnp_forward.1} parent=1 // pred_fallthru
      _
    // Predicated region
    $region46: #{attention_pnp_forward.1} parent=1 // pred_check
      _
    $region47: #{attention_pnp_forward.1} parent=1 // pred_check_branch
      %163 = sbr.rel (0) target = $region49
    $region48: #{attention_pnp_forward.1} parent=1 // pred_region
      %165 = vsyncadd [#allocation19], 0
      %s167 = sshll.u32 %s11, 4
      %s168 = int_to_ptr.hbm [resolvable:$true] %s167
      %s169 = sshll.u32 [#allocation20], 4
      %s170 = int_to_ptr.vmem [resolvable:$true] %s169
      %172 = dma.hbm_to_vmem [thread:$0]  %s168, 32, %s170, [#allocation19]
    $region49: #{attention_pnp_forward.1} parent=1 // pred_fallthru
      _
    // Predicated region
    $region50: #{attention_pnp_forward.1} parent=1 // pred_check
      _
    $region51: #{attention_pnp_forward.1} parent=1 // pred_check_branch
      %174 = sbr.rel (0) target = $region53
    $region52: #{attention_pnp_forward.1} parent=1 // pred_region
      %176 = vsyncadd [#allocation22], 0
      %s177 = sshll.u32 %s12, 4
      %s178 = int_to_ptr.hbm [resolvable:$true] %s177
      %s179 = sshll.u32 [#allocation21], 4
      %s180 = int_to_ptr.vmem [resolvable:$true] %s179
      %185 = dma.hbm_to_vmem [thread:$0]  %s178, 8192, %s180, [#allocation22], 256, 256, 16
    $region53: #{attention_pnp_forward.1} parent=1 // pred_fallthru
      _
    // Predicated region
    $region54: #{attention_pnp_forward.1} parent=1 // pred_check
      _
    $region55: #{attention_pnp_forward.1} parent=1 // pred_check_branch
      %187 = sbr.rel (0) target = $region57
    $region56: #{attention_pnp_forward.1} parent=1 // pred_region
      %189 = vsyncadd [#allocation22], 0
      %s191 = sshll.u32 %s13, 4
      %s192 = int_to_ptr.hbm [resolvable:$true] %s191
      %s193 = sshll.u32 [#allocation23], 4
      %s194 = int_to_ptr.vmem [resolvable:$true] %s193
      %196 = dma.hbm_to_vmem [thread:$0]  %s192, 128, %s194, [#allocation22]
    $region57: #{attention_pnp_forward.1} parent=1 // pred_fallthru
      _
    // Predicated region
    $region58: #{attention_pnp_forward.1} parent=1 // pred_check
      _
    $region59: #{attention_pnp_forward.1} parent=1 // pred_check_branch
      %198 = sbr.rel (0) target = $region61
    $region60: #{attention_pnp_forward.1} parent=1 // pred_region
      %200 = vsyncadd [#allocation25], 0
      %s201 = sshll.u32 %s14, 4
      %s202 = int_to_ptr.hbm [resolvable:$true] %s201
      %s203 = sshll.u32 [#allocation24], 4
      %s204 = int_to_ptr.vmem [resolvable:$true] %s203
      %209 = dma.hbm_to_vmem [thread:$0]  %s202, 8192, %s204, [#allocation25], 64, 64, 4
    $region61: #{attention_pnp_forward.1} parent=1 // pred_fallthru
      _
    // Predicated region
    $region62: #{attention_pnp_forward.1} parent=1 // pred_check
      _
    $region63: #{attention_pnp_forward.1} parent=1 // pred_check_branch
      %211 = sbr.rel (0) target = $region65
    $region64: #{attention_pnp_forward.1} parent=1 // pred_region
      %213 = vsyncadd [#allocation25], 0
      %s215 = sshll.u32 %s15, 4
      %s216 = int_to_ptr.hbm [resolvable:$true] %s215
      %s217 = sshll.u32 [#allocation26], 4
      %s218 = int_to_ptr.vmem [resolvable:$true] %s217
      %220 = dma.hbm_to_vmem [thread:$0]  %s216, 32, %s218, [#allocation25]
    $region65: #{attention_pnp_forward.1} parent=1 // pred_fallthru
      _
    // Predicated region
    $region66: #{attention_pnp_forward.1} parent=1 // pred_check
      _
    $region67: #{attention_pnp_forward.1} parent=1 // pred_check_branch
      %222 = sbr.rel (0) target = $region69
    $region68: #{attention_pnp_forward.1} parent=1 // pred_region
      %224 = vsyncadd [#allocation28], 0
      %s226 = sshll.u32 %s16, 4
      %s227 = int_to_ptr.hbm [resolvable:$true] %s226
      %s228 = sshll.u32 [#allocation27], 4
      %s229 = int_to_ptr.vmem [resolvable:$true] %s228
      %231 = dma.hbm_to_vmem [thread:$0]  %s227, 16, %s229, [#allocation28]
    $region69: #{attention_pnp_forward.1} parent=1 // pred_fallthru
      _
    // Predicated region
    $region70: #{attention_pnp_forward.1} parent=1 // pred_check
      _
    $region71: #{attention_pnp_forward.1} parent=1 // pred_check_branch
      %233 = sbr.rel (0) target = $region73
    $region72: #{attention_pnp_forward.1} parent=1 // pred_region
      %235 = vsyncadd [#allocation28], 0
      %s237 = sshll.u32 %s17, 4
      %s238 = int_to_ptr.hbm [resolvable:$true] %s237
      %s239 = sshll.u32 [#allocation29], 4
      %s240 = int_to_ptr.vmem [resolvable:$true] %s239
      %242 = dma.hbm_to_vmem [thread:$0]  %s238, 16, %s240, [#allocation28]
    $region73: #{attention_pnp_forward.1} parent=1 // pred_fallthru
      _
    // Predicated region
    $region74: #{attention_pnp_forward.1} parent=1 // pred_check
      _
    $region75: #{attention_pnp_forward.1} parent=1 // pred_check_branch
      %244 = sbr.rel (0) target = $region77
    $region76: #{attention_pnp_forward.1} parent=1 // pred_region
      %246 = vsyncadd [#allocation31], 0
      %s248 = sshll.u32 %s19, 4
      %s249 = int_to_ptr.hbm [resolvable:$true] %s248
      %s250 = sshll.u32 [#allocation30], 4
      %s251 = int_to_ptr.vmem [resolvable:$true] %s250
      %253 = dma.hbm_to_vmem [thread:$0]  %s249, 64, %s251, [#allocation31]
    $region77: #{attention_pnp_forward.1} parent=1 // pred_fallthru
      _
    // Predicated region
    $region78: #{attention_pnp_forward.1} parent=1 // pred_check
      _
    $region79: #{attention_pnp_forward.1} parent=1 // pred_check_branch
      %255 = sbr.rel (0) target = $region81
    $region80: #{attention_pnp_forward.1} parent=1 // pred_region
      %257 = vsyncadd [#allocation31], 0
      %s258 = sshll.u32 %s20, 4
      %s259 = int_to_ptr.hbm [resolvable:$true] %s258
      %s260 = sshll.u32 [#allocation32], 4
      %s261 = int_to_ptr.vmem [resolvable:$true] %s260
      %266 = dma.hbm_to_vmem [thread:$0]  %s259, 8192, %s261, [#allocation31], 128, 128, 8
    $region81: #{attention_pnp_forward.1} parent=1 // pred_fallthru
      _
    // Predicated region
    $region82: #{attention_pnp_forward.1} parent=1 // pred_check
      _
    $region83: #{attention_pnp_forward.1} parent=1 // pred_check_branch
      %268 = sbr.rel (0) target = $region85
    $region84: #{attention_pnp_forward.1} parent=1 // pred_region
      %270 = vsyncadd [#allocation34], 0
      %s272 = sshll.u32 %s21, 4
      %s273 = int_to_ptr.hbm [resolvable:$true] %s272
      %s274 = sshll.u32 [#allocation33], 4
      %s275 = int_to_ptr.vmem [resolvable:$true] %s274
      %277 = dma.hbm_to_vmem [thread:$0]  %s273, 32, %s275, [#allocation34]
    $region85: #{attention_pnp_forward.1} parent=1 // pred_fallthru
      _
    // Predicated region
    $region86: #{attention_pnp_forward.1} parent=1 // pred_check
      _
    $region87: #{attention_pnp_forward.1} parent=1 // pred_check_branch
      %279 = sbr.rel (0) target = $region89
    $region88: #{attention_pnp_forward.1} parent=1 // pred_region
      _
    $region89: #{attention_pnp_forward.1} parent=1 // pred_fallthru
      _
    // Predicated region
    $region90: #{attention_pnp_forward.1} parent=1 // pred_check
      _
    $region91: #{attention_pnp_forward.1} parent=1 // pred_check_branch
      %281 = sbr.rel (0) target = $region93
    $region92: #{attention_pnp_forward.1} parent=1 // pred_region
      %283 = vsyncadd [#allocation34], 0
      %s285 = sshll.u32 %s23, 4
      %s286 = int_to_ptr.hbm [resolvable:$true] %s285
      %s287 = sshll.u32 [#allocation35], 4
      %s288 = int_to_ptr.vmem [resolvable:$true] %s287
      %290 = dma.hbm_to_vmem [thread:$0]  %s286, 16, %s288, [#allocation34]
    $region93: #{attention_pnp_forward.1} parent=1 // pred_fallthru
      _
    // Predicated region
    $region94: #{attention_pnp_forward.1} parent=1 // pred_check
      _
    $region95: #{attention_pnp_forward.1} parent=1 // pred_check_branch
      %292 = sbr.rel (0) target = $region97
    $region96: #{attention_pnp_forward.1} parent=1 // pred_region
      %294 = dma.done [#allocation5], 1536
    $region97: #{attention_pnp_forward.1} parent=1 // pred_fallthru
      _
    // Predicated region
    $region98: #{attention_pnp_forward.1} parent=1 // pred_check
      _
    $region99: #{attention_pnp_forward.1} parent=1 // pred_check_branch
      %296 = sbr.rel (0) target = $region101
    $region100: #{attention_pnp_forward.1} parent=1 // pred_region
      %298 = dma.done [#allocation7], 16
    $region101: #{attention_pnp_forward.1} parent=1 // pred_fallthru
      _
    // Predicated region
    $region102: #{attention_pnp_forward.1} parent=1 // pred_check
      _
    $region103: #{attention_pnp_forward.1} parent=1 // pred_check_branch
      %300 = sbr.rel (0) target = $region105
    $region104: #{attention_pnp_forward.1} parent=1 // pred_region
      %302 = dma.done [#allocation7], 512
    $region105: #{attention_pnp_forward.1} parent=1 // pred_fallthru
      _
    // Predicated region
    $region106: #{attention_pnp_forward.1} parent=1 // pred_check
      _
    $region107: #{attention_pnp_forward.1} parent=1 // pred_check_branch
      %304 = sbr.rel (0) target = $region109
    $region108: #{attention_pnp_forward.1} parent=1 // pred_region
      %306 = dma.done [#allocation10], 32
    $region109: #{attention_pnp_forward.1} parent=1 // pred_fallthru
      _
    // Predicated region
    $region110: #{attention_pnp_forward.1} parent=1 // pred_check
      _
    $region111: #{attention_pnp_forward.1} parent=1 // pred_check_branch
      %308 = sbr.rel (0) target = $region113
    $region112: #{attention_pnp_forward.1} parent=1 // pred_region
      %310 = dma.done [#allocation10], 32
    $region113: #{attention_pnp_forward.1} parent=1 // pred_fallthru
      _
    // Predicated region
    $region114: #{attention_pnp_forward.1} parent=1 // pred_check
      _
    $region115: #{attention_pnp_forward.1} parent=1 // pred_check_branch
      %312 = sbr.rel (0) target = $region117
    $region116: #{attention_pnp_forward.1} parent=1 // pred_region
      %314 = dma.done [#allocation13], 6144
    $region117: #{attention_pnp_forward.1} parent=1 // pred_fallthru
      _
    // Predicated region
    $region118: #{attention_pnp_forward.1} parent=1 // pred_check
      _
    $region119: #{attention_pnp_forward.1} parent=1 // pred_check_branch
      %316 = sbr.rel (0) target = $region121
    $region120: #{attention_pnp_forward.1} parent=1 // pred_region
      %318 = dma.done [#allocation13], 96
    $region121: #{attention_pnp_forward.1} parent=1 // pred_fallthru
      _
    // Predicated region
    $region122: #{attention_pnp_forward.1} parent=1 // pred_check
      _
    $region123: #{attention_pnp_forward.1} parent=1 // pred_check_branch
      %320 = sbr.rel (0) target = $region125
    $region124: #{attention_pnp_forward.1} parent=1 // pred_region
      %322 = dma.done [#allocation16], 2048
    $region125: #{attention_pnp_forward.1} parent=1 // pred_fallthru
      _
    // Predicated region
    $region126: #{attention_pnp_forward.1} parent=1 // pred_check
      _
    $region127: #{attention_pnp_forward.1} parent=1 // pred_check_branch
      %324 = sbr.rel (0) target = $region129
    $region128: #{attention_pnp_forward.1} parent=1 // pred_region
      %326 = dma.done [#allocation16], 32
    $region129: #{attention_pnp_forward.1} parent=1 // pred_fallthru
      _
    // Predicated region
    $region130: #{attention_pnp_forward.1} parent=1 // pred_check
      _
    $region131: #{attention_pnp_forward.1} parent=1 // pred_check_branch
      %328 = sbr.rel (0) target = $region133
    $region132: #{attention_pnp_forward.1} parent=1 // pred_region
      %330 = dma.done [#allocation19], 32
    $region133: #{attention_pnp_forward.1} parent=1 // pred_fallthru
      _
    // Predicated region
    $region134: #{attention_pnp_forward.1} parent=1 // pred_check
      _
    $region135: #{attention_pnp_forward.1} parent=1 // pred_check_branch
      %332 = sbr.rel (0) target = $region137
    $region136: #{attention_pnp_forward.1} parent=1 // pred_region
      %334 = dma.done [#allocation19], 32
    $region137: #{attention_pnp_forward.1} parent=1 // pred_fallthru
      _
    // Predicated region
    $region138: #{attention_pnp_forward.1} parent=1 // pred_check
      _
    $region139: #{attention_pnp_forward.1} parent=1 // pred_check_branch
      %336 = sbr.rel (0) target = $region141
    $region140: #{attention_pnp_forward.1} parent=1 // pred_region
      %338 = dma.done [#allocation22], 8192
    $region141: #{attention_pnp_forward.1} parent=1 // pred_fallthru
      _
    // Predicated region
    $region142: #{attention_pnp_forward.1} parent=1 // pred_check
      _
    $region143: #{attention_pnp_forward.1} parent=1 // pred_check_branch
      %340 = sbr.rel (0) target = $region145
    $region144: #{attention_pnp_forward.1} parent=1 // pred_region
      %342 = dma.done [#allocation22], 128
    $region145: #{attention_pnp_forward.1} parent=1 // pred_fallthru
      _
    // Predicated region
    $region146: #{attention_pnp_forward.1} parent=1 // pred_check
      _
    $region147: #{attention_pnp_forward.1} parent=1 // pred_check_branch
      %344 = sbr.rel (0) target = $region149
    $region148: #{attention_pnp_forward.1} parent=1 // pred_region
      %346 = dma.done [#allocation25], 8192
    $region149: #{attention_pnp_forward.1} parent=1 // pred_fallthru
      _
    // Predicated region
    $region150: #{attention_pnp_forward.1} parent=1 // pred_check
      _
    $region151: #{attention_pnp_forward.1} parent=1 // pred_check_branch
      %348 = sbr.rel (0) target = $region153
    $region152: #{attention_pnp_forward.1} parent=1 // pred_region
      %350 = dma.done [#allocation25], 32
    $region153: #{attention_pnp_forward.1} parent=1 // pred_fallthru
      _
    // Predicated region
    $region154: #{attention_pnp_forward.1} parent=1 // pred_check
      _
    $region155: #{attention_pnp_forward.1} parent=1 // pred_check_branch
      %352 = sbr.rel (0) target = $region157
    $region156: #{attention_pnp_forward.1} parent=1 // pred_region
      %354 = dma.done [#allocation28], 16
    $region157: #{attention_pnp_forward.1} parent=1 // pred_fallthru
      _
    // Predicated region
    $region158: #{attention_pnp_forward.1} parent=1 // pred_check
      _
    $region159: #{attention_pnp_forward.1} parent=1 // pred_check_branch
      %356 = sbr.rel (0) target = $region161
    $region160: #{attention_pnp_forward.1} parent=1 // pred_region
      %358 = dma.done [#allocation28], 16
    $region161: #{attention_pnp_forward.1} parent=1 // pred_fallthru
      _
    // Predicated region
    $region162: #{attention_pnp_forward.1} parent=1 // pred_check
      _
    $region163: #{attention_pnp_forward.1} parent=1 // pred_check_branch
      %360 = sbr.rel (0) target = $region165
    $region164: #{attention_pnp_forward.1} parent=1 // pred_region
      %362 = dma.done [#allocation31], 64
    $region165: #{attention_pnp_forward.1} parent=1 // pred_fallthru
      _
    // Predicated region
    $region166: #{attention_pnp_forward.1} parent=1 // pred_check
      _
    $region167: #{attention_pnp_forward.1} parent=1 // pred_check_branch
      %364 = sbr.rel (0) target = $region169
    $region168: #{attention_pnp_forward.1} parent=1 // pred_region
      %366 = dma.done [#allocation31], 8192
    $region169: #{attention_pnp_forward.1} parent=1 // pred_fallthru
      _
    // Predicated region
    $region170: #{attention_pnp_forward.1} parent=1 // pred_check
      _
    $region171: #{attention_pnp_forward.1} parent=1 // pred_check_branch
      %368 = sbr.rel (0) target = $region173
    $region172: #{attention_pnp_forward.1} parent=1 // pred_region
      %370 = dma.done [#allocation34], 32
    $region173: #{attention_pnp_forward.1} parent=1 // pred_fallthru
      _
    // Predicated region
    $region174: #{attention_pnp_forward.1} parent=1 // pred_check
      _
    $region175: #{attention_pnp_forward.1} parent=1 // pred_check_branch
      %372 = sbr.rel (0) target = $region177
    $region176: #{attention_pnp_forward.1} parent=1 // pred_region
      %374 = dma.done [#allocation34], 16
    $region177: #{attention_pnp_forward.1} parent=1 // pred_fallthru
      _
    // Predicated region
    $region178: #{attention_pnp_forward.1} parent=1 // pred_check
      _
    $region179: #{attention_pnp_forward.1} parent=1 // pred_check_branch
      %377 = sbr.rel target = $region181
    $region180: #{attention_pnp_forward.1} parent=1 // pred_region
      %378 = sst [smem:[#allocation38]] [#allocation37]
      %379 = sst [smem:[#allocation39]] [#allocation36]
    $region181: #{attention_pnp_forward.1} parent=1 // pred_fallthru
      _
    %381 = shalt.err (0)
    %s383 = sshll.u32 %s18, 4
    %s384 = int_to_ptr.hbm [resolvable:$true] %s383
    %s385 = sshll.u32 [#allocation2], 4
    %s386 = int_to_ptr.vmem [resolvable:$true] %s385
    %388 = dma.hbm_to_vmem [thread:$0]  %s384, 65536, %s386, [#allocation3]
    %v389 = vld [vmem:[%s0] sm:$0xff]
    %v390 = vld [vmem:[%s0 + $0x8] sm:$0xff]
    %v391 = vld [vmem:[%s0 + $0x10] sm:$0xff]
    %v392 = vld [vmem:[%s0 + $0x18] sm:$0xff]
    %v393 = vld [vmem:[#allocation4] sm:$0xf]
    %v394 = vld [vmem:[#allocation4 + $0x4] sm:$0xf]
    %v395 = vld [vmem:[#allocation4 + $0x8] sm:$0xf]
    %v396 = vld [vmem:[#allocation4 + $0xc] sm:$0xf]
    %v397 = vld [vmem:[#allocation4 + $0x10] sm:$0xf]
    %v398 = vld [vmem:[#allocation4 + $0x14] sm:$0xf]
    %v399 = vld [vmem:[#allocation4 + $0x18] sm:$0xf]
    %v400 = vld [vmem:[#allocation4 + $0x1c] sm:$0xf]
    %v401 = vld [vmem:[#allocation4 + $0x20] sm:$0xf]
    %v402 = vld [vmem:[#allocation4 + $0x24] sm:$0xf]
    %v403 = vld [vmem:[#allocation4 + $0x28] sm:$0xf]
    %v404 = vld [vmem:[#allocation4 + $0x2c] sm:$0xf]
    %v405 = vld [vmem:[#allocation4 + $0x30] sm:$0xf]
    %v406 = vld [vmem:[#allocation4 + $0x34] sm:$0xf]
    %v407 = vld [vmem:[#allocation4 + $0x38] sm:$0xf]
    %v408 = vld [vmem:[#allocation4 + $0x3c] sm:$0xf]
    %v409 = vld [vmem:[#allocation4 + $0x40] sm:$0xf]
    %v410 = vld [vmem:[#allocation4 + $0x44] sm:$0xf]
    %v411 = vld [vmem:[#allocation4 + $0x48] sm:$0xf]
    %v412 = vld [vmem:[#allocation4 + $0x4c] sm:$0xf]
    %v413 = vld [vmem:[#allocation4 + $0x50] sm:$0xf]
    %v414 = vld [vmem:[#allocation4 + $0x54] sm:$0xf]
    %v415 = vld [vmem:[#allocation4 + $0x58] sm:$0xf]
    %v416 = vld [vmem:[#allocation4 + $0x5c] sm:$0xf]
    %v417 = vld [vmem:[#allocation6] sm:$0x1]
    %v419 = vperm.slane %v417, 0
    %v425 = vunpack.c.l.b16 %v389
    %v426 = vunpack.c.h.b16 %v389
    %v427 = vunpack.c.l.b16 %v390
    %v428 = vunpack.c.h.b16 %v390
    %v429 = vunpack.c.l.b16 %v391
    %v430 = vunpack.c.h.b16 %v391
    %v431 = vunpack.c.l.b16 %v392
    %v432 = vunpack.c.h.b16 %v392
    %v433 = vpack.c.b16 %v427, %v425
    %v434 = vpack.c.b16 %v428, %v426
    %v435 = vpack.c.b16 %v431, %v429
    %v436 = vpack.c.b16 %v432, %v430
    %v463 = vunpack.c.l.b16 %v393
    %v464 = vunpack.c.l.b16 %v394
    %v465 = vunpack.c.l.b16 %v395
    %v466 = vunpack.c.l.b16 %v396
    %v467 = vunpack.c.l.b16 %v397
    %v468 = vunpack.c.l.b16 %v398
    %v469 = vunpack.c.l.b16 %v399
    %v470 = vunpack.c.l.b16 %v400
    %v471 = vunpack.c.l.b16 %v401
    %v472 = vunpack.c.l.b16 %v402
    %v473 = vunpack.c.l.b16 %v403
    %v474 = vunpack.c.l.b16 %v404
    %v475 = vunpack.c.l.b16 %v405
    %v476 = vunpack.c.l.b16 %v406
    %v477 = vunpack.c.l.b16 %v407
    %v478 = vunpack.c.l.b16 %v408
    %v479 = vunpack.c.l.b16 %v409
    %v480 = vunpack.c.l.b16 %v410
    %v481 = vunpack.c.l.b16 %v411
    %v482 = vunpack.c.l.b16 %v412
    %v483 = vunpack.c.l.b16 %v413
    %v484 = vunpack.c.l.b16 %v414
    %v485 = vunpack.c.l.b16 %v415
    %v486 = vunpack.c.l.b16 %v416
    %v487 = vpack.c.b16 %v464, %v463
    %v488 = vpack.c.b16 %v466, %v465
    %v489 = vpack.c.b16 %v468, %v467
    %v490 = vpack.c.b16 %v470, %v469
    %v491 = vpack.c.b16 %v472, %v471
    %v492 = vpack.c.b16 %v474, %v473
    %v493 = vpack.c.b16 %v476, %v475
    %v494 = vpack.c.b16 %v478, %v477
    %v495 = vpack.c.b16 %v480, %v479
    %v496 = vpack.c.b16 %v482, %v481
    %v497 = vpack.c.b16 %v484, %v483
    %v498 = vpack.c.b16 %v486, %v485
    %vm511 = vcmask 523264
    %v513 = vsel %vm511, %v434, 0
    %v516 = vsel %vm511, %v436, 0
    %518 = vmatpush.bf16.msra.mxu0 %v494
    %519 = vmatpush.bf16.msra.mxu0 %v493
    %520 = vmatpush.bf16.msra.mxu0 %v492
    %521 = vmatpush.bf16.msra.mxu0 %v491
    %522 = vmatpush.bf16.msra.mxu0 %v490
    %523 = vmatpush.bf16.msra.mxu0 %v489
    %524 = vmatpush.bf16.msra.mxu0 %v488
    %525 = vmatpush.bf16.msra.mxu0 %v487
    %526 = vmatmul.bf16.gmra.mxu0 %v433
    %v527 = vpop.f32.mrf.mxu0
    %v528 = vadd.f32 %v419, %v527
    %v529 = vpop.f32.mrf.mxu0
    %v530 = vadd.f32 %v419, %v529
    %531 = vmatmul.bf16.gmra.mxu0 %v435
    %v532 = vpop.f32.mrf.mxu0
    %v533 = vadd.f32 %v419, %v532
    %v534 = vpop.f32.mrf.mxu0
    %v535 = vadd.f32 %v419, %v534
    %536 = vdwg.mxu0
    %537 = vmatpush.bf16.msra.mxu0 0
    %538 = vmatpush.bf16.msra.mxu0 0
    %539 = vmatpush.bf16.msra.mxu0 0
    %540 = vmatpush.bf16.msra.mxu0 0
    %541 = vmatpush.bf16.msra.mxu0 %v498
    %542 = vmatpush.bf16.msra.mxu0 %v497
    %543 = vmatpush.bf16.msra.mxu0 %v496
    %544 = vmatpush.bf16.msra.mxu0 %v495
    %545 = vmatmul.bf16.gmra.mxu0 %v513
    %v546 = vpop.f32.mrf.mxu0
    %v547 = vadd.f32 %v528, %v546
    %v548 = vpop.f32.mrf.mxu0
    %v549 = vadd.f32 %v530, %v548
    %550 = vmatmul.bf16.gmra.mxu0 %v516
    %v551 = vpop.f32.mrf.mxu0
    %v552 = vadd.f32 %v533, %v551
    %v553 = vpop.f32.mrf.mxu0
    %v554 = vadd.f32 %v535, %v553
    %555 = vdwg.mxu0
    %v556 = vld [vmem:[#allocation8] sm:$0xff]
    %v557 = vld [vmem:[#allocation8 + $0x8] sm:$0xff]
    %v558 = vld [vmem:[#allocation8 + $0x10] sm:$0xff]
    %v559 = vld [vmem:[#allocation8 + $0x18] sm:$0xff]
    %v560 = vadd.f32 %v547, %v556
    %v561 = vadd.f32 %v549, %v557
    %v562 = vadd.f32 %v552, %v558
    %v563 = vadd.f32 %v554, %v559
    %v564 = vld [vmem:[#allocation9] sm:$0x1]
    %v565 = vld [vmem:[#allocation11] sm:$0x1]
    %566 = vadd.xlane.f32.xlu0 %v560
    %v567 = vpop.xlane.xlu0 %566
    %568 = vadd.xlane.f32.xlu0 %v561
    %v569 = vpop.xlane.xlu0 %568
    %570 = vadd.xlane.f32.xlu0 %v562
    %v571 = vpop.xlane.xlu0 %570
    %572 = vadd.xlane.f32.xlu0 %v563
    %v573 = vpop.xlane.xlu0 %572
    %v574 = vrcp.pop 128.0
    %v575 = vmul.f32 128.0, %v574
    %v576 = vsub.f32 1.0, %v575
    %v577 = vmul.f32 %v574, %v576
    %v578 = vadd.f32 %v574, %v577
    %vm579 = vweird.f32 %v574
    %v580 = vsel %vm579, %v574, %v578
    %v581 = vmul.f32 %v567, %v580
    %v582 = vmul.f32 %v569, %v580
    %v583 = vmul.f32 %v571, %v580
    %v584 = vmul.f32 %v573, %v580
    %v585 = vsub.f32 %v560, %v581
    %v586 = vsub.f32 %v561, %v582
    %v587 = vsub.f32 %v562, %v583
    %v588 = vsub.f32 %v563, %v584
    %v589 = vmul.f32 %v585, %v585
    %v590 = vmul.f32 %v586, %v586
    %v591 = vmul.f32 %v587, %v587
    %v592 = vmul.f32 %v588, %v588
    %593 = vadd.xlane.f32.xlu0 %v589
    %v594 = vpop.xlane.xlu0 %593
    %595 = vadd.xlane.f32.xlu0 %v590
    %v596 = vpop.xlane.xlu0 %595
    %597 = vadd.xlane.f32.xlu0 %v591
    %v598 = vpop.xlane.xlu0 %597
    %599 = vadd.xlane.f32.xlu0 %v592
    %v600 = vpop.xlane.xlu0 %599
    %v601 = vmul.f32 %v594, %v580
    %v602 = vmul.f32 %v596, %v580
    %v603 = vmul.f32 %v598, %v580
    %v604 = vmul.f32 %v600, %v580
    %v605 = vadd.f32 %v601, 1e-05
    %v606 = vadd.f32 %v602, 1e-05
    %v607 = vadd.f32 %v603, 1e-05
    %v608 = vadd.f32 %v604, 1e-05
    %v609 = vrsqrt.pop %v605
    %v610 = vmul.f32 %v609, %v605
    %v611 = vmul.f32 %v610, %v609
    %v612 = vmul.f32 0.5, %v611
    %v613 = vsub.f32 1.5, %v612
    %v614 = vmul.f32 %v609, %v613
    %vm615 = vweird.f32 %v605
    %vm616 = vweird.f32 %v609
    %vm617 = vmor %vm615, %vm616
    %v618 = vsel %vm617, %v609, %v614
    %v619 = vrsqrt.pop %v606
    %v620 = vmul.f32 %v619, %v606
    %v621 = vmul.f32 %v620, %v619
    %v622 = vmul.f32 0.5, %v621
    %v623 = vsub.f32 1.5, %v622
    %v624 = vmul.f32 %v619, %v623
    %vm625 = vweird.f32 %v606
    %vm626 = vweird.f32 %v619
    %vm627 = vmor %vm625, %vm626
    %v628 = vsel %vm627, %v619, %v624
    %v629 = vrsqrt.pop %v607
    %v630 = vmul.f32 %v629, %v607
    %v631 = vmul.f32 %v630, %v629
    %v632 = vmul.f32 0.5, %v631
    %v633 = vsub.f32 1.5, %v632
    %v634 = vmul.f32 %v629, %v633
    %vm635 = vweird.f32 %v607
    %vm636 = vweird.f32 %v629
    %vm637 = vmor %vm635, %vm636
    %v638 = vsel %vm637, %v629, %v634
    %v639 = vrsqrt.pop %v608
    %v640 = vmul.f32 %v639, %v608
    %v641 = vmul.f32 %v640, %v639
    %v642 = vmul.f32 0.5, %v641
    %v643 = vsub.f32 1.5, %v642
    %v644 = vmul.f32 %v639, %v643
    %vm645 = vweird.f32 %v608
    %vm646 = vweird.f32 %v639
    %vm647 = vmor %vm645, %vm646
    %v648 = vsel %vm647, %v639, %v644
    %v649 = vmul.f32 %v585, %v618
    %v650 = vmul.f32 %v586, %v628
    %v651 = vmul.f32 %v587, %v638
    %v652 = vmul.f32 %v588, %v648
    %v653 = vperm.slane %v564, 0
    %v654 = vmul.f32 %v649, %v653
    %v655 = vmul.f32 %v650, %v653
    %v656 = vmul.f32 %v651, %v653
    %v657 = vmul.f32 %v652, %v653
    %v658 = vperm.slane %v565, 0
    %v659 = vadd.f32 %v654, %v658
    %v660 = vadd.f32 %v655, %v658
    %v661 = vadd.f32 %v656, %v658
    %v662 = vadd.f32 %v657, %v658
    %v663 = vpack.c.bf16 %v660, %v659
    %v664 = vpack.c.bf16 %v662, %v661
    %v665 = vld [vmem:[#allocation12] sm:$0xff]
    %v666 = vld [vmem:[#allocation12 + $0x8] sm:$0xf]
    %v667 = vld [vmem:[#allocation12 + $0xc] sm:$0xff]
    %v668 = vld [vmem:[#allocation12 + $0x14] sm:$0xf]
    %v669 = vld [vmem:[#allocation12 + $0x18] sm:$0xff]
    %v670 = vld [vmem:[#allocation12 + $0x20] sm:$0xf]
    %v671 = vld [vmem:[#allocation12 + $0x24] sm:$0xff]
    %v672 = vld [vmem:[#allocation12 + $0x2c] sm:$0xf]
    %v673 = vld [vmem:[#allocation12 + $0x30] sm:$0xff]
    %v674 = vld [vmem:[#allocation12 + $0x38] sm:$0xf]
    %v675 = vld [vmem:[#allocation12 + $0x3c] sm:$0xff]
    %v676 = vld [vmem:[#allocation12 + $0x44] sm:$0xf]
    %v677 = vld [vmem:[#allocation12 + $0x48] sm:$0xff]
    %v678 = vld [vmem:[#allocation12 + $0x50] sm:$0xf]
    %v679 = vld [vmem:[#allocation12 + $0x54] sm:$0xff]
    %v680 = vld [vmem:[#allocation12 + $0x5c] sm:$0xf]
    %v681 = vld [vmem:[#allocation12 + $0x60] sm:$0xff]
    %v682 = vld [vmem:[#allocation12 + $0x68] sm:$0xf]
    %v683 = vld [vmem:[#allocation12 + $0x6c] sm:$0xff]
    %v684 = vld [vmem:[#allocation12 + $0x74] sm:$0xf]
    %v685 = vld [vmem:[#allocation12 + $0x78] sm:$0xff]
    %v686 = vld [vmem:[#allocation12 + $0x80] sm:$0xf]
    %v687 = vld [vmem:[#allocation12 + $0x84] sm:$0xff]
    %v688 = vld [vmem:[#allocation12 + $0x8c] sm:$0xf]
    %v689 = vld [vmem:[#allocation12 + $0x90] sm:$0xff]
    %v690 = vld [vmem:[#allocation12 + $0x98] sm:$0xf]
    %v691 = vld [vmem:[#allocation12 + $0x9c] sm:$0xff]
    %v692 = vld [vmem:[#allocation12 + $0xa4] sm:$0xf]
    %v693 = vld [vmem:[#allocation12 + $0xa8] sm:$0xff]
    %v694 = vld [vmem:[#allocation12 + $0xb0] sm:$0xf]
    %v695 = vld [vmem:[#allocation12 + $0xb4] sm:$0xff]
    %v696 = vld [vmem:[#allocation12 + $0xbc] sm:$0xf]
    %v697 = vld [vmem:[#allocation14] ss:$2 sm:$0x7]
    %v699 = vperm.slane %v697, 0
    %v700 = vperm.slane %v697, 1
    %v701 = vperm.slane %v697, 2
    %v737 = vunpack.c.l.b16 %v665
    %v738 = vunpack.c.h.b16 %v665
    %v739 = vunpack.c.l.b16 %v666
    %v740 = vunpack.c.l.b16 %v667
    %v741 = vunpack.c.h.b16 %v667
    %v742 = vunpack.c.l.b16 %v668
    %v743 = vunpack.c.l.b16 %v669
    %v744 = vunpack.c.h.b16 %v669
    %v745 = vunpack.c.l.b16 %v670
    %v746 = vunpack.c.l.b16 %v671
    %v747 = vunpack.c.h.b16 %v671
    %v748 = vunpack.c.l.b16 %v672
    %v749 = vunpack.c.l.b16 %v673
    %v750 = vunpack.c.h.b16 %v673
    %v751 = vunpack.c.l.b16 %v674
    %v752 = vunpack.c.l.b16 %v675
    %v753 = vunpack.c.h.b16 %v675
    %v754 = vunpack.c.l.b16 %v676
    %v755 = vunpack.c.l.b16 %v677
    %v756 = vunpack.c.h.b16 %v677
    %v757 = vunpack.c.l.b16 %v678
    %v758 = vunpack.c.l.b16 %v679
    %v759 = vunpack.c.h.b16 %v679
    %v760 = vunpack.c.l.b16 %v680
    %v761 = vunpack.c.l.b16 %v681
    %v762 = vunpack.c.h.b16 %v681
    %v763 = vunpack.c.l.b16 %v682
    %v764 = vunpack.c.l.b16 %v683
    %v765 = vunpack.c.h.b16 %v683
    %v766 = vunpack.c.l.b16 %v684
    %v767 = vunpack.c.l.b16 %v685
    %v768 = vunpack.c.h.b16 %v685
    %v769 = vunpack.c.l.b16 %v686
    %v770 = vunpack.c.l.b16 %v687
    %v771 = vunpack.c.h.b16 %v687
    %v772 = vunpack.c.l.b16 %v688
    %v773 = vunpack.c.l.b16 %v689
    %v774 = vunpack.c.h.b16 %v689
    %v775 = vunpack.c.l.b16 %v690
    %v776 = vunpack.c.l.b16 %v691
    %v777 = vunpack.c.h.b16 %v691
    %v778 = vunpack.c.l.b16 %v692
    %v779 = vunpack.c.l.b16 %v693
    %v780 = vunpack.c.h.b16 %v693
    %v781 = vunpack.c.l.b16 %v694
    %v782 = vunpack.c.l.b16 %v695
    %v783 = vunpack.c.h.b16 %v695
    %v784 = vunpack.c.l.b16 %v696
    %v785 = vpack.c.b16 %v740, %v737
    %v786 = vpack.c.b16 %v741, %v738
    %v787 = vpack.c.b16 %v742, %v739
    %v788 = vpack.c.b16 %v746, %v743
    %v789 = vpack.c.b16 %v747, %v744
    %v790 = vpack.c.b16 %v748, %v745
    %v791 = vpack.c.b16 %v752, %v749
    %v792 = vpack.c.b16 %v753, %v750
    %v793 = vpack.c.b16 %v754, %v751
    %v794 = vpack.c.b16 %v758, %v755
    %v795 = vpack.c.b16 %v759, %v756
    %v796 = vpack.c.b16 %v760, %v757
    %v797 = vpack.c.b16 %v764, %v761
    %v798 = vpack.c.b16 %v765, %v762
    %v799 = vpack.c.b16 %v766, %v763
    %v800 = vpack.c.b16 %v770, %v767
    %v801 = vpack.c.b16 %v771, %v768
    %v802 = vpack.c.b16 %v772, %v769
    %v803 = vpack.c.b16 %v776, %v773
    %v804 = vpack.c.b16 %v777, %v774
    %v805 = vpack.c.b16 %v778, %v775
    %v806 = vpack.c.b16 %v782, %v779
    %v807 = vpack.c.b16 %v783, %v780
    %v808 = vpack.c.b16 %v784, %v781
    %833 = vmatpush.bf16.msra.mxu0 %v806
    %834 = vmatpush.bf16.msra.mxu0 %v803
    %835 = vmatpush.bf16.msra.mxu0 %v800
    %836 = vmatpush.bf16.msra.mxu0 %v797
    %837 = vmatpush.bf16.msra.mxu0 %v794
    %838 = vmatpush.bf16.msra.mxu0 %v791
    %839 = vmatpush.bf16.msra.mxu0 %v788
    %840 = vmatpush.bf16.msra.mxu0 %v785
    %841 = vmatmul.bf16.gmra.mxu0 %v663
    %v842 = vpop.f32.mrf.mxu0
    %v843 = vadd.f32 %v699, %v842
    %v844 = vpop.f32.mrf.mxu0
    %v845 = vadd.f32 %v699, %v844
    %846 = vmatmul.bf16.gmra.mxu0 %v664
    %v847 = vpop.f32.mrf.mxu0
    %v848 = vadd.f32 %v699, %v847
    %v849 = vpop.f32.mrf.mxu0
    %v850 = vadd.f32 %v699, %v849
    %851 = vdwg.mxu0
    %852 = vmatpush.bf16.msra.mxu0 %v807
    %853 = vmatpush.bf16.msra.mxu0 %v804
    %854 = vmatpush.bf16.msra.mxu0 %v801
    %855 = vmatpush.bf16.msra.mxu0 %v798
    %856 = vmatpush.bf16.msra.mxu0 %v795
    %857 = vmatpush.bf16.msra.mxu0 %v792
    %858 = vmatpush.bf16.msra.mxu0 %v789
    %859 = vmatpush.bf16.msra.mxu0 %v786
    %860 = vmatmul.bf16.gmra.mxu0 %v663
    %v861 = vpop.f32.mrf.mxu0
    %v862 = vadd.f32 %v700, %v861
    %v863 = vpop.f32.mrf.mxu0
    %v864 = vadd.f32 %v700, %v863
    %865 = vmatmul.bf16.gmra.mxu0 %v664
    %v866 = vpop.f32.mrf.mxu0
    %v867 = vadd.f32 %v700, %v866
    %v868 = vpop.f32.mrf.mxu0
    %v869 = vadd.f32 %v700, %v868
    %870 = vdwg.mxu0
    %871 = vmatpush.bf16.msra.mxu0 %v808
    %872 = vmatpush.bf16.msra.mxu0 %v805
    %873 = vmatpush.bf16.msra.mxu0 %v802
    %874 = vmatpush.bf16.msra.mxu0 %v799
    %875 = vmatpush.bf16.msra.mxu0 %v796
    %876 = vmatpush.bf16.msra.mxu0 %v793
    %877 = vmatpush.bf16.msra.mxu0 %v790
    %878 = vmatpush.bf16.msra.mxu0 %v787
    %879 = vmatmul.bf16.gmra.mxu0 %v663
    %v880 = vpop.f32.mrf.mxu0
    %v881 = vadd.f32 %v701, %v880
    %v882 = vpop.f32.mrf.mxu0
    %v883 = vadd.f32 %v701, %v882
    %884 = vmatmul.bf16.gmra.mxu0 %v664
    %v885 = vpop.f32.mrf.mxu0
    %v886 = vadd.f32 %v701, %v885
    %v887 = vpop.f32.mrf.mxu0
    %v888 = vadd.f32 %v701, %v887
    %889 = vdwg.mxu0
    %v890 = vpack.c.bf16 %v862, %v843
    %v891 = vpack.c.bf16 %v881, %v881
    %v892 = vpack.c.bf16 %v864, %v845
    %v893 = vpack.c.bf16 %v883, %v883
    %v894 = vpack.c.bf16 %v867, %v848
    %v895 = vpack.c.bf16 %v886, %v886
    %v896 = vpack.c.bf16 %v869, %v850
    %v897 = vpack.c.bf16 %v888, %v888
    %902 = vrot.lane.b32.xlu0 %v890, 96
    %v903 = vpop.permute.xlu0 %902
    %904 = vrot.lane.b32.xlu0 %v892, 96
    %v905 = vpop.permute.xlu0 %904
    %906 = vrot.lane.b32.xlu0 %v894, 96
    %v907 = vpop.permute.xlu0 %906
    %908 = vrot.lane.b32.xlu0 %v896, 96
    %v909 = vpop.permute.xlu0 %908
    %910 = vrot.lane.b32.xlu0 %v890, 64
    %v911 = vpop.permute.xlu0 %910
    %912 = vrot.lane.b32.xlu0 %v892, 64
    %v913 = vpop.permute.xlu0 %912
    %914 = vrot.lane.b32.xlu0 %v894, 64
    %v915 = vpop.permute.xlu0 %914
    %916 = vrot.lane.b32.xlu0 %v896, 64
    %v917 = vpop.permute.xlu0 %916
    %918 = vrot.lane.b32.xlu0 %v890, 32
    %v919 = vpop.permute.xlu0 %918
    %920 = vrot.lane.b32.xlu0 %v892, 32
    %v921 = vpop.permute.xlu0 %920
    %922 = vrot.lane.b32.xlu0 %v894, 32
    %v923 = vpop.permute.xlu0 %922
    %924 = vrot.lane.b32.xlu0 %v896, 32
    %v925 = vpop.permute.xlu0 %924
    %v926 = vrot.slane %v890, 4
    %v927 = vrot.slane %v892, 4
    %v928 = vrot.slane %v894, 4
    %v929 = vrot.slane %v896, 4
    %v930 = vrot.slane %v903, 4
    %v931 = vrot.slane %v905, 4
    %v932 = vrot.slane %v907, 4
    %v933 = vrot.slane %v909, 4
    %v934 = vrot.slane %v911, 4
    %v935 = vrot.slane %v913, 4
    %v936 = vrot.slane %v915, 4
    %v937 = vrot.slane %v917, 4
    %v938 = vrot.slane %v919, 4
    %v939 = vrot.slane %v921, 4
    %v940 = vrot.slane %v923, 4
    %v941 = vrot.slane %v925, 4
    %946 = vrot.lane.b32.xlu0 %v891, 96
    %v947 = vpop.permute.xlu0 %946
    %948 = vrot.lane.b32.xlu0 %v893, 96
    %v949 = vpop.permute.xlu0 %948
    %950 = vrot.lane.b32.xlu0 %v895, 96
    %v951 = vpop.permute.xlu0 %950
    %952 = vrot.lane.b32.xlu0 %v897, 96
    %v953 = vpop.permute.xlu0 %952
    %954 = vrot.lane.b32.xlu0 %v891, 64
    %v955 = vpop.permute.xlu0 %954
    %956 = vrot.lane.b32.xlu0 %v893, 64
    %v957 = vpop.permute.xlu0 %956
    %958 = vrot.lane.b32.xlu0 %v895, 64
    %v959 = vpop.permute.xlu0 %958
    %960 = vrot.lane.b32.xlu0 %v897, 64
    %v961 = vpop.permute.xlu0 %960
    %962 = vrot.lane.b32.xlu0 %v891, 32
    %v963 = vpop.permute.xlu0 %962
    %964 = vrot.lane.b32.xlu0 %v893, 32
    %v965 = vpop.permute.xlu0 %964
    %966 = vrot.lane.b32.xlu0 %v895, 32
    %v967 = vpop.permute.xlu0 %966
    %968 = vrot.lane.b32.xlu0 %v897, 32
    %v969 = vpop.permute.xlu0 %968
    %v970 = vunpack.c.l.b16 %v890
    %v971 = vunpack.c.l.b16 %v892
    %v972 = vpack.c.b16 %v971, %v970
    %v973 = vunpack.c.l.b16 %v926
    %v974 = vunpack.c.l.b16 %v927
    %v975 = vpack.c.b16 %v974, %v973
    %vm976 = vcmask 261120
    %v978 = vsel %vm976, %v972, 0
    %v981 = vsel %vm976, %v975, 0
    %983 = vmatpush.bf16.xpose.msra.mxu0 0
    %984 = vmatpush.bf16.xpose.msra.mxu0 0
    %985 = vmatpush.bf16.xpose.msra.mxu0 0
    %986 = vmatpush.bf16.xpose.msra.mxu0 0
    %987 = vmatpush.bf16.xpose.msra.mxu0 0
    %988 = vmatpush.bf16.xpose.msra.mxu0 0
    %989 = vmatpush.bf16.xpose.msra.mxu0 0
    %990 = vmatpush.bf16.xpose.msra.mxu0 %v981
    %991 = vmatmul.bf16.gmra.mxu0 %v978
    %v992 = vpop.f32.mrf.mxu0
    %v993 = vadd.f32 0.0, %v992
    %v994 = vpop.f32.mrf.mxu0
    %v995 = vadd.f32 0.0, %v994
    %996 = vdwg.mxu0
    %v997 = vunpack.c.l.b16 %v894
    %v998 = vunpack.c.l.b16 %v896
    %v999 = vpack.c.b16 %v998, %v997
    %v1000 = vunpack.c.l.b16 %v928
    %v1001 = vunpack.c.l.b16 %v929
    %v1002 = vpack.c.b16 %v1001, %v1000
    %v1004 = vsel %vm976, %v999, 0
    %v1007 = vsel %vm976, %v1002, 0
    %1009 = vmatpush.bf16.xpose.msra.mxu0 0
    %1010 = vmatpush.bf16.xpose.msra.mxu0 0
    %1011 = vmatpush.bf16.xpose.msra.mxu0 0
    %1012 = vmatpush.bf16.xpose.msra.mxu0 0
    %1013 = vmatpush.bf16.xpose.msra.mxu0 0
    %1014 = vmatpush.bf16.xpose.msra.mxu0 0
    %1015 = vmatpush.bf16.xpose.msra.mxu0 0
    %1016 = vmatpush.bf16.xpose.msra.mxu0 %v1007
    %1017 = vmatmul.bf16.gmra.mxu0 %v1004
    %v1018 = vpop.f32.mrf.mxu0
    %v1019 = vadd.f32 0.0, %v1018
    %v1020 = vpop.f32.mrf.mxu0
    %v1021 = vadd.f32 0.0, %v1020
    %1022 = vdwg.mxu0
    %v1023 = vunpack.c.l.b16 %v903
    %v1024 = vunpack.c.l.b16 %v905
    %v1025 = vpack.c.b16 %v1024, %v1023
    %v1026 = vunpack.c.l.b16 %v930
    %v1027 = vunpack.c.l.b16 %v931
    %v1028 = vpack.c.b16 %v1027, %v1026
    %v1030 = vsel %vm976, %v1025, 0
    %v1033 = vsel %vm976, %v1028, 0
    %1035 = vmatpush.bf16.xpose.msra.mxu0 0
    %1036 = vmatpush.bf16.xpose.msra.mxu0 0
    %1037 = vmatpush.bf16.xpose.msra.mxu0 0
    %1038 = vmatpush.bf16.xpose.msra.mxu0 0
    %1039 = vmatpush.bf16.xpose.msra.mxu0 0
    %1040 = vmatpush.bf16.xpose.msra.mxu0 0
    %1041 = vmatpush.bf16.xpose.msra.mxu0 0
    %1042 = vmatpush.bf16.xpose.msra.mxu0 %v1033
    %1043 = vmatmul.bf16.gmra.mxu0 %v1030
    %v1044 = vpop.f32.mrf.mxu0
    %v1045 = vadd.f32 0.0, %v1044
    %v1046 = vpop.f32.mrf.mxu0
    %v1047 = vadd.f32 0.0, %v1046
    %1048 = vdwg.mxu0
    %v1049 = vunpack.c.l.b16 %v907
    %v1050 = vunpack.c.l.b16 %v909
    %v1051 = vpack.c.b16 %v1050, %v1049
    %v1052 = vunpack.c.l.b16 %v932
    %v1053 = vunpack.c.l.b16 %v933
    %v1054 = vpack.c.b16 %v1053, %v1052
    %v1056 = vsel %vm976, %v1051, 0
    %v1059 = vsel %vm976, %v1054, 0
    %1061 = vmatpush.bf16.xpose.msra.mxu0 0
    %1062 = vmatpush.bf16.xpose.msra.mxu0 0
    %1063 = vmatpush.bf16.xpose.msra.mxu0 0
    %1064 = vmatpush.bf16.xpose.msra.mxu0 0
    %1065 = vmatpush.bf16.xpose.msra.mxu0 0
    %1066 = vmatpush.bf16.xpose.msra.mxu0 0
    %1067 = vmatpush.bf16.xpose.msra.mxu0 0
    %1068 = vmatpush.bf16.xpose.msra.mxu0 %v1059
    %1069 = vmatmul.bf16.gmra.mxu0 %v1056
    %v1070 = vpop.f32.mrf.mxu0
    %v1071 = vadd.f32 0.0, %v1070
    %v1072 = vpop.f32.mrf.mxu0
    %v1073 = vadd.f32 0.0, %v1072
    %1074 = vdwg.mxu0
    %v1075 = vunpack.c.l.b16 %v911
    %v1076 = vunpack.c.l.b16 %v913
    %v1077 = vpack.c.b16 %v1076, %v1075
    %v1078 = vunpack.c.l.b16 %v934
    %v1079 = vunpack.c.l.b16 %v935
    %v1080 = vpack.c.b16 %v1079, %v1078
    %v1082 = vsel %vm976, %v1077, 0
    %v1085 = vsel %vm976, %v1080, 0
    %1087 = vmatpush.bf16.xpose.msra.mxu0 0
    %1088 = vmatpush.bf16.xpose.msra.mxu0 0
    %1089 = vmatpush.bf16.xpose.msra.mxu0 0
    %1090 = vmatpush.bf16.xpose.msra.mxu0 0
    %1091 = vmatpush.bf16.xpose.msra.mxu0 0
    %1092 = vmatpush.bf16.xpose.msra.mxu0 0
    %1093 = vmatpush.bf16.xpose.msra.mxu0 0
    %1094 = vmatpush.bf16.xpose.msra.mxu0 %v1085
    %1095 = vmatmul.bf16.gmra.mxu0 %v1082
    %v1096 = vpop.f32.mrf.mxu0
    %v1097 = vadd.f32 0.0, %v1096
    %v1098 = vpop.f32.mrf.mxu0
    %v1099 = vadd.f32 0.0, %v1098
    %1100 = vdwg.mxu0
    %v1101 = vunpack.c.l.b16 %v915
    %v1102 = vunpack.c.l.b16 %v917
    %v1103 = vpack.c.b16 %v1102, %v1101
    %v1104 = vunpack.c.l.b16 %v936
    %v1105 = vunpack.c.l.b16 %v937
    %v1106 = vpack.c.b16 %v1105, %v1104
    %v1108 = vsel %vm976, %v1103, 0
    %v1111 = vsel %vm976, %v1106, 0
    %1113 = vmatpush.bf16.xpose.msra.mxu0 0
    %1114 = vmatpush.bf16.xpose.msra.mxu0 0
    %1115 = vmatpush.bf16.xpose.msra.mxu0 0
    %1116 = vmatpush.bf16.xpose.msra.mxu0 0
    %1117 = vmatpush.bf16.xpose.msra.mxu0 0
    %1118 = vmatpush.bf16.xpose.msra.mxu0 0
    %1119 = vmatpush.bf16.xpose.msra.mxu0 0
    %1120 = vmatpush.bf16.xpose.msra.mxu0 %v1111
    %1121 = vmatmul.bf16.gmra.mxu0 %v1108
    %v1122 = vpop.f32.mrf.mxu0
    %v1123 = vadd.f32 0.0, %v1122
    %v1124 = vpop.f32.mrf.mxu0
    %v1125 = vadd.f32 0.0, %v1124
    %1126 = vdwg.mxu0
    %v1127 = vunpack.c.l.b16 %v919
    %v1128 = vunpack.c.l.b16 %v921
    %v1129 = vpack.c.b16 %v1128, %v1127
    %v1130 = vunpack.c.l.b16 %v938
    %v1131 = vunpack.c.l.b16 %v939
    %v1132 = vpack.c.b16 %v1131, %v1130
    %v1134 = vsel %vm976, %v1129, 0
    %v1137 = vsel %vm976, %v1132, 0
    %1139 = vmatpush.bf16.xpose.msra.mxu0 0
    %1140 = vmatpush.bf16.xpose.msra.mxu0 0
    %1141 = vmatpush.bf16.xpose.msra.mxu0 0
    %1142 = vmatpush.bf16.xpose.msra.mxu0 0
    %1143 = vmatpush.bf16.xpose.msra.mxu0 0
    %1144 = vmatpush.bf16.xpose.msra.mxu0 0
    %1145 = vmatpush.bf16.xpose.msra.mxu0 0
    %1146 = vmatpush.bf16.xpose.msra.mxu0 %v1137
    %1147 = vmatmul.bf16.gmra.mxu0 %v1134
    %v1148 = vpop.f32.mrf.mxu0
    %v1149 = vadd.f32 0.0, %v1148
    %v1150 = vpop.f32.mrf.mxu0
    %v1151 = vadd.f32 0.0, %v1150
    %1152 = vdwg.mxu0
    %v1153 = vunpack.c.l.b16 %v923
    %v1154 = vunpack.c.l.b16 %v925
    %v1155 = vpack.c.b16 %v1154, %v1153
    %v1156 = vunpack.c.l.b16 %v940
    %v1157 = vunpack.c.l.b16 %v941
    %v1158 = vpack.c.b16 %v1157, %v1156
    %v1160 = vsel %vm976, %v1155, 0
    %v1163 = vsel %vm976, %v1158, 0
    %1165 = vmatpush.bf16.xpose.msra.mxu0 0
    %1166 = vmatpush.bf16.xpose.msra.mxu0 0
    %1167 = vmatpush.bf16.xpose.msra.mxu0 0
    %1168 = vmatpush.bf16.xpose.msra.mxu0 0
    %1169 = vmatpush.bf16.xpose.msra.mxu0 0
    %1170 = vmatpush.bf16.xpose.msra.mxu0 0
    %1171 = vmatpush.bf16.xpose.msra.mxu0 0
    %1172 = vmatpush.bf16.xpose.msra.mxu0 %v1163
    %1173 = vmatmul.bf16.gmra.mxu0 %v1160
    %v1174 = vpop.f32.mrf.mxu0
    %v1175 = vadd.f32 0.0, %v1174
    %v1176 = vpop.f32.mrf.mxu0
    %v1177 = vadd.f32 0.0, %v1176
    %1178 = vdwg.mxu0
    %vm1179 = vcmask 130048
    %v1180 = vsel %vm1179, %v993, -inf
    %1181 = vmax.xlane.f32.xlu0 %v1180
    %v1182 = vpop.xlane.xlu0 %1181
    %v1183 = vsel %vm1179, %v995, -inf
    %1184 = vmax.xlane.f32.xlu0 %v1183
    %v1185 = vpop.xlane.xlu0 %1184
    %v1186 = vsel %vm1179, %v1019, -inf
    %1187 = vmax.xlane.f32.xlu0 %v1186
    %v1188 = vpop.xlane.xlu0 %1187
    %v1189 = vsel %vm1179, %v1021, -inf
    %1190 = vmax.xlane.f32.xlu0 %v1189
    %v1191 = vpop.xlane.xlu0 %1190
    %v1192 = vsel %vm1179, %v1045, -inf
    %1193 = vmax.xlane.f32.xlu0 %v1192
    %v1194 = vpop.xlane.xlu0 %1193
    %v1195 = vsel %vm1179, %v1047, -inf
    %1196 = vmax.xlane.f32.xlu0 %v1195
    %v1197 = vpop.xlane.xlu0 %1196
    %v1198 = vsel %vm1179, %v1071, -inf
    %1199 = vmax.xlane.f32.xlu0 %v1198
    %v1200 = vpop.xlane.xlu0 %1199
    %v1201 = vsel %vm1179, %v1073, -inf
    %1202 = vmax.xlane.f32.xlu0 %v1201
    %v1203 = vpop.xlane.xlu0 %1202
    %v1204 = vsel %vm1179, %v1097, -inf
    %1205 = vmax.xlane.f32.xlu0 %v1204
    %v1206 = vpop.xlane.xlu0 %1205
    %v1207 = vsel %vm1179, %v1099, -inf
    %1208 = vmax.xlane.f32.xlu0 %v1207
    %v1209 = vpop.xlane.xlu0 %1208
    %v1210 = vsel %vm1179, %v1123, -inf
    %1211 = vmax.xlane.f32.xlu0 %v1210
    %v1212 = vpop.xlane.xlu0 %1211
    %v1213 = vsel %vm1179, %v1125, -inf
    %1214 = vmax.xlane.f32.xlu0 %v1213
    %v1215 = vpop.xlane.xlu0 %1214
    %v1216 = vsel %vm1179, %v1149, -inf
    %1217 = vmax.xlane.f32.xlu0 %v1216
    %v1218 = vpop.xlane.xlu0 %1217
    %v1219 = vsel %vm1179, %v1151, -inf
    %1220 = vmax.xlane.f32.xlu0 %v1219
    %v1221 = vpop.xlane.xlu0 %1220
    %v1222 = vsel %vm1179, %v1175, -inf
    %1223 = vmax.xlane.f32.xlu0 %v1222
    %v1224 = vpop.xlane.xlu0 %1223
    %v1225 = vsel %vm1179, %v1177, -inf
    %1226 = vmax.xlane.f32.xlu0 %v1225
    %v1227 = vpop.xlane.xlu0 %1226
    %v1228 = vsub.f32 %v993, %v1182
    %v1229 = vsub.f32 %v995, %v1185
    %v1230 = vsub.f32 %v1019, %v1188
    %v1231 = vsub.f32 %v1021, %v1191
    %v1232 = vsub.f32 %v1045, %v1194
    %v1233 = vsub.f32 %v1047, %v1197
    %v1234 = vsub.f32 %v1071, %v1200
    %v1235 = vsub.f32 %v1073, %v1203
    %v1236 = vsub.f32 %v1097, %v1206
    %v1237 = vsub.f32 %v1099, %v1209
    %v1238 = vsub.f32 %v1123, %v1212
    %v1239 = vsub.f32 %v1125, %v1215
    %v1240 = vsub.f32 %v1149, %v1218
    %v1241 = vsub.f32 %v1151, %v1221
    %v1242 = vsub.f32 %v1175, %v1224
    %v1243 = vsub.f32 %v1177, %v1227
    %v1244 = vmul.f32 %v1228, 1.442695
    %v1245 = vpow.pop %v1244
    %v1246 = vmul.f32 %v1229, 1.442695
    %v1247 = vpow.pop %v1246
    %v1248 = vmul.f32 %v1230, 1.442695
    %v1249 = vpow.pop %v1248
    %v1250 = vmul.f32 %v1231, 1.442695
    %v1251 = vpow.pop %v1250
    %v1252 = vmul.f32 %v1232, 1.442695
    %v1253 = vpow.pop %v1252
    %v1254 = vmul.f32 %v1233, 1.442695
    %v1255 = vpow.pop %v1254
    %v1256 = vmul.f32 %v1234, 1.442695
    %v1257 = vpow.pop %v1256
    %v1258 = vmul.f32 %v1235, 1.442695
    %v1259 = vpow.pop %v1258
    %v1260 = vmul.f32 %v1236, 1.442695
    %v1261 = vpow.pop %v1260
    %v1262 = vmul.f32 %v1237, 1.442695
    %v1263 = vpow.pop %v1262
    %v1264 = vmul.f32 %v1238, 1.442695
    %v1265 = vpow.pop %v1264
    %v1266 = vmul.f32 %v1239, 1.442695
    %v1267 = vpow.pop %v1266
    %v1268 = vmul.f32 %v1240, 1.442695
    %v1269 = vpow.pop %v1268
    %v1270 = vmul.f32 %v1241, 1.442695
    %v1271 = vpow.pop %v1270
    %v1272 = vmul.f32 %v1242, 1.442695
    %v1273 = vpow.pop %v1272
    %v1274 = vmul.f32 %v1243, 1.442695
    %v1275 = vpow.pop %v1274
    %v1276 = vsel %vm1179, %v1245, 0.0
    %1277 = vadd.xlane.f32.xlu0 %v1276
    %v1278 = vpop.xlane.xlu0 %1277
    %v1279 = vsel %vm1179, %v1247, 0.0
    %1280 = vadd.xlane.f32.xlu0 %v1279
    %v1281 = vpop.xlane.xlu0 %1280
    %v1282 = vsel %vm1179, %v1249, 0.0
    %1283 = vadd.xlane.f32.xlu0 %v1282
    %v1284 = vpop.xlane.xlu0 %1283
    %v1285 = vsel %vm1179, %v1251, 0.0
    %1286 = vadd.xlane.f32.xlu0 %v1285
    %v1287 = vpop.xlane.xlu0 %1286
    %v1288 = vsel %vm1179, %v1253, 0.0
    %1289 = vadd.xlane.f32.xlu0 %v1288
    %v1290 = vpop.xlane.xlu0 %1289
    %v1291 = vsel %vm1179, %v1255, 0.0
    %1292 = vadd.xlane.f32.xlu0 %v1291
    %v1293 = vpop.xlane.xlu0 %1292
    %v1294 = vsel %vm1179, %v1257, 0.0
    %1295 = vadd.xlane.f32.xlu0 %v1294
    %v1296 = vpop.xlane.xlu0 %1295
    %v1297 = vsel %vm1179, %v1259, 0.0
    %1298 = vadd.xlane.f32.xlu0 %v1297
    %v1299 = vpop.xlane.xlu0 %1298
    %v1300 = vsel %vm1179, %v1261, 0.0
    %1301 = vadd.xlane.f32.xlu0 %v1300
    %v1302 = vpop.xlane.xlu0 %1301
    %v1303 = vsel %vm1179, %v1263, 0.0
    %1304 = vadd.xlane.f32.xlu0 %v1303
    %v1305 = vpop.xlane.xlu0 %1304
    %v1306 = vsel %vm1179, %v1265, 0.0
    %1307 = vadd.xlane.f32.xlu0 %v1306
    %v1308 = vpop.xlane.xlu0 %1307
    %v1309 = vsel %vm1179, %v1267, 0.0
    %1310 = vadd.xlane.f32.xlu0 %v1309
    %v1311 = vpop.xlane.xlu0 %1310
    %v1312 = vsel %vm1179, %v1269, 0.0
    %1313 = vadd.xlane.f32.xlu0 %v1312
    %v1314 = vpop.xlane.xlu0 %1313
    %v1315 = vsel %vm1179, %v1271, 0.0
    %1316 = vadd.xlane.f32.xlu0 %v1315
    %v1317 = vpop.xlane.xlu0 %1316
    %v1318 = vsel %vm1179, %v1273, 0.0
    %1319 = vadd.xlane.f32.xlu0 %v1318
    %v1320 = vpop.xlane.xlu0 %1319
    %v1321 = vsel %vm1179, %v1275, 0.0
    %1322 = vadd.xlane.f32.xlu0 %v1321
    %v1323 = vpop.xlane.xlu0 %1322
    %v1324 = vrcp.pop %v1278
    %v1325 = vrcp.pop %v1281
    %v1326 = vrcp.pop %v1284
    %v1327 = vrcp.pop %v1287
    %v1328 = vrcp.pop %v1290
    %v1329 = vrcp.pop %v1293
    %v1330 = vrcp.pop %v1296
    %v1331 = vrcp.pop %v1299
    %v1332 = vrcp.pop %v1302
    %v1333 = vrcp.pop %v1305
    %v1334 = vrcp.pop %v1308
    %v1335 = vrcp.pop %v1311
    %v1336 = vrcp.pop %v1314
    %v1337 = vrcp.pop %v1317
    %v1338 = vrcp.pop %v1320
    %v1339 = vrcp.pop %v1323
    %v1340 = vmul.f32 %v1245, %v1324
    %v1341 = vmul.f32 %v1247, %v1325
    %v1342 = vmul.f32 %v1249, %v1326
    %v1343 = vmul.f32 %v1251, %v1327
    %v1344 = vmul.f32 %v1253, %v1328
    %v1345 = vmul.f32 %v1255, %v1329
    %v1346 = vmul.f32 %v1257, %v1330
    %v1347 = vmul.f32 %v1259, %v1331
    %v1348 = vmul.f32 %v1261, %v1332
    %v1349 = vmul.f32 %v1263, %v1333
    %v1350 = vmul.f32 %v1265, %v1334
    %v1351 = vmul.f32 %v1267, %v1335
    %v1352 = vmul.f32 %v1269, %v1336
    %v1353 = vmul.f32 %v1271, %v1337
    %v1354 = vmul.f32 %v1273, %v1338
    %v1355 = vmul.f32 %v1275, %v1339
    %v1356 = vpack.c.bf16 %v1340, %v1340
    %v1357 = vpack.c.bf16 %v1341, %v1341
    %v1358 = vpack.c.bf16 %v1342, %v1342
    %v1359 = vpack.c.bf16 %v1343, %v1343
    %v1360 = vpack.c.bf16 %v1344, %v1344
    %v1361 = vpack.c.bf16 %v1345, %v1345
    %v1362 = vpack.c.bf16 %v1346, %v1346
    %v1363 = vpack.c.bf16 %v1347, %v1347
    %v1364 = vpack.c.bf16 %v1348, %v1348
    %v1365 = vpack.c.bf16 %v1349, %v1349
    %v1366 = vpack.c.bf16 %v1350, %v1350
    %v1367 = vpack.c.bf16 %v1351, %v1351
    %v1368 = vpack.c.bf16 %v1352, %v1352
    %v1369 = vpack.c.bf16 %v1353, %v1353
    %v1370 = vpack.c.bf16 %v1354, %v1354
    %v1371 = vpack.c.bf16 %v1355, %v1355
    %v1374 = vunpack.c.l.b16 %v1356
    %v1375 = vunpack.c.l.b16 %v1357
    %v1376 = vpack.c.b16 %v1375, %v1374
    %v1377 = vunpack.c.l.b16 %v891
    %v1378 = vunpack.c.l.b16 %v893
    %v1379 = vpack.c.b16 %v1378, %v1377
    %v1382 = vsel %vm1179, %v1376, 0
    %1384 = vmatpush.bf16.msra.mxu0 0
    %1385 = vmatpush.bf16.msra.mxu0 0
    %1386 = vmatpush.bf16.msra.mxu0 0
    %1387 = vmatpush.bf16.msra.mxu0 0
    %1388 = vmatpush.bf16.msra.mxu0 0
    %1389 = vmatpush.bf16.msra.mxu0 0
    %1390 = vmatpush.bf16.msra.mxu0 0
    %1391 = vmatpush.bf16.msra.mxu0 %v1379
    %1392 = vmatmul.bf16.gmra.mxu0 %v1382
    %v1393 = vpop.f32.mrf.mxu0
    %v1394 = vadd.f32 0.0, %v1393
    %v1395 = vpop.f32.mrf.mxu0
    %v1396 = vadd.f32 0.0, %v1395
    %1397 = vdwg.mxu0
    %v1400 = vunpack.c.l.b16 %v1358
    %v1401 = vunpack.c.l.b16 %v1359
    %v1402 = vpack.c.b16 %v1401, %v1400
    %v1403 = vunpack.c.l.b16 %v895
    %v1404 = vunpack.c.l.b16 %v897
    %v1405 = vpack.c.b16 %v1404, %v1403
    %v1408 = vsel %vm1179, %v1402, 0
    %1410 = vmatpush.bf16.msra.mxu0 0
    %1411 = vmatpush.bf16.msra.mxu0 0
    %1412 = vmatpush.bf16.msra.mxu0 0
    %1413 = vmatpush.bf16.msra.mxu0 0
    %1414 = vmatpush.bf16.msra.mxu0 0
    %1415 = vmatpush.bf16.msra.mxu0 0
    %1416 = vmatpush.bf16.msra.mxu0 0
    %1417 = vmatpush.bf16.msra.mxu0 %v1405
    %1418 = vmatmul.bf16.gmra.mxu0 %v1408
    %v1419 = vpop.f32.mrf.mxu0
    %v1420 = vadd.f32 0.0, %v1419
    %v1421 = vpop.f32.mrf.mxu0
    %v1422 = vadd.f32 0.0, %v1421
    %1423 = vdwg.mxu0
    %v1426 = vunpack.c.l.b16 %v1360
    %v1427 = vunpack.c.l.b16 %v1361
    %v1428 = vpack.c.b16 %v1427, %v1426
    %v1429 = vunpack.c.l.b16 %v947
    %v1430 = vunpack.c.l.b16 %v949
    %v1431 = vpack.c.b16 %v1430, %v1429
    %v1434 = vsel %vm1179, %v1428, 0
    %1436 = vmatpush.bf16.msra.mxu0 0
    %1437 = vmatpush.bf16.msra.mxu0 0
    %1438 = vmatpush.bf16.msra.mxu0 0
    %1439 = vmatpush.bf16.msra.mxu0 0
    %1440 = vmatpush.bf16.msra.mxu0 0
    %1441 = vmatpush.bf16.msra.mxu0 0
    %1442 = vmatpush.bf16.msra.mxu0 0
    %1443 = vmatpush.bf16.msra.mxu0 %v1431
    %1444 = vmatmul.bf16.gmra.mxu0 %v1434
    %v1445 = vpop.f32.mrf.mxu0
    %v1446 = vadd.f32 0.0, %v1445
    %v1447 = vpop.f32.mrf.mxu0
    %v1448 = vadd.f32 0.0, %v1447
    %1449 = vdwg.mxu0
    %v1452 = vunpack.c.l.b16 %v1362
    %v1453 = vunpack.c.l.b16 %v1363
    %v1454 = vpack.c.b16 %v1453, %v1452
    %v1455 = vunpack.c.l.b16 %v951
    %v1456 = vunpack.c.l.b16 %v953
    %v1457 = vpack.c.b16 %v1456, %v1455
    %v1460 = vsel %vm1179, %v1454, 0
    %1462 = vmatpush.bf16.msra.mxu0 0
    %1463 = vmatpush.bf16.msra.mxu0 0
    %1464 = vmatpush.bf16.msra.mxu0 0
    %1465 = vmatpush.bf16.msra.mxu0 0
    %1466 = vmatpush.bf16.msra.mxu0 0
    %1467 = vmatpush.bf16.msra.mxu0 0
    %1468 = vmatpush.bf16.msra.mxu0 0
    %1469 = vmatpush.bf16.msra.mxu0 %v1457
    %1470 = vmatmul.bf16.gmra.mxu0 %v1460
    %v1471 = vpop.f32.mrf.mxu0
    %v1472 = vadd.f32 0.0, %v1471
    %v1473 = vpop.f32.mrf.mxu0
    %v1474 = vadd.f32 0.0, %v1473
    %1475 = vdwg.mxu0
    %v1478 = vunpack.c.l.b16 %v1364
    %v1479 = vunpack.c.l.b16 %v1365
    %v1480 = vpack.c.b16 %v1479, %v1478
    %v1481 = vunpack.c.l.b16 %v955
    %v1482 = vunpack.c.l.b16 %v957
    %v1483 = vpack.c.b16 %v1482, %v1481
    %v1486 = vsel %vm1179, %v1480, 0
    %1488 = vmatpush.bf16.msra.mxu0 0
    %1489 = vmatpush.bf16.msra.mxu0 0
    %1490 = vmatpush.bf16.msra.mxu0 0
    %1491 = vmatpush.bf16.msra.mxu0 0
    %1492 = vmatpush.bf16.msra.mxu0 0
    %1493 = vmatpush.bf16.msra.mxu0 0
    %1494 = vmatpush.bf16.msra.mxu0 0
    %1495 = vmatpush.bf16.msra.mxu0 %v1483
    %1496 = vmatmul.bf16.gmra.mxu0 %v1486
    %v1497 = vpop.f32.mrf.mxu0
    %v1498 = vadd.f32 0.0, %v1497
    %v1499 = vpop.f32.mrf.mxu0
    %v1500 = vadd.f32 0.0, %v1499
    %1501 = vdwg.mxu0
    %v1504 = vunpack.c.l.b16 %v1366
    %v1505 = vunpack.c.l.b16 %v1367
    %v1506 = vpack.c.b16 %v1505, %v1504
    %v1507 = vunpack.c.l.b16 %v959
    %v1508 = vunpack.c.l.b16 %v961
    %v1509 = vpack.c.b16 %v1508, %v1507
    %v1512 = vsel %vm1179, %v1506, 0
    %1514 = vmatpush.bf16.msra.mxu0 0
    %1515 = vmatpush.bf16.msra.mxu0 0
    %1516 = vmatpush.bf16.msra.mxu0 0
    %1517 = vmatpush.bf16.msra.mxu0 0
    %1518 = vmatpush.bf16.msra.mxu0 0
    %1519 = vmatpush.bf16.msra.mxu0 0
    %1520 = vmatpush.bf16.msra.mxu0 0
    %1521 = vmatpush.bf16.msra.mxu0 %v1509
    %1522 = vmatmul.bf16.gmra.mxu0 %v1512
    %v1523 = vpop.f32.mrf.mxu0
    %v1524 = vadd.f32 0.0, %v1523
    %v1525 = vpop.f32.mrf.mxu0
    %v1526 = vadd.f32 0.0, %v1525
    %1527 = vdwg.mxu0
    %v1530 = vunpack.c.l.b16 %v1368
    %v1531 = vunpack.c.l.b16 %v1369
    %v1532 = vpack.c.b16 %v1531, %v1530
    %v1533 = vunpack.c.l.b16 %v963
    %v1534 = vunpack.c.l.b16 %v965
    %v1535 = vpack.c.b16 %v1534, %v1533
    %v1538 = vsel %vm1179, %v1532, 0
    %1540 = vmatpush.bf16.msra.mxu0 0
    %1541 = vmatpush.bf16.msra.mxu0 0
    %1542 = vmatpush.bf16.msra.mxu0 0
    %1543 = vmatpush.bf16.msra.mxu0 0
    %1544 = vmatpush.bf16.msra.mxu0 0
    %1545 = vmatpush.bf16.msra.mxu0 0
    %1546 = vmatpush.bf16.msra.mxu0 0
    %1547 = vmatpush.bf16.msra.mxu0 %v1535
    %1548 = vmatmul.bf16.gmra.mxu0 %v1538
    %v1549 = vpop.f32.mrf.mxu0
    %v1550 = vadd.f32 0.0, %v1549
    %v1551 = vpop.f32.mrf.mxu0
    %v1552 = vadd.f32 0.0, %v1551
    %1553 = vdwg.mxu0
    %v1556 = vunpack.c.l.b16 %v1370
    %v1557 = vunpack.c.l.b16 %v1371
    %v1558 = vpack.c.b16 %v1557, %v1556
    %v1559 = vunpack.c.l.b16 %v967
    %v1560 = vunpack.c.l.b16 %v969
    %v1561 = vpack.c.b16 %v1560, %v1559
    %v1564 = vsel %vm1179, %v1558, 0
    %1566 = vmatpush.bf16.msra.mxu0 0
    %1567 = vmatpush.bf16.msra.mxu0 0
    %1568 = vmatpush.bf16.msra.mxu0 0
    %1569 = vmatpush.bf16.msra.mxu0 0
    %1570 = vmatpush.bf16.msra.mxu0 0
    %1571 = vmatpush.bf16.msra.mxu0 0
    %1572 = vmatpush.bf16.msra.mxu0 0
    %1573 = vmatpush.bf16.msra.mxu0 %v1561
    %1574 = vmatmul.bf16.gmra.mxu0 %v1564
    %v1575 = vpop.f32.mrf.mxu0
    %v1576 = vadd.f32 0.0, %v1575
    %v1577 = vpop.f32.mrf.mxu0
    %v1578 = vadd.f32 0.0, %v1577
    %1579 = vdwg.mxu0
    %1584 = vrot.lane.b32.xlu0 %v1446, 32
    %v1585 = vpop.permute.xlu0 %1584
    %1586 = vrot.lane.b32.xlu0 %v1448, 32
    %v1587 = vpop.permute.xlu0 %1586
    %1588 = vrot.lane.b32.xlu0 %v1472, 32
    %v1589 = vpop.permute.xlu0 %1588
    %1590 = vrot.lane.b32.xlu0 %v1474, 32
    %v1591 = vpop.permute.xlu0 %1590
    %1600 = vrot.lane.b32.xlu0 %v1498, 64
    %v1601 = vpop.permute.xlu0 %1600
    %1602 = vrot.lane.b32.xlu0 %v1500, 64
    %v1603 = vpop.permute.xlu0 %1602
    %1604 = vrot.lane.b32.xlu0 %v1524, 64
    %v1605 = vpop.permute.xlu0 %1604
    %1606 = vrot.lane.b32.xlu0 %v1526, 64
    %v1607 = vpop.permute.xlu0 %1606
    %1616 = vrot.lane.b32.xlu0 %v1550, 96
    %v1617 = vpop.permute.xlu0 %1616
    %1618 = vrot.lane.b32.xlu0 %v1552, 96
    %v1619 = vpop.permute.xlu0 %1618
    %1620 = vrot.lane.b32.xlu0 %v1576, 96
    %v1621 = vpop.permute.xlu0 %1620
    %1622 = vrot.lane.b32.xlu0 %v1578, 96
    %v1623 = vpop.permute.xlu0 %1622
    %v1628 = vsel %vm976, %v1394, %v1585
    %v1629 = vsel %vm976, %v1396, %v1587
    %v1630 = vsel %vm976, %v1420, %v1589
    %v1631 = vsel %vm976, %v1422, %v1591
    %v1632 = vsel %vm511, %v1628, %v1601
    %v1633 = vsel %vm511, %v1629, %v1603
    %v1634 = vsel %vm511, %v1630, %v1605
    %v1635 = vsel %vm511, %v1631, %v1607
    %vm1636 = vcmask 785408
    %v1637 = vsel %vm1636, %v1632, %v1617
    %v1638 = vsel %vm1636, %v1633, %v1619
    %v1639 = vsel %vm1636, %v1634, %v1621
    %v1640 = vsel %vm1636, %v1635, %v1623
    %v1641 = vpack.c.bf16 %v1638, %v1637
    %v1642 = vpack.c.bf16 %v1640, %v1639
    %v1643 = vld [vmem:[#allocation15] sm:$0xf]
    %v1644 = vld [vmem:[#allocation15 + $0x4] sm:$0xf]
    %v1645 = vld [vmem:[#allocation15 + $0x8] sm:$0xf]
    %v1646 = vld [vmem:[#allocation15 + $0xc] sm:$0xf]
    %v1647 = vld [vmem:[#allocation15 + $0x10] sm:$0xf]
    %v1648 = vld [vmem:[#allocation15 + $0x14] sm:$0xf]
    %v1649 = vld [vmem:[#allocation15 + $0x18] sm:$0xf]
    %v1650 = vld [vmem:[#allocation15 + $0x1c] sm:$0xf]
    %v1651 = vld [vmem:[#allocation15 + $0x20] sm:$0xf]
    %v1652 = vld [vmem:[#allocation15 + $0x24] sm:$0xf]
    %v1653 = vld [vmem:[#allocation15 + $0x28] sm:$0xf]
    %v1654 = vld [vmem:[#allocation15 + $0x2c] sm:$0xf]
    %v1655 = vld [vmem:[#allocation15 + $0x30] sm:$0xf]
    %v1656 = vld [vmem:[#allocation15 + $0x34] sm:$0xf]
    %v1657 = vld [vmem:[#allocation15 + $0x38] sm:$0xf]
    %v1658 = vld [vmem:[#allocation15 + $0x3c] sm:$0xf]
    %v1675 = vunpack.c.l.b16 %v1643
    %v1676 = vunpack.c.l.b16 %v1644
    %v1677 = vunpack.c.l.b16 %v1645
    %v1678 = vunpack.c.l.b16 %v1646
    %v1679 = vunpack.c.l.b16 %v1647
    %v1680 = vunpack.c.l.b16 %v1648
    %v1681 = vunpack.c.l.b16 %v1649
    %v1682 = vunpack.c.l.b16 %v1650
    %v1683 = vunpack.c.l.b16 %v1651
    %v1684 = vunpack.c.l.b16 %v1652
    %v1685 = vunpack.c.l.b16 %v1653
    %v1686 = vunpack.c.l.b16 %v1654
    %v1687 = vunpack.c.l.b16 %v1655
    %v1688 = vunpack.c.l.b16 %v1656
    %v1689 = vunpack.c.l.b16 %v1657
    %v1690 = vunpack.c.l.b16 %v1658
    %v1691 = vpack.c.b16 %v1676, %v1675
    %v1692 = vpack.c.b16 %v1678, %v1677
    %v1693 = vpack.c.b16 %v1680, %v1679
    %v1694 = vpack.c.b16 %v1682, %v1681
    %v1695 = vpack.c.b16 %v1684, %v1683
    %v1696 = vpack.c.b16 %v1686, %v1685
    %v1697 = vpack.c.b16 %v1688, %v1687
    %v1698 = vpack.c.b16 %v1690, %v1689
    %1707 = vmatpush.bf16.msra.mxu0 %v1698
    %1708 = vmatpush.bf16.msra.mxu0 %v1697
    %1709 = vmatpush.bf16.msra.mxu0 %v1696
    %1710 = vmatpush.bf16.msra.mxu0 %v1695
    %1711 = vmatpush.bf16.msra.mxu0 %v1694
    %1712 = vmatpush.bf16.msra.mxu0 %v1693
    %1713 = vmatpush.bf16.msra.mxu0 %v1692
    %1714 = vmatpush.bf16.msra.mxu0 %v1691
    %1715 = vmatmul.bf16.gmra.mxu0 %v1641
    %v1716 = vpop.f32.mrf.mxu0
    %v1717 = vadd.f32 0.0, %v1716
    %v1718 = vpop.f32.mrf.mxu0
    %v1719 = vadd.f32 0.0, %v1718
    %1720 = vmatmul.bf16.gmra.mxu0 %v1642
    %v1721 = vpop.f32.mrf.mxu0
    %v1722 = vadd.f32 0.0, %v1721
    %v1723 = vpop.f32.mrf.mxu0
    %v1724 = vadd.f32 0.0, %v1723
    %1725 = vdwg.mxu0
    %v1726 = vadd.f32 %v560, %v1717
    %v1727 = vadd.f32 %v561, %v1719
    %v1728 = vadd.f32 %v562, %v1722
    %v1729 = vadd.f32 %v563, %v1724
    %v1730 = vld [vmem:[#allocation17] sm:$0x1]
    %v1731 = vperm.slane %v1730, 0
    %v1732 = vadd.f32 %v1726, %v1731
    %v1733 = vadd.f32 %v1727, %v1731
    %v1734 = vadd.f32 %v1728, %v1731
    %v1735 = vadd.f32 %v1729, %v1731
    %v1736 = vld [vmem:[#allocation18] sm:$0x1]
    %v1737 = vld [vmem:[#allocation20] sm:$0x1]
    %1738 = vadd.xlane.f32.xlu0 %v1732
    %v1739 = vpop.xlane.xlu0 %1738
    %1740 = vadd.xlane.f32.xlu0 %v1733
    %v1741 = vpop.xlane.xlu0 %1740
    %1742 = vadd.xlane.f32.xlu0 %v1734
    %v1743 = vpop.xlane.xlu0 %1742
    %1744 = vadd.xlane.f32.xlu0 %v1735
    %v1745 = vpop.xlane.xlu0 %1744
    %v1746 = vmul.f32 %v1739, %v580
    %v1747 = vmul.f32 %v1741, %v580
    %v1748 = vmul.f32 %v1743, %v580
    %v1749 = vmul.f32 %v1745, %v580
    %v1750 = vsub.f32 %v1732, %v1746
    %v1751 = vsub.f32 %v1733, %v1747
    %v1752 = vsub.f32 %v1734, %v1748
    %v1753 = vsub.f32 %v1735, %v1749
    %v1754 = vmul.f32 %v1750, %v1750
    %v1755 = vmul.f32 %v1751, %v1751
    %v1756 = vmul.f32 %v1752, %v1752
    %v1757 = vmul.f32 %v1753, %v1753
    %1758 = vadd.xlane.f32.xlu0 %v1754
    %v1759 = vpop.xlane.xlu0 %1758
    %1760 = vadd.xlane.f32.xlu0 %v1755
    %v1761 = vpop.xlane.xlu0 %1760
    %1762 = vadd.xlane.f32.xlu0 %v1756
    %v1763 = vpop.xlane.xlu0 %1762
    %1764 = vadd.xlane.f32.xlu0 %v1757
    %v1765 = vpop.xlane.xlu0 %1764
    %v1766 = vmul.f32 %v1759, %v580
    %v1767 = vmul.f32 %v1761, %v580
    %v1768 = vmul.f32 %v1763, %v580
    %v1769 = vmul.f32 %v1765, %v580
    %v1770 = vadd.f32 %v1766, 1e-05
    %v1771 = vadd.f32 %v1767, 1e-05
    %v1772 = vadd.f32 %v1768, 1e-05
    %v1773 = vadd.f32 %v1769, 1e-05
    %v1774 = vrsqrt.pop %v1770
    %v1775 = vmul.f32 %v1774, %v1770
    %v1776 = vmul.f32 %v1775, %v1774
    %v1777 = vmul.f32 0.5, %v1776
    %v1778 = vsub.f32 1.5, %v1777
    %v1779 = vmul.f32 %v1774, %v1778
    %vm1780 = vweird.f32 %v1770
    %vm1781 = vweird.f32 %v1774
    %vm1782 = vmor %vm1780, %vm1781
    %v1783 = vsel %vm1782, %v1774, %v1779
    %v1784 = vrsqrt.pop %v1771
    %v1785 = vmul.f32 %v1784, %v1771
    %v1786 = vmul.f32 %v1785, %v1784
    %v1787 = vmul.f32 0.5, %v1786
    %v1788 = vsub.f32 1.5, %v1787
    %v1789 = vmul.f32 %v1784, %v1788
    %vm1790 = vweird.f32 %v1771
    %vm1791 = vweird.f32 %v1784
    %vm1792 = vmor %vm1790, %vm1791
    %v1793 = vsel %vm1792, %v1784, %v1789
    %v1794 = vrsqrt.pop %v1772
    %v1795 = vmul.f32 %v1794, %v1772
    %v1796 = vmul.f32 %v1795, %v1794
    %v1797 = vmul.f32 0.5, %v1796
    %v1798 = vsub.f32 1.5, %v1797
    %v1799 = vmul.f32 %v1794, %v1798
    %vm1800 = vweird.f32 %v1772
    %vm1801 = vweird.f32 %v1794
    %vm1802 = vmor %vm1800, %vm1801
    %v1803 = vsel %vm1802, %v1794, %v1799
    %v1804 = vrsqrt.pop %v1773
    %v1805 = vmul.f32 %v1804, %v1773
    %v1806 = vmul.f32 %v1805, %v1804
    %v1807 = vmul.f32 0.5, %v1806
    %v1808 = vsub.f32 1.5, %v1807
    %v1809 = vmul.f32 %v1804, %v1808
    %vm1810 = vweird.f32 %v1773
    %vm1811 = vweird.f32 %v1804
    %vm1812 = vmor %vm1810, %vm1811
    %v1813 = vsel %vm1812, %v1804, %v1809
    %v1814 = vmul.f32 %v1750, %v1783
    %v1815 = vmul.f32 %v1751, %v1793
    %v1816 = vmul.f32 %v1752, %v1803
    %v1817 = vmul.f32 %v1753, %v1813
    %v1818 = vperm.slane %v1736, 0
    %v1819 = vmul.f32 %v1814, %v1818
    %v1820 = vmul.f32 %v1815, %v1818
    %v1821 = vmul.f32 %v1816, %v1818
    %v1822 = vmul.f32 %v1817, %v1818
    %v1823 = vperm.slane %v1737, 0
    %v1824 = vadd.f32 %v1819, %v1823
    %v1825 = vadd.f32 %v1820, %v1823
    %v1826 = vadd.f32 %v1821, %v1823
    %v1827 = vadd.f32 %v1822, %v1823
    %v1828 = vpack.c.bf16 %v1825, %v1824
    %v1829 = vpack.c.bf16 %v1827, %v1826
    %v1830 = vld [vmem:[#allocation21] sm:$0xff]
    %v1831 = vld [vmem:[#allocation21 + $0x8] sm:$0xff]
    %v1832 = vld [vmem:[#allocation21 + $0x10] sm:$0xff]
    %v1833 = vld [vmem:[#allocation21 + $0x18] sm:$0xff]
    %v1834 = vld [vmem:[#allocation21 + $0x20] sm:$0xff]
    %v1835 = vld [vmem:[#allocation21 + $0x28] sm:$0xff]
    %v1836 = vld [vmem:[#allocation21 + $0x30] sm:$0xff]
    %v1837 = vld [vmem:[#allocation21 + $0x38] sm:$0xff]
    %v1838 = vld [vmem:[#allocation21 + $0x40] sm:$0xff]
    %v1839 = vld [vmem:[#allocation21 + $0x48] sm:$0xff]
    %v1840 = vld [vmem:[#allocation21 + $0x50] sm:$0xff]
    %v1841 = vld [vmem:[#allocation21 + $0x58] sm:$0xff]
    %v1842 = vld [vmem:[#allocation21 + $0x60] sm:$0xff]
    %v1843 = vld [vmem:[#allocation21 + $0x68] sm:$0xff]
    %v1844 = vld [vmem:[#allocation21 + $0x70] sm:$0xff]
    %v1845 = vld [vmem:[#allocation21 + $0x78] sm:$0xff]
    %v1846 = vld [vmem:[#allocation21 + $0x80] sm:$0xff]
    %v1847 = vld [vmem:[#allocation21 + $0x88] sm:$0xff]
    %v1848 = vld [vmem:[#allocation21 + $0x90] sm:$0xff]
    %v1849 = vld [vmem:[#allocation21 + $0x98] sm:$0xff]
    %v1850 = vld [vmem:[#allocation21 + $0xa0] sm:$0xff]
    %v1851 = vld [vmem:[#allocation21 + $0xa8] sm:$0xff]
    %v1852 = vld [vmem:[#allocation21 + $0xb0] sm:$0xff]
    %v1853 = vld [vmem:[#allocation21 + $0xb8] sm:$0xff]
    %v1854 = vld [vmem:[#allocation21 + $0xc0] sm:$0xff]
    %v1855 = vld [vmem:[#allocation21 + $0xc8] sm:$0xff]
    %v1856 = vld [vmem:[#allocation21 + $0xd0] sm:$0xff]
    %v1857 = vld [vmem:[#allocation21 + $0xd8] sm:$0xff]
    %v1858 = vld [vmem:[#allocation21 + $0xe0] sm:$0xff]
    %v1859 = vld [vmem:[#allocation21 + $0xe8] sm:$0xff]
    %v1860 = vld [vmem:[#allocation21 + $0xf0] sm:$0xff]
    %v1861 = vld [vmem:[#allocation21 + $0xf8] sm:$0xff]
    %v1862 = vld [vmem:[#allocation23] ss:$2 sm:$0xf]
    %v1864 = vperm.slane %v1862, 0
    %v1865 = vperm.slane %v1862, 1
    %v1866 = vperm.slane %v1862, 2
    %v1867 = vperm.slane %v1862, 3
    %v1904 = vunpack.c.l.b16 %v1830
    %v1905 = vunpack.c.h.b16 %v1830
    %v1906 = vunpack.c.l.b16 %v1831
    %v1907 = vunpack.c.h.b16 %v1831
    %v1908 = vunpack.c.l.b16 %v1832
    %v1909 = vunpack.c.h.b16 %v1832
    %v1910 = vunpack.c.l.b16 %v1833
    %v1911 = vunpack.c.h.b16 %v1833
    %v1912 = vunpack.c.l.b16 %v1834
    %v1913 = vunpack.c.h.b16 %v1834
    %v1914 = vunpack.c.l.b16 %v1835
    %v1915 = vunpack.c.h.b16 %v1835
    %v1916 = vunpack.c.l.b16 %v1836
    %v1917 = vunpack.c.h.b16 %v1836
    %v1918 = vunpack.c.l.b16 %v1837
    %v1919 = vunpack.c.h.b16 %v1837
    %v1920 = vunpack.c.l.b16 %v1838
    %v1921 = vunpack.c.h.b16 %v1838
    %v1922 = vunpack.c.l.b16 %v1839
    %v1923 = vunpack.c.h.b16 %v1839
    %v1924 = vunpack.c.l.b16 %v1840
    %v1925 = vunpack.c.h.b16 %v1840
    %v1926 = vunpack.c.l.b16 %v1841
    %v1927 = vunpack.c.h.b16 %v1841
    %v1928 = vunpack.c.l.b16 %v1842
    %v1929 = vunpack.c.h.b16 %v1842
    %v1930 = vunpack.c.l.b16 %v1843
    %v1931 = vunpack.c.h.b16 %v1843
    %v1932 = vunpack.c.l.b16 %v1844
    %v1933 = vunpack.c.h.b16 %v1844
    %v1934 = vunpack.c.l.b16 %v1845
    %v1935 = vunpack.c.h.b16 %v1845
    %v1936 = vunpack.c.l.b16 %v1846
    %v1937 = vunpack.c.h.b16 %v1846
    %v1938 = vunpack.c.l.b16 %v1847
    %v1939 = vunpack.c.h.b16 %v1847
    %v1940 = vunpack.c.l.b16 %v1848
    %v1941 = vunpack.c.h.b16 %v1848
    %v1942 = vunpack.c.l.b16 %v1849
    %v1943 = vunpack.c.h.b16 %v1849
    %v1944 = vunpack.c.l.b16 %v1850
    %v1945 = vunpack.c.h.b16 %v1850
    %v1946 = vunpack.c.l.b16 %v1851
    %v1947 = vunpack.c.h.b16 %v1851
    %v1948 = vunpack.c.l.b16 %v1852
    %v1949 = vunpack.c.h.b16 %v1852
    %v1950 = vunpack.c.l.b16 %v1853
    %v1951 = vunpack.c.h.b16 %v1853
    %v1952 = vunpack.c.l.b16 %v1854
    %v1953 = vunpack.c.h.b16 %v1854
    %v1954 = vunpack.c.l.b16 %v1855
    %v1955 = vunpack.c.h.b16 %v1855
    %v1956 = vunpack.c.l.b16 %v1856
    %v1957 = vunpack.c.h.b16 %v1856
    %v1958 = vunpack.c.l.b16 %v1857
    %v1959 = vunpack.c.h.b16 %v1857
    %v1960 = vunpack.c.l.b16 %v1858
    %v1961 = vunpack.c.h.b16 %v1858
    %v1962 = vunpack.c.l.b16 %v1859
    %v1963 = vunpack.c.h.b16 %v1859
    %v1964 = vunpack.c.l.b16 %v1860
    %v1965 = vunpack.c.h.b16 %v1860
    %v1966 = vunpack.c.l.b16 %v1861
    %v1967 = vunpack.c.h.b16 %v1861
    %v1968 = vpack.c.b16 %v1908, %v1904
    %v1969 = vpack.c.b16 %v1909, %v1905
    %v1970 = vpack.c.b16 %v1910, %v1906
    %v1971 = vpack.c.b16 %v1911, %v1907
    %v1972 = vpack.c.b16 %v1916, %v1912
    %v1973 = vpack.c.b16 %v1917, %v1913
    %v1974 = vpack.c.b16 %v1918, %v1914
    %v1975 = vpack.c.b16 %v1919, %v1915
    %v1976 = vpack.c.b16 %v1924, %v1920
    %v1977 = vpack.c.b16 %v1925, %v1921
    %v1978 = vpack.c.b16 %v1926, %v1922
    %v1979 = vpack.c.b16 %v1927, %v1923
    %v1980 = vpack.c.b16 %v1932, %v1928
    %v1981 = vpack.c.b16 %v1933, %v1929
    %v1982 = vpack.c.b16 %v1934, %v1930
    %v1983 = vpack.c.b16 %v1935, %v1931
    %v1984 = vpack.c.b16 %v1940, %v1936
    %v1985 = vpack.c.b16 %v1941, %v1937
    %v1986 = vpack.c.b16 %v1942, %v1938
    %v1987 = vpack.c.b16 %v1943, %v1939
    %v1988 = vpack.c.b16 %v1948, %v1944
    %v1989 = vpack.c.b16 %v1949, %v1945
    %v1990 = vpack.c.b16 %v1950, %v1946
    %v1991 = vpack.c.b16 %v1951, %v1947
    %v1992 = vpack.c.b16 %v1956, %v1952
    %v1993 = vpack.c.b16 %v1957, %v1953
    %v1994 = vpack.c.b16 %v1958, %v1954
    %v1995 = vpack.c.b16 %v1959, %v1955
    %v1996 = vpack.c.b16 %v1964, %v1960
    %v1997 = vpack.c.b16 %v1965, %v1961
    %v1998 = vpack.c.b16 %v1966, %v1962
    %v1999 = vpack.c.b16 %v1967, %v1963
    %2032 = vmatpush.bf16.msra.mxu0 %v1996
    %2033 = vmatpush.bf16.msra.mxu0 %v1992
    %2034 = vmatpush.bf16.msra.mxu0 %v1988
    %2035 = vmatpush.bf16.msra.mxu0 %v1984
    %2036 = vmatpush.bf16.msra.mxu0 %v1980
    %2037 = vmatpush.bf16.msra.mxu0 %v1976
    %2038 = vmatpush.bf16.msra.mxu0 %v1972
    %2039 = vmatpush.bf16.msra.mxu0 %v1968
    %2040 = vmatmul.bf16.gmra.mxu0 %v1828
    %v2041 = vpop.f32.mrf.mxu0
    %v2042 = vadd.f32 %v1864, %v2041
    %v2043 = vpop.f32.mrf.mxu0
    %v2044 = vadd.f32 %v1864, %v2043
    %2045 = vmatmul.bf16.gmra.mxu0 %v1829
    %v2046 = vpop.f32.mrf.mxu0
    %v2047 = vadd.f32 %v1864, %v2046
    %v2048 = vpop.f32.mrf.mxu0
    %v2049 = vadd.f32 %v1864, %v2048
    %2050 = vdwg.mxu0
    %2051 = vmatpush.bf16.msra.mxu0 %v1997
    %2052 = vmatpush.bf16.msra.mxu0 %v1993
    %2053 = vmatpush.bf16.msra.mxu0 %v1989
    %2054 = vmatpush.bf16.msra.mxu0 %v1985
    %2055 = vmatpush.bf16.msra.mxu0 %v1981
    %2056 = vmatpush.bf16.msra.mxu0 %v1977
    %2057 = vmatpush.bf16.msra.mxu0 %v1973
    %2058 = vmatpush.bf16.msra.mxu0 %v1969
    %2059 = vmatmul.bf16.gmra.mxu0 %v1828
    %v2060 = vpop.f32.mrf.mxu0
    %v2061 = vadd.f32 %v1865, %v2060
    %v2062 = vpop.f32.mrf.mxu0
    %v2063 = vadd.f32 %v1865, %v2062
    %2064 = vmatmul.bf16.gmra.mxu0 %v1829
    %v2065 = vpop.f32.mrf.mxu0
    %v2066 = vadd.f32 %v1865, %v2065
    %v2067 = vpop.f32.mrf.mxu0
    %v2068 = vadd.f32 %v1865, %v2067
    %2069 = vdwg.mxu0
    %2070 = vmatpush.bf16.msra.mxu0 %v1998
    %2071 = vmatpush.bf16.msra.mxu0 %v1994
    %2072 = vmatpush.bf16.msra.mxu0 %v1990
    %2073 = vmatpush.bf16.msra.mxu0 %v1986
    %2074 = vmatpush.bf16.msra.mxu0 %v1982
    %2075 = vmatpush.bf16.msra.mxu0 %v1978
    %2076 = vmatpush.bf16.msra.mxu0 %v1974
    %2077 = vmatpush.bf16.msra.mxu0 %v1970
    %2078 = vmatmul.bf16.gmra.mxu0 %v1828
    %v2079 = vpop.f32.mrf.mxu0
    %v2080 = vadd.f32 %v1866, %v2079
    %v2081 = vpop.f32.mrf.mxu0
    %v2082 = vadd.f32 %v1866, %v2081
    %2083 = vmatmul.bf16.gmra.mxu0 %v1829
    %v2084 = vpop.f32.mrf.mxu0
    %v2085 = vadd.f32 %v1866, %v2084
    %v2086 = vpop.f32.mrf.mxu0
    %v2087 = vadd.f32 %v1866, %v2086
    %2088 = vdwg.mxu0
    %2089 = vmatpush.bf16.msra.mxu0 %v1999
    %2090 = vmatpush.bf16.msra.mxu0 %v1995
    %2091 = vmatpush.bf16.msra.mxu0 %v1991
    %2092 = vmatpush.bf16.msra.mxu0 %v1987
    %2093 = vmatpush.bf16.msra.mxu0 %v1983
    %2094 = vmatpush.bf16.msra.mxu0 %v1979
    %2095 = vmatpush.bf16.msra.mxu0 %v1975
    %2096 = vmatpush.bf16.msra.mxu0 %v1971
    %2097 = vmatmul.bf16.gmra.mxu0 %v1828
    %v2098 = vpop.f32.mrf.mxu0
    %v2099 = vadd.f32 %v1867, %v2098
    %v2100 = vpop.f32.mrf.mxu0
    %v2101 = vadd.f32 %v1867, %v2100
    %2102 = vmatmul.bf16.gmra.mxu0 %v1829
    %v2103 = vpop.f32.mrf.mxu0
    %v2104 = vadd.f32 %v1867, %v2103
    %v2105 = vpop.f32.mrf.mxu0
    %v2106 = vadd.f32 %v1867, %v2105
    %2107 = vdwg.mxu0
    %v2108 = vmul.f32 %v2042, 0.5
    %v2109 = vmul.f32 %v2061, 0.5
    %v2110 = vmul.f32 %v2080, 0.5
    %v2111 = vmul.f32 %v2099, 0.5
    %v2112 = vmul.f32 %v2044, 0.5
    %v2113 = vmul.f32 %v2063, 0.5
    %v2114 = vmul.f32 %v2082, 0.5
    %v2115 = vmul.f32 %v2101, 0.5
    %v2116 = vmul.f32 %v2047, 0.5
    %v2117 = vmul.f32 %v2066, 0.5
    %v2118 = vmul.f32 %v2085, 0.5
    %v2119 = vmul.f32 %v2104, 0.5
    %v2120 = vmul.f32 %v2049, 0.5
    %v2121 = vmul.f32 %v2068, 0.5
    %v2122 = vmul.f32 %v2087, 0.5
    %v2123 = vmul.f32 %v2106, 0.5
    %v2124 = vmul.f32 %v2042, 0.044715
    %v2125 = vmul.f32 %v2061, 0.044715
    %v2126 = vmul.f32 %v2080, 0.044715
    %v2127 = vmul.f32 %v2099, 0.044715
    %v2128 = vmul.f32 %v2044, 0.044715
    %v2129 = vmul.f32 %v2063, 0.044715
    %v2130 = vmul.f32 %v2082, 0.044715
    %v2131 = vmul.f32 %v2101, 0.044715
    %v2132 = vmul.f32 %v2047, 0.044715
    %v2133 = vmul.f32 %v2066, 0.044715
    %v2134 = vmul.f32 %v2085, 0.044715
    %v2135 = vmul.f32 %v2104, 0.044715
    %v2136 = vmul.f32 %v2049, 0.044715
    %v2137 = vmul.f32 %v2068, 0.044715
    %v2138 = vmul.f32 %v2087, 0.044715
    %v2139 = vmul.f32 %v2106, 0.044715
    %v2140 = vmul.f32 %v2124, %v2042
    %v2141 = vmul.f32 %v2125, %v2061
    %v2142 = vmul.f32 %v2126, %v2080
    %v2143 = vmul.f32 %v2127, %v2099
    %v2144 = vmul.f32 %v2128, %v2044
    %v2145 = vmul.f32 %v2129, %v2063
    %v2146 = vmul.f32 %v2130, %v2082
    %v2147 = vmul.f32 %v2131, %v2101
    %v2148 = vmul.f32 %v2132, %v2047
    %v2149 = vmul.f32 %v2133, %v2066
    %v2150 = vmul.f32 %v2134, %v2085
    %v2151 = vmul.f32 %v2135, %v2104
    %v2152 = vmul.f32 %v2136, %v2049
    %v2153 = vmul.f32 %v2137, %v2068
    %v2154 = vmul.f32 %v2138, %v2087
    %v2155 = vmul.f32 %v2139, %v2106
    %v2156 = vmul.f32 %v2140, %v2042
    %v2157 = vmul.f32 %v2141, %v2061
    %v2158 = vmul.f32 %v2142, %v2080
    %v2159 = vmul.f32 %v2143, %v2099
    %v2160 = vmul.f32 %v2144, %v2044
    %v2161 = vmul.f32 %v2145, %v2063
    %v2162 = vmul.f32 %v2146, %v2082
    %v2163 = vmul.f32 %v2147, %v2101
    %v2164 = vmul.f32 %v2148, %v2047
    %v2165 = vmul.f32 %v2149, %v2066
    %v2166 = vmul.f32 %v2150, %v2085
    %v2167 = vmul.f32 %v2151, %v2104
    %v2168 = vmul.f32 %v2152, %v2049
    %v2169 = vmul.f32 %v2153, %v2068
    %v2170 = vmul.f32 %v2154, %v2087
    %v2171 = vmul.f32 %v2155, %v2106
    %v2172 = vadd.f32 %v2042, %v2156
    %v2173 = vadd.f32 %v2061, %v2157
    %v2174 = vadd.f32 %v2080, %v2158
    %v2175 = vadd.f32 %v2099, %v2159
    %v2176 = vadd.f32 %v2044, %v2160
    %v2177 = vadd.f32 %v2063, %v2161
    %v2178 = vadd.f32 %v2082, %v2162
    %v2179 = vadd.f32 %v2101, %v2163
    %v2180 = vadd.f32 %v2047, %v2164
    %v2181 = vadd.f32 %v2066, %v2165
    %v2182 = vadd.f32 %v2085, %v2166
    %v2183 = vadd.f32 %v2104, %v2167
    %v2184 = vadd.f32 %v2049, %v2168
    %v2185 = vadd.f32 %v2068, %v2169
    %v2186 = vadd.f32 %v2087, %v2170
    %v2187 = vadd.f32 %v2106, %v2171
    %v2188 = vmul.f32 %v2172, 0.7978846
    %v2189 = vmul.f32 %v2173, 0.7978846
    %v2190 = vmul.f32 %v2174, 0.7978846
    %v2191 = vmul.f32 %v2175, 0.7978846
    %v2192 = vmul.f32 %v2176, 0.7978846
    %v2193 = vmul.f32 %v2177, 0.7978846
    %v2194 = vmul.f32 %v2178, 0.7978846
    %v2195 = vmul.f32 %v2179, 0.7978846
    %v2196 = vmul.f32 %v2180, 0.7978846
    %v2197 = vmul.f32 %v2181, 0.7978846
    %v2198 = vmul.f32 %v2182, 0.7978846
    %v2199 = vmul.f32 %v2183, 0.7978846
    %v2200 = vmul.f32 %v2184, 0.7978846
    %v2201 = vmul.f32 %v2185, 0.7978846
    %v2202 = vmul.f32 %v2186, 0.7978846
    %v2203 = vmul.f32 %v2187, 0.7978846
    %v2204 = vtanh.pop %v2188
    %v2205 = vtanh.pop %v2189
    %v2206 = vtanh.pop %v2190
    %v2207 = vtanh.pop %v2191
    %v2208 = vtanh.pop %v2192
    %v2209 = vtanh.pop %v2193
    %v2210 = vtanh.pop %v2194
    %v2211 = vtanh.pop %v2195
    %v2212 = vtanh.pop %v2196
    %v2213 = vtanh.pop %v2197
    %v2214 = vtanh.pop %v2198
    %v2215 = vtanh.pop %v2199
    %v2216 = vtanh.pop %v2200
    %v2217 = vtanh.pop %v2201
    %v2218 = vtanh.pop %v2202
    %v2219 = vtanh.pop %v2203
    %v2220 = vadd.f32 %v2204, 1.0
    %v2221 = vadd.f32 %v2205, 1.0
    %v2222 = vadd.f32 %v2206, 1.0
    %v2223 = vadd.f32 %v2207, 1.0
    %v2224 = vadd.f32 %v2208, 1.0
    %v2225 = vadd.f32 %v2209, 1.0
    %v2226 = vadd.f32 %v2210, 1.0
    %v2227 = vadd.f32 %v2211, 1.0
    %v2228 = vadd.f32 %v2212, 1.0
    %v2229 = vadd.f32 %v2213, 1.0
    %v2230 = vadd.f32 %v2214, 1.0
    %v2231 = vadd.f32 %v2215, 1.0
    %v2232 = vadd.f32 %v2216, 1.0
    %v2233 = vadd.f32 %v2217, 1.0
    %v2234 = vadd.f32 %v2218, 1.0
    %v2235 = vadd.f32 %v2219, 1.0
    %v2236 = vmul.f32 %v2108, %v2220
    %v2237 = vmul.f32 %v2109, %v2221
    %v2238 = vmul.f32 %v2110, %v2222
    %v2239 = vmul.f32 %v2111, %v2223
    %v2240 = vmul.f32 %v2112, %v2224
    %v2241 = vmul.f32 %v2113, %v2225
    %v2242 = vmul.f32 %v2114, %v2226
    %v2243 = vmul.f32 %v2115, %v2227
    %v2244 = vmul.f32 %v2116, %v2228
    %v2245 = vmul.f32 %v2117, %v2229
    %v2246 = vmul.f32 %v2118, %v2230
    %v2247 = vmul.f32 %v2119, %v2231
    %v2248 = vmul.f32 %v2120, %v2232
    %v2249 = vmul.f32 %v2121, %v2233
    %v2250 = vmul.f32 %v2122, %v2234
    %v2251 = vmul.f32 %v2123, %v2235
    %v2252 = vpack.c.bf16 %v2240, %v2236
    %v2253 = vpack.c.bf16 %v2241, %v2237
    %v2254 = vpack.c.bf16 %v2242, %v2238
    %v2255 = vpack.c.bf16 %v2243, %v2239
    %v2256 = vpack.c.bf16 %v2248, %v2244
    %v2257 = vpack.c.bf16 %v2249, %v2245
    %v2258 = vpack.c.bf16 %v2250, %v2246
    %v2259 = vpack.c.bf16 %v2251, %v2247
    %v2260 = vld [vmem:[#allocation24] sm:$0xf]
    %v2261 = vld [vmem:[#allocation24 + $0x4] sm:$0xf]
    %v2262 = vld [vmem:[#allocation24 + $0x8] sm:$0xf]
    %v2263 = vld [vmem:[#allocation24 + $0xc] sm:$0xf]
    %v2264 = vld [vmem:[#allocation24 + $0x10] sm:$0xf]
    %v2265 = vld [vmem:[#allocation24 + $0x14] sm:$0xf]
    %v2266 = vld [vmem:[#allocation24 + $0x18] sm:$0xf]
    %v2267 = vld [vmem:[#allocation24 + $0x1c] sm:$0xf]
    %v2268 = vld [vmem:[#allocation24 + $0x20] sm:$0xf]
    %v2269 = vld [vmem:[#allocation24 + $0x24] sm:$0xf]
    %v2270 = vld [vmem:[#allocation24 + $0x28] sm:$0xf]
    %v2271 = vld [vmem:[#allocation24 + $0x2c] sm:$0xf]
    %v2272 = vld [vmem:[#allocation24 + $0x30] sm:$0xf]
    %v2273 = vld [vmem:[#allocation24 + $0x34] sm:$0xf]
    %v2274 = vld [vmem:[#allocation24 + $0x38] sm:$0xf]
    %v2275 = vld [vmem:[#allocation24 + $0x3c] sm:$0xf]
    %v2276 = vld [vmem:[#allocation24 + $0x40] sm:$0xf]
    %v2277 = vld [vmem:[#allocation24 + $0x44] sm:$0xf]
    %v2278 = vld [vmem:[#allocation24 + $0x48] sm:$0xf]
    %v2279 = vld [vmem:[#allocation24 + $0x4c] sm:$0xf]
    %v2280 = vld [vmem:[#allocation24 + $0x50] sm:$0xf]
    %v2281 = vld [vmem:[#allocation24 + $0x54] sm:$0xf]
    %v2282 = vld [vmem:[#allocation24 + $0x58] sm:$0xf]
    %v2283 = vld [vmem:[#allocation24 + $0x5c] sm:$0xf]
    %v2284 = vld [vmem:[#allocation24 + $0x60] sm:$0xf]
    %v2285 = vld [vmem:[#allocation24 + $0x64] sm:$0xf]
    %v2286 = vld [vmem:[#allocation24 + $0x68] sm:$0xf]
    %v2287 = vld [vmem:[#allocation24 + $0x6c] sm:$0xf]
    %v2288 = vld [vmem:[#allocation24 + $0x70] sm:$0xf]
    %v2289 = vld [vmem:[#allocation24 + $0x74] sm:$0xf]
    %v2290 = vld [vmem:[#allocation24 + $0x78] sm:$0xf]
    %v2291 = vld [vmem:[#allocation24 + $0x7c] sm:$0xf]
    %v2292 = vld [vmem:[#allocation24 + $0x80] sm:$0xf]
    %v2293 = vld [vmem:[#allocation24 + $0x84] sm:$0xf]
    %v2294 = vld [vmem:[#allocation24 + $0x88] sm:$0xf]
    %v2295 = vld [vmem:[#allocation24 + $0x8c] sm:$0xf]
    %v2296 = vld [vmem:[#allocation24 + $0x90] sm:$0xf]
    %v2297 = vld [vmem:[#allocation24 + $0x94] sm:$0xf]
    %v2298 = vld [vmem:[#allocation24 + $0x98] sm:$0xf]
    %v2299 = vld [vmem:[#allocation24 + $0x9c] sm:$0xf]
    %v2300 = vld [vmem:[#allocation24 + $0xa0] sm:$0xf]
    %v2301 = vld [vmem:[#allocation24 + $0xa4] sm:$0xf]
    %v2302 = vld [vmem:[#allocation24 + $0xa8] sm:$0xf]
    %v2303 = vld [vmem:[#allocation24 + $0xac] sm:$0xf]
    %v2304 = vld [vmem:[#allocation24 + $0xb0] sm:$0xf]
    %v2305 = vld [vmem:[#allocation24 + $0xb4] sm:$0xf]
    %v2306 = vld [vmem:[#allocation24 + $0xb8] sm:$0xf]
    %v2307 = vld [vmem:[#allocation24 + $0xbc] sm:$0xf]
    %v2308 = vld [vmem:[#allocation24 + $0xc0] sm:$0xf]
    %v2309 = vld [vmem:[#allocation24 + $0xc4] sm:$0xf]
    %v2310 = vld [vmem:[#allocation24 + $0xc8] sm:$0xf]
    %v2311 = vld [vmem:[#allocation24 + $0xcc] sm:$0xf]
    %v2312 = vld [vmem:[#allocation24 + $0xd0] sm:$0xf]
    %v2313 = vld [vmem:[#allocation24 + $0xd4] sm:$0xf]
    %v2314 = vld [vmem:[#allocation24 + $0xd8] sm:$0xf]
    %v2315 = vld [vmem:[#allocation24 + $0xdc] sm:$0xf]
    %v2316 = vld [vmem:[#allocation24 + $0xe0] sm:$0xf]
    %v2317 = vld [vmem:[#allocation24 + $0xe4] sm:$0xf]
    %v2318 = vld [vmem:[#allocation24 + $0xe8] sm:$0xf]
    %v2319 = vld [vmem:[#allocation24 + $0xec] sm:$0xf]
    %v2320 = vld [vmem:[#allocation24 + $0xf0] sm:$0xf]
    %v2321 = vld [vmem:[#allocation24 + $0xf4] sm:$0xf]
    %v2322 = vld [vmem:[#allocation24 + $0xf8] sm:$0xf]
    %v2323 = vld [vmem:[#allocation24 + $0xfc] sm:$0xf]
    %v2324 = vld [vmem:[#allocation26] sm:$0x1]
    %v2325 = vperm.slane %v2324, 0
    %v2390 = vunpack.c.l.b16 %v2260
    %v2391 = vunpack.c.l.b16 %v2261
    %v2392 = vunpack.c.l.b16 %v2262
    %v2393 = vunpack.c.l.b16 %v2263
    %v2394 = vunpack.c.l.b16 %v2264
    %v2395 = vunpack.c.l.b16 %v2265
    %v2396 = vunpack.c.l.b16 %v2266
    %v2397 = vunpack.c.l.b16 %v2267
    %v2398 = vunpack.c.l.b16 %v2268
    %v2399 = vunpack.c.l.b16 %v2269
    %v2400 = vunpack.c.l.b16 %v2270
    %v2401 = vunpack.c.l.b16 %v2271
    %v2402 = vunpack.c.l.b16 %v2272
    %v2403 = vunpack.c.l.b16 %v2273
    %v2404 = vunpack.c.l.b16 %v2274
    %v2405 = vunpack.c.l.b16 %v2275
    %v2406 = vunpack.c.l.b16 %v2276
    %v2407 = vunpack.c.l.b16 %v2277
    %v2408 = vunpack.c.l.b16 %v2278
    %v2409 = vunpack.c.l.b16 %v2279
    %v2410 = vunpack.c.l.b16 %v2280
    %v2411 = vunpack.c.l.b16 %v2281
    %v2412 = vunpack.c.l.b16 %v2282
    %v2413 = vunpack.c.l.b16 %v2283
    %v2414 = vunpack.c.l.b16 %v2284
    %v2415 = vunpack.c.l.b16 %v2285
    %v2416 = vunpack.c.l.b16 %v2286
    %v2417 = vunpack.c.l.b16 %v2287
    %v2418 = vunpack.c.l.b16 %v2288
    %v2419 = vunpack.c.l.b16 %v2289
    %v2420 = vunpack.c.l.b16 %v2290
    %v2421 = vunpack.c.l.b16 %v2291
    %v2422 = vunpack.c.l.b16 %v2292
    %v2423 = vunpack.c.l.b16 %v2293
    %v2424 = vunpack.c.l.b16 %v2294
    %v2425 = vunpack.c.l.b16 %v2295
    %v2426 = vunpack.c.l.b16 %v2296
    %v2427 = vunpack.c.l.b16 %v2297
    %v2428 = vunpack.c.l.b16 %v2298
    %v2429 = vunpack.c.l.b16 %v2299
    %v2430 = vunpack.c.l.b16 %v2300
    %v2431 = vunpack.c.l.b16 %v2301
    %v2432 = vunpack.c.l.b16 %v2302
    %v2433 = vunpack.c.l.b16 %v2303
    %v2434 = vunpack.c.l.b16 %v2304
    %v2435 = vunpack.c.l.b16 %v2305
    %v2436 = vunpack.c.l.b16 %v2306
    %v2437 = vunpack.c.l.b16 %v2307
    %v2438 = vunpack.c.l.b16 %v2308
    %v2439 = vunpack.c.l.b16 %v2309
    %v2440 = vunpack.c.l.b16 %v2310
    %v2441 = vunpack.c.l.b16 %v2311
    %v2442 = vunpack.c.l.b16 %v2312
    %v2443 = vunpack.c.l.b16 %v2313
    %v2444 = vunpack.c.l.b16 %v2314
    %v2445 = vunpack.c.l.b16 %v2315
    %v2446 = vunpack.c.l.b16 %v2316
    %v2447 = vunpack.c.l.b16 %v2317
    %v2448 = vunpack.c.l.b16 %v2318
    %v2449 = vunpack.c.l.b16 %v2319
    %v2450 = vunpack.c.l.b16 %v2320
    %v2451 = vunpack.c.l.b16 %v2321
    %v2452 = vunpack.c.l.b16 %v2322
    %v2453 = vunpack.c.l.b16 %v2323
    %v2454 = vpack.c.b16 %v2391, %v2390
    %v2455 = vpack.c.b16 %v2393, %v2392
    %v2456 = vpack.c.b16 %v2395, %v2394
    %v2457 = vpack.c.b16 %v2397, %v2396
    %v2458 = vpack.c.b16 %v2399, %v2398
    %v2459 = vpack.c.b16 %v2401, %v2400
    %v2460 = vpack.c.b16 %v2403, %v2402
    %v2461 = vpack.c.b16 %v2405, %v2404
    %v2462 = vpack.c.b16 %v2407, %v2406
    %v2463 = vpack.c.b16 %v2409, %v2408
    %v2464 = vpack.c.b16 %v2411, %v2410
    %v2465 = vpack.c.b16 %v2413, %v2412
    %v2466 = vpack.c.b16 %v2415, %v2414
    %v2467 = vpack.c.b16 %v2417, %v2416
    %v2468 = vpack.c.b16 %v2419, %v2418
    %v2469 = vpack.c.b16 %v2421, %v2420
    %v2470 = vpack.c.b16 %v2423, %v2422
    %v2471 = vpack.c.b16 %v2425, %v2424
    %v2472 = vpack.c.b16 %v2427, %v2426
    %v2473 = vpack.c.b16 %v2429, %v2428
    %v2474 = vpack.c.b16 %v2431, %v2430
    %v2475 = vpack.c.b16 %v2433, %v2432
    %v2476 = vpack.c.b16 %v2435, %v2434
    %v2477 = vpack.c.b16 %v2437, %v2436
    %v2478 = vpack.c.b16 %v2439, %v2438
    %v2479 = vpack.c.b16 %v2441, %v2440
    %v2480 = vpack.c.b16 %v2443, %v2442
    %v2481 = vpack.c.b16 %v2445, %v2444
    %v2482 = vpack.c.b16 %v2447, %v2446
    %v2483 = vpack.c.b16 %v2449, %v2448
    %v2484 = vpack.c.b16 %v2451, %v2450
    %v2485 = vpack.c.b16 %v2453, %v2452
    %2518 = vmatpush.bf16.msra.mxu0 %v2461
    %2519 = vmatpush.bf16.msra.mxu0 %v2460
    %2520 = vmatpush.bf16.msra.mxu0 %v2459
    %2521 = vmatpush.bf16.msra.mxu0 %v2458
    %2522 = vmatpush.bf16.msra.mxu0 %v2457
    %2523 = vmatpush.bf16.msra.mxu0 %v2456
    %2524 = vmatpush.bf16.msra.mxu0 %v2455
    %2525 = vmatpush.bf16.msra.mxu0 %v2454
    %2526 = vmatmul.bf16.gmra.mxu0 %v2252
    %v2527 = vpop.f32.mrf.mxu0
    %v2528 = vadd.f32 %v2325, %v2527
    %v2529 = vpop.f32.mrf.mxu0
    %v2530 = vadd.f32 %v2325, %v2529
    %2531 = vmatmul.bf16.gmra.mxu0 %v2256
    %v2532 = vpop.f32.mrf.mxu0
    %v2533 = vadd.f32 %v2325, %v2532
    %v2534 = vpop.f32.mrf.mxu0
    %v2535 = vadd.f32 %v2325, %v2534
    %2536 = vdwg.mxu0
    %2537 = vmatpush.bf16.msra.mxu0 %v2469
    %2538 = vmatpush.bf16.msra.mxu0 %v2468
    %2539 = vmatpush.bf16.msra.mxu0 %v2467
    %2540 = vmatpush.bf16.msra.mxu0 %v2466
    %2541 = vmatpush.bf16.msra.mxu0 %v2465
    %2542 = vmatpush.bf16.msra.mxu0 %v2464
    %2543 = vmatpush.bf16.msra.mxu0 %v2463
    %2544 = vmatpush.bf16.msra.mxu0 %v2462
    %2545 = vmatmul.bf16.gmra.mxu0 %v2253
    %v2546 = vpop.f32.mrf.mxu0
    %v2547 = vadd.f32 %v2528, %v2546
    %v2548 = vpop.f32.mrf.mxu0
    %v2549 = vadd.f32 %v2530, %v2548
    %2550 = vmatmul.bf16.gmra.mxu0 %v2257
    %v2551 = vpop.f32.mrf.mxu0
    %v2552 = vadd.f32 %v2533, %v2551
    %v2553 = vpop.f32.mrf.mxu0
    %v2554 = vadd.f32 %v2535, %v2553
    %2555 = vdwg.mxu0
    %2556 = vmatpush.bf16.msra.mxu0 %v2477
    %2557 = vmatpush.bf16.msra.mxu0 %v2476
    %2558 = vmatpush.bf16.msra.mxu0 %v2475
    %2559 = vmatpush.bf16.msra.mxu0 %v2474
    %2560 = vmatpush.bf16.msra.mxu0 %v2473
    %2561 = vmatpush.bf16.msra.mxu0 %v2472
    %2562 = vmatpush.bf16.msra.mxu0 %v2471
    %2563 = vmatpush.bf16.msra.mxu0 %v2470
    %2564 = vmatmul.bf16.gmra.mxu0 %v2254
    %v2565 = vpop.f32.mrf.mxu0
    %v2566 = vadd.f32 %v2547, %v2565
    %v2567 = vpop.f32.mrf.mxu0
    %v2568 = vadd.f32 %v2549, %v2567
    %2569 = vmatmul.bf16.gmra.mxu0 %v2258
    %v2570 = vpop.f32.mrf.mxu0
    %v2571 = vadd.f32 %v2552, %v2570
    %v2572 = vpop.f32.mrf.mxu0
    %v2573 = vadd.f32 %v2554, %v2572
    %2574 = vdwg.mxu0
    %2575 = vmatpush.bf16.msra.mxu0 %v2485
    %2576 = vmatpush.bf16.msra.mxu0 %v2484
    %2577 = vmatpush.bf16.msra.mxu0 %v2483
    %2578 = vmatpush.bf16.msra.mxu0 %v2482
    %2579 = vmatpush.bf16.msra.mxu0 %v2481
    %2580 = vmatpush.bf16.msra.mxu0 %v2480
    %2581 = vmatpush.bf16.msra.mxu0 %v2479
    %2582 = vmatpush.bf16.msra.mxu0 %v2478
    %2583 = vmatmul.bf16.gmra.mxu0 %v2255
    %v2584 = vpop.f32.mrf.mxu0
    %v2585 = vadd.f32 %v2566, %v2584
    %v2586 = vpop.f32.mrf.mxu0
    %v2587 = vadd.f32 %v2568, %v2586
    %2588 = vmatmul.bf16.gmra.mxu0 %v2259
    %v2589 = vpop.f32.mrf.mxu0
    %v2590 = vadd.f32 %v2571, %v2589
    %v2591 = vpop.f32.mrf.mxu0
    %v2592 = vadd.f32 %v2573, %v2591
    %2593 = vdwg.mxu0
    %v2594 = vadd.f32 %v1732, %v2585
    %v2595 = vadd.f32 %v1733, %v2587
    %v2596 = vadd.f32 %v1734, %v2590
    %v2597 = vadd.f32 %v1735, %v2592
    %v2598 = vld [vmem:[#allocation9 + $0x1] sm:$0x1]
    %v2599 = vld [vmem:[#allocation11 + $0x1] sm:$0x1]
    %2600 = vadd.xlane.f32.xlu0 %v2594
    %v2601 = vpop.xlane.xlu0 %2600
    %2602 = vadd.xlane.f32.xlu0 %v2595
    %v2603 = vpop.xlane.xlu0 %2602
    %2604 = vadd.xlane.f32.xlu0 %v2596
    %v2605 = vpop.xlane.xlu0 %2604
    %2606 = vadd.xlane.f32.xlu0 %v2597
    %v2607 = vpop.xlane.xlu0 %2606
    %v2608 = vmul.f32 %v2601, %v580
    %v2609 = vmul.f32 %v2603, %v580
    %v2610 = vmul.f32 %v2605, %v580
    %v2611 = vmul.f32 %v2607, %v580
    %v2612 = vsub.f32 %v2594, %v2608
    %v2613 = vsub.f32 %v2595, %v2609
    %v2614 = vsub.f32 %v2596, %v2610
    %v2615 = vsub.f32 %v2597, %v2611
    %v2616 = vmul.f32 %v2612, %v2612
    %v2617 = vmul.f32 %v2613, %v2613
    %v2618 = vmul.f32 %v2614, %v2614
    %v2619 = vmul.f32 %v2615, %v2615
    %2620 = vadd.xlane.f32.xlu0 %v2616
    %v2621 = vpop.xlane.xlu0 %2620
    %2622 = vadd.xlane.f32.xlu0 %v2617
    %v2623 = vpop.xlane.xlu0 %2622
    %2624 = vadd.xlane.f32.xlu0 %v2618
    %v2625 = vpop.xlane.xlu0 %2624
    %2626 = vadd.xlane.f32.xlu0 %v2619
    %v2627 = vpop.xlane.xlu0 %2626
    %v2628 = vmul.f32 %v2621, %v580
    %v2629 = vmul.f32 %v2623, %v580
    %v2630 = vmul.f32 %v2625, %v580
    %v2631 = vmul.f32 %v2627, %v580
    %v2632 = vadd.f32 %v2628, 1e-05
    %v2633 = vadd.f32 %v2629, 1e-05
    %v2634 = vadd.f32 %v2630, 1e-05
    %v2635 = vadd.f32 %v2631, 1e-05
    %v2636 = vrsqrt.pop %v2632
    %v2637 = vmul.f32 %v2636, %v2632
    %v2638 = vmul.f32 %v2637, %v2636
    %v2639 = vmul.f32 0.5, %v2638
    %v2640 = vsub.f32 1.5, %v2639
    %v2641 = vmul.f32 %v2636, %v2640
    %vm2642 = vweird.f32 %v2632
    %vm2643 = vweird.f32 %v2636
    %vm2644 = vmor %vm2642, %vm2643
    %v2645 = vsel %vm2644, %v2636, %v2641
    %v2646 = vrsqrt.pop %v2633
    %v2647 = vmul.f32 %v2646, %v2633
    %v2648 = vmul.f32 %v2647, %v2646
    %v2649 = vmul.f32 0.5, %v2648
    %v2650 = vsub.f32 1.5, %v2649
    %v2651 = vmul.f32 %v2646, %v2650
    %vm2652 = vweird.f32 %v2633
    %vm2653 = vweird.f32 %v2646
    %vm2654 = vmor %vm2652, %vm2653
    %v2655 = vsel %vm2654, %v2646, %v2651
    %v2656 = vrsqrt.pop %v2634
    %v2657 = vmul.f32 %v2656, %v2634
    %v2658 = vmul.f32 %v2657, %v2656
    %v2659 = vmul.f32 0.5, %v2658
    %v2660 = vsub.f32 1.5, %v2659
    %v2661 = vmul.f32 %v2656, %v2660
    %vm2662 = vweird.f32 %v2634
    %vm2663 = vweird.f32 %v2656
    %vm2664 = vmor %vm2662, %vm2663
    %v2665 = vsel %vm2664, %v2656, %v2661
    %v2666 = vrsqrt.pop %v2635
    %v2667 = vmul.f32 %v2666, %v2635
    %v2668 = vmul.f32 %v2667, %v2666
    %v2669 = vmul.f32 0.5, %v2668
    %v2670 = vsub.f32 1.5, %v2669
    %v2671 = vmul.f32 %v2666, %v2670
    %vm2672 = vweird.f32 %v2635
    %vm2673 = vweird.f32 %v2666
    %vm2674 = vmor %vm2672, %vm2673
    %v2675 = vsel %vm2674, %v2666, %v2671
    %v2676 = vmul.f32 %v2612, %v2645
    %v2677 = vmul.f32 %v2613, %v2655
    %v2678 = vmul.f32 %v2614, %v2665
    %v2679 = vmul.f32 %v2615, %v2675
    %v2680 = vperm.slane %v2598, 0
    %v2681 = vmul.f32 %v2676, %v2680
    %v2682 = vmul.f32 %v2677, %v2680
    %v2683 = vmul.f32 %v2678, %v2680
    %v2684 = vmul.f32 %v2679, %v2680
    %v2685 = vperm.slane %v2599, 0
    %v2686 = vadd.f32 %v2681, %v2685
    %v2687 = vadd.f32 %v2682, %v2685
    %v2688 = vadd.f32 %v2683, %v2685
    %v2689 = vadd.f32 %v2684, %v2685
    %v2690 = vpack.c.bf16 %v2687, %v2686
    %v2691 = vpack.c.bf16 %v2689, %v2688
    %s2692 = scalar_lea.vmem [#allocation12], 192
    %v2693 = vld [vmem:[%s2692] sm:$0xff]
    %v2694 = vld [vmem:[%s2692 + $0x8] sm:$0xf]
    %v2695 = vld [vmem:[%s2692 + $0xc] sm:$0xff]
    %v2696 = vld [vmem:[%s2692 + $0x14] sm:$0xf]
    %v2697 = vld [vmem:[%s2692 + $0x18] sm:$0xff]
    %v2698 = vld [vmem:[%s2692 + $0x20] sm:$0xf]
    %v2699 = vld [vmem:[%s2692 + $0x24] sm:$0xff]
    %v2700 = vld [vmem:[%s2692 + $0x2c] sm:$0xf]
    %v2701 = vld [vmem:[%s2692 + $0x30] sm:$0xff]
    %v2702 = vld [vmem:[%s2692 + $0x38] sm:$0xf]
    %v2703 = vld [vmem:[%s2692 + $0x3c] sm:$0xff]
    %v2704 = vld [vmem:[%s2692 + $0x44] sm:$0xf]
    %v2705 = vld [vmem:[%s2692 + $0x48] sm:$0xff]
    %v2706 = vld [vmem:[%s2692 + $0x50] sm:$0xf]
    %v2707 = vld [vmem:[%s2692 + $0x54] sm:$0xff]
    %v2708 = vld [vmem:[%s2692 + $0x5c] sm:$0xf]
    %v2709 = vld [vmem:[%s2692 + $0x60] sm:$0xff]
    %v2710 = vld [vmem:[%s2692 + $0x68] sm:$0xf]
    %v2711 = vld [vmem:[%s2692 + $0x6c] sm:$0xff]
    %v2712 = vld [vmem:[%s2692 + $0x74] sm:$0xf]
    %v2713 = vld [vmem:[%s2692 + $0x78] sm:$0xff]
    %v2714 = vld [vmem:[%s2692 + $0x80] sm:$0xf]
    %v2715 = vld [vmem:[%s2692 + $0x84] sm:$0xff]
    %v2716 = vld [vmem:[%s2692 + $0x8c] sm:$0xf]
    %v2717 = vld [vmem:[%s2692 + $0x90] sm:$0xff]
    %v2718 = vld [vmem:[%s2692 + $0x98] sm:$0xf]
    %v2719 = vld [vmem:[%s2692 + $0x9c] sm:$0xff]
    %v2720 = vld [vmem:[%s2692 + $0xa4] sm:$0xf]
    %v2721 = vld [vmem:[%s2692 + $0xa8] sm:$0xff]
    %v2722 = vld [vmem:[%s2692 + $0xb0] sm:$0xf]
    %v2723 = vld [vmem:[%s2692 + $0xb4] sm:$0xff]
    %v2724 = vld [vmem:[%s2692 + $0xbc] sm:$0xf]
    %s2725 = scalar_lea.vmem [#allocation14], 1
    %v2726 = vld [vmem:[%s2725] ss:$2 sm:$0x7]
    %v2728 = vperm.slane %v2726, 0
    %v2729 = vperm.slane %v2726, 1
    %v2730 = vperm.slane %v2726, 2
    %v2766 = vunpack.c.l.b16 %v2693
    %v2767 = vunpack.c.h.b16 %v2693
    %v2768 = vunpack.c.l.b16 %v2694
    %v2769 = vunpack.c.l.b16 %v2695
    %v2770 = vunpack.c.h.b16 %v2695
    %v2771 = vunpack.c.l.b16 %v2696
    %v2772 = vunpack.c.l.b16 %v2697
    %v2773 = vunpack.c.h.b16 %v2697
    %v2774 = vunpack.c.l.b16 %v2698
    %v2775 = vunpack.c.l.b16 %v2699
    %v2776 = vunpack.c.h.b16 %v2699
    %v2777 = vunpack.c.l.b16 %v2700
    %v2778 = vunpack.c.l.b16 %v2701
    %v2779 = vunpack.c.h.b16 %v2701
    %v2780 = vunpack.c.l.b16 %v2702
    %v2781 = vunpack.c.l.b16 %v2703
    %v2782 = vunpack.c.h.b16 %v2703
    %v2783 = vunpack.c.l.b16 %v2704
    %v2784 = vunpack.c.l.b16 %v2705
    %v2785 = vunpack.c.h.b16 %v2705
    %v2786 = vunpack.c.l.b16 %v2706
    %v2787 = vunpack.c.l.b16 %v2707
    %v2788 = vunpack.c.h.b16 %v2707
    %v2789 = vunpack.c.l.b16 %v2708
    %v2790 = vunpack.c.l.b16 %v2709
    %v2791 = vunpack.c.h.b16 %v2709
    %v2792 = vunpack.c.l.b16 %v2710
    %v2793 = vunpack.c.l.b16 %v2711
    %v2794 = vunpack.c.h.b16 %v2711
    %v2795 = vunpack.c.l.b16 %v2712
    %v2796 = vunpack.c.l.b16 %v2713
    %v2797 = vunpack.c.h.b16 %v2713
    %v2798 = vunpack.c.l.b16 %v2714
    %v2799 = vunpack.c.l.b16 %v2715
    %v2800 = vunpack.c.h.b16 %v2715
    %v2801 = vunpack.c.l.b16 %v2716
    %v2802 = vunpack.c.l.b16 %v2717
    %v2803 = vunpack.c.h.b16 %v2717
    %v2804 = vunpack.c.l.b16 %v2718
    %v2805 = vunpack.c.l.b16 %v2719
    %v2806 = vunpack.c.h.b16 %v2719
    %v2807 = vunpack.c.l.b16 %v2720
    %v2808 = vunpack.c.l.b16 %v2721
    %v2809 = vunpack.c.h.b16 %v2721
    %v2810 = vunpack.c.l.b16 %v2722
    %v2811 = vunpack.c.l.b16 %v2723
    %v2812 = vunpack.c.h.b16 %v2723
    %v2813 = vunpack.c.l.b16 %v2724
    %v2814 = vpack.c.b16 %v2769, %v2766
    %v2815 = vpack.c.b16 %v2770, %v2767
    %v2816 = vpack.c.b16 %v2771, %v2768
    %v2817 = vpack.c.b16 %v2775, %v2772
    %v2818 = vpack.c.b16 %v2776, %v2773
    %v2819 = vpack.c.b16 %v2777, %v2774
    %v2820 = vpack.c.b16 %v2781, %v2778
    %v2821 = vpack.c.b16 %v2782, %v2779
    %v2822 = vpack.c.b16 %v2783, %v2780
    %v2823 = vpack.c.b16 %v2787, %v2784
    %v2824 = vpack.c.b16 %v2788, %v2785
    %v2825 = vpack.c.b16 %v2789, %v2786
    %v2826 = vpack.c.b16 %v2793, %v2790
    %v2827 = vpack.c.b16 %v2794, %v2791
    %v2828 = vpack.c.b16 %v2795, %v2792
    %v2829 = vpack.c.b16 %v2799, %v2796
    %v2830 = vpack.c.b16 %v2800, %v2797
    %v2831 = vpack.c.b16 %v2801, %v2798
    %v2832 = vpack.c.b16 %v2805, %v2802
    %v2833 = vpack.c.b16 %v2806, %v2803
    %v2834 = vpack.c.b16 %v2807, %v2804
    %v2835 = vpack.c.b16 %v2811, %v2808
    %v2836 = vpack.c.b16 %v2812, %v2809
    %v2837 = vpack.c.b16 %v2813, %v2810
    %2862 = vmatpush.bf16.msra.mxu0 %v2835
    %2863 = vmatpush.bf16.msra.mxu0 %v2832
    %2864 = vmatpush.bf16.msra.mxu0 %v2829
    %2865 = vmatpush.bf16.msra.mxu0 %v2826
    %2866 = vmatpush.bf16.msra.mxu0 %v2823
    %2867 = vmatpush.bf16.msra.mxu0 %v2820
    %2868 = vmatpush.bf16.msra.mxu0 %v2817
    %2869 = vmatpush.bf16.msra.mxu0 %v2814
    %2870 = vmatmul.bf16.gmra.mxu0 %v2690
    %v2871 = vpop.f32.mrf.mxu0
    %v2872 = vadd.f32 %v2728, %v2871
    %v2873 = vpop.f32.mrf.mxu0
    %v2874 = vadd.f32 %v2728, %v2873
    %2875 = vmatmul.bf16.gmra.mxu0 %v2691
    %v2876 = vpop.f32.mrf.mxu0
    %v2877 = vadd.f32 %v2728, %v2876
    %v2878 = vpop.f32.mrf.mxu0
    %v2879 = vadd.f32 %v2728, %v2878
    %2880 = vdwg.mxu0
    %2881 = vmatpush.bf16.msra.mxu0 %v2836
    %2882 = vmatpush.bf16.msra.mxu0 %v2833
    %2883 = vmatpush.bf16.msra.mxu0 %v2830
    %2884 = vmatpush.bf16.msra.mxu0 %v2827
    %2885 = vmatpush.bf16.msra.mxu0 %v2824
    %2886 = vmatpush.bf16.msra.mxu0 %v2821
    %2887 = vmatpush.bf16.msra.mxu0 %v2818
    %2888 = vmatpush.bf16.msra.mxu0 %v2815
    %2889 = vmatmul.bf16.gmra.mxu0 %v2690
    %v2890 = vpop.f32.mrf.mxu0
    %v2891 = vadd.f32 %v2729, %v2890
    %v2892 = vpop.f32.mrf.mxu0
    %v2893 = vadd.f32 %v2729, %v2892
    %2894 = vmatmul.bf16.gmra.mxu0 %v2691
    %v2895 = vpop.f32.mrf.mxu0
    %v2896 = vadd.f32 %v2729, %v2895
    %v2897 = vpop.f32.mrf.mxu0
    %v2898 = vadd.f32 %v2729, %v2897
    %2899 = vdwg.mxu0
    %2900 = vmatpush.bf16.msra.mxu0 %v2837
    %2901 = vmatpush.bf16.msra.mxu0 %v2834
    %2902 = vmatpush.bf16.msra.mxu0 %v2831
    %2903 = vmatpush.bf16.msra.mxu0 %v2828
    %2904 = vmatpush.bf16.msra.mxu0 %v2825
    %2905 = vmatpush.bf16.msra.mxu0 %v2822
    %2906 = vmatpush.bf16.msra.mxu0 %v2819
    %2907 = vmatpush.bf16.msra.mxu0 %v2816
    %2908 = vmatmul.bf16.gmra.mxu0 %v2690
    %v2909 = vpop.f32.mrf.mxu0
    %v2910 = vadd.f32 %v2730, %v2909
    %v2911 = vpop.f32.mrf.mxu0
    %v2912 = vadd.f32 %v2730, %v2911
    %2913 = vmatmul.bf16.gmra.mxu0 %v2691
    %v2914 = vpop.f32.mrf.mxu0
    %v2915 = vadd.f32 %v2730, %v2914
    %v2916 = vpop.f32.mrf.mxu0
    %v2917 = vadd.f32 %v2730, %v2916
    %2918 = vdwg.mxu0
    %v2919 = vpack.c.bf16 %v2891, %v2872
    %v2920 = vpack.c.bf16 %v2910, %v2910
    %v2921 = vpack.c.bf16 %v2893, %v2874
    %v2922 = vpack.c.bf16 %v2912, %v2912
    %v2923 = vpack.c.bf16 %v2896, %v2877
    %v2924 = vpack.c.bf16 %v2915, %v2915
    %v2925 = vpack.c.bf16 %v2898, %v2879
    %v2926 = vpack.c.bf16 %v2917, %v2917
    %2931 = vrot.lane.b32.xlu0 %v2919, 96
    %v2932 = vpop.permute.xlu0 %2931
    %2933 = vrot.lane.b32.xlu0 %v2921, 96
    %v2934 = vpop.permute.xlu0 %2933
    %2935 = vrot.lane.b32.xlu0 %v2923, 96
    %v2936 = vpop.permute.xlu0 %2935
    %2937 = vrot.lane.b32.xlu0 %v2925, 96
    %v2938 = vpop.permute.xlu0 %2937
    %2939 = vrot.lane.b32.xlu0 %v2919, 64
    %v2940 = vpop.permute.xlu0 %2939
    %2941 = vrot.lane.b32.xlu0 %v2921, 64
    %v2942 = vpop.permute.xlu0 %2941
    %2943 = vrot.lane.b32.xlu0 %v2923, 64
    %v2944 = vpop.permute.xlu0 %2943
    %2945 = vrot.lane.b32.xlu0 %v2925, 64
    %v2946 = vpop.permute.xlu0 %2945
    %2947 = vrot.lane.b32.xlu0 %v2919, 32
    %v2948 = vpop.permute.xlu0 %2947
    %2949 = vrot.lane.b32.xlu0 %v2921, 32
    %v2950 = vpop.permute.xlu0 %2949
    %2951 = vrot.lane.b32.xlu0 %v2923, 32
    %v2952 = vpop.permute.xlu0 %2951
    %2953 = vrot.lane.b32.xlu0 %v2925, 32
    %v2954 = vpop.permute.xlu0 %2953
    %v2955 = vrot.slane %v2919, 4
    %v2956 = vrot.slane %v2921, 4
    %v2957 = vrot.slane %v2923, 4
    %v2958 = vrot.slane %v2925, 4
    %v2959 = vrot.slane %v2932, 4
    %v2960 = vrot.slane %v2934, 4
    %v2961 = vrot.slane %v2936, 4
    %v2962 = vrot.slane %v2938, 4
    %v2963 = vrot.slane %v2940, 4
    %v2964 = vrot.slane %v2942, 4
    %v2965 = vrot.slane %v2944, 4
    %v2966 = vrot.slane %v2946, 4
    %v2967 = vrot.slane %v2948, 4
    %v2968 = vrot.slane %v2950, 4
    %v2969 = vrot.slane %v2952, 4
    %v2970 = vrot.slane %v2954, 4
    %2975 = vrot.lane.b32.xlu0 %v2920, 96
    %v2976 = vpop.permute.xlu0 %2975
    %2977 = vrot.lane.b32.xlu0 %v2922, 96
    %v2978 = vpop.permute.xlu0 %2977
    %2979 = vrot.lane.b32.xlu0 %v2924, 96
    %v2980 = vpop.permute.xlu0 %2979
    %2981 = vrot.lane.b32.xlu0 %v2926, 96
    %v2982 = vpop.permute.xlu0 %2981
    %2983 = vrot.lane.b32.xlu0 %v2920, 64
    %v2984 = vpop.permute.xlu0 %2983
    %2985 = vrot.lane.b32.xlu0 %v2922, 64
    %v2986 = vpop.permute.xlu0 %2985
    %2987 = vrot.lane.b32.xlu0 %v2924, 64
    %v2988 = vpop.permute.xlu0 %2987
    %2989 = vrot.lane.b32.xlu0 %v2926, 64
    %v2990 = vpop.permute.xlu0 %2989
    %2991 = vrot.lane.b32.xlu0 %v2920, 32
    %v2992 = vpop.permute.xlu0 %2991
    %2993 = vrot.lane.b32.xlu0 %v2922, 32
    %v2994 = vpop.permute.xlu0 %2993
    %2995 = vrot.lane.b32.xlu0 %v2924, 32
    %v2996 = vpop.permute.xlu0 %2995
    %2997 = vrot.lane.b32.xlu0 %v2926, 32
    %v2998 = vpop.permute.xlu0 %2997
    %v2999 = vunpack.c.l.b16 %v2919
    %v3000 = vunpack.c.l.b16 %v2921
    %v3001 = vpack.c.b16 %v3000, %v2999
    %v3002 = vunpack.c.l.b16 %v2955
    %v3003 = vunpack.c.l.b16 %v2956
    %v3004 = vpack.c.b16 %v3003, %v3002
    %v3006 = vsel %vm976, %v3001, 0
    %v3009 = vsel %vm976, %v3004, 0
    %3011 = vmatpush.bf16.xpose.msra.mxu0 0
    %3012 = vmatpush.bf16.xpose.msra.mxu0 0
    %3013 = vmatpush.bf16.xpose.msra.mxu0 0
    %3014 = vmatpush.bf16.xpose.msra.mxu0 0
    %3015 = vmatpush.bf16.xpose.msra.mxu0 0
    %3016 = vmatpush.bf16.xpose.msra.mxu0 0
    %3017 = vmatpush.bf16.xpose.msra.mxu0 0
    %3018 = vmatpush.bf16.xpose.msra.mxu0 %v3009
    %3019 = vmatmul.bf16.gmra.mxu0 %v3006
    %v3020 = vpop.f32.mrf.mxu0
    %v3021 = vadd.f32 0.0, %v3020
    %v3022 = vpop.f32.mrf.mxu0
    %v3023 = vadd.f32 0.0, %v3022
    %3024 = vdwg.mxu0
    %v3025 = vunpack.c.l.b16 %v2923
    %v3026 = vunpack.c.l.b16 %v2925
    %v3027 = vpack.c.b16 %v3026, %v3025
    %v3028 = vunpack.c.l.b16 %v2957
    %v3029 = vunpack.c.l.b16 %v2958
    %v3030 = vpack.c.b16 %v3029, %v3028
    %v3032 = vsel %vm976, %v3027, 0
    %v3035 = vsel %vm976, %v3030, 0
    %3037 = vmatpush.bf16.xpose.msra.mxu0 0
    %3038 = vmatpush.bf16.xpose.msra.mxu0 0
    %3039 = vmatpush.bf16.xpose.msra.mxu0 0
    %3040 = vmatpush.bf16.xpose.msra.mxu0 0
    %3041 = vmatpush.bf16.xpose.msra.mxu0 0
    %3042 = vmatpush.bf16.xpose.msra.mxu0 0
    %3043 = vmatpush.bf16.xpose.msra.mxu0 0
    %3044 = vmatpush.bf16.xpose.msra.mxu0 %v3035
    %3045 = vmatmul.bf16.gmra.mxu0 %v3032
    %v3046 = vpop.f32.mrf.mxu0
    %v3047 = vadd.f32 0.0, %v3046
    %v3048 = vpop.f32.mrf.mxu0
    %v3049 = vadd.f32 0.0, %v3048
    %3050 = vdwg.mxu0
    %v3051 = vunpack.c.l.b16 %v2932
    %v3052 = vunpack.c.l.b16 %v2934
    %v3053 = vpack.c.b16 %v3052, %v3051
    %v3054 = vunpack.c.l.b16 %v2959
    %v3055 = vunpack.c.l.b16 %v2960
    %v3056 = vpack.c.b16 %v3055, %v3054
    %v3058 = vsel %vm976, %v3053, 0
    %v3061 = vsel %vm976, %v3056, 0
    %3063 = vmatpush.bf16.xpose.msra.mxu0 0
    %3064 = vmatpush.bf16.xpose.msra.mxu0 0
    %3065 = vmatpush.bf16.xpose.msra.mxu0 0
    %3066 = vmatpush.bf16.xpose.msra.mxu0 0
    %3067 = vmatpush.bf16.xpose.msra.mxu0 0
    %3068 = vmatpush.bf16.xpose.msra.mxu0 0
    %3069 = vmatpush.bf16.xpose.msra.mxu0 0
    %3070 = vmatpush.bf16.xpose.msra.mxu0 %v3061
    %3071 = vmatmul.bf16.gmra.mxu0 %v3058
    %v3072 = vpop.f32.mrf.mxu0
    %v3073 = vadd.f32 0.0, %v3072
    %v3074 = vpop.f32.mrf.mxu0
    %v3075 = vadd.f32 0.0, %v3074
    %3076 = vdwg.mxu0
    %v3077 = vunpack.c.l.b16 %v2936
    %v3078 = vunpack.c.l.b16 %v2938
    %v3079 = vpack.c.b16 %v3078, %v3077
    %v3080 = vunpack.c.l.b16 %v2961
    %v3081 = vunpack.c.l.b16 %v2962
    %v3082 = vpack.c.b16 %v3081, %v3080
    %v3084 = vsel %vm976, %v3079, 0
    %v3087 = vsel %vm976, %v3082, 0
    %3089 = vmatpush.bf16.xpose.msra.mxu0 0
    %3090 = vmatpush.bf16.xpose.msra.mxu0 0
    %3091 = vmatpush.bf16.xpose.msra.mxu0 0
    %3092 = vmatpush.bf16.xpose.msra.mxu0 0
    %3093 = vmatpush.bf16.xpose.msra.mxu0 0
    %3094 = vmatpush.bf16.xpose.msra.mxu0 0
    %3095 = vmatpush.bf16.xpose.msra.mxu0 0
    %3096 = vmatpush.bf16.xpose.msra.mxu0 %v3087
    %3097 = vmatmul.bf16.gmra.mxu0 %v3084
    %v3098 = vpop.f32.mrf.mxu0
    %v3099 = vadd.f32 0.0, %v3098
    %v3100 = vpop.f32.mrf.mxu0
    %v3101 = vadd.f32 0.0, %v3100
    %3102 = vdwg.mxu0
    %v3103 = vunpack.c.l.b16 %v2940
    %v3104 = vunpack.c.l.b16 %v2942
    %v3105 = vpack.c.b16 %v3104, %v3103
    %v3106 = vunpack.c.l.b16 %v2963
    %v3107 = vunpack.c.l.b16 %v2964
    %v3108 = vpack.c.b16 %v3107, %v3106
    %v3110 = vsel %vm976, %v3105, 0
    %v3113 = vsel %vm976, %v3108, 0
    %3115 = vmatpush.bf16.xpose.msra.mxu0 0
    %3116 = vmatpush.bf16.xpose.msra.mxu0 0
    %3117 = vmatpush.bf16.xpose.msra.mxu0 0
    %3118 = vmatpush.bf16.xpose.msra.mxu0 0
    %3119 = vmatpush.bf16.xpose.msra.mxu0 0
    %3120 = vmatpush.bf16.xpose.msra.mxu0 0
    %3121 = vmatpush.bf16.xpose.msra.mxu0 0
    %3122 = vmatpush.bf16.xpose.msra.mxu0 %v3113
    %3123 = vmatmul.bf16.gmra.mxu0 %v3110
    %v3124 = vpop.f32.mrf.mxu0
    %v3125 = vadd.f32 0.0, %v3124
    %v3126 = vpop.f32.mrf.mxu0
    %v3127 = vadd.f32 0.0, %v3126
    %3128 = vdwg.mxu0
    %v3129 = vunpack.c.l.b16 %v2944
    %v3130 = vunpack.c.l.b16 %v2946
    %v3131 = vpack.c.b16 %v3130, %v3129
    %v3132 = vunpack.c.l.b16 %v2965
    %v3133 = vunpack.c.l.b16 %v2966
    %v3134 = vpack.c.b16 %v3133, %v3132
    %v3136 = vsel %vm976, %v3131, 0
    %v3139 = vsel %vm976, %v3134, 0
    %3141 = vmatpush.bf16.xpose.msra.mxu0 0
    %3142 = vmatpush.bf16.xpose.msra.mxu0 0
    %3143 = vmatpush.bf16.xpose.msra.mxu0 0
    %3144 = vmatpush.bf16.xpose.msra.mxu0 0
    %3145 = vmatpush.bf16.xpose.msra.mxu0 0
    %3146 = vmatpush.bf16.xpose.msra.mxu0 0
    %3147 = vmatpush.bf16.xpose.msra.mxu0 0
    %3148 = vmatpush.bf16.xpose.msra.mxu0 %v3139
    %3149 = vmatmul.bf16.gmra.mxu0 %v3136
    %v3150 = vpop.f32.mrf.mxu0
    %v3151 = vadd.f32 0.0, %v3150
    %v3152 = vpop.f32.mrf.mxu0
    %v3153 = vadd.f32 0.0, %v3152
    %3154 = vdwg.mxu0
    %v3155 = vunpack.c.l.b16 %v2948
    %v3156 = vunpack.c.l.b16 %v2950
    %v3157 = vpack.c.b16 %v3156, %v3155
    %v3158 = vunpack.c.l.b16 %v2967
    %v3159 = vunpack.c.l.b16 %v2968
    %v3160 = vpack.c.b16 %v3159, %v3158
    %v3162 = vsel %vm976, %v3157, 0
    %v3165 = vsel %vm976, %v3160, 0
    %3167 = vmatpush.bf16.xpose.msra.mxu0 0
    %3168 = vmatpush.bf16.xpose.msra.mxu0 0
    %3169 = vmatpush.bf16.xpose.msra.mxu0 0
    %3170 = vmatpush.bf16.xpose.msra.mxu0 0
    %3171 = vmatpush.bf16.xpose.msra.mxu0 0
    %3172 = vmatpush.bf16.xpose.msra.mxu0 0
    %3173 = vmatpush.bf16.xpose.msra.mxu0 0
    %3174 = vmatpush.bf16.xpose.msra.mxu0 %v3165
    %3175 = vmatmul.bf16.gmra.mxu0 %v3162
    %v3176 = vpop.f32.mrf.mxu0
    %v3177 = vadd.f32 0.0, %v3176
    %v3178 = vpop.f32.mrf.mxu0
    %v3179 = vadd.f32 0.0, %v3178
    %3180 = vdwg.mxu0
    %v3181 = vunpack.c.l.b16 %v2952
    %v3182 = vunpack.c.l.b16 %v2954
    %v3183 = vpack.c.b16 %v3182, %v3181
    %v3184 = vunpack.c.l.b16 %v2969
    %v3185 = vunpack.c.l.b16 %v2970
    %v3186 = vpack.c.b16 %v3185, %v3184
    %v3188 = vsel %vm976, %v3183, 0
    %v3191 = vsel %vm976, %v3186, 0
    %3193 = vmatpush.bf16.xpose.msra.mxu0 0
    %3194 = vmatpush.bf16.xpose.msra.mxu0 0
    %3195 = vmatpush.bf16.xpose.msra.mxu0 0
    %3196 = vmatpush.bf16.xpose.msra.mxu0 0
    %3197 = vmatpush.bf16.xpose.msra.mxu0 0
    %3198 = vmatpush.bf16.xpose.msra.mxu0 0
    %3199 = vmatpush.bf16.xpose.msra.mxu0 0
    %3200 = vmatpush.bf16.xpose.msra.mxu0 %v3191
    %3201 = vmatmul.bf16.gmra.mxu0 %v3188
    %v3202 = vpop.f32.mrf.mxu0
    %v3203 = vadd.f32 0.0, %v3202
    %v3204 = vpop.f32.mrf.mxu0
    %v3205 = vadd.f32 0.0, %v3204
    %3206 = vdwg.mxu0
    %v3207 = vsel %vm1179, %v3021, -inf
    %3208 = vmax.xlane.f32.xlu0 %v3207
    %v3209 = vpop.xlane.xlu0 %3208
    %v3210 = vsel %vm1179, %v3023, -inf
    %3211 = vmax.xlane.f32.xlu0 %v3210
    %v3212 = vpop.xlane.xlu0 %3211
    %v3213 = vsel %vm1179, %v3047, -inf
    %3214 = vmax.xlane.f32.xlu0 %v3213
    %v3215 = vpop.xlane.xlu0 %3214
    %v3216 = vsel %vm1179, %v3049, -inf
    %3217 = vmax.xlane.f32.xlu0 %v3216
    %v3218 = vpop.xlane.xlu0 %3217
    %v3219 = vsel %vm1179, %v3073, -inf
    %3220 = vmax.xlane.f32.xlu0 %v3219
    %v3221 = vpop.xlane.xlu0 %3220
    %v3222 = vsel %vm1179, %v3075, -inf
    %3223 = vmax.xlane.f32.xlu0 %v3222
    %v3224 = vpop.xlane.xlu0 %3223
    %v3225 = vsel %vm1179, %v3099, -inf
    %3226 = vmax.xlane.f32.xlu0 %v3225
    %v3227 = vpop.xlane.xlu0 %3226
    %v3228 = vsel %vm1179, %v3101, -inf
    %3229 = vmax.xlane.f32.xlu0 %v3228
    %v3230 = vpop.xlane.xlu0 %3229
    %v3231 = vsel %vm1179, %v3125, -inf
    %3232 = vmax.xlane.f32.xlu0 %v3231
    %v3233 = vpop.xlane.xlu0 %3232
    %v3234 = vsel %vm1179, %v3127, -inf
    %3235 = vmax.xlane.f32.xlu0 %v3234
    %v3236 = vpop.xlane.xlu0 %3235
    %v3237 = vsel %vm1179, %v3151, -inf
    %3238 = vmax.xlane.f32.xlu0 %v3237
    %v3239 = vpop.xlane.xlu0 %3238
    %v3240 = vsel %vm1179, %v3153, -inf
    %3241 = vmax.xlane.f32.xlu0 %v3240
    %v3242 = vpop.xlane.xlu0 %3241
    %v3243 = vsel %vm1179, %v3177, -inf
    %3244 = vmax.xlane.f32.xlu0 %v3243
    %v3245 = vpop.xlane.xlu0 %3244
    %v3246 = vsel %vm1179, %v3179, -inf
    %3247 = vmax.xlane.f32.xlu0 %v3246
    %v3248 = vpop.xlane.xlu0 %3247
    %v3249 = vsel %vm1179, %v3203, -inf
    %3250 = vmax.xlane.f32.xlu0 %v3249
    %v3251 = vpop.xlane.xlu0 %3250
    %v3252 = vsel %vm1179, %v3205, -inf
    %3253 = vmax.xlane.f32.xlu0 %v3252
    %v3254 = vpop.xlane.xlu0 %3253
    %v3255 = vsub.f32 %v3021, %v3209
    %v3256 = vsub.f32 %v3023, %v3212
    %v3257 = vsub.f32 %v3047, %v3215
    %v3258 = vsub.f32 %v3049, %v3218
    %v3259 = vsub.f32 %v3073, %v3221
    %v3260 = vsub.f32 %v3075, %v3224
    %v3261 = vsub.f32 %v3099, %v3227
    %v3262 = vsub.f32 %v3101, %v3230
    %v3263 = vsub.f32 %v3125, %v3233
    %v3264 = vsub.f32 %v3127, %v3236
    %v3265 = vsub.f32 %v3151, %v3239
    %v3266 = vsub.f32 %v3153, %v3242
    %v3267 = vsub.f32 %v3177, %v3245
    %v3268 = vsub.f32 %v3179, %v3248
    %v3269 = vsub.f32 %v3203, %v3251
    %v3270 = vsub.f32 %v3205, %v3254
    %v3271 = vmul.f32 %v3255, 1.442695
    %v3272 = vpow.pop %v3271
    %v3273 = vmul.f32 %v3256, 1.442695
    %v3274 = vpow.pop %v3273
    %v3275 = vmul.f32 %v3257, 1.442695
    %v3276 = vpow.pop %v3275
    %v3277 = vmul.f32 %v3258, 1.442695
    %v3278 = vpow.pop %v3277
    %v3279 = vmul.f32 %v3259, 1.442695
    %v3280 = vpow.pop %v3279
    %v3281 = vmul.f32 %v3260, 1.442695
    %v3282 = vpow.pop %v3281
    %v3283 = vmul.f32 %v3261, 1.442695
    %v3284 = vpow.pop %v3283
    %v3285 = vmul.f32 %v3262, 1.442695
    %v3286 = vpow.pop %v3285
    %v3287 = vmul.f32 %v3263, 1.442695
    %v3288 = vpow.pop %v3287
    %v3289 = vmul.f32 %v3264, 1.442695
    %v3290 = vpow.pop %v3289
    %v3291 = vmul.f32 %v3265, 1.442695
    %v3292 = vpow.pop %v3291
    %v3293 = vmul.f32 %v3266, 1.442695
    %v3294 = vpow.pop %v3293
    %v3295 = vmul.f32 %v3267, 1.442695
    %v3296 = vpow.pop %v3295
    %v3297 = vmul.f32 %v3268, 1.442695
    %v3298 = vpow.pop %v3297
    %v3299 = vmul.f32 %v3269, 1.442695
    %v3300 = vpow.pop %v3299
    %v3301 = vmul.f32 %v3270, 1.442695
    %v3302 = vpow.pop %v3301
    %v3303 = vsel %vm1179, %v3272, 0.0
    %3304 = vadd.xlane.f32.xlu0 %v3303
    %v3305 = vpop.xlane.xlu0 %3304
    %v3306 = vsel %vm1179, %v3274, 0.0
    %3307 = vadd.xlane.f32.xlu0 %v3306
    %v3308 = vpop.xlane.xlu0 %3307
    %v3309 = vsel %vm1179, %v3276, 0.0
    %3310 = vadd.xlane.f32.xlu0 %v3309
    %v3311 = vpop.xlane.xlu0 %3310
    %v3312 = vsel %vm1179, %v3278, 0.0
    %3313 = vadd.xlane.f32.xlu0 %v3312
    %v3314 = vpop.xlane.xlu0 %3313
    %v3315 = vsel %vm1179, %v3280, 0.0
    %3316 = vadd.xlane.f32.xlu0 %v3315
    %v3317 = vpop.xlane.xlu0 %3316
    %v3318 = vsel %vm1179, %v3282, 0.0
    %3319 = vadd.xlane.f32.xlu0 %v3318
    %v3320 = vpop.xlane.xlu0 %3319
    %v3321 = vsel %vm1179, %v3284, 0.0
    %3322 = vadd.xlane.f32.xlu0 %v3321
    %v3323 = vpop.xlane.xlu0 %3322
    %v3324 = vsel %vm1179, %v3286, 0.0
    %3325 = vadd.xlane.f32.xlu0 %v3324
    %v3326 = vpop.xlane.xlu0 %3325
    %v3327 = vsel %vm1179, %v3288, 0.0
    %3328 = vadd.xlane.f32.xlu0 %v3327
    %v3329 = vpop.xlane.xlu0 %3328
    %v3330 = vsel %vm1179, %v3290, 0.0
    %3331 = vadd.xlane.f32.xlu0 %v3330
    %v3332 = vpop.xlane.xlu0 %3331
    %v3333 = vsel %vm1179, %v3292, 0.0
    %3334 = vadd.xlane.f32.xlu0 %v3333
    %v3335 = vpop.xlane.xlu0 %3334
    %v3336 = vsel %vm1179, %v3294, 0.0
    %3337 = vadd.xlane.f32.xlu0 %v3336
    %v3338 = vpop.xlane.xlu0 %3337
    %v3339 = vsel %vm1179, %v3296, 0.0
    %3340 = vadd.xlane.f32.xlu0 %v3339
    %v3341 = vpop.xlane.xlu0 %3340
    %v3342 = vsel %vm1179, %v3298, 0.0
    %3343 = vadd.xlane.f32.xlu0 %v3342
    %v3344 = vpop.xlane.xlu0 %3343
    %v3345 = vsel %vm1179, %v3300, 0.0
    %3346 = vadd.xlane.f32.xlu0 %v3345
    %v3347 = vpop.xlane.xlu0 %3346
    %v3348 = vsel %vm1179, %v3302, 0.0
    %3349 = vadd.xlane.f32.xlu0 %v3348
    %v3350 = vpop.xlane.xlu0 %3349
    %v3351 = vrcp.pop %v3305
    %v3352 = vrcp.pop %v3308
    %v3353 = vrcp.pop %v3311
    %v3354 = vrcp.pop %v3314
    %v3355 = vrcp.pop %v3317
    %v3356 = vrcp.pop %v3320
    %v3357 = vrcp.pop %v3323
    %v3358 = vrcp.pop %v3326
    %v3359 = vrcp.pop %v3329
    %v3360 = vrcp.pop %v3332
    %v3361 = vrcp.pop %v3335
    %v3362 = vrcp.pop %v3338
    %v3363 = vrcp.pop %v3341
    %v3364 = vrcp.pop %v3344
    %v3365 = vrcp.pop %v3347
    %v3366 = vrcp.pop %v3350
    %v3367 = vmul.f32 %v3272, %v3351
    %v3368 = vmul.f32 %v3274, %v3352
    %v3369 = vmul.f32 %v3276, %v3353
    %v3370 = vmul.f32 %v3278, %v3354
    %v3371 = vmul.f32 %v3280, %v3355
    %v3372 = vmul.f32 %v3282, %v3356
    %v3373 = vmul.f32 %v3284, %v3357
    %v3374 = vmul.f32 %v3286, %v3358
    %v3375 = vmul.f32 %v3288, %v3359
    %v3376 = vmul.f32 %v3290, %v3360
    %v3377 = vmul.f32 %v3292, %v3361
    %v3378 = vmul.f32 %v3294, %v3362
    %v3379 = vmul.f32 %v3296, %v3363
    %v3380 = vmul.f32 %v3298, %v3364
    %v3381 = vmul.f32 %v3300, %v3365
    %v3382 = vmul.f32 %v3302, %v3366
    %v3383 = vpack.c.bf16 %v3367, %v3367
    %v3384 = vpack.c.bf16 %v3368, %v3368
    %v3385 = vpack.c.bf16 %v3369, %v3369
    %v3386 = vpack.c.bf16 %v3370, %v3370
    %v3387 = vpack.c.bf16 %v3371, %v3371
    %v3388 = vpack.c.bf16 %v3372, %v3372
    %v3389 = vpack.c.bf16 %v3373, %v3373
    %v3390 = vpack.c.bf16 %v3374, %v3374
    %v3391 = vpack.c.bf16 %v3375, %v3375
    %v3392 = vpack.c.bf16 %v3376, %v3376
    %v3393 = vpack.c.bf16 %v3377, %v3377
    %v3394 = vpack.c.bf16 %v3378, %v3378
    %v3395 = vpack.c.bf16 %v3379, %v3379
    %v3396 = vpack.c.bf16 %v3380, %v3380
    %v3397 = vpack.c.bf16 %v3381, %v3381
    %v3398 = vpack.c.bf16 %v3382, %v3382
    %v3401 = vunpack.c.l.b16 %v3383
    %v3402 = vunpack.c.l.b16 %v3384
    %v3403 = vpack.c.b16 %v3402, %v3401
    %v3404 = vunpack.c.l.b16 %v2920
    %v3405 = vunpack.c.l.b16 %v2922
    %v3406 = vpack.c.b16 %v3405, %v3404
    %v3409 = vsel %vm1179, %v3403, 0
    %3411 = vmatpush.bf16.msra.mxu0 0
    %3412 = vmatpush.bf16.msra.mxu0 0
    %3413 = vmatpush.bf16.msra.mxu0 0
    %3414 = vmatpush.bf16.msra.mxu0 0
    %3415 = vmatpush.bf16.msra.mxu0 0
    %3416 = vmatpush.bf16.msra.mxu0 0
    %3417 = vmatpush.bf16.msra.mxu0 0
    %3418 = vmatpush.bf16.msra.mxu0 %v3406
    %3419 = vmatmul.bf16.gmra.mxu0 %v3409
    %v3420 = vpop.f32.mrf.mxu0
    %v3421 = vadd.f32 0.0, %v3420
    %v3422 = vpop.f32.mrf.mxu0
    %v3423 = vadd.f32 0.0, %v3422
    %3424 = vdwg.mxu0
    %v3427 = vunpack.c.l.b16 %v3385
    %v3428 = vunpack.c.l.b16 %v3386
    %v3429 = vpack.c.b16 %v3428, %v3427
    %v3430 = vunpack.c.l.b16 %v2924
    %v3431 = vunpack.c.l.b16 %v2926
    %v3432 = vpack.c.b16 %v3431, %v3430
    %v3435 = vsel %vm1179, %v3429, 0
    %3437 = vmatpush.bf16.msra.mxu0 0
    %3438 = vmatpush.bf16.msra.mxu0 0
    %3439 = vmatpush.bf16.msra.mxu0 0
    %3440 = vmatpush.bf16.msra.mxu0 0
    %3441 = vmatpush.bf16.msra.mxu0 0
    %3442 = vmatpush.bf16.msra.mxu0 0
    %3443 = vmatpush.bf16.msra.mxu0 0
    %3444 = vmatpush.bf16.msra.mxu0 %v3432
    %3445 = vmatmul.bf16.gmra.mxu0 %v3435
    %v3446 = vpop.f32.mrf.mxu0
    %v3447 = vadd.f32 0.0, %v3446
    %v3448 = vpop.f32.mrf.mxu0
    %v3449 = vadd.f32 0.0, %v3448
    %3450 = vdwg.mxu0
    %v3453 = vunpack.c.l.b16 %v3387
    %v3454 = vunpack.c.l.b16 %v3388
    %v3455 = vpack.c.b16 %v3454, %v3453
    %v3456 = vunpack.c.l.b16 %v2976
    %v3457 = vunpack.c.l.b16 %v2978
    %v3458 = vpack.c.b16 %v3457, %v3456
    %v3461 = vsel %vm1179, %v3455, 0
    %3463 = vmatpush.bf16.msra.mxu0 0
    %3464 = vmatpush.bf16.msra.mxu0 0
    %3465 = vmatpush.bf16.msra.mxu0 0
    %3466 = vmatpush.bf16.msra.mxu0 0
    %3467 = vmatpush.bf16.msra.mxu0 0
    %3468 = vmatpush.bf16.msra.mxu0 0
    %3469 = vmatpush.bf16.msra.mxu0 0
    %3470 = vmatpush.bf16.msra.mxu0 %v3458
    %3471 = vmatmul.bf16.gmra.mxu0 %v3461
    %v3472 = vpop.f32.mrf.mxu0
    %v3473 = vadd.f32 0.0, %v3472
    %v3474 = vpop.f32.mrf.mxu0
    %v3475 = vadd.f32 0.0, %v3474
    %3476 = vdwg.mxu0
    %v3479 = vunpack.c.l.b16 %v3389
    %v3480 = vunpack.c.l.b16 %v3390
    %v3481 = vpack.c.b16 %v3480, %v3479
    %v3482 = vunpack.c.l.b16 %v2980
    %v3483 = vunpack.c.l.b16 %v2982
    %v3484 = vpack.c.b16 %v3483, %v3482
    %v3487 = vsel %vm1179, %v3481, 0
    %3489 = vmatpush.bf16.msra.mxu0 0
    %3490 = vmatpush.bf16.msra.mxu0 0
    %3491 = vmatpush.bf16.msra.mxu0 0
    %3492 = vmatpush.bf16.msra.mxu0 0
    %3493 = vmatpush.bf16.msra.mxu0 0
    %3494 = vmatpush.bf16.msra.mxu0 0
    %3495 = vmatpush.bf16.msra.mxu0 0
    %3496 = vmatpush.bf16.msra.mxu0 %v3484
    %3497 = vmatmul.bf16.gmra.mxu0 %v3487
    %v3498 = vpop.f32.mrf.mxu0
    %v3499 = vadd.f32 0.0, %v3498
    %v3500 = vpop.f32.mrf.mxu0
    %v3501 = vadd.f32 0.0, %v3500
    %3502 = vdwg.mxu0
    %v3505 = vunpack.c.l.b16 %v3391
    %v3506 = vunpack.c.l.b16 %v3392
    %v3507 = vpack.c.b16 %v3506, %v3505
    %v3508 = vunpack.c.l.b16 %v2984
    %v3509 = vunpack.c.l.b16 %v2986
    %v3510 = vpack.c.b16 %v3509, %v3508
    %v3513 = vsel %vm1179, %v3507, 0
    %3515 = vmatpush.bf16.msra.mxu0 0
    %3516 = vmatpush.bf16.msra.mxu0 0
    %3517 = vmatpush.bf16.msra.mxu0 0
    %3518 = vmatpush.bf16.msra.mxu0 0
    %3519 = vmatpush.bf16.msra.mxu0 0
    %3520 = vmatpush.bf16.msra.mxu0 0
    %3521 = vmatpush.bf16.msra.mxu0 0
    %3522 = vmatpush.bf16.msra.mxu0 %v3510
    %3523 = vmatmul.bf16.gmra.mxu0 %v3513
    %v3524 = vpop.f32.mrf.mxu0
    %v3525 = vadd.f32 0.0, %v3524
    %v3526 = vpop.f32.mrf.mxu0
    %v3527 = vadd.f32 0.0, %v3526
    %3528 = vdwg.mxu0
    %v3531 = vunpack.c.l.b16 %v3393
    %v3532 = vunpack.c.l.b16 %v3394
    %v3533 = vpack.c.b16 %v3532, %v3531
    %v3534 = vunpack.c.l.b16 %v2988
    %v3535 = vunpack.c.l.b16 %v2990
    %v3536 = vpack.c.b16 %v3535, %v3534
    %v3539 = vsel %vm1179, %v3533, 0
    %3541 = vmatpush.bf16.msra.mxu0 0
    %3542 = vmatpush.bf16.msra.mxu0 0
    %3543 = vmatpush.bf16.msra.mxu0 0
    %3544 = vmatpush.bf16.msra.mxu0 0
    %3545 = vmatpush.bf16.msra.mxu0 0
    %3546 = vmatpush.bf16.msra.mxu0 0
    %3547 = vmatpush.bf16.msra.mxu0 0
    %3548 = vmatpush.bf16.msra.mxu0 %v3536
    %3549 = vmatmul.bf16.gmra.mxu0 %v3539
    %v3550 = vpop.f32.mrf.mxu0
    %v3551 = vadd.f32 0.0, %v3550
    %v3552 = vpop.f32.mrf.mxu0
    %v3553 = vadd.f32 0.0, %v3552
    %3554 = vdwg.mxu0
    %v3557 = vunpack.c.l.b16 %v3395
    %v3558 = vunpack.c.l.b16 %v3396
    %v3559 = vpack.c.b16 %v3558, %v3557
    %v3560 = vunpack.c.l.b16 %v2992
    %v3561 = vunpack.c.l.b16 %v2994
    %v3562 = vpack.c.b16 %v3561, %v3560
    %v3565 = vsel %vm1179, %v3559, 0
    %3567 = vmatpush.bf16.msra.mxu0 0
    %3568 = vmatpush.bf16.msra.mxu0 0
    %3569 = vmatpush.bf16.msra.mxu0 0
    %3570 = vmatpush.bf16.msra.mxu0 0
    %3571 = vmatpush.bf16.msra.mxu0 0
    %3572 = vmatpush.bf16.msra.mxu0 0
    %3573 = vmatpush.bf16.msra.mxu0 0
    %3574 = vmatpush.bf16.msra.mxu0 %v3562
    %3575 = vmatmul.bf16.gmra.mxu0 %v3565
    %v3576 = vpop.f32.mrf.mxu0
    %v3577 = vadd.f32 0.0, %v3576
    %v3578 = vpop.f32.mrf.mxu0
    %v3579 = vadd.f32 0.0, %v3578
    %3580 = vdwg.mxu0
    %v3583 = vunpack.c.l.b16 %v3397
    %v3584 = vunpack.c.l.b16 %v3398
    %v3585 = vpack.c.b16 %v3584, %v3583
    %v3586 = vunpack.c.l.b16 %v2996
    %v3587 = vunpack.c.l.b16 %v2998
    %v3588 = vpack.c.b16 %v3587, %v3586
    %v3591 = vsel %vm1179, %v3585, 0
    %3593 = vmatpush.bf16.msra.mxu0 0
    %3594 = vmatpush.bf16.msra.mxu0 0
    %3595 = vmatpush.bf16.msra.mxu0 0
    %3596 = vmatpush.bf16.msra.mxu0 0
    %3597 = vmatpush.bf16.msra.mxu0 0
    %3598 = vmatpush.bf16.msra.mxu0 0
    %3599 = vmatpush.bf16.msra.mxu0 0
    %3600 = vmatpush.bf16.msra.mxu0 %v3588
    %3601 = vmatmul.bf16.gmra.mxu0 %v3591
    %v3602 = vpop.f32.mrf.mxu0
    %v3603 = vadd.f32 0.0, %v3602
    %v3604 = vpop.f32.mrf.mxu0
    %v3605 = vadd.f32 0.0, %v3604
    %3606 = vdwg.mxu0
    %3611 = vrot.lane.b32.xlu0 %v3473, 32
    %v3612 = vpop.permute.xlu0 %3611
    %3613 = vrot.lane.b32.xlu0 %v3475, 32
    %v3614 = vpop.permute.xlu0 %3613
    %3615 = vrot.lane.b32.xlu0 %v3499, 32
    %v3616 = vpop.permute.xlu0 %3615
    %3617 = vrot.lane.b32.xlu0 %v3501, 32
    %v3618 = vpop.permute.xlu0 %3617
    %3627 = vrot.lane.b32.xlu0 %v3525, 64
    %v3628 = vpop.permute.xlu0 %3627
    %3629 = vrot.lane.b32.xlu0 %v3527, 64
    %v3630 = vpop.permute.xlu0 %3629
    %3631 = vrot.lane.b32.xlu0 %v3551, 64
    %v3632 = vpop.permute.xlu0 %3631
    %3633 = vrot.lane.b32.xlu0 %v3553, 64
    %v3634 = vpop.permute.xlu0 %3633
    %3643 = vrot.lane.b32.xlu0 %v3577, 96
    %v3644 = vpop.permute.xlu0 %3643
    %3645 = vrot.lane.b32.xlu0 %v3579, 96
    %v3646 = vpop.permute.xlu0 %3645
    %3647 = vrot.lane.b32.xlu0 %v3603, 96
    %v3648 = vpop.permute.xlu0 %3647
    %3649 = vrot.lane.b32.xlu0 %v3605, 96
    %v3650 = vpop.permute.xlu0 %3649
    %v3655 = vsel %vm976, %v3421, %v3612
    %v3656 = vsel %vm976, %v3423, %v3614
    %v3657 = vsel %vm976, %v3447, %v3616
    %v3658 = vsel %vm976, %v3449, %v3618
    %v3659 = vsel %vm511, %v3655, %v3628
    %v3660 = vsel %vm511, %v3656, %v3630
    %v3661 = vsel %vm511, %v3657, %v3632
    %v3662 = vsel %vm511, %v3658, %v3634
    %v3663 = vsel %vm1636, %v3659, %v3644
    %v3664 = vsel %vm1636, %v3660, %v3646
    %v3665 = vsel %vm1636, %v3661, %v3648
    %v3666 = vsel %vm1636, %v3662, %v3650
    %v3667 = vpack.c.bf16 %v3664, %v3663
    %v3668 = vpack.c.bf16 %v3666, %v3665
    %s3669 = scalar_lea.vmem [#allocation15], 64
    %v3670 = vld [vmem:[%s3669] sm:$0xf]
    %v3671 = vld [vmem:[%s3669 + $0x4] sm:$0xf]
    %v3672 = vld [vmem:[%s3669 + $0x8] sm:$0xf]
    %v3673 = vld [vmem:[%s3669 + $0xc] sm:$0xf]
    %v3674 = vld [vmem:[%s3669 + $0x10] sm:$0xf]
    %v3675 = vld [vmem:[%s3669 + $0x14] sm:$0xf]
    %v3676 = vld [vmem:[%s3669 + $0x18] sm:$0xf]
    %v3677 = vld [vmem:[%s3669 + $0x1c] sm:$0xf]
    %v3678 = vld [vmem:[%s3669 + $0x20] sm:$0xf]
    %v3679 = vld [vmem:[%s3669 + $0x24] sm:$0xf]
    %v3680 = vld [vmem:[%s3669 + $0x28] sm:$0xf]
    %v3681 = vld [vmem:[%s3669 + $0x2c] sm:$0xf]
    %v3682 = vld [vmem:[%s3669 + $0x30] sm:$0xf]
    %v3683 = vld [vmem:[%s3669 + $0x34] sm:$0xf]
    %v3684 = vld [vmem:[%s3669 + $0x38] sm:$0xf]
    %v3685 = vld [vmem:[%s3669 + $0x3c] sm:$0xf]
    %v3702 = vunpack.c.l.b16 %v3670
    %v3703 = vunpack.c.l.b16 %v3671
    %v3704 = vunpack.c.l.b16 %v3672
    %v3705 = vunpack.c.l.b16 %v3673
    %v3706 = vunpack.c.l.b16 %v3674
    %v3707 = vunpack.c.l.b16 %v3675
    %v3708 = vunpack.c.l.b16 %v3676
    %v3709 = vunpack.c.l.b16 %v3677
    %v3710 = vunpack.c.l.b16 %v3678
    %v3711 = vunpack.c.l.b16 %v3679
    %v3712 = vunpack.c.l.b16 %v3680
    %v3713 = vunpack.c.l.b16 %v3681
    %v3714 = vunpack.c.l.b16 %v3682
    %v3715 = vunpack.c.l.b16 %v3683
    %v3716 = vunpack.c.l.b16 %v3684
    %v3717 = vunpack.c.l.b16 %v3685
    %v3718 = vpack.c.b16 %v3703, %v3702
    %v3719 = vpack.c.b16 %v3705, %v3704
    %v3720 = vpack.c.b16 %v3707, %v3706
    %v3721 = vpack.c.b16 %v3709, %v3708
    %v3722 = vpack.c.b16 %v3711, %v3710
    %v3723 = vpack.c.b16 %v3713, %v3712
    %v3724 = vpack.c.b16 %v3715, %v3714
    %v3725 = vpack.c.b16 %v3717, %v3716
    %3734 = vmatpush.bf16.msra.mxu0 %v3725
    %3735 = vmatpush.bf16.msra.mxu0 %v3724
    %3736 = vmatpush.bf16.msra.mxu0 %v3723
    %3737 = vmatpush.bf16.msra.mxu0 %v3722
    %3738 = vmatpush.bf16.msra.mxu0 %v3721
    %3739 = vmatpush.bf16.msra.mxu0 %v3720
    %3740 = vmatpush.bf16.msra.mxu0 %v3719
    %3741 = vmatpush.bf16.msra.mxu0 %v3718
    %3742 = vmatmul.bf16.gmra.mxu0 %v3667
    %v3743 = vpop.f32.mrf.mxu0
    %v3744 = vadd.f32 0.0, %v3743
    %v3745 = vpop.f32.mrf.mxu0
    %v3746 = vadd.f32 0.0, %v3745
    %3747 = vmatmul.bf16.gmra.mxu0 %v3668
    %v3748 = vpop.f32.mrf.mxu0
    %v3749 = vadd.f32 0.0, %v3748
    %v3750 = vpop.f32.mrf.mxu0
    %v3751 = vadd.f32 0.0, %v3750
    %3752 = vdwg.mxu0
    %v3753 = vadd.f32 %v2594, %v3744
    %v3754 = vadd.f32 %v2595, %v3746
    %v3755 = vadd.f32 %v2596, %v3749
    %v3756 = vadd.f32 %v2597, %v3751
    %v3757 = vld [vmem:[#allocation17 + $0x1] sm:$0x1]
    %v3758 = vperm.slane %v3757, 0
    %v3759 = vadd.f32 %v3753, %v3758
    %v3760 = vadd.f32 %v3754, %v3758
    %v3761 = vadd.f32 %v3755, %v3758
    %v3762 = vadd.f32 %v3756, %v3758
    %v3763 = vld [vmem:[#allocation18 + $0x1] sm:$0x1]
    %v3764 = vld [vmem:[#allocation20 + $0x1] sm:$0x1]
    %3765 = vadd.xlane.f32.xlu0 %v3759
    %v3766 = vpop.xlane.xlu0 %3765
    %3767 = vadd.xlane.f32.xlu0 %v3760
    %v3768 = vpop.xlane.xlu0 %3767
    %3769 = vadd.xlane.f32.xlu0 %v3761
    %v3770 = vpop.xlane.xlu0 %3769
    %3771 = vadd.xlane.f32.xlu0 %v3762
    %v3772 = vpop.xlane.xlu0 %3771
    %v3773 = vmul.f32 %v3766, %v580
    %v3774 = vmul.f32 %v3768, %v580
    %v3775 = vmul.f32 %v3770, %v580
    %v3776 = vmul.f32 %v3772, %v580
    %v3777 = vsub.f32 %v3759, %v3773
    %v3778 = vsub.f32 %v3760, %v3774
    %v3779 = vsub.f32 %v3761, %v3775
    %v3780 = vsub.f32 %v3762, %v3776
    %v3781 = vmul.f32 %v3777, %v3777
    %v3782 = vmul.f32 %v3778, %v3778
    %v3783 = vmul.f32 %v3779, %v3779
    %v3784 = vmul.f32 %v3780, %v3780
    %3785 = vadd.xlane.f32.xlu0 %v3781
    %v3786 = vpop.xlane.xlu0 %3785
    %3787 = vadd.xlane.f32.xlu0 %v3782
    %v3788 = vpop.xlane.xlu0 %3787
    %3789 = vadd.xlane.f32.xlu0 %v3783
    %v3790 = vpop.xlane.xlu0 %3789
    %3791 = vadd.xlane.f32.xlu0 %v3784
    %v3792 = vpop.xlane.xlu0 %3791
    %v3793 = vmul.f32 %v3786, %v580
    %v3794 = vmul.f32 %v3788, %v580
    %v3795 = vmul.f32 %v3790, %v580
    %v3796 = vmul.f32 %v3792, %v580
    %v3797 = vadd.f32 %v3793, 1e-05
    %v3798 = vadd.f32 %v3794, 1e-05
    %v3799 = vadd.f32 %v3795, 1e-05
    %v3800 = vadd.f32 %v3796, 1e-05
    %v3801 = vrsqrt.pop %v3797
    %v3802 = vmul.f32 %v3801, %v3797
    %v3803 = vmul.f32 %v3802, %v3801
    %v3804 = vmul.f32 0.5, %v3803
    %v3805 = vsub.f32 1.5, %v3804
    %v3806 = vmul.f32 %v3801, %v3805
    %vm3807 = vweird.f32 %v3797
    %vm3808 = vweird.f32 %v3801
    %vm3809 = vmor %vm3807, %vm3808
    %v3810 = vsel %vm3809, %v3801, %v3806
    %v3811 = vrsqrt.pop %v3798
    %v3812 = vmul.f32 %v3811, %v3798
    %v3813 = vmul.f32 %v3812, %v3811
    %v3814 = vmul.f32 0.5, %v3813
    %v3815 = vsub.f32 1.5, %v3814
    %v3816 = vmul.f32 %v3811, %v3815
    %vm3817 = vweird.f32 %v3798
    %vm3818 = vweird.f32 %v3811
    %vm3819 = vmor %vm3817, %vm3818
    %v3820 = vsel %vm3819, %v3811, %v3816
    %v3821 = vrsqrt.pop %v3799
    %v3822 = vmul.f32 %v3821, %v3799
    %v3823 = vmul.f32 %v3822, %v3821
    %v3824 = vmul.f32 0.5, %v3823
    %v3825 = vsub.f32 1.5, %v3824
    %v3826 = vmul.f32 %v3821, %v3825
    %vm3827 = vweird.f32 %v3799
    %vm3828 = vweird.f32 %v3821
    %vm3829 = vmor %vm3827, %vm3828
    %v3830 = vsel %vm3829, %v3821, %v3826
    %v3831 = vrsqrt.pop %v3800
    %v3832 = vmul.f32 %v3831, %v3800
    %v3833 = vmul.f32 %v3832, %v3831
    %v3834 = vmul.f32 0.5, %v3833
    %v3835 = vsub.f32 1.5, %v3834
    %v3836 = vmul.f32 %v3831, %v3835
    %vm3837 = vweird.f32 %v3800
    %vm3838 = vweird.f32 %v3831
    %vm3839 = vmor %vm3837, %vm3838
    %v3840 = vsel %vm3839, %v3831, %v3836
    %v3841 = vmul.f32 %v3777, %v3810
    %v3842 = vmul.f32 %v3778, %v3820
    %v3843 = vmul.f32 %v3779, %v3830
    %v3844 = vmul.f32 %v3780, %v3840
    %v3845 = vperm.slane %v3763, 0
    %v3846 = vmul.f32 %v3841, %v3845
    %v3847 = vmul.f32 %v3842, %v3845
    %v3848 = vmul.f32 %v3843, %v3845
    %v3849 = vmul.f32 %v3844, %v3845
    %v3850 = vperm.slane %v3764, 0
    %v3851 = vadd.f32 %v3846, %v3850
    %v3852 = vadd.f32 %v3847, %v3850
    %v3853 = vadd.f32 %v3848, %v3850
    %v3854 = vadd.f32 %v3849, %v3850
    %v3855 = vpack.c.bf16 %v3852, %v3851
    %v3856 = vpack.c.bf16 %v3854, %v3853
    %s3857 = scalar_lea.vmem [#allocation21], 256
    %v3858 = vld [vmem:[%s3857] sm:$0xff]
    %v3859 = vld [vmem:[%s3857 + $0x8] sm:$0xff]
    %v3860 = vld [vmem:[%s3857 + $0x10] sm:$0xff]
    %v3861 = vld [vmem:[%s3857 + $0x18] sm:$0xff]
    %v3862 = vld [vmem:[%s3857 + $0x20] sm:$0xff]
    %v3863 = vld [vmem:[%s3857 + $0x28] sm:$0xff]
    %v3864 = vld [vmem:[%s3857 + $0x30] sm:$0xff]
    %v3865 = vld [vmem:[%s3857 + $0x38] sm:$0xff]
    %v3866 = vld [vmem:[%s3857 + $0x40] sm:$0xff]
    %v3867 = vld [vmem:[%s3857 + $0x48] sm:$0xff]
    %v3868 = vld [vmem:[%s3857 + $0x50] sm:$0xff]
    %v3869 = vld [vmem:[%s3857 + $0x58] sm:$0xff]
    %v3870 = vld [vmem:[%s3857 + $0x60] sm:$0xff]
    %v3871 = vld [vmem:[%s3857 + $0x68] sm:$0xff]
    %v3872 = vld [vmem:[%s3857 + $0x70] sm:$0xff]
    %v3873 = vld [vmem:[%s3857 + $0x78] sm:$0xff]
    %v3874 = vld [vmem:[%s3857 + $0x80] sm:$0xff]
    %v3875 = vld [vmem:[%s3857 + $0x88] sm:$0xff]
    %v3876 = vld [vmem:[%s3857 + $0x90] sm:$0xff]
    %v3877 = vld [vmem:[%s3857 + $0x98] sm:$0xff]
    %v3878 = vld [vmem:[%s3857 + $0xa0] sm:$0xff]
    %v3879 = vld [vmem:[%s3857 + $0xa8] sm:$0xff]
    %v3880 = vld [vmem:[%s3857 + $0xb0] sm:$0xff]
    %v3881 = vld [vmem:[%s3857 + $0xb8] sm:$0xff]
    %v3882 = vld [vmem:[%s3857 + $0xc0] sm:$0xff]
    %v3883 = vld [vmem:[%s3857 + $0xc8] sm:$0xff]
    %v3884 = vld [vmem:[%s3857 + $0xd0] sm:$0xff]
    %v3885 = vld [vmem:[%s3857 + $0xd8] sm:$0xff]
    %v3886 = vld [vmem:[%s3857 + $0xe0] sm:$0xff]
    %v3887 = vld [vmem:[%s3857 + $0xe8] sm:$0xff]
    %v3888 = vld [vmem:[%s3857 + $0xf0] sm:$0xff]
    %v3889 = vld [vmem:[%s3857 + $0xf8] sm:$0xff]
    %s3890 = scalar_lea.vmem [#allocation23], 1
    %v3891 = vld [vmem:[%s3890] ss:$2 sm:$0xf]
    %v3893 = vperm.slane %v3891, 0
    %v3894 = vperm.slane %v3891, 1
    %v3895 = vperm.slane %v3891, 2
    %v3896 = vperm.slane %v3891, 3
    %v3933 = vunpack.c.l.b16 %v3858
    %v3934 = vunpack.c.h.b16 %v3858
    %v3935 = vunpack.c.l.b16 %v3859
    %v3936 = vunpack.c.h.b16 %v3859
    %v3937 = vunpack.c.l.b16 %v3860
    %v3938 = vunpack.c.h.b16 %v3860
    %v3939 = vunpack.c.l.b16 %v3861
    %v3940 = vunpack.c.h.b16 %v3861
    %v3941 = vunpack.c.l.b16 %v3862
    %v3942 = vunpack.c.h.b16 %v3862
    %v3943 = vunpack.c.l.b16 %v3863
    %v3944 = vunpack.c.h.b16 %v3863
    %v3945 = vunpack.c.l.b16 %v3864
    %v3946 = vunpack.c.h.b16 %v3864
    %v3947 = vunpack.c.l.b16 %v3865
    %v3948 = vunpack.c.h.b16 %v3865
    %v3949 = vunpack.c.l.b16 %v3866
    %v3950 = vunpack.c.h.b16 %v3866
    %v3951 = vunpack.c.l.b16 %v3867
    %v3952 = vunpack.c.h.b16 %v3867
    %v3953 = vunpack.c.l.b16 %v3868
    %v3954 = vunpack.c.h.b16 %v3868
    %v3955 = vunpack.c.l.b16 %v3869
    %v3956 = vunpack.c.h.b16 %v3869
    %v3957 = vunpack.c.l.b16 %v3870
    %v3958 = vunpack.c.h.b16 %v3870
    %v3959 = vunpack.c.l.b16 %v3871
    %v3960 = vunpack.c.h.b16 %v3871
    %v3961 = vunpack.c.l.b16 %v3872
    %v3962 = vunpack.c.h.b16 %v3872
    %v3963 = vunpack.c.l.b16 %v3873
    %v3964 = vunpack.c.h.b16 %v3873
    %v3965 = vunpack.c.l.b16 %v3874
    %v3966 = vunpack.c.h.b16 %v3874
    %v3967 = vunpack.c.l.b16 %v3875
    %v3968 = vunpack.c.h.b16 %v3875
    %v3969 = vunpack.c.l.b16 %v3876
    %v3970 = vunpack.c.h.b16 %v3876
    %v3971 = vunpack.c.l.b16 %v3877
    %v3972 = vunpack.c.h.b16 %v3877
    %v3973 = vunpack.c.l.b16 %v3878
    %v3974 = vunpack.c.h.b16 %v3878
    %v3975 = vunpack.c.l.b16 %v3879
    %v3976 = vunpack.c.h.b16 %v3879
    %v3977 = vunpack.c.l.b16 %v3880
    %v3978 = vunpack.c.h.b16 %v3880
    %v3979 = vunpack.c.l.b16 %v3881
    %v3980 = vunpack.c.h.b16 %v3881
    %v3981 = vunpack.c.l.b16 %v3882
    %v3982 = vunpack.c.h.b16 %v3882
    %v3983 = vunpack.c.l.b16 %v3883
    %v3984 = vunpack.c.h.b16 %v3883
    %v3985 = vunpack.c.l.b16 %v3884
    %v3986 = vunpack.c.h.b16 %v3884
    %v3987 = vunpack.c.l.b16 %v3885
    %v3988 = vunpack.c.h.b16 %v3885
    %v3989 = vunpack.c.l.b16 %v3886
    %v3990 = vunpack.c.h.b16 %v3886
    %v3991 = vunpack.c.l.b16 %v3887
    %v3992 = vunpack.c.h.b16 %v3887
    %v3993 = vunpack.c.l.b16 %v3888
    %v3994 = vunpack.c.h.b16 %v3888
    %v3995 = vunpack.c.l.b16 %v3889
    %v3996 = vunpack.c.h.b16 %v3889
    %v3997 = vpack.c.b16 %v3937, %v3933
    %v3998 = vpack.c.b16 %v3938, %v3934
    %v3999 = vpack.c.b16 %v3939, %v3935
    %v4000 = vpack.c.b16 %v3940, %v3936
    %v4001 = vpack.c.b16 %v3945, %v3941
    %v4002 = vpack.c.b16 %v3946, %v3942
    %v4003 = vpack.c.b16 %v3947, %v3943
    %v4004 = vpack.c.b16 %v3948, %v3944
    %v4005 = vpack.c.b16 %v3953, %v3949
    %v4006 = vpack.c.b16 %v3954, %v3950
    %v4007 = vpack.c.b16 %v3955, %v3951
    %v4008 = vpack.c.b16 %v3956, %v3952
    %v4009 = vpack.c.b16 %v3961, %v3957
    %v4010 = vpack.c.b16 %v3962, %v3958
    %v4011 = vpack.c.b16 %v3963, %v3959
    %v4012 = vpack.c.b16 %v3964, %v3960
    %v4013 = vpack.c.b16 %v3969, %v3965
    %v4014 = vpack.c.b16 %v3970, %v3966
    %v4015 = vpack.c.b16 %v3971, %v3967
    %v4016 = vpack.c.b16 %v3972, %v3968
    %v4017 = vpack.c.b16 %v3977, %v3973
    %v4018 = vpack.c.b16 %v3978, %v3974
    %v4019 = vpack.c.b16 %v3979, %v3975
    %v4020 = vpack.c.b16 %v3980, %v3976
    %v4021 = vpack.c.b16 %v3985, %v3981
    %v4022 = vpack.c.b16 %v3986, %v3982
    %v4023 = vpack.c.b16 %v3987, %v3983
    %v4024 = vpack.c.b16 %v3988, %v3984
    %v4025 = vpack.c.b16 %v3993, %v3989
    %v4026 = vpack.c.b16 %v3994, %v3990
    %v4027 = vpack.c.b16 %v3995, %v3991
    %v4028 = vpack.c.b16 %v3996, %v3992
    %4061 = vmatpush.bf16.msra.mxu0 %v4025
    %4062 = vmatpush.bf16.msra.mxu0 %v4021
    %4063 = vmatpush.bf16.msra.mxu0 %v4017
    %4064 = vmatpush.bf16.msra.mxu0 %v4013
    %4065 = vmatpush.bf16.msra.mxu0 %v4009
    %4066 = vmatpush.bf16.msra.mxu0 %v4005
    %4067 = vmatpush.bf16.msra.mxu0 %v4001
    %4068 = vmatpush.bf16.msra.mxu0 %v3997
    %4069 = vmatmul.bf16.gmra.mxu0 %v3855
    %v4070 = vpop.f32.mrf.mxu0
    %v4071 = vadd.f32 %v3893, %v4070
    %v4072 = vpop.f32.mrf.mxu0
    %v4073 = vadd.f32 %v3893, %v4072
    %4074 = vmatmul.bf16.gmra.mxu0 %v3856
    %v4075 = vpop.f32.mrf.mxu0
    %v4076 = vadd.f32 %v3893, %v4075
    %v4077 = vpop.f32.mrf.mxu0
    %v4078 = vadd.f32 %v3893, %v4077
    %4079 = vdwg.mxu0
    %4080 = vmatpush.bf16.msra.mxu0 %v4026
    %4081 = vmatpush.bf16.msra.mxu0 %v4022
    %4082 = vmatpush.bf16.msra.mxu0 %v4018
    %4083 = vmatpush.bf16.msra.mxu0 %v4014
    %4084 = vmatpush.bf16.msra.mxu0 %v4010
    %4085 = vmatpush.bf16.msra.mxu0 %v4006
    %4086 = vmatpush.bf16.msra.mxu0 %v4002
    %4087 = vmatpush.bf16.msra.mxu0 %v3998
    %4088 = vmatmul.bf16.gmra.mxu0 %v3855
    %v4089 = vpop.f32.mrf.mxu0
    %v4090 = vadd.f32 %v3894, %v4089
    %v4091 = vpop.f32.mrf.mxu0
    %v4092 = vadd.f32 %v3894, %v4091
    %4093 = vmatmul.bf16.gmra.mxu0 %v3856
    %v4094 = vpop.f32.mrf.mxu0
    %v4095 = vadd.f32 %v3894, %v4094
    %v4096 = vpop.f32.mrf.mxu0
    %v4097 = vadd.f32 %v3894, %v4096
    %4098 = vdwg.mxu0
    %4099 = vmatpush.bf16.msra.mxu0 %v4027
    %4100 = vmatpush.bf16.msra.mxu0 %v4023
    %4101 = vmatpush.bf16.msra.mxu0 %v4019
    %4102 = vmatpush.bf16.msra.mxu0 %v4015
    %4103 = vmatpush.bf16.msra.mxu0 %v4011
    %4104 = vmatpush.bf16.msra.mxu0 %v4007
    %4105 = vmatpush.bf16.msra.mxu0 %v4003
    %4106 = vmatpush.bf16.msra.mxu0 %v3999
    %4107 = vmatmul.bf16.gmra.mxu0 %v3855
    %v4108 = vpop.f32.mrf.mxu0
    %v4109 = vadd.f32 %v3895, %v4108
    %v4110 = vpop.f32.mrf.mxu0
    %v4111 = vadd.f32 %v3895, %v4110
    %4112 = vmatmul.bf16.gmra.mxu0 %v3856
    %v4113 = vpop.f32.mrf.mxu0
    %v4114 = vadd.f32 %v3895, %v4113
    %v4115 = vpop.f32.mrf.mxu0
    %v4116 = vadd.f32 %v3895, %v4115
    %4117 = vdwg.mxu0
    %4118 = vmatpush.bf16.msra.mxu0 %v4028
    %4119 = vmatpush.bf16.msra.mxu0 %v4024
    %4120 = vmatpush.bf16.msra.mxu0 %v4020
    %4121 = vmatpush.bf16.msra.mxu0 %v4016
    %4122 = vmatpush.bf16.msra.mxu0 %v4012
    %4123 = vmatpush.bf16.msra.mxu0 %v4008
    %4124 = vmatpush.bf16.msra.mxu0 %v4004
    %4125 = vmatpush.bf16.msra.mxu0 %v4000
    %4126 = vmatmul.bf16.gmra.mxu0 %v3855
    %v4127 = vpop.f32.mrf.mxu0
    %v4128 = vadd.f32 %v3896, %v4127
    %v4129 = vpop.f32.mrf.mxu0
    %v4130 = vadd.f32 %v3896, %v4129
    %4131 = vmatmul.bf16.gmra.mxu0 %v3856
    %v4132 = vpop.f32.mrf.mxu0
    %v4133 = vadd.f32 %v3896, %v4132
    %v4134 = vpop.f32.mrf.mxu0
    %v4135 = vadd.f32 %v3896, %v4134
    %4136 = vdwg.mxu0
    %v4137 = vmul.f32 %v4071, 0.5
    %v4138 = vmul.f32 %v4090, 0.5
    %v4139 = vmul.f32 %v4109, 0.5
    %v4140 = vmul.f32 %v4128, 0.5
    %v4141 = vmul.f32 %v4073, 0.5
    %v4142 = vmul.f32 %v4092, 0.5
    %v4143 = vmul.f32 %v4111, 0.5
    %v4144 = vmul.f32 %v4130, 0.5
    %v4145 = vmul.f32 %v4076, 0.5
    %v4146 = vmul.f32 %v4095, 0.5
    %v4147 = vmul.f32 %v4114, 0.5
    %v4148 = vmul.f32 %v4133, 0.5
    %v4149 = vmul.f32 %v4078, 0.5
    %v4150 = vmul.f32 %v4097, 0.5
    %v4151 = vmul.f32 %v4116, 0.5
    %v4152 = vmul.f32 %v4135, 0.5
    %v4153 = vmul.f32 %v4071, 0.044715
    %v4154 = vmul.f32 %v4090, 0.044715
    %v4155 = vmul.f32 %v4109, 0.044715
    %v4156 = vmul.f32 %v4128, 0.044715
    %v4157 = vmul.f32 %v4073, 0.044715
    %v4158 = vmul.f32 %v4092, 0.044715
    %v4159 = vmul.f32 %v4111, 0.044715
    %v4160 = vmul.f32 %v4130, 0.044715
    %v4161 = vmul.f32 %v4076, 0.044715
    %v4162 = vmul.f32 %v4095, 0.044715
    %v4163 = vmul.f32 %v4114, 0.044715
    %v4164 = vmul.f32 %v4133, 0.044715
    %v4165 = vmul.f32 %v4078, 0.044715
    %v4166 = vmul.f32 %v4097, 0.044715
    %v4167 = vmul.f32 %v4116, 0.044715
    %v4168 = vmul.f32 %v4135, 0.044715
    %v4169 = vmul.f32 %v4153, %v4071
    %v4170 = vmul.f32 %v4154, %v4090
    %v4171 = vmul.f32 %v4155, %v4109
    %v4172 = vmul.f32 %v4156, %v4128
    %v4173 = vmul.f32 %v4157, %v4073
    %v4174 = vmul.f32 %v4158, %v4092
    %v4175 = vmul.f32 %v4159, %v4111
    %v4176 = vmul.f32 %v4160, %v4130
    %v4177 = vmul.f32 %v4161, %v4076
    %v4178 = vmul.f32 %v4162, %v4095
    %v4179 = vmul.f32 %v4163, %v4114
    %v4180 = vmul.f32 %v4164, %v4133
    %v4181 = vmul.f32 %v4165, %v4078
    %v4182 = vmul.f32 %v4166, %v4097
    %v4183 = vmul.f32 %v4167, %v4116
    %v4184 = vmul.f32 %v4168, %v4135
    %v4185 = vmul.f32 %v4169, %v4071
    %v4186 = vmul.f32 %v4170, %v4090
    %v4187 = vmul.f32 %v4171, %v4109
    %v4188 = vmul.f32 %v4172, %v4128
    %v4189 = vmul.f32 %v4173, %v4073
    %v4190 = vmul.f32 %v4174, %v4092
    %v4191 = vmul.f32 %v4175, %v4111
    %v4192 = vmul.f32 %v4176, %v4130
    %v4193 = vmul.f32 %v4177, %v4076
    %v4194 = vmul.f32 %v4178, %v4095
    %v4195 = vmul.f32 %v4179, %v4114
    %v4196 = vmul.f32 %v4180, %v4133
    %v4197 = vmul.f32 %v4181, %v4078
    %v4198 = vmul.f32 %v4182, %v4097
    %v4199 = vmul.f32 %v4183, %v4116
    %v4200 = vmul.f32 %v4184, %v4135
    %v4201 = vadd.f32 %v4071, %v4185
    %v4202 = vadd.f32 %v4090, %v4186
    %v4203 = vadd.f32 %v4109, %v4187
    %v4204 = vadd.f32 %v4128, %v4188
    %v4205 = vadd.f32 %v4073, %v4189
    %v4206 = vadd.f32 %v4092, %v4190
    %v4207 = vadd.f32 %v4111, %v4191
    %v4208 = vadd.f32 %v4130, %v4192
    %v4209 = vadd.f32 %v4076, %v4193
    %v4210 = vadd.f32 %v4095, %v4194
    %v4211 = vadd.f32 %v4114, %v4195
    %v4212 = vadd.f32 %v4133, %v4196
    %v4213 = vadd.f32 %v4078, %v4197
    %v4214 = vadd.f32 %v4097, %v4198
    %v4215 = vadd.f32 %v4116, %v4199
    %v4216 = vadd.f32 %v4135, %v4200
    %v4217 = vmul.f32 %v4201, 0.7978846
    %v4218 = vmul.f32 %v4202, 0.7978846
    %v4219 = vmul.f32 %v4203, 0.7978846
    %v4220 = vmul.f32 %v4204, 0.7978846
    %v4221 = vmul.f32 %v4205, 0.7978846
    %v4222 = vmul.f32 %v4206, 0.7978846
    %v4223 = vmul.f32 %v4207, 0.7978846
    %v4224 = vmul.f32 %v4208, 0.7978846
    %v4225 = vmul.f32 %v4209, 0.7978846
    %v4226 = vmul.f32 %v4210, 0.7978846
    %v4227 = vmul.f32 %v4211, 0.7978846
    %v4228 = vmul.f32 %v4212, 0.7978846
    %v4229 = vmul.f32 %v4213, 0.7978846
    %v4230 = vmul.f32 %v4214, 0.7978846
    %v4231 = vmul.f32 %v4215, 0.7978846
    %v4232 = vmul.f32 %v4216, 0.7978846
    %v4233 = vtanh.pop %v4217
    %v4234 = vtanh.pop %v4218
    %v4235 = vtanh.pop %v4219
    %v4236 = vtanh.pop %v4220
    %v4237 = vtanh.pop %v4221
    %v4238 = vtanh.pop %v4222
    %v4239 = vtanh.pop %v4223
    %v4240 = vtanh.pop %v4224
    %v4241 = vtanh.pop %v4225
    %v4242 = vtanh.pop %v4226
    %v4243 = vtanh.pop %v4227
    %v4244 = vtanh.pop %v4228
    %v4245 = vtanh.pop %v4229
    %v4246 = vtanh.pop %v4230
    %v4247 = vtanh.pop %v4231
    %v4248 = vtanh.pop %v4232
    %v4249 = vadd.f32 %v4233, 1.0
    %v4250 = vadd.f32 %v4234, 1.0
    %v4251 = vadd.f32 %v4235, 1.0
    %v4252 = vadd.f32 %v4236, 1.0
    %v4253 = vadd.f32 %v4237, 1.0
    %v4254 = vadd.f32 %v4238, 1.0
    %v4255 = vadd.f32 %v4239, 1.0
    %v4256 = vadd.f32 %v4240, 1.0
    %v4257 = vadd.f32 %v4241, 1.0
    %v4258 = vadd.f32 %v4242, 1.0
    %v4259 = vadd.f32 %v4243, 1.0
    %v4260 = vadd.f32 %v4244, 1.0
    %v4261 = vadd.f32 %v4245, 1.0
    %v4262 = vadd.f32 %v4246, 1.0
    %v4263 = vadd.f32 %v4247, 1.0
    %v4264 = vadd.f32 %v4248, 1.0
    %v4265 = vmul.f32 %v4137, %v4249
    %v4266 = vmul.f32 %v4138, %v4250
    %v4267 = vmul.f32 %v4139, %v4251
    %v4268 = vmul.f32 %v4140, %v4252
    %v4269 = vmul.f32 %v4141, %v4253
    %v4270 = vmul.f32 %v4142, %v4254
    %v4271 = vmul.f32 %v4143, %v4255
    %v4272 = vmul.f32 %v4144, %v4256
    %v4273 = vmul.f32 %v4145, %v4257
    %v4274 = vmul.f32 %v4146, %v4258
    %v4275 = vmul.f32 %v4147, %v4259
    %v4276 = vmul.f32 %v4148, %v4260
    %v4277 = vmul.f32 %v4149, %v4261
    %v4278 = vmul.f32 %v4150, %v4262
    %v4279 = vmul.f32 %v4151, %v4263
    %v4280 = vmul.f32 %v4152, %v4264
    %v4281 = vpack.c.bf16 %v4269, %v4265
    %v4282 = vpack.c.bf16 %v4270, %v4266
    %v4283 = vpack.c.bf16 %v4271, %v4267
    %v4284 = vpack.c.bf16 %v4272, %v4268
    %v4285 = vpack.c.bf16 %v4277, %v4273
    %v4286 = vpack.c.bf16 %v4278, %v4274
    %v4287 = vpack.c.bf16 %v4279, %v4275
    %v4288 = vpack.c.bf16 %v4280, %v4276
    %s4289 = scalar_lea.vmem [#allocation24], 256
    %v4290 = vld [vmem:[%s4289] sm:$0xf]
    %v4291 = vld [vmem:[%s4289 + $0x4] sm:$0xf]
    %v4292 = vld [vmem:[%s4289 + $0x8] sm:$0xf]
    %v4293 = vld [vmem:[%s4289 + $0xc] sm:$0xf]
    %v4294 = vld [vmem:[%s4289 + $0x10] sm:$0xf]
    %v4295 = vld [vmem:[%s4289 + $0x14] sm:$0xf]
    %v4296 = vld [vmem:[%s4289 + $0x18] sm:$0xf]
    %v4297 = vld [vmem:[%s4289 + $0x1c] sm:$0xf]
    %v4298 = vld [vmem:[%s4289 + $0x20] sm:$0xf]
    %v4299 = vld [vmem:[%s4289 + $0x24] sm:$0xf]
    %v4300 = vld [vmem:[%s4289 + $0x28] sm:$0xf]
    %v4301 = vld [vmem:[%s4289 + $0x2c] sm:$0xf]
    %v4302 = vld [vmem:[%s4289 + $0x30] sm:$0xf]
    %v4303 = vld [vmem:[%s4289 + $0x34] sm:$0xf]
    %v4304 = vld [vmem:[%s4289 + $0x38] sm:$0xf]
    %v4305 = vld [vmem:[%s4289 + $0x3c] sm:$0xf]
    %v4306 = vld [vmem:[%s4289 + $0x40] sm:$0xf]
    %v4307 = vld [vmem:[%s4289 + $0x44] sm:$0xf]
    %v4308 = vld [vmem:[%s4289 + $0x48] sm:$0xf]
    %v4309 = vld [vmem:[%s4289 + $0x4c] sm:$0xf]
    %v4310 = vld [vmem:[%s4289 + $0x50] sm:$0xf]
    %v4311 = vld [vmem:[%s4289 + $0x54] sm:$0xf]
    %v4312 = vld [vmem:[%s4289 + $0x58] sm:$0xf]
    %v4313 = vld [vmem:[%s4289 + $0x5c] sm:$0xf]
    %v4314 = vld [vmem:[%s4289 + $0x60] sm:$0xf]
    %v4315 = vld [vmem:[%s4289 + $0x64] sm:$0xf]
    %v4316 = vld [vmem:[%s4289 + $0x68] sm:$0xf]
    %v4317 = vld [vmem:[%s4289 + $0x6c] sm:$0xf]
    %v4318 = vld [vmem:[%s4289 + $0x70] sm:$0xf]
    %v4319 = vld [vmem:[%s4289 + $0x74] sm:$0xf]
    %v4320 = vld [vmem:[%s4289 + $0x78] sm:$0xf]
    %v4321 = vld [vmem:[%s4289 + $0x7c] sm:$0xf]
    %v4322 = vld [vmem:[%s4289 + $0x80] sm:$0xf]
    %v4323 = vld [vmem:[%s4289 + $0x84] sm:$0xf]
    %v4324 = vld [vmem:[%s4289 + $0x88] sm:$0xf]
    %v4325 = vld [vmem:[%s4289 + $0x8c] sm:$0xf]
    %v4326 = vld [vmem:[%s4289 + $0x90] sm:$0xf]
    %v4327 = vld [vmem:[%s4289 + $0x94] sm:$0xf]
    %v4328 = vld [vmem:[%s4289 + $0x98] sm:$0xf]
    %v4329 = vld [vmem:[%s4289 + $0x9c] sm:$0xf]
    %v4330 = vld [vmem:[%s4289 + $0xa0] sm:$0xf]
    %v4331 = vld [vmem:[%s4289 + $0xa4] sm:$0xf]
    %v4332 = vld [vmem:[%s4289 + $0xa8] sm:$0xf]
    %v4333 = vld [vmem:[%s4289 + $0xac] sm:$0xf]
    %v4334 = vld [vmem:[%s4289 + $0xb0] sm:$0xf]
    %v4335 = vld [vmem:[%s4289 + $0xb4] sm:$0xf]
    %v4336 = vld [vmem:[%s4289 + $0xb8] sm:$0xf]
    %v4337 = vld [vmem:[%s4289 + $0xbc] sm:$0xf]
    %v4338 = vld [vmem:[%s4289 + $0xc0] sm:$0xf]
    %v4339 = vld [vmem:[%s4289 + $0xc4] sm:$0xf]
    %v4340 = vld [vmem:[%s4289 + $0xc8] sm:$0xf]
    %v4341 = vld [vmem:[%s4289 + $0xcc] sm:$0xf]
    %v4342 = vld [vmem:[%s4289 + $0xd0] sm:$0xf]
    %v4343 = vld [vmem:[%s4289 + $0xd4] sm:$0xf]
    %v4344 = vld [vmem:[%s4289 + $0xd8] sm:$0xf]
    %v4345 = vld [vmem:[%s4289 + $0xdc] sm:$0xf]
    %v4346 = vld [vmem:[%s4289 + $0xe0] sm:$0xf]
    %v4347 = vld [vmem:[%s4289 + $0xe4] sm:$0xf]
    %v4348 = vld [vmem:[%s4289 + $0xe8] sm:$0xf]
    %v4349 = vld [vmem:[%s4289 + $0xec] sm:$0xf]
    %v4350 = vld [vmem:[%s4289 + $0xf0] sm:$0xf]
    %v4351 = vld [vmem:[%s4289 + $0xf4] sm:$0xf]
    %v4352 = vld [vmem:[%s4289 + $0xf8] sm:$0xf]
    %v4353 = vld [vmem:[%s4289 + $0xfc] sm:$0xf]
    %v4354 = vld [vmem:[#allocation26 + $0x1] sm:$0x1]
    %v4355 = vperm.slane %v4354, 0
    %v4420 = vunpack.c.l.b16 %v4290
    %v4421 = vunpack.c.l.b16 %v4291
    %v4422 = vunpack.c.l.b16 %v4292
    %v4423 = vunpack.c.l.b16 %v4293
    %v4424 = vunpack.c.l.b16 %v4294
    %v4425 = vunpack.c.l.b16 %v4295
    %v4426 = vunpack.c.l.b16 %v4296
    %v4427 = vunpack.c.l.b16 %v4297
    %v4428 = vunpack.c.l.b16 %v4298
    %v4429 = vunpack.c.l.b16 %v4299
    %v4430 = vunpack.c.l.b16 %v4300
    %v4431 = vunpack.c.l.b16 %v4301
    %v4432 = vunpack.c.l.b16 %v4302
    %v4433 = vunpack.c.l.b16 %v4303
    %v4434 = vunpack.c.l.b16 %v4304
    %v4435 = vunpack.c.l.b16 %v4305
    %v4436 = vunpack.c.l.b16 %v4306
    %v4437 = vunpack.c.l.b16 %v4307
    %v4438 = vunpack.c.l.b16 %v4308
    %v4439 = vunpack.c.l.b16 %v4309
    %v4440 = vunpack.c.l.b16 %v4310
    %v4441 = vunpack.c.l.b16 %v4311
    %v4442 = vunpack.c.l.b16 %v4312
    %v4443 = vunpack.c.l.b16 %v4313
    %v4444 = vunpack.c.l.b16 %v4314
    %v4445 = vunpack.c.l.b16 %v4315
    %v4446 = vunpack.c.l.b16 %v4316
    %v4447 = vunpack.c.l.b16 %v4317
    %v4448 = vunpack.c.l.b16 %v4318
    %v4449 = vunpack.c.l.b16 %v4319
    %v4450 = vunpack.c.l.b16 %v4320
    %v4451 = vunpack.c.l.b16 %v4321
    %v4452 = vunpack.c.l.b16 %v4322
    %v4453 = vunpack.c.l.b16 %v4323
    %v4454 = vunpack.c.l.b16 %v4324
    %v4455 = vunpack.c.l.b16 %v4325
    %v4456 = vunpack.c.l.b16 %v4326
    %v4457 = vunpack.c.l.b16 %v4327
    %v4458 = vunpack.c.l.b16 %v4328
    %v4459 = vunpack.c.l.b16 %v4329
    %v4460 = vunpack.c.l.b16 %v4330
    %v4461 = vunpack.c.l.b16 %v4331
    %v4462 = vunpack.c.l.b16 %v4332
    %v4463 = vunpack.c.l.b16 %v4333
    %v4464 = vunpack.c.l.b16 %v4334
    %v4465 = vunpack.c.l.b16 %v4335
    %v4466 = vunpack.c.l.b16 %v4336
    %v4467 = vunpack.c.l.b16 %v4337
    %v4468 = vunpack.c.l.b16 %v4338
    %v4469 = vunpack.c.l.b16 %v4339
    %v4470 = vunpack.c.l.b16 %v4340
    %v4471 = vunpack.c.l.b16 %v4341
    %v4472 = vunpack.c.l.b16 %v4342
    %v4473 = vunpack.c.l.b16 %v4343
    %v4474 = vunpack.c.l.b16 %v4344
    %v4475 = vunpack.c.l.b16 %v4345
    %v4476 = vunpack.c.l.b16 %v4346
    %v4477 = vunpack.c.l.b16 %v4347
    %v4478 = vunpack.c.l.b16 %v4348
    %v4479 = vunpack.c.l.b16 %v4349
    %v4480 = vunpack.c.l.b16 %v4350
    %v4481 = vunpack.c.l.b16 %v4351
    %v4482 = vunpack.c.l.b16 %v4352
    %v4483 = vunpack.c.l.b16 %v4353
    %v4484 = vpack.c.b16 %v4421, %v4420
    %v4485 = vpack.c.b16 %v4423, %v4422
    %v4486 = vpack.c.b16 %v4425, %v4424
    %v4487 = vpack.c.b16 %v4427, %v4426
    %v4488 = vpack.c.b16 %v4429, %v4428
    %v4489 = vpack.c.b16 %v4431, %v4430
    %v4490 = vpack.c.b16 %v4433, %v4432
    %v4491 = vpack.c.b16 %v4435, %v4434
    %v4492 = vpack.c.b16 %v4437, %v4436
    %v4493 = vpack.c.b16 %v4439, %v4438
    %v4494 = vpack.c.b16 %v4441, %v4440
    %v4495 = vpack.c.b16 %v4443, %v4442
    %v4496 = vpack.c.b16 %v4445, %v4444
    %v4497 = vpack.c.b16 %v4447, %v4446
    %v4498 = vpack.c.b16 %v4449, %v4448
    %v4499 = vpack.c.b16 %v4451, %v4450
    %v4500 = vpack.c.b16 %v4453, %v4452
    %v4501 = vpack.c.b16 %v4455, %v4454
    %v4502 = vpack.c.b16 %v4457, %v4456
    %v4503 = vpack.c.b16 %v4459, %v4458
    %v4504 = vpack.c.b16 %v4461, %v4460
    %v4505 = vpack.c.b16 %v4463, %v4462
    %v4506 = vpack.c.b16 %v4465, %v4464
    %v4507 = vpack.c.b16 %v4467, %v4466
    %v4508 = vpack.c.b16 %v4469, %v4468
    %v4509 = vpack.c.b16 %v4471, %v4470
    %v4510 = vpack.c.b16 %v4473, %v4472
    %v4511 = vpack.c.b16 %v4475, %v4474
    %v4512 = vpack.c.b16 %v4477, %v4476
    %v4513 = vpack.c.b16 %v4479, %v4478
    %v4514 = vpack.c.b16 %v4481, %v4480
    %v4515 = vpack.c.b16 %v4483, %v4482
    %4548 = vmatpush.bf16.msra.mxu0 %v4491
    %4549 = vmatpush.bf16.msra.mxu0 %v4490
    %4550 = vmatpush.bf16.msra.mxu0 %v4489
    %4551 = vmatpush.bf16.msra.mxu0 %v4488
    %4552 = vmatpush.bf16.msra.mxu0 %v4487
    %4553 = vmatpush.bf16.msra.mxu0 %v4486
    %4554 = vmatpush.bf16.msra.mxu0 %v4485
    %4555 = vmatpush.bf16.msra.mxu0 %v4484
    %4556 = vmatmul.bf16.gmra.mxu0 %v4281
    %v4557 = vpop.f32.mrf.mxu0
    %v4558 = vadd.f32 %v4355, %v4557
    %v4559 = vpop.f32.mrf.mxu0
    %v4560 = vadd.f32 %v4355, %v4559
    %4561 = vmatmul.bf16.gmra.mxu0 %v4285
    %v4562 = vpop.f32.mrf.mxu0
    %v4563 = vadd.f32 %v4355, %v4562
    %v4564 = vpop.f32.mrf.mxu0
    %v4565 = vadd.f32 %v4355, %v4564
    %4566 = vdwg.mxu0
    %4567 = vmatpush.bf16.msra.mxu0 %v4499
    %4568 = vmatpush.bf16.msra.mxu0 %v4498
    %4569 = vmatpush.bf16.msra.mxu0 %v4497
    %4570 = vmatpush.bf16.msra.mxu0 %v4496
    %4571 = vmatpush.bf16.msra.mxu0 %v4495
    %4572 = vmatpush.bf16.msra.mxu0 %v4494
    %4573 = vmatpush.bf16.msra.mxu0 %v4493
    %4574 = vmatpush.bf16.msra.mxu0 %v4492
    %4575 = vmatmul.bf16.gmra.mxu0 %v4282
    %v4576 = vpop.f32.mrf.mxu0
    %v4577 = vadd.f32 %v4558, %v4576
    %v4578 = vpop.f32.mrf.mxu0
    %v4579 = vadd.f32 %v4560, %v4578
    %4580 = vmatmul.bf16.gmra.mxu0 %v4286
    %v4581 = vpop.f32.mrf.mxu0
    %v4582 = vadd.f32 %v4563, %v4581
    %v4583 = vpop.f32.mrf.mxu0
    %v4584 = vadd.f32 %v4565, %v4583
    %4585 = vdwg.mxu0
    %4586 = vmatpush.bf16.msra.mxu0 %v4507
    %4587 = vmatpush.bf16.msra.mxu0 %v4506
    %4588 = vmatpush.bf16.msra.mxu0 %v4505
    %4589 = vmatpush.bf16.msra.mxu0 %v4504
    %4590 = vmatpush.bf16.msra.mxu0 %v4503
    %4591 = vmatpush.bf16.msra.mxu0 %v4502
    %4592 = vmatpush.bf16.msra.mxu0 %v4501
    %4593 = vmatpush.bf16.msra.mxu0 %v4500
    %4594 = vmatmul.bf16.gmra.mxu0 %v4283
    %v4595 = vpop.f32.mrf.mxu0
    %v4596 = vadd.f32 %v4577, %v4595
    %v4597 = vpop.f32.mrf.mxu0
    %v4598 = vadd.f32 %v4579, %v4597
    %4599 = vmatmul.bf16.gmra.mxu0 %v4287
    %v4600 = vpop.f32.mrf.mxu0
    %v4601 = vadd.f32 %v4582, %v4600
    %v4602 = vpop.f32.mrf.mxu0
    %v4603 = vadd.f32 %v4584, %v4602
    %4604 = vdwg.mxu0
    %4605 = vmatpush.bf16.msra.mxu0 %v4515
    %4606 = vmatpush.bf16.msra.mxu0 %v4514
    %4607 = vmatpush.bf16.msra.mxu0 %v4513
    %4608 = vmatpush.bf16.msra.mxu0 %v4512
    %4609 = vmatpush.bf16.msra.mxu0 %v4511
    %4610 = vmatpush.bf16.msra.mxu0 %v4510
    %4611 = vmatpush.bf16.msra.mxu0 %v4509
    %4612 = vmatpush.bf16.msra.mxu0 %v4508
    %4613 = vmatmul.bf16.gmra.mxu0 %v4284
    %v4614 = vpop.f32.mrf.mxu0
    %v4615 = vadd.f32 %v4596, %v4614
    %v4616 = vpop.f32.mrf.mxu0
    %v4617 = vadd.f32 %v4598, %v4616
    %4618 = vmatmul.bf16.gmra.mxu0 %v4288
    %v4619 = vpop.f32.mrf.mxu0
    %v4620 = vadd.f32 %v4601, %v4619
    %v4621 = vpop.f32.mrf.mxu0
    %v4622 = vadd.f32 %v4603, %v4621
    %4623 = vdwg.mxu0
    %v4624 = vadd.f32 %v3759, %v4615
    %v4625 = vadd.f32 %v3760, %v4617
    %v4626 = vadd.f32 %v3761, %v4620
    %v4627 = vadd.f32 %v3762, %v4622
    %v4628 = vld [vmem:[#allocation27] sm:$0x1]
    %v4629 = vld [vmem:[#allocation29] sm:$0x1]
    %4630 = vadd.xlane.f32.xlu0 %v4624
    %v4631 = vpop.xlane.xlu0 %4630
    %4632 = vadd.xlane.f32.xlu0 %v4625
    %v4633 = vpop.xlane.xlu0 %4632
    %4634 = vadd.xlane.f32.xlu0 %v4626
    %v4635 = vpop.xlane.xlu0 %4634
    %4636 = vadd.xlane.f32.xlu0 %v4627
    %v4637 = vpop.xlane.xlu0 %4636
    %v4638 = vmul.f32 %v4631, %v580
    %v4639 = vmul.f32 %v4633, %v580
    %v4640 = vmul.f32 %v4635, %v580
    %v4641 = vmul.f32 %v4637, %v580
    %v4642 = vsub.f32 %v4624, %v4638
    %v4643 = vsub.f32 %v4625, %v4639
    %v4644 = vsub.f32 %v4626, %v4640
    %v4645 = vsub.f32 %v4627, %v4641
    %v4646 = vmul.f32 %v4642, %v4642
    %v4647 = vmul.f32 %v4643, %v4643
    %v4648 = vmul.f32 %v4644, %v4644
    %v4649 = vmul.f32 %v4645, %v4645
    %4650 = vadd.xlane.f32.xlu0 %v4646
    %v4651 = vpop.xlane.xlu0 %4650
    %4652 = vadd.xlane.f32.xlu0 %v4647
    %v4653 = vpop.xlane.xlu0 %4652
    %4654 = vadd.xlane.f32.xlu0 %v4648
    %v4655 = vpop.xlane.xlu0 %4654
    %4656 = vadd.xlane.f32.xlu0 %v4649
    %v4657 = vpop.xlane.xlu0 %4656
    %v4658 = vmul.f32 %v4651, %v580
    %v4659 = vmul.f32 %v4653, %v580
    %v4660 = vmul.f32 %v4655, %v580
    %v4661 = vmul.f32 %v4657, %v580
    %v4662 = vadd.f32 %v4658, 1e-05
    %v4663 = vadd.f32 %v4659, 1e-05
    %v4664 = vadd.f32 %v4660, 1e-05
    %v4665 = vadd.f32 %v4661, 1e-05
    %v4666 = vrsqrt.pop %v4662
    %v4667 = vmul.f32 %v4666, %v4662
    %v4668 = vmul.f32 %v4667, %v4666
    %v4669 = vmul.f32 0.5, %v4668
    %v4670 = vsub.f32 1.5, %v4669
    %v4671 = vmul.f32 %v4666, %v4670
    %vm4672 = vweird.f32 %v4662
    %vm4673 = vweird.f32 %v4666
    %vm4674 = vmor %vm4672, %vm4673
    %v4675 = vsel %vm4674, %v4666, %v4671
    %v4676 = vrsqrt.pop %v4663
    %v4677 = vmul.f32 %v4676, %v4663
    %v4678 = vmul.f32 %v4677, %v4676
    %v4679 = vmul.f32 0.5, %v4678
    %v4680 = vsub.f32 1.5, %v4679
    %v4681 = vmul.f32 %v4676, %v4680
    %vm4682 = vweird.f32 %v4663
    %vm4683 = vweird.f32 %v4676
    %vm4684 = vmor %vm4682, %vm4683
    %v4685 = vsel %vm4684, %v4676, %v4681
    %v4686 = vrsqrt.pop %v4664
    %v4687 = vmul.f32 %v4686, %v4664
    %v4688 = vmul.f32 %v4687, %v4686
    %v4689 = vmul.f32 0.5, %v4688
    %v4690 = vsub.f32 1.5, %v4689
    %v4691 = vmul.f32 %v4686, %v4690
    %vm4692 = vweird.f32 %v4664
    %vm4693 = vweird.f32 %v4686
    %vm4694 = vmor %vm4692, %vm4693
    %v4695 = vsel %vm4694, %v4686, %v4691
    %v4696 = vrsqrt.pop %v4665
    %v4697 = vmul.f32 %v4696, %v4665
    %v4698 = vmul.f32 %v4697, %v4696
    %v4699 = vmul.f32 0.5, %v4698
    %v4700 = vsub.f32 1.5, %v4699
    %v4701 = vmul.f32 %v4696, %v4700
    %vm4702 = vweird.f32 %v4665
    %vm4703 = vweird.f32 %v4696
    %vm4704 = vmor %vm4702, %vm4703
    %v4705 = vsel %vm4704, %v4696, %v4701
    %v4706 = vmul.f32 %v4642, %v4675
    %v4707 = vmul.f32 %v4643, %v4685
    %v4708 = vmul.f32 %v4644, %v4695
    %v4709 = vmul.f32 %v4645, %v4705
    %v4711 = vperm.slane %v4628, 0
    %v4713 = vmul.f32 %v4706, %v4711
    %v4714 = vmul.f32 %v4707, %v4711
    %v4715 = vmul.f32 %v4708, %v4711
    %v4716 = vmul.f32 %v4709, %v4711
    %v4718 = vperm.slane %v4629, 0
    %v4720 = vadd.f32 %v4713, %v4718
    %v4721 = vadd.f32 %v4714, %v4718
    %v4722 = vadd.f32 %v4715, %v4718
    %v4723 = vadd.f32 %v4716, %v4718
    %4724 = vst [vmem:[%s25] sm:$0xff] %v4720
    %4725 = vst [vmem:[%s25 + $0x8] sm:$0xff] %v4721
    %4726 = vst [vmem:[%s25 + $0x10] sm:$0xff] %v4722
    %4727 = vst [vmem:[%s25 + $0x18] sm:$0xff] %v4723
    %s4728 = smul.u32 4, 16
    %s4729 = smul.u32 %s4728, 16
    %s4730 = smul.u32 %s4729, 4
    %s4731 = sshll.u32 %s4730, 4
    %4732 = dma.done [#allocation3], %s4731
    %v4733 = vpack.c.bf16 %v4720, %v4720
    %v4734 = vpack.c.bf16 %v4721, %v4721
    %v4735 = vpack.c.bf16 %v4722, %v4722
    %v4736 = vpack.c.bf16 %v4723, %v4723
    %v4737 = vld [vmem:[#allocation2] sm:$0xff]
    %v4738 = vld [vmem:[#allocation2 + $0x8] sm:$0xff]
    %v4739 = vld [vmem:[#allocation2 + $0x10] sm:$0xff]
    %v4740 = vld [vmem:[#allocation2 + $0x18] sm:$0xff]
    %v4741 = vld [vmem:[#allocation2 + $0x20] sm:$0xff]
    %v4742 = vld [vmem:[#allocation2 + $0x28] sm:$0xff]
    %v4743 = vld [vmem:[#allocation2 + $0x30] sm:$0xff]
    %v4744 = vld [vmem:[#allocation2 + $0x38] sm:$0xff]
    %v4745 = vld [vmem:[#allocation2 + $0x40] sm:$0xff]
    %v4746 = vld [vmem:[#allocation2 + $0x48] sm:$0xff]
    %v4747 = vld [vmem:[#allocation2 + $0x50] sm:$0xff]
    %v4748 = vld [vmem:[#allocation2 + $0x58] sm:$0xff]
    %v4749 = vld [vmem:[#allocation2 + $0x60] sm:$0xff]
    %v4750 = vld [vmem:[#allocation2 + $0x68] sm:$0xff]
    %v4751 = vld [vmem:[#allocation2 + $0x70] sm:$0xff]
    %v4752 = vld [vmem:[#allocation2 + $0x78] sm:$0xff]
    %v4753 = vld [vmem:[#allocation2 + $0x80] sm:$0xff]
    %v4754 = vld [vmem:[#allocation2 + $0x88] sm:$0xff]
    %v4755 = vld [vmem:[#allocation2 + $0x90] sm:$0xff]
    %v4756 = vld [vmem:[#allocation2 + $0x98] sm:$0xff]
    %v4757 = vld [vmem:[#allocation2 + $0xa0] sm:$0xff]
    %v4758 = vld [vmem:[#allocation2 + $0xa8] sm:$0xff]
    %v4759 = vld [vmem:[#allocation2 + $0xb0] sm:$0xff]
    %v4760 = vld [vmem:[#allocation2 + $0xb8] sm:$0xff]
    %v4761 = vld [vmem:[#allocation2 + $0xc0] sm:$0xff]
    %v4762 = vld [vmem:[#allocation2 + $0xc8] sm:$0xff]
    %v4763 = vld [vmem:[#allocation2 + $0xd0] sm:$0xff]
    %v4764 = vld [vmem:[#allocation2 + $0xd8] sm:$0xff]
    %v4765 = vld [vmem:[#allocation2 + $0xe0] sm:$0xff]
    %v4766 = vld [vmem:[#allocation2 + $0xe8] sm:$0xff]
    %v4767 = vld [vmem:[#allocation2 + $0xf0] sm:$0xff]
    %v4768 = vld [vmem:[#allocation2 + $0xf8] sm:$0xff]
    %s4769 = scalar_lea.vmem [#allocation2], 256
    %v4770 = vld [vmem:[%s4769] sm:$0xff]
    %v4771 = vld [vmem:[%s4769 + $0x8] sm:$0xff]
    %v4772 = vld [vmem:[%s4769 + $0x10] sm:$0xff]
    %v4773 = vld [vmem:[%s4769 + $0x18] sm:$0xff]
    %v4774 = vld [vmem:[%s4769 + $0x20] sm:$0xff]
    %v4775 = vld [vmem:[%s4769 + $0x28] sm:$0xff]
    %v4776 = vld [vmem:[%s4769 + $0x30] sm:$0xff]
    %v4777 = vld [vmem:[%s4769 + $0x38] sm:$0xff]
    %v4778 = vld [vmem:[%s4769 + $0x40] sm:$0xff]
    %v4779 = vld [vmem:[%s4769 + $0x48] sm:$0xff]
    %v4780 = vld [vmem:[%s4769 + $0x50] sm:$0xff]
    %v4781 = vld [vmem:[%s4769 + $0x58] sm:$0xff]
    %v4782 = vld [vmem:[%s4769 + $0x60] sm:$0xff]
    %v4783 = vld [vmem:[%s4769 + $0x68] sm:$0xff]
    %v4784 = vld [vmem:[%s4769 + $0x70] sm:$0xff]
    %v4785 = vld [vmem:[%s4769 + $0x78] sm:$0xff]
    %v4786 = vld [vmem:[%s4769 + $0x80] sm:$0xff]
    %v4787 = vld [vmem:[%s4769 + $0x88] sm:$0xff]
    %v4788 = vld [vmem:[%s4769 + $0x90] sm:$0xff]
    %v4789 = vld [vmem:[%s4769 + $0x98] sm:$0xff]
    %v4790 = vld [vmem:[%s4769 + $0xa0] sm:$0xff]
    %v4791 = vld [vmem:[%s4769 + $0xa8] sm:$0xff]
    %v4792 = vld [vmem:[%s4769 + $0xb0] sm:$0xff]
    %v4793 = vld [vmem:[%s4769 + $0xb8] sm:$0xff]
    %v4794 = vld [vmem:[%s4769 + $0xc0] sm:$0xff]
    %v4795 = vld [vmem:[%s4769 + $0xc8] sm:$0xff]
    %v4796 = vld [vmem:[%s4769 + $0xd0] sm:$0xff]
    %v4797 = vld [vmem:[%s4769 + $0xd8] sm:$0xff]
    %v4798 = vld [vmem:[%s4769 + $0xe0] sm:$0xff]
    %v4799 = vld [vmem:[%s4769 + $0xe8] sm:$0xff]
    %v4800 = vld [vmem:[%s4769 + $0xf0] sm:$0xff]
    %v4801 = vld [vmem:[%s4769 + $0xf8] sm:$0xff]
    %v4804 = vunpack.c.l.b16 %v4733
    %v4805 = vunpack.c.l.b16 %v4735
    %v4806 = vpack.c.b16 %v4804, %v4804
    %v4807 = vpack.c.b16 %v4805, %v4805
    %v4808 = vunpack.c.l.b16 %v4806
    %v4809 = vunpack.c.l.b16 %v4807
    %v4810 = vrot.slane %v4808, 1
    %vm4811 = vcmask 1041409
    %v4812 = vsel %vm4811, %v4809, %v4810
    %v4813 = vpack.c.b16 %v4812, %v4812
    %v4847 = vunpack.c.l.b16 %v4770
    %v4848 = vunpack.c.h.b16 %v4770
    %v4849 = vunpack.c.l.b16 %v4771
    %v4850 = vunpack.c.h.b16 %v4771
    %v4851 = vunpack.c.l.b16 %v4772
    %v4852 = vunpack.c.h.b16 %v4772
    %v4853 = vunpack.c.l.b16 %v4773
    %v4854 = vunpack.c.h.b16 %v4773
    %v4855 = vunpack.c.l.b16 %v4774
    %v4856 = vunpack.c.h.b16 %v4774
    %v4857 = vunpack.c.l.b16 %v4775
    %v4858 = vunpack.c.h.b16 %v4775
    %v4859 = vunpack.c.l.b16 %v4776
    %v4860 = vunpack.c.h.b16 %v4776
    %v4861 = vunpack.c.l.b16 %v4777
    %v4862 = vunpack.c.h.b16 %v4777
    %v4863 = vunpack.c.l.b16 %v4778
    %v4864 = vunpack.c.h.b16 %v4778
    %v4865 = vunpack.c.l.b16 %v4779
    %v4866 = vunpack.c.h.b16 %v4779
    %v4867 = vunpack.c.l.b16 %v4780
    %v4868 = vunpack.c.h.b16 %v4780
    %v4869 = vunpack.c.l.b16 %v4781
    %v4870 = vunpack.c.h.b16 %v4781
    %v4871 = vunpack.c.l.b16 %v4782
    %v4872 = vunpack.c.h.b16 %v4782
    %v4873 = vunpack.c.l.b16 %v4783
    %v4874 = vunpack.c.h.b16 %v4783
    %v4875 = vunpack.c.l.b16 %v4784
    %v4876 = vunpack.c.h.b16 %v4784
    %v4877 = vunpack.c.l.b16 %v4785
    %v4878 = vunpack.c.h.b16 %v4785
    %v4879 = vunpack.c.l.b16 %v4786
    %v4880 = vunpack.c.h.b16 %v4786
    %v4881 = vunpack.c.l.b16 %v4787
    %v4882 = vunpack.c.h.b16 %v4787
    %v4883 = vunpack.c.l.b16 %v4788
    %v4884 = vunpack.c.h.b16 %v4788
    %v4885 = vunpack.c.l.b16 %v4789
    %v4886 = vunpack.c.h.b16 %v4789
    %v4887 = vunpack.c.l.b16 %v4790
    %v4888 = vunpack.c.h.b16 %v4790
    %v4889 = vunpack.c.l.b16 %v4791
    %v4890 = vunpack.c.h.b16 %v4791
    %v4891 = vunpack.c.l.b16 %v4792
    %v4892 = vunpack.c.h.b16 %v4792
    %v4893 = vunpack.c.l.b16 %v4793
    %v4894 = vunpack.c.h.b16 %v4793
    %v4895 = vunpack.c.l.b16 %v4794
    %v4896 = vunpack.c.h.b16 %v4794
    %v4897 = vunpack.c.l.b16 %v4795
    %v4898 = vunpack.c.h.b16 %v4795
    %v4899 = vunpack.c.l.b16 %v4796
    %v4900 = vunpack.c.h.b16 %v4796
    %v4901 = vunpack.c.l.b16 %v4797
    %v4902 = vunpack.c.h.b16 %v4797
    %v4903 = vunpack.c.l.b16 %v4798
    %v4904 = vunpack.c.h.b16 %v4798
    %v4905 = vunpack.c.l.b16 %v4799
    %v4906 = vunpack.c.h.b16 %v4799
    %v4907 = vunpack.c.l.b16 %v4800
    %v4908 = vunpack.c.h.b16 %v4800
    %v4909 = vunpack.c.l.b16 %v4801
    %v4910 = vunpack.c.h.b16 %v4801
    %v4911 = vpack.c.b16 %v4851, %v4847
    %v4912 = vpack.c.b16 %v4852, %v4848
    %v4913 = vpack.c.b16 %v4853, %v4849
    %v4914 = vpack.c.b16 %v4854, %v4850
    %v4915 = vpack.c.b16 %v4859, %v4855
    %v4916 = vpack.c.b16 %v4860, %v4856
    %v4917 = vpack.c.b16 %v4861, %v4857
    %v4918 = vpack.c.b16 %v4862, %v4858
    %v4919 = vpack.c.b16 %v4867, %v4863
    %v4920 = vpack.c.b16 %v4868, %v4864
    %v4921 = vpack.c.b16 %v4869, %v4865
    %v4922 = vpack.c.b16 %v4870, %v4866
    %v4923 = vpack.c.b16 %v4875, %v4871
    %v4924 = vpack.c.b16 %v4876, %v4872
    %v4925 = vpack.c.b16 %v4877, %v4873
    %v4926 = vpack.c.b16 %v4878, %v4874
    %v4927 = vpack.c.b16 %v4883, %v4879
    %v4928 = vpack.c.b16 %v4884, %v4880
    %v4929 = vpack.c.b16 %v4885, %v4881
    %v4930 = vpack.c.b16 %v4886, %v4882
    %v4931 = vpack.c.b16 %v4891, %v4887
    %v4932 = vpack.c.b16 %v4892, %v4888
    %v4933 = vpack.c.b16 %v4893, %v4889
    %v4934 = vpack.c.b16 %v4894, %v4890
    %v4935 = vpack.c.b16 %v4899, %v4895
    %v4936 = vpack.c.b16 %v4900, %v4896
    %v4937 = vpack.c.b16 %v4901, %v4897
    %v4938 = vpack.c.b16 %v4902, %v4898
    %v4939 = vpack.c.b16 %v4907, %v4903
    %v4940 = vpack.c.b16 %v4908, %v4904
    %v4941 = vpack.c.b16 %v4909, %v4905
    %v4942 = vpack.c.b16 %v4910, %v4906
    %4975 = vmatpush.bf16.msra.mxu0 %v4939
    %4976 = vmatpush.bf16.msra.mxu0 %v4935
    %4977 = vmatpush.bf16.msra.mxu0 %v4931
    %4978 = vmatpush.bf16.msra.mxu0 %v4927
    %4979 = vmatpush.bf16.msra.mxu0 %v4923
    %4980 = vmatpush.bf16.msra.mxu0 %v4919
    %4981 = vmatpush.bf16.msra.mxu0 %v4915
    %4982 = vmatpush.bf16.msra.mxu0 %v4911
    %4983 = vmatmul.bf16.gmra.mxu0 %v4813
    %v4984 = vpop.f32.mrf.mxu0
    %v4985 = vadd.f32 0.0, %v4984
    %v4986 = vpop.f32.mrf.mxu0
    %4987 = vdwg.mxu0
    %4988 = vmatpush.bf16.msra.mxu0 %v4940
    %4989 = vmatpush.bf16.msra.mxu0 %v4936
    %4990 = vmatpush.bf16.msra.mxu0 %v4932
    %4991 = vmatpush.bf16.msra.mxu0 %v4928
    %4992 = vmatpush.bf16.msra.mxu0 %v4924
    %4993 = vmatpush.bf16.msra.mxu0 %v4920
    %4994 = vmatpush.bf16.msra.mxu0 %v4916
    %4995 = vmatpush.bf16.msra.mxu0 %v4912
    %4996 = vmatmul.bf16.gmra.mxu0 %v4813
    %v4997 = vpop.f32.mrf.mxu0
    %v4998 = vadd.f32 0.0, %v4997
    %v4999 = vpop.f32.mrf.mxu0
    %5000 = vdwg.mxu0
    %5001 = vmatpush.bf16.msra.mxu0 %v4941
    %5002 = vmatpush.bf16.msra.mxu0 %v4937
    %5003 = vmatpush.bf16.msra.mxu0 %v4933
    %5004 = vmatpush.bf16.msra.mxu0 %v4929
    %5005 = vmatpush.bf16.msra.mxu0 %v4925
    %5006 = vmatpush.bf16.msra.mxu0 %v4921
    %5007 = vmatpush.bf16.msra.mxu0 %v4917
    %5008 = vmatpush.bf16.msra.mxu0 %v4913
    %5009 = vmatmul.bf16.gmra.mxu0 %v4813
    %v5010 = vpop.f32.mrf.mxu0
    %v5011 = vadd.f32 0.0, %v5010
    %v5012 = vpop.f32.mrf.mxu0
    %5013 = vdwg.mxu0
    %5014 = vmatpush.bf16.msra.mxu0 %v4942
    %5015 = vmatpush.bf16.msra.mxu0 %v4938
    %5016 = vmatpush.bf16.msra.mxu0 %v4934
    %5017 = vmatpush.bf16.msra.mxu0 %v4930
    %5018 = vmatpush.bf16.msra.mxu0 %v4926
    %5019 = vmatpush.bf16.msra.mxu0 %v4922
    %5020 = vmatpush.bf16.msra.mxu0 %v4918
    %5021 = vmatpush.bf16.msra.mxu0 %v4914
    %5022 = vmatmul.bf16.gmra.mxu0 %v4813
    %v5023 = vpop.f32.mrf.mxu0
    %v5024 = vadd.f32 0.0, %v5023
    %v5025 = vpop.f32.mrf.mxu0
    %5026 = vdwg.mxu0
    %v5027 = vrot.slane %v4809, 7
    %v5028 = vsel %vm4811, %v5027, %v4808
    %v5029 = vpack.c.b16 %v5028, %v5028
    %v5063 = vunpack.c.l.b16 %v4737
    %v5064 = vunpack.c.h.b16 %v4737
    %v5065 = vunpack.c.l.b16 %v4738
    %v5066 = vunpack.c.h.b16 %v4738
    %v5067 = vunpack.c.l.b16 %v4739
    %v5068 = vunpack.c.h.b16 %v4739
    %v5069 = vunpack.c.l.b16 %v4740
    %v5070 = vunpack.c.h.b16 %v4740
    %v5071 = vunpack.c.l.b16 %v4741
    %v5072 = vunpack.c.h.b16 %v4741
    %v5073 = vunpack.c.l.b16 %v4742
    %v5074 = vunpack.c.h.b16 %v4742
    %v5075 = vunpack.c.l.b16 %v4743
    %v5076 = vunpack.c.h.b16 %v4743
    %v5077 = vunpack.c.l.b16 %v4744
    %v5078 = vunpack.c.h.b16 %v4744
    %v5079 = vunpack.c.l.b16 %v4745
    %v5080 = vunpack.c.h.b16 %v4745
    %v5081 = vunpack.c.l.b16 %v4746
    %v5082 = vunpack.c.h.b16 %v4746
    %v5083 = vunpack.c.l.b16 %v4747
    %v5084 = vunpack.c.h.b16 %v4747
    %v5085 = vunpack.c.l.b16 %v4748
    %v5086 = vunpack.c.h.b16 %v4748
    %v5087 = vunpack.c.l.b16 %v4749
    %v5088 = vunpack.c.h.b16 %v4749
    %v5089 = vunpack.c.l.b16 %v4750
    %v5090 = vunpack.c.h.b16 %v4750
    %v5091 = vunpack.c.l.b16 %v4751
    %v5092 = vunpack.c.h.b16 %v4751
    %v5093 = vunpack.c.l.b16 %v4752
    %v5094 = vunpack.c.h.b16 %v4752
    %v5095 = vunpack.c.l.b16 %v4753
    %v5096 = vunpack.c.h.b16 %v4753
    %v5097 = vunpack.c.l.b16 %v4754
    %v5098 = vunpack.c.h.b16 %v4754
    %v5099 = vunpack.c.l.b16 %v4755
    %v5100 = vunpack.c.h.b16 %v4755
    %v5101 = vunpack.c.l.b16 %v4756
    %v5102 = vunpack.c.h.b16 %v4756
    %v5103 = vunpack.c.l.b16 %v4757
    %v5104 = vunpack.c.h.b16 %v4757
    %v5105 = vunpack.c.l.b16 %v4758
    %v5106 = vunpack.c.h.b16 %v4758
    %v5107 = vunpack.c.l.b16 %v4759
    %v5108 = vunpack.c.h.b16 %v4759
    %v5109 = vunpack.c.l.b16 %v4760
    %v5110 = vunpack.c.h.b16 %v4760
    %v5111 = vunpack.c.l.b16 %v4761
    %v5112 = vunpack.c.h.b16 %v4761
    %v5113 = vunpack.c.l.b16 %v4762
    %v5114 = vunpack.c.h.b16 %v4762
    %v5115 = vunpack.c.l.b16 %v4763
    %v5116 = vunpack.c.h.b16 %v4763
    %v5117 = vunpack.c.l.b16 %v4764
    %v5118 = vunpack.c.h.b16 %v4764
    %v5119 = vunpack.c.l.b16 %v4765
    %v5120 = vunpack.c.h.b16 %v4765
    %v5121 = vunpack.c.l.b16 %v4766
    %v5122 = vunpack.c.h.b16 %v4766
    %v5123 = vunpack.c.l.b16 %v4767
    %v5124 = vunpack.c.h.b16 %v4767
    %v5125 = vunpack.c.l.b16 %v4768
    %v5126 = vunpack.c.h.b16 %v4768
    %v5127 = vpack.c.b16 %v5067, %v5063
    %v5128 = vpack.c.b16 %v5068, %v5064
    %v5129 = vpack.c.b16 %v5069, %v5065
    %v5130 = vpack.c.b16 %v5070, %v5066
    %v5131 = vpack.c.b16 %v5075, %v5071
    %v5132 = vpack.c.b16 %v5076, %v5072
    %v5133 = vpack.c.b16 %v5077, %v5073
    %v5134 = vpack.c.b16 %v5078, %v5074
    %v5135 = vpack.c.b16 %v5083, %v5079
    %v5136 = vpack.c.b16 %v5084, %v5080
    %v5137 = vpack.c.b16 %v5085, %v5081
    %v5138 = vpack.c.b16 %v5086, %v5082
    %v5139 = vpack.c.b16 %v5091, %v5087
    %v5140 = vpack.c.b16 %v5092, %v5088
    %v5141 = vpack.c.b16 %v5093, %v5089
    %v5142 = vpack.c.b16 %v5094, %v5090
    %v5143 = vpack.c.b16 %v5099, %v5095
    %v5144 = vpack.c.b16 %v5100, %v5096
    %v5145 = vpack.c.b16 %v5101, %v5097
    %v5146 = vpack.c.b16 %v5102, %v5098
    %v5147 = vpack.c.b16 %v5107, %v5103
    %v5148 = vpack.c.b16 %v5108, %v5104
    %v5149 = vpack.c.b16 %v5109, %v5105
    %v5150 = vpack.c.b16 %v5110, %v5106
    %v5151 = vpack.c.b16 %v5115, %v5111
    %v5152 = vpack.c.b16 %v5116, %v5112
    %v5153 = vpack.c.b16 %v5117, %v5113
    %v5154 = vpack.c.b16 %v5118, %v5114
    %v5155 = vpack.c.b16 %v5123, %v5119
    %v5156 = vpack.c.b16 %v5124, %v5120
    %v5157 = vpack.c.b16 %v5125, %v5121
    %v5158 = vpack.c.b16 %v5126, %v5122
    %5191 = vmatpush.bf16.msra.mxu0 %v5155
    %5192 = vmatpush.bf16.msra.mxu0 %v5151
    %5193 = vmatpush.bf16.msra.mxu0 %v5147
    %5194 = vmatpush.bf16.msra.mxu0 %v5143
    %5195 = vmatpush.bf16.msra.mxu0 %v5139
    %5196 = vmatpush.bf16.msra.mxu0 %v5135
    %5197 = vmatpush.bf16.msra.mxu0 %v5131
    %5198 = vmatpush.bf16.msra.mxu0 %v5127
    %5199 = vmatmul.bf16.gmra.mxu0 %v5029
    %v5200 = vpop.f32.mrf.mxu0
    %v5201 = vadd.f32 %v4985, %v5200
    %v5202 = vpop.f32.mrf.mxu0
    %5203 = vdwg.mxu0
    %5204 = vmatpush.bf16.msra.mxu0 %v5156
    %5205 = vmatpush.bf16.msra.mxu0 %v5152
    %5206 = vmatpush.bf16.msra.mxu0 %v5148
    %5207 = vmatpush.bf16.msra.mxu0 %v5144
    %5208 = vmatpush.bf16.msra.mxu0 %v5140
    %5209 = vmatpush.bf16.msra.mxu0 %v5136
    %5210 = vmatpush.bf16.msra.mxu0 %v5132
    %5211 = vmatpush.bf16.msra.mxu0 %v5128
    %5212 = vmatmul.bf16.gmra.mxu0 %v5029
    %v5213 = vpop.f32.mrf.mxu0
    %v5214 = vadd.f32 %v4998, %v5213
    %v5215 = vpop.f32.mrf.mxu0
    %5216 = vdwg.mxu0
    %5217 = vmatpush.bf16.msra.mxu0 %v5157
    %5218 = vmatpush.bf16.msra.mxu0 %v5153
    %5219 = vmatpush.bf16.msra.mxu0 %v5149
    %5220 = vmatpush.bf16.msra.mxu0 %v5145
    %5221 = vmatpush.bf16.msra.mxu0 %v5141
    %5222 = vmatpush.bf16.msra.mxu0 %v5137
    %5223 = vmatpush.bf16.msra.mxu0 %v5133
    %5224 = vmatpush.bf16.msra.mxu0 %v5129
    %5225 = vmatmul.bf16.gmra.mxu0 %v5029
    %v5226 = vpop.f32.mrf.mxu0
    %v5227 = vadd.f32 %v5011, %v5226
    %v5228 = vpop.f32.mrf.mxu0
    %5229 = vdwg.mxu0
    %5230 = vmatpush.bf16.msra.mxu0 %v5158
    %5231 = vmatpush.bf16.msra.mxu0 %v5154
    %5232 = vmatpush.bf16.msra.mxu0 %v5150
    %5233 = vmatpush.bf16.msra.mxu0 %v5146
    %5234 = vmatpush.bf16.msra.mxu0 %v5142
    %5235 = vmatpush.bf16.msra.mxu0 %v5138
    %5236 = vmatpush.bf16.msra.mxu0 %v5134
    %5237 = vmatpush.bf16.msra.mxu0 %v5130
    %5238 = vmatmul.bf16.gmra.mxu0 %v5029
    %v5239 = vpop.f32.mrf.mxu0
    %v5240 = vadd.f32 %v5024, %v5239
    %v5241 = vpop.f32.mrf.mxu0
    %5242 = vdwg.mxu0
    %s5243 = scalar_lea.vmem [#allocation2], 512
    %v5244 = vld [vmem:[%s5243] sm:$0xff]
    %v5245 = vld [vmem:[%s5243 + $0x8] sm:$0xff]
    %v5246 = vld [vmem:[%s5243 + $0x10] sm:$0xff]
    %v5247 = vld [vmem:[%s5243 + $0x18] sm:$0xff]
    %v5248 = vld [vmem:[%s5243 + $0x20] sm:$0xff]
    %v5249 = vld [vmem:[%s5243 + $0x28] sm:$0xff]
    %v5250 = vld [vmem:[%s5243 + $0x30] sm:$0xff]
    %v5251 = vld [vmem:[%s5243 + $0x38] sm:$0xff]
    %v5252 = vld [vmem:[%s5243 + $0x40] sm:$0xff]
    %v5253 = vld [vmem:[%s5243 + $0x48] sm:$0xff]
    %v5254 = vld [vmem:[%s5243 + $0x50] sm:$0xff]
    %v5255 = vld [vmem:[%s5243 + $0x58] sm:$0xff]
    %v5256 = vld [vmem:[%s5243 + $0x60] sm:$0xff]
    %v5257 = vld [vmem:[%s5243 + $0x68] sm:$0xff]
    %v5258 = vld [vmem:[%s5243 + $0x70] sm:$0xff]
    %v5259 = vld [vmem:[%s5243 + $0x78] sm:$0xff]
    %v5260 = vld [vmem:[%s5243 + $0x80] sm:$0xff]
    %v5261 = vld [vmem:[%s5243 + $0x88] sm:$0xff]
    %v5262 = vld [vmem:[%s5243 + $0x90] sm:$0xff]
    %v5263 = vld [vmem:[%s5243 + $0x98] sm:$0xff]
    %v5264 = vld [vmem:[%s5243 + $0xa0] sm:$0xff]
    %v5265 = vld [vmem:[%s5243 + $0xa8] sm:$0xff]
    %v5266 = vld [vmem:[%s5243 + $0xb0] sm:$0xff]
    %v5267 = vld [vmem:[%s5243 + $0xb8] sm:$0xff]
    %v5268 = vld [vmem:[%s5243 + $0xc0] sm:$0xff]
    %v5269 = vld [vmem:[%s5243 + $0xc8] sm:$0xff]
    %v5270 = vld [vmem:[%s5243 + $0xd0] sm:$0xff]
    %v5271 = vld [vmem:[%s5243 + $0xd8] sm:$0xff]
    %v5272 = vld [vmem:[%s5243 + $0xe0] sm:$0xff]
    %v5273 = vld [vmem:[%s5243 + $0xe8] sm:$0xff]
    %v5274 = vld [vmem:[%s5243 + $0xf0] sm:$0xff]
    %v5275 = vld [vmem:[%s5243 + $0xf8] sm:$0xff]
    %v5276 = vrot.slane %v4808, 2
    %v5277 = vrot.slane %v4809, 1
    %v5278 = vsel %vm4811, %v5277, %v5276
    %v5279 = vpack.c.b16 %v5278, %v5278
    %v5313 = vunpack.c.l.b16 %v5244
    %v5314 = vunpack.c.h.b16 %v5244
    %v5315 = vunpack.c.l.b16 %v5245
    %v5316 = vunpack.c.h.b16 %v5245
    %v5317 = vunpack.c.l.b16 %v5246
    %v5318 = vunpack.c.h.b16 %v5246
    %v5319 = vunpack.c.l.b16 %v5247
    %v5320 = vunpack.c.h.b16 %v5247
    %v5321 = vunpack.c.l.b16 %v5248
    %v5322 = vunpack.c.h.b16 %v5248
    %v5323 = vunpack.c.l.b16 %v5249
    %v5324 = vunpack.c.h.b16 %v5249
    %v5325 = vunpack.c.l.b16 %v5250
    %v5326 = vunpack.c.h.b16 %v5250
    %v5327 = vunpack.c.l.b16 %v5251
    %v5328 = vunpack.c.h.b16 %v5251
    %v5329 = vunpack.c.l.b16 %v5252
    %v5330 = vunpack.c.h.b16 %v5252
    %v5331 = vunpack.c.l.b16 %v5253
    %v5332 = vunpack.c.h.b16 %v5253
    %v5333 = vunpack.c.l.b16 %v5254
    %v5334 = vunpack.c.h.b16 %v5254
    %v5335 = vunpack.c.l.b16 %v5255
    %v5336 = vunpack.c.h.b16 %v5255
    %v5337 = vunpack.c.l.b16 %v5256
    %v5338 = vunpack.c.h.b16 %v5256
    %v5339 = vunpack.c.l.b16 %v5257
    %v5340 = vunpack.c.h.b16 %v5257
    %v5341 = vunpack.c.l.b16 %v5258
    %v5342 = vunpack.c.h.b16 %v5258
    %v5343 = vunpack.c.l.b16 %v5259
    %v5344 = vunpack.c.h.b16 %v5259
    %v5345 = vunpack.c.l.b16 %v5260
    %v5346 = vunpack.c.h.b16 %v5260
    %v5347 = vunpack.c.l.b16 %v5261
    %v5348 = vunpack.c.h.b16 %v5261
    %v5349 = vunpack.c.l.b16 %v5262
    %v5350 = vunpack.c.h.b16 %v5262
    %v5351 = vunpack.c.l.b16 %v5263
    %v5352 = vunpack.c.h.b16 %v5263
    %v5353 = vunpack.c.l.b16 %v5264
    %v5354 = vunpack.c.h.b16 %v5264
    %v5355 = vunpack.c.l.b16 %v5265
    %v5356 = vunpack.c.h.b16 %v5265
    %v5357 = vunpack.c.l.b16 %v5266
    %v5358 = vunpack.c.h.b16 %v5266
    %v5359 = vunpack.c.l.b16 %v5267
    %v5360 = vunpack.c.h.b16 %v5267
    %v5361 = vunpack.c.l.b16 %v5268
    %v5362 = vunpack.c.h.b16 %v5268
    %v5363 = vunpack.c.l.b16 %v5269
    %v5364 = vunpack.c.h.b16 %v5269
    %v5365 = vunpack.c.l.b16 %v5270
    %v5366 = vunpack.c.h.b16 %v5270
    %v5367 = vunpack.c.l.b16 %v5271
    %v5368 = vunpack.c.h.b16 %v5271
    %v5369 = vunpack.c.l.b16 %v5272
    %v5370 = vunpack.c.h.b16 %v5272
    %v5371 = vunpack.c.l.b16 %v5273
    %v5372 = vunpack.c.h.b16 %v5273
    %v5373 = vunpack.c.l.b16 %v5274
    %v5374 = vunpack.c.h.b16 %v5274
    %v5375 = vunpack.c.l.b16 %v5275
    %v5376 = vunpack.c.h.b16 %v5275
    %v5377 = vpack.c.b16 %v5317, %v5313
    %v5378 = vpack.c.b16 %v5318, %v5314
    %v5379 = vpack.c.b16 %v5319, %v5315
    %v5380 = vpack.c.b16 %v5320, %v5316
    %v5381 = vpack.c.b16 %v5325, %v5321
    %v5382 = vpack.c.b16 %v5326, %v5322
    %v5383 = vpack.c.b16 %v5327, %v5323
    %v5384 = vpack.c.b16 %v5328, %v5324
    %v5385 = vpack.c.b16 %v5333, %v5329
    %v5386 = vpack.c.b16 %v5334, %v5330
    %v5387 = vpack.c.b16 %v5335, %v5331
    %v5388 = vpack.c.b16 %v5336, %v5332
    %v5389 = vpack.c.b16 %v5341, %v5337
    %v5390 = vpack.c.b16 %v5342, %v5338
    %v5391 = vpack.c.b16 %v5343, %v5339
    %v5392 = vpack.c.b16 %v5344, %v5340
    %v5393 = vpack.c.b16 %v5349, %v5345
    %v5394 = vpack.c.b16 %v5350, %v5346
    %v5395 = vpack.c.b16 %v5351, %v5347
    %v5396 = vpack.c.b16 %v5352, %v5348
    %v5397 = vpack.c.b16 %v5357, %v5353
    %v5398 = vpack.c.b16 %v5358, %v5354
    %v5399 = vpack.c.b16 %v5359, %v5355
    %v5400 = vpack.c.b16 %v5360, %v5356
    %v5401 = vpack.c.b16 %v5365, %v5361
    %v5402 = vpack.c.b16 %v5366, %v5362
    %v5403 = vpack.c.b16 %v5367, %v5363
    %v5404 = vpack.c.b16 %v5368, %v5364
    %v5405 = vpack.c.b16 %v5373, %v5369
    %v5406 = vpack.c.b16 %v5374, %v5370
    %v5407 = vpack.c.b16 %v5375, %v5371
    %v5408 = vpack.c.b16 %v5376, %v5372
    %5441 = vmatpush.bf16.msra.mxu0 %v5405
    %5442 = vmatpush.bf16.msra.mxu0 %v5401
    %5443 = vmatpush.bf16.msra.mxu0 %v5397
    %5444 = vmatpush.bf16.msra.mxu0 %v5393
    %5445 = vmatpush.bf16.msra.mxu0 %v5389
    %5446 = vmatpush.bf16.msra.mxu0 %v5385
    %5447 = vmatpush.bf16.msra.mxu0 %v5381
    %5448 = vmatpush.bf16.msra.mxu0 %v5377
    %5449 = vmatmul.bf16.gmra.mxu0 %v5279
    %v5450 = vpop.f32.mrf.mxu0
    %v5451 = vadd.f32 0.0, %v5450
    %v5452 = vpop.f32.mrf.mxu0
    %5453 = vdwg.mxu0
    %5454 = vmatpush.bf16.msra.mxu0 %v5406
    %5455 = vmatpush.bf16.msra.mxu0 %v5402
    %5456 = vmatpush.bf16.msra.mxu0 %v5398
    %5457 = vmatpush.bf16.msra.mxu0 %v5394
    %5458 = vmatpush.bf16.msra.mxu0 %v5390
    %5459 = vmatpush.bf16.msra.mxu0 %v5386
    %5460 = vmatpush.bf16.msra.mxu0 %v5382
    %5461 = vmatpush.bf16.msra.mxu0 %v5378
    %5462 = vmatmul.bf16.gmra.mxu0 %v5279
    %v5463 = vpop.f32.mrf.mxu0
    %v5464 = vadd.f32 0.0, %v5463
    %v5465 = vpop.f32.mrf.mxu0
    %5466 = vdwg.mxu0
    %5467 = vmatpush.bf16.msra.mxu0 %v5407
    %5468 = vmatpush.bf16.msra.mxu0 %v5403
    %5469 = vmatpush.bf16.msra.mxu0 %v5399
    %5470 = vmatpush.bf16.msra.mxu0 %v5395
    %5471 = vmatpush.bf16.msra.mxu0 %v5391
    %5472 = vmatpush.bf16.msra.mxu0 %v5387
    %5473 = vmatpush.bf16.msra.mxu0 %v5383
    %5474 = vmatpush.bf16.msra.mxu0 %v5379
    %5475 = vmatmul.bf16.gmra.mxu0 %v5279
    %v5476 = vpop.f32.mrf.mxu0
    %v5477 = vadd.f32 0.0, %v5476
    %v5478 = vpop.f32.mrf.mxu0
    %5479 = vdwg.mxu0
    %5480 = vmatpush.bf16.msra.mxu0 %v5408
    %5481 = vmatpush.bf16.msra.mxu0 %v5404
    %5482 = vmatpush.bf16.msra.mxu0 %v5400
    %5483 = vmatpush.bf16.msra.mxu0 %v5396
    %5484 = vmatpush.bf16.msra.mxu0 %v5392
    %5485 = vmatpush.bf16.msra.mxu0 %v5388
    %5486 = vmatpush.bf16.msra.mxu0 %v5384
    %5487 = vmatpush.bf16.msra.mxu0 %v5380
    %5488 = vmatmul.bf16.gmra.mxu0 %v5279
    %v5489 = vpop.f32.mrf.mxu0
    %v5490 = vadd.f32 0.0, %v5489
    %v5491 = vpop.f32.mrf.mxu0
    %5492 = vdwg.mxu0
    %v5493 = vadd.f32 %v5201, %v5451
    %v5494 = vadd.f32 %v5214, %v5464
    %v5495 = vadd.f32 %v5227, %v5477
    %v5496 = vadd.f32 %v5240, %v5490
    %s5497 = scalar_lea.vmem [#allocation2], 768
    %v5498 = vld [vmem:[%s5497] sm:$0xff]
    %v5499 = vld [vmem:[%s5497 + $0x8] sm:$0xff]
    %v5500 = vld [vmem:[%s5497 + $0x10] sm:$0xff]
    %v5501 = vld [vmem:[%s5497 + $0x18] sm:$0xff]
    %v5502 = vld [vmem:[%s5497 + $0x20] sm:$0xff]
    %v5503 = vld [vmem:[%s5497 + $0x28] sm:$0xff]
    %v5504 = vld [vmem:[%s5497 + $0x30] sm:$0xff]
    %v5505 = vld [vmem:[%s5497 + $0x38] sm:$0xff]
    %v5506 = vld [vmem:[%s5497 + $0x40] sm:$0xff]
    %v5507 = vld [vmem:[%s5497 + $0x48] sm:$0xff]
    %v5508 = vld [vmem:[%s5497 + $0x50] sm:$0xff]
    %v5509 = vld [vmem:[%s5497 + $0x58] sm:$0xff]
    %v5510 = vld [vmem:[%s5497 + $0x60] sm:$0xff]
    %v5511 = vld [vmem:[%s5497 + $0x68] sm:$0xff]
    %v5512 = vld [vmem:[%s5497 + $0x70] sm:$0xff]
    %v5513 = vld [vmem:[%s5497 + $0x78] sm:$0xff]
    %v5514 = vld [vmem:[%s5497 + $0x80] sm:$0xff]
    %v5515 = vld [vmem:[%s5497 + $0x88] sm:$0xff]
    %v5516 = vld [vmem:[%s5497 + $0x90] sm:$0xff]
    %v5517 = vld [vmem:[%s5497 + $0x98] sm:$0xff]
    %v5518 = vld [vmem:[%s5497 + $0xa0] sm:$0xff]
    %v5519 = vld [vmem:[%s5497 + $0xa8] sm:$0xff]
    %v5520 = vld [vmem:[%s5497 + $0xb0] sm:$0xff]
    %v5521 = vld [vmem:[%s5497 + $0xb8] sm:$0xff]
    %v5522 = vld [vmem:[%s5497 + $0xc0] sm:$0xff]
    %v5523 = vld [vmem:[%s5497 + $0xc8] sm:$0xff]
    %v5524 = vld [vmem:[%s5497 + $0xd0] sm:$0xff]
    %v5525 = vld [vmem:[%s5497 + $0xd8] sm:$0xff]
    %v5526 = vld [vmem:[%s5497 + $0xe0] sm:$0xff]
    %v5527 = vld [vmem:[%s5497 + $0xe8] sm:$0xff]
    %v5528 = vld [vmem:[%s5497 + $0xf0] sm:$0xff]
    %v5529 = vld [vmem:[%s5497 + $0xf8] sm:$0xff]
    %v5530 = vrot.slane %v4808, 3
    %v5531 = vrot.slane %v4809, 2
    %v5532 = vsel %vm4811, %v5531, %v5530
    %v5533 = vpack.c.b16 %v5532, %v5532
    %v5567 = vunpack.c.l.b16 %v5498
    %v5568 = vunpack.c.h.b16 %v5498
    %v5569 = vunpack.c.l.b16 %v5499
    %v5570 = vunpack.c.h.b16 %v5499
    %v5571 = vunpack.c.l.b16 %v5500
    %v5572 = vunpack.c.h.b16 %v5500
    %v5573 = vunpack.c.l.b16 %v5501
    %v5574 = vunpack.c.h.b16 %v5501
    %v5575 = vunpack.c.l.b16 %v5502
    %v5576 = vunpack.c.h.b16 %v5502
    %v5577 = vunpack.c.l.b16 %v5503
    %v5578 = vunpack.c.h.b16 %v5503
    %v5579 = vunpack.c.l.b16 %v5504
    %v5580 = vunpack.c.h.b16 %v5504
    %v5581 = vunpack.c.l.b16 %v5505
    %v5582 = vunpack.c.h.b16 %v5505
    %v5583 = vunpack.c.l.b16 %v5506
    %v5584 = vunpack.c.h.b16 %v5506
    %v5585 = vunpack.c.l.b16 %v5507
    %v5586 = vunpack.c.h.b16 %v5507
    %v5587 = vunpack.c.l.b16 %v5508
    %v5588 = vunpack.c.h.b16 %v5508
    %v5589 = vunpack.c.l.b16 %v5509
    %v5590 = vunpack.c.h.b16 %v5509
    %v5591 = vunpack.c.l.b16 %v5510
    %v5592 = vunpack.c.h.b16 %v5510
    %v5593 = vunpack.c.l.b16 %v5511
    %v5594 = vunpack.c.h.b16 %v5511
    %v5595 = vunpack.c.l.b16 %v5512
    %v5596 = vunpack.c.h.b16 %v5512
    %v5597 = vunpack.c.l.b16 %v5513
    %v5598 = vunpack.c.h.b16 %v5513
    %v5599 = vunpack.c.l.b16 %v5514
    %v5600 = vunpack.c.h.b16 %v5514
    %v5601 = vunpack.c.l.b16 %v5515
    %v5602 = vunpack.c.h.b16 %v5515
    %v5603 = vunpack.c.l.b16 %v5516
    %v5604 = vunpack.c.h.b16 %v5516
    %v5605 = vunpack.c.l.b16 %v5517
    %v5606 = vunpack.c.h.b16 %v5517
    %v5607 = vunpack.c.l.b16 %v5518
    %v5608 = vunpack.c.h.b16 %v5518
    %v5609 = vunpack.c.l.b16 %v5519
    %v5610 = vunpack.c.h.b16 %v5519
    %v5611 = vunpack.c.l.b16 %v5520
    %v5612 = vunpack.c.h.b16 %v5520
    %v5613 = vunpack.c.l.b16 %v5521
    %v5614 = vunpack.c.h.b16 %v5521
    %v5615 = vunpack.c.l.b16 %v5522
    %v5616 = vunpack.c.h.b16 %v5522
    %v5617 = vunpack.c.l.b16 %v5523
    %v5618 = vunpack.c.h.b16 %v5523
    %v5619 = vunpack.c.l.b16 %v5524
    %v5620 = vunpack.c.h.b16 %v5524
    %v5621 = vunpack.c.l.b16 %v5525
    %v5622 = vunpack.c.h.b16 %v5525
    %v5623 = vunpack.c.l.b16 %v5526
    %v5624 = vunpack.c.h.b16 %v5526
    %v5625 = vunpack.c.l.b16 %v5527
    %v5626 = vunpack.c.h.b16 %v5527
    %v5627 = vunpack.c.l.b16 %v5528
    %v5628 = vunpack.c.h.b16 %v5528
    %v5629 = vunpack.c.l.b16 %v5529
    %v5630 = vunpack.c.h.b16 %v5529
    %v5631 = vpack.c.b16 %v5571, %v5567
    %v5632 = vpack.c.b16 %v5572, %v5568
    %v5633 = vpack.c.b16 %v5573, %v5569
    %v5634 = vpack.c.b16 %v5574, %v5570
    %v5635 = vpack.c.b16 %v5579, %v5575
    %v5636 = vpack.c.b16 %v5580, %v5576
    %v5637 = vpack.c.b16 %v5581, %v5577
    %v5638 = vpack.c.b16 %v5582, %v5578
    %v5639 = vpack.c.b16 %v5587, %v5583
    %v5640 = vpack.c.b16 %v5588, %v5584
    %v5641 = vpack.c.b16 %v5589, %v5585
    %v5642 = vpack.c.b16 %v5590, %v5586
    %v5643 = vpack.c.b16 %v5595, %v5591
    %v5644 = vpack.c.b16 %v5596, %v5592
    %v5645 = vpack.c.b16 %v5597, %v5593
    %v5646 = vpack.c.b16 %v5598, %v5594
    %v5647 = vpack.c.b16 %v5603, %v5599
    %v5648 = vpack.c.b16 %v5604, %v5600
    %v5649 = vpack.c.b16 %v5605, %v5601
    %v5650 = vpack.c.b16 %v5606, %v5602
    %v5651 = vpack.c.b16 %v5611, %v5607
    %v5652 = vpack.c.b16 %v5612, %v5608
    %v5653 = vpack.c.b16 %v5613, %v5609
    %v5654 = vpack.c.b16 %v5614, %v5610
    %v5655 = vpack.c.b16 %v5619, %v5615
    %v5656 = vpack.c.b16 %v5620, %v5616
    %v5657 = vpack.c.b16 %v5621, %v5617
    %v5658 = vpack.c.b16 %v5622, %v5618
    %v5659 = vpack.c.b16 %v5627, %v5623
    %v5660 = vpack.c.b16 %v5628, %v5624
    %v5661 = vpack.c.b16 %v5629, %v5625
    %v5662 = vpack.c.b16 %v5630, %v5626
    %5695 = vmatpush.bf16.msra.mxu0 %v5659
    %5696 = vmatpush.bf16.msra.mxu0 %v5655
    %5697 = vmatpush.bf16.msra.mxu0 %v5651
    %5698 = vmatpush.bf16.msra.mxu0 %v5647
    %5699 = vmatpush.bf16.msra.mxu0 %v5643
    %5700 = vmatpush.bf16.msra.mxu0 %v5639
    %5701 = vmatpush.bf16.msra.mxu0 %v5635
    %5702 = vmatpush.bf16.msra.mxu0 %v5631
    %5703 = vmatmul.bf16.gmra.mxu0 %v5533
    %v5704 = vpop.f32.mrf.mxu0
    %v5705 = vadd.f32 0.0, %v5704
    %v5706 = vpop.f32.mrf.mxu0
    %5707 = vdwg.mxu0
    %5708 = vmatpush.bf16.msra.mxu0 %v5660
    %5709 = vmatpush.bf16.msra.mxu0 %v5656
    %5710 = vmatpush.bf16.msra.mxu0 %v5652
    %5711 = vmatpush.bf16.msra.mxu0 %v5648
    %5712 = vmatpush.bf16.msra.mxu0 %v5644
    %5713 = vmatpush.bf16.msra.mxu0 %v5640
    %5714 = vmatpush.bf16.msra.mxu0 %v5636
    %5715 = vmatpush.bf16.msra.mxu0 %v5632
    %5716 = vmatmul.bf16.gmra.mxu0 %v5533
    %v5717 = vpop.f32.mrf.mxu0
    %v5718 = vadd.f32 0.0, %v5717
    %v5719 = vpop.f32.mrf.mxu0
    %5720 = vdwg.mxu0
    %5721 = vmatpush.bf16.msra.mxu0 %v5661
    %5722 = vmatpush.bf16.msra.mxu0 %v5657
    %5723 = vmatpush.bf16.msra.mxu0 %v5653
    %5724 = vmatpush.bf16.msra.mxu0 %v5649
    %5725 = vmatpush.bf16.msra.mxu0 %v5645
    %5726 = vmatpush.bf16.msra.mxu0 %v5641
    %5727 = vmatpush.bf16.msra.mxu0 %v5637
    %5728 = vmatpush.bf16.msra.mxu0 %v5633
    %5729 = vmatmul.bf16.gmra.mxu0 %v5533
    %v5730 = vpop.f32.mrf.mxu0
    %v5731 = vadd.f32 0.0, %v5730
    %v5732 = vpop.f32.mrf.mxu0
    %5733 = vdwg.mxu0
    %5734 = vmatpush.bf16.msra.mxu0 %v5662
    %5735 = vmatpush.bf16.msra.mxu0 %v5658
    %5736 = vmatpush.bf16.msra.mxu0 %v5654
    %5737 = vmatpush.bf16.msra.mxu0 %v5650
    %5738 = vmatpush.bf16.msra.mxu0 %v5646
    %5739 = vmatpush.bf16.msra.mxu0 %v5642
    %5740 = vmatpush.bf16.msra.mxu0 %v5638
    %5741 = vmatpush.bf16.msra.mxu0 %v5634
    %5742 = vmatmul.bf16.gmra.mxu0 %v5533
    %v5743 = vpop.f32.mrf.mxu0
    %v5744 = vadd.f32 0.0, %v5743
    %v5745 = vpop.f32.mrf.mxu0
    %5746 = vdwg.mxu0
    %v5747 = vadd.f32 %v5493, %v5705
    %v5748 = vadd.f32 %v5494, %v5718
    %v5749 = vadd.f32 %v5495, %v5731
    %v5750 = vadd.f32 %v5496, %v5744
    %s5751 = scalar_lea.vmem [#allocation2], 1024
    %v5752 = vld [vmem:[%s5751] sm:$0xff]
    %v5753 = vld [vmem:[%s5751 + $0x8] sm:$0xff]
    %v5754 = vld [vmem:[%s5751 + $0x10] sm:$0xff]
    %v5755 = vld [vmem:[%s5751 + $0x18] sm:$0xff]
    %v5756 = vld [vmem:[%s5751 + $0x20] sm:$0xff]
    %v5757 = vld [vmem:[%s5751 + $0x28] sm:$0xff]
    %v5758 = vld [vmem:[%s5751 + $0x30] sm:$0xff]
    %v5759 = vld [vmem:[%s5751 + $0x38] sm:$0xff]
    %v5760 = vld [vmem:[%s5751 + $0x40] sm:$0xff]
    %v5761 = vld [vmem:[%s5751 + $0x48] sm:$0xff]
    %v5762 = vld [vmem:[%s5751 + $0x50] sm:$0xff]
    %v5763 = vld [vmem:[%s5751 + $0x58] sm:$0xff]
    %v5764 = vld [vmem:[%s5751 + $0x60] sm:$0xff]
    %v5765 = vld [vmem:[%s5751 + $0x68] sm:$0xff]
    %v5766 = vld [vmem:[%s5751 + $0x70] sm:$0xff]
    %v5767 = vld [vmem:[%s5751 + $0x78] sm:$0xff]
    %v5768 = vld [vmem:[%s5751 + $0x80] sm:$0xff]
    %v5769 = vld [vmem:[%s5751 + $0x88] sm:$0xff]
    %v5770 = vld [vmem:[%s5751 + $0x90] sm:$0xff]
    %v5771 = vld [vmem:[%s5751 + $0x98] sm:$0xff]
    %v5772 = vld [vmem:[%s5751 + $0xa0] sm:$0xff]
    %v5773 = vld [vmem:[%s5751 + $0xa8] sm:$0xff]
    %v5774 = vld [vmem:[%s5751 + $0xb0] sm:$0xff]
    %v5775 = vld [vmem:[%s5751 + $0xb8] sm:$0xff]
    %v5776 = vld [vmem:[%s5751 + $0xc0] sm:$0xff]
    %v5777 = vld [vmem:[%s5751 + $0xc8] sm:$0xff]
    %v5778 = vld [vmem:[%s5751 + $0xd0] sm:$0xff]
    %v5779 = vld [vmem:[%s5751 + $0xd8] sm:$0xff]
    %v5780 = vld [vmem:[%s5751 + $0xe0] sm:$0xff]
    %v5781 = vld [vmem:[%s5751 + $0xe8] sm:$0xff]
    %v5782 = vld [vmem:[%s5751 + $0xf0] sm:$0xff]
    %v5783 = vld [vmem:[%s5751 + $0xf8] sm:$0xff]
    %v5784 = vrot.slane %v4808, 4
    %v5785 = vrot.slane %v4809, 3
    %v5786 = vsel %vm4811, %v5785, %v5784
    %v5787 = vpack.c.b16 %v5786, %v5786
    %v5821 = vunpack.c.l.b16 %v5752
    %v5822 = vunpack.c.h.b16 %v5752
    %v5823 = vunpack.c.l.b16 %v5753
    %v5824 = vunpack.c.h.b16 %v5753
    %v5825 = vunpack.c.l.b16 %v5754
    %v5826 = vunpack.c.h.b16 %v5754
    %v5827 = vunpack.c.l.b16 %v5755
    %v5828 = vunpack.c.h.b16 %v5755
    %v5829 = vunpack.c.l.b16 %v5756
    %v5830 = vunpack.c.h.b16 %v5756
    %v5831 = vunpack.c.l.b16 %v5757
    %v5832 = vunpack.c.h.b16 %v5757
    %v5833 = vunpack.c.l.b16 %v5758
    %v5834 = vunpack.c.h.b16 %v5758
    %v5835 = vunpack.c.l.b16 %v5759
    %v5836 = vunpack.c.h.b16 %v5759
    %v5837 = vunpack.c.l.b16 %v5760
    %v5838 = vunpack.c.h.b16 %v5760
    %v5839 = vunpack.c.l.b16 %v5761
    %v5840 = vunpack.c.h.b16 %v5761
    %v5841 = vunpack.c.l.b16 %v5762
    %v5842 = vunpack.c.h.b16 %v5762
    %v5843 = vunpack.c.l.b16 %v5763
    %v5844 = vunpack.c.h.b16 %v5763
    %v5845 = vunpack.c.l.b16 %v5764
    %v5846 = vunpack.c.h.b16 %v5764
    %v5847 = vunpack.c.l.b16 %v5765
    %v5848 = vunpack.c.h.b16 %v5765
    %v5849 = vunpack.c.l.b16 %v5766
    %v5850 = vunpack.c.h.b16 %v5766
    %v5851 = vunpack.c.l.b16 %v5767
    %v5852 = vunpack.c.h.b16 %v5767
    %v5853 = vunpack.c.l.b16 %v5768
    %v5854 = vunpack.c.h.b16 %v5768
    %v5855 = vunpack.c.l.b16 %v5769
    %v5856 = vunpack.c.h.b16 %v5769
    %v5857 = vunpack.c.l.b16 %v5770
    %v5858 = vunpack.c.h.b16 %v5770
    %v5859 = vunpack.c.l.b16 %v5771
    %v5860 = vunpack.c.h.b16 %v5771
    %v5861 = vunpack.c.l.b16 %v5772
    %v5862 = vunpack.c.h.b16 %v5772
    %v5863 = vunpack.c.l.b16 %v5773
    %v5864 = vunpack.c.h.b16 %v5773
    %v5865 = vunpack.c.l.b16 %v5774
    %v5866 = vunpack.c.h.b16 %v5774
    %v5867 = vunpack.c.l.b16 %v5775
    %v5868 = vunpack.c.h.b16 %v5775
    %v5869 = vunpack.c.l.b16 %v5776
    %v5870 = vunpack.c.h.b16 %v5776
    %v5871 = vunpack.c.l.b16 %v5777
    %v5872 = vunpack.c.h.b16 %v5777
    %v5873 = vunpack.c.l.b16 %v5778
    %v5874 = vunpack.c.h.b16 %v5778
    %v5875 = vunpack.c.l.b16 %v5779
    %v5876 = vunpack.c.h.b16 %v5779
    %v5877 = vunpack.c.l.b16 %v5780
    %v5878 = vunpack.c.h.b16 %v5780
    %v5879 = vunpack.c.l.b16 %v5781
    %v5880 = vunpack.c.h.b16 %v5781
    %v5881 = vunpack.c.l.b16 %v5782
    %v5882 = vunpack.c.h.b16 %v5782
    %v5883 = vunpack.c.l.b16 %v5783
    %v5884 = vunpack.c.h.b16 %v5783
    %v5885 = vpack.c.b16 %v5825, %v5821
    %v5886 = vpack.c.b16 %v5826, %v5822
    %v5887 = vpack.c.b16 %v5827, %v5823
    %v5888 = vpack.c.b16 %v5828, %v5824
    %v5889 = vpack.c.b16 %v5833, %v5829
    %v5890 = vpack.c.b16 %v5834, %v5830
    %v5891 = vpack.c.b16 %v5835, %v5831
    %v5892 = vpack.c.b16 %v5836, %v5832
    %v5893 = vpack.c.b16 %v5841, %v5837
    %v5894 = vpack.c.b16 %v5842, %v5838
    %v5895 = vpack.c.b16 %v5843, %v5839
    %v5896 = vpack.c.b16 %v5844, %v5840
    %v5897 = vpack.c.b16 %v5849, %v5845
    %v5898 = vpack.c.b16 %v5850, %v5846
    %v5899 = vpack.c.b16 %v5851, %v5847
    %v5900 = vpack.c.b16 %v5852, %v5848
    %v5901 = vpack.c.b16 %v5857, %v5853
    %v5902 = vpack.c.b16 %v5858, %v5854
    %v5903 = vpack.c.b16 %v5859, %v5855
    %v5904 = vpack.c.b16 %v5860, %v5856
    %v5905 = vpack.c.b16 %v5865, %v5861
    %v5906 = vpack.c.b16 %v5866, %v5862
    %v5907 = vpack.c.b16 %v5867, %v5863
    %v5908 = vpack.c.b16 %v5868, %v5864
    %v5909 = vpack.c.b16 %v5873, %v5869
    %v5910 = vpack.c.b16 %v5874, %v5870
    %v5911 = vpack.c.b16 %v5875, %v5871
    %v5912 = vpack.c.b16 %v5876, %v5872
    %v5913 = vpack.c.b16 %v5881, %v5877
    %v5914 = vpack.c.b16 %v5882, %v5878
    %v5915 = vpack.c.b16 %v5883, %v5879
    %v5916 = vpack.c.b16 %v5884, %v5880
    %5949 = vmatpush.bf16.msra.mxu0 %v5913
    %5950 = vmatpush.bf16.msra.mxu0 %v5909
    %5951 = vmatpush.bf16.msra.mxu0 %v5905
    %5952 = vmatpush.bf16.msra.mxu0 %v5901
    %5953 = vmatpush.bf16.msra.mxu0 %v5897
    %5954 = vmatpush.bf16.msra.mxu0 %v5893
    %5955 = vmatpush.bf16.msra.mxu0 %v5889
    %5956 = vmatpush.bf16.msra.mxu0 %v5885
    %5957 = vmatmul.bf16.gmra.mxu0 %v5787
    %v5958 = vpop.f32.mrf.mxu0
    %v5959 = vadd.f32 0.0, %v5958
    %v5960 = vpop.f32.mrf.mxu0
    %5961 = vdwg.mxu0
    %5962 = vmatpush.bf16.msra.mxu0 %v5914
    %5963 = vmatpush.bf16.msra.mxu0 %v5910
    %5964 = vmatpush.bf16.msra.mxu0 %v5906
    %5965 = vmatpush.bf16.msra.mxu0 %v5902
    %5966 = vmatpush.bf16.msra.mxu0 %v5898
    %5967 = vmatpush.bf16.msra.mxu0 %v5894
    %5968 = vmatpush.bf16.msra.mxu0 %v5890
    %5969 = vmatpush.bf16.msra.mxu0 %v5886
    %5970 = vmatmul.bf16.gmra.mxu0 %v5787
    %v5971 = vpop.f32.mrf.mxu0
    %v5972 = vadd.f32 0.0, %v5971
    %v5973 = vpop.f32.mrf.mxu0
    %5974 = vdwg.mxu0
    %5975 = vmatpush.bf16.msra.mxu0 %v5915
    %5976 = vmatpush.bf16.msra.mxu0 %v5911
    %5977 = vmatpush.bf16.msra.mxu0 %v5907
    %5978 = vmatpush.bf16.msra.mxu0 %v5903
    %5979 = vmatpush.bf16.msra.mxu0 %v5899
    %5980 = vmatpush.bf16.msra.mxu0 %v5895
    %5981 = vmatpush.bf16.msra.mxu0 %v5891
    %5982 = vmatpush.bf16.msra.mxu0 %v5887
    %5983 = vmatmul.bf16.gmra.mxu0 %v5787
    %v5984 = vpop.f32.mrf.mxu0
    %v5985 = vadd.f32 0.0, %v5984
    %v5986 = vpop.f32.mrf.mxu0
    %5987 = vdwg.mxu0
    %5988 = vmatpush.bf16.msra.mxu0 %v5916
    %5989 = vmatpush.bf16.msra.mxu0 %v5912
    %5990 = vmatpush.bf16.msra.mxu0 %v5908
    %5991 = vmatpush.bf16.msra.mxu0 %v5904
    %5992 = vmatpush.bf16.msra.mxu0 %v5900
    %5993 = vmatpush.bf16.msra.mxu0 %v5896
    %5994 = vmatpush.bf16.msra.mxu0 %v5892
    %5995 = vmatpush.bf16.msra.mxu0 %v5888
    %5996 = vmatmul.bf16.gmra.mxu0 %v5787
    %v5997 = vpop.f32.mrf.mxu0
    %v5998 = vadd.f32 0.0, %v5997
    %v5999 = vpop.f32.mrf.mxu0
    %6000 = vdwg.mxu0
    %v6001 = vadd.f32 %v5747, %v5959
    %v6002 = vadd.f32 %v5748, %v5972
    %v6003 = vadd.f32 %v5749, %v5985
    %v6004 = vadd.f32 %v5750, %v5998
    %s6005 = scalar_lea.vmem [#allocation2], 1280
    %v6006 = vld [vmem:[%s6005] sm:$0xff]
    %v6007 = vld [vmem:[%s6005 + $0x8] sm:$0xff]
    %v6008 = vld [vmem:[%s6005 + $0x10] sm:$0xff]
    %v6009 = vld [vmem:[%s6005 + $0x18] sm:$0xff]
    %v6010 = vld [vmem:[%s6005 + $0x20] sm:$0xff]
    %v6011 = vld [vmem:[%s6005 + $0x28] sm:$0xff]
    %v6012 = vld [vmem:[%s6005 + $0x30] sm:$0xff]
    %v6013 = vld [vmem:[%s6005 + $0x38] sm:$0xff]
    %v6014 = vld [vmem:[%s6005 + $0x40] sm:$0xff]
    %v6015 = vld [vmem:[%s6005 + $0x48] sm:$0xff]
    %v6016 = vld [vmem:[%s6005 + $0x50] sm:$0xff]
    %v6017 = vld [vmem:[%s6005 + $0x58] sm:$0xff]
    %v6018 = vld [vmem:[%s6005 + $0x60] sm:$0xff]
    %v6019 = vld [vmem:[%s6005 + $0x68] sm:$0xff]
    %v6020 = vld [vmem:[%s6005 + $0x70] sm:$0xff]
    %v6021 = vld [vmem:[%s6005 + $0x78] sm:$0xff]
    %v6022 = vld [vmem:[%s6005 + $0x80] sm:$0xff]
    %v6023 = vld [vmem:[%s6005 + $0x88] sm:$0xff]
    %v6024 = vld [vmem:[%s6005 + $0x90] sm:$0xff]
    %v6025 = vld [vmem:[%s6005 + $0x98] sm:$0xff]
    %v6026 = vld [vmem:[%s6005 + $0xa0] sm:$0xff]
    %v6027 = vld [vmem:[%s6005 + $0xa8] sm:$0xff]
    %v6028 = vld [vmem:[%s6005 + $0xb0] sm:$0xff]
    %v6029 = vld [vmem:[%s6005 + $0xb8] sm:$0xff]
    %v6030 = vld [vmem:[%s6005 + $0xc0] sm:$0xff]
    %v6031 = vld [vmem:[%s6005 + $0xc8] sm:$0xff]
    %v6032 = vld [vmem:[%s6005 + $0xd0] sm:$0xff]
    %v6033 = vld [vmem:[%s6005 + $0xd8] sm:$0xff]
    %v6034 = vld [vmem:[%s6005 + $0xe0] sm:$0xff]
    %v6035 = vld [vmem:[%s6005 + $0xe8] sm:$0xff]
    %v6036 = vld [vmem:[%s6005 + $0xf0] sm:$0xff]
    %v6037 = vld [vmem:[%s6005 + $0xf8] sm:$0xff]
    %v6038 = vrot.slane %v4808, 5
    %v6039 = vrot.slane %v4809, 4
    %v6040 = vsel %vm4811, %v6039, %v6038
    %v6041 = vpack.c.b16 %v6040, %v6040
    %v6075 = vunpack.c.l.b16 %v6006
    %v6076 = vunpack.c.h.b16 %v6006
    %v6077 = vunpack.c.l.b16 %v6007
    %v6078 = vunpack.c.h.b16 %v6007
    %v6079 = vunpack.c.l.b16 %v6008
    %v6080 = vunpack.c.h.b16 %v6008
    %v6081 = vunpack.c.l.b16 %v6009
    %v6082 = vunpack.c.h.b16 %v6009
    %v6083 = vunpack.c.l.b16 %v6010
    %v6084 = vunpack.c.h.b16 %v6010
    %v6085 = vunpack.c.l.b16 %v6011
    %v6086 = vunpack.c.h.b16 %v6011
    %v6087 = vunpack.c.l.b16 %v6012
    %v6088 = vunpack.c.h.b16 %v6012
    %v6089 = vunpack.c.l.b16 %v6013
    %v6090 = vunpack.c.h.b16 %v6013
    %v6091 = vunpack.c.l.b16 %v6014
    %v6092 = vunpack.c.h.b16 %v6014
    %v6093 = vunpack.c.l.b16 %v6015
    %v6094 = vunpack.c.h.b16 %v6015
    %v6095 = vunpack.c.l.b16 %v6016
    %v6096 = vunpack.c.h.b16 %v6016
    %v6097 = vunpack.c.l.b16 %v6017
    %v6098 = vunpack.c.h.b16 %v6017
    %v6099 = vunpack.c.l.b16 %v6018
    %v6100 = vunpack.c.h.b16 %v6018
    %v6101 = vunpack.c.l.b16 %v6019
    %v6102 = vunpack.c.h.b16 %v6019
    %v6103 = vunpack.c.l.b16 %v6020
    %v6104 = vunpack.c.h.b16 %v6020
    %v6105 = vunpack.c.l.b16 %v6021
    %v6106 = vunpack.c.h.b16 %v6021
    %v6107 = vunpack.c.l.b16 %v6022
    %v6108 = vunpack.c.h.b16 %v6022
    %v6109 = vunpack.c.l.b16 %v6023
    %v6110 = vunpack.c.h.b16 %v6023
    %v6111 = vunpack.c.l.b16 %v6024
    %v6112 = vunpack.c.h.b16 %v6024
    %v6113 = vunpack.c.l.b16 %v6025
    %v6114 = vunpack.c.h.b16 %v6025
    %v6115 = vunpack.c.l.b16 %v6026
    %v6116 = vunpack.c.h.b16 %v6026
    %v6117 = vunpack.c.l.b16 %v6027
    %v6118 = vunpack.c.h.b16 %v6027
    %v6119 = vunpack.c.l.b16 %v6028
    %v6120 = vunpack.c.h.b16 %v6028
    %v6121 = vunpack.c.l.b16 %v6029
    %v6122 = vunpack.c.h.b16 %v6029
    %v6123 = vunpack.c.l.b16 %v6030
    %v6124 = vunpack.c.h.b16 %v6030
    %v6125 = vunpack.c.l.b16 %v6031
    %v6126 = vunpack.c.h.b16 %v6031
    %v6127 = vunpack.c.l.b16 %v6032
    %v6128 = vunpack.c.h.b16 %v6032
    %v6129 = vunpack.c.l.b16 %v6033
    %v6130 = vunpack.c.h.b16 %v6033
    %v6131 = vunpack.c.l.b16 %v6034
    %v6132 = vunpack.c.h.b16 %v6034
    %v6133 = vunpack.c.l.b16 %v6035
    %v6134 = vunpack.c.h.b16 %v6035
    %v6135 = vunpack.c.l.b16 %v6036
    %v6136 = vunpack.c.h.b16 %v6036
    %v6137 = vunpack.c.l.b16 %v6037
    %v6138 = vunpack.c.h.b16 %v6037
    %v6139 = vpack.c.b16 %v6079, %v6075
    %v6140 = vpack.c.b16 %v6080, %v6076
    %v6141 = vpack.c.b16 %v6081, %v6077
    %v6142 = vpack.c.b16 %v6082, %v6078
    %v6143 = vpack.c.b16 %v6087, %v6083
    %v6144 = vpack.c.b16 %v6088, %v6084
    %v6145 = vpack.c.b16 %v6089, %v6085
    %v6146 = vpack.c.b16 %v6090, %v6086
    %v6147 = vpack.c.b16 %v6095, %v6091
    %v6148 = vpack.c.b16 %v6096, %v6092
    %v6149 = vpack.c.b16 %v6097, %v6093
    %v6150 = vpack.c.b16 %v6098, %v6094
    %v6151 = vpack.c.b16 %v6103, %v6099
    %v6152 = vpack.c.b16 %v6104, %v6100
    %v6153 = vpack.c.b16 %v6105, %v6101
    %v6154 = vpack.c.b16 %v6106, %v6102
    %v6155 = vpack.c.b16 %v6111, %v6107
    %v6156 = vpack.c.b16 %v6112, %v6108
    %v6157 = vpack.c.b16 %v6113, %v6109
    %v6158 = vpack.c.b16 %v6114, %v6110
    %v6159 = vpack.c.b16 %v6119, %v6115
    %v6160 = vpack.c.b16 %v6120, %v6116
    %v6161 = vpack.c.b16 %v6121, %v6117
    %v6162 = vpack.c.b16 %v6122, %v6118
    %v6163 = vpack.c.b16 %v6127, %v6123
    %v6164 = vpack.c.b16 %v6128, %v6124
    %v6165 = vpack.c.b16 %v6129, %v6125
    %v6166 = vpack.c.b16 %v6130, %v6126
    %v6167 = vpack.c.b16 %v6135, %v6131
    %v6168 = vpack.c.b16 %v6136, %v6132
    %v6169 = vpack.c.b16 %v6137, %v6133
    %v6170 = vpack.c.b16 %v6138, %v6134
    %6203 = vmatpush.bf16.msra.mxu0 %v6167
    %6204 = vmatpush.bf16.msra.mxu0 %v6163
    %6205 = vmatpush.bf16.msra.mxu0 %v6159
    %6206 = vmatpush.bf16.msra.mxu0 %v6155
    %6207 = vmatpush.bf16.msra.mxu0 %v6151
    %6208 = vmatpush.bf16.msra.mxu0 %v6147
    %6209 = vmatpush.bf16.msra.mxu0 %v6143
    %6210 = vmatpush.bf16.msra.mxu0 %v6139
    %6211 = vmatmul.bf16.gmra.mxu0 %v6041
    %v6212 = vpop.f32.mrf.mxu0
    %v6213 = vadd.f32 0.0, %v6212
    %v6214 = vpop.f32.mrf.mxu0
    %6215 = vdwg.mxu0
    %6216 = vmatpush.bf16.msra.mxu0 %v6168
    %6217 = vmatpush.bf16.msra.mxu0 %v6164
    %6218 = vmatpush.bf16.msra.mxu0 %v6160
    %6219 = vmatpush.bf16.msra.mxu0 %v6156
    %6220 = vmatpush.bf16.msra.mxu0 %v6152
    %6221 = vmatpush.bf16.msra.mxu0 %v6148
    %6222 = vmatpush.bf16.msra.mxu0 %v6144
    %6223 = vmatpush.bf16.msra.mxu0 %v6140
    %6224 = vmatmul.bf16.gmra.mxu0 %v6041
    %v6225 = vpop.f32.mrf.mxu0
    %v6226 = vadd.f32 0.0, %v6225
    %v6227 = vpop.f32.mrf.mxu0
    %6228 = vdwg.mxu0
    %6229 = vmatpush.bf16.msra.mxu0 %v6169
    %6230 = vmatpush.bf16.msra.mxu0 %v6165
    %6231 = vmatpush.bf16.msra.mxu0 %v6161
    %6232 = vmatpush.bf16.msra.mxu0 %v6157
    %6233 = vmatpush.bf16.msra.mxu0 %v6153
    %6234 = vmatpush.bf16.msra.mxu0 %v6149
    %6235 = vmatpush.bf16.msra.mxu0 %v6145
    %6236 = vmatpush.bf16.msra.mxu0 %v6141
    %6237 = vmatmul.bf16.gmra.mxu0 %v6041
    %v6238 = vpop.f32.mrf.mxu0
    %v6239 = vadd.f32 0.0, %v6238
    %v6240 = vpop.f32.mrf.mxu0
    %6241 = vdwg.mxu0
    %6242 = vmatpush.bf16.msra.mxu0 %v6170
    %6243 = vmatpush.bf16.msra.mxu0 %v6166
    %6244 = vmatpush.bf16.msra.mxu0 %v6162
    %6245 = vmatpush.bf16.msra.mxu0 %v6158
    %6246 = vmatpush.bf16.msra.mxu0 %v6154
    %6247 = vmatpush.bf16.msra.mxu0 %v6150
    %6248 = vmatpush.bf16.msra.mxu0 %v6146
    %6249 = vmatpush.bf16.msra.mxu0 %v6142
    %6250 = vmatmul.bf16.gmra.mxu0 %v6041
    %v6251 = vpop.f32.mrf.mxu0
    %v6252 = vadd.f32 0.0, %v6251
    %v6253 = vpop.f32.mrf.mxu0
    %6254 = vdwg.mxu0
    %v6255 = vadd.f32 %v6001, %v6213
    %v6256 = vadd.f32 %v6002, %v6226
    %v6257 = vadd.f32 %v6003, %v6239
    %v6258 = vadd.f32 %v6004, %v6252
    %s6259 = scalar_lea.vmem [#allocation2], 1536
    %v6260 = vld [vmem:[%s6259] sm:$0xff]
    %v6261 = vld [vmem:[%s6259 + $0x8] sm:$0xff]
    %v6262 = vld [vmem:[%s6259 + $0x10] sm:$0xff]
    %v6263 = vld [vmem:[%s6259 + $0x18] sm:$0xff]
    %v6264 = vld [vmem:[%s6259 + $0x20] sm:$0xff]
    %v6265 = vld [vmem:[%s6259 + $0x28] sm:$0xff]
    %v6266 = vld [vmem:[%s6259 + $0x30] sm:$0xff]
    %v6267 = vld [vmem:[%s6259 + $0x38] sm:$0xff]
    %v6268 = vld [vmem:[%s6259 + $0x40] sm:$0xff]
    %v6269 = vld [vmem:[%s6259 + $0x48] sm:$0xff]
    %v6270 = vld [vmem:[%s6259 + $0x50] sm:$0xff]
    %v6271 = vld [vmem:[%s6259 + $0x58] sm:$0xff]
    %v6272 = vld [vmem:[%s6259 + $0x60] sm:$0xff]
    %v6273 = vld [vmem:[%s6259 + $0x68] sm:$0xff]
    %v6274 = vld [vmem:[%s6259 + $0x70] sm:$0xff]
    %v6275 = vld [vmem:[%s6259 + $0x78] sm:$0xff]
    %v6276 = vld [vmem:[%s6259 + $0x80] sm:$0xff]
    %v6277 = vld [vmem:[%s6259 + $0x88] sm:$0xff]
    %v6278 = vld [vmem:[%s6259 + $0x90] sm:$0xff]
    %v6279 = vld [vmem:[%s6259 + $0x98] sm:$0xff]
    %v6280 = vld [vmem:[%s6259 + $0xa0] sm:$0xff]
    %v6281 = vld [vmem:[%s6259 + $0xa8] sm:$0xff]
    %v6282 = vld [vmem:[%s6259 + $0xb0] sm:$0xff]
    %v6283 = vld [vmem:[%s6259 + $0xb8] sm:$0xff]
    %v6284 = vld [vmem:[%s6259 + $0xc0] sm:$0xff]
    %v6285 = vld [vmem:[%s6259 + $0xc8] sm:$0xff]
    %v6286 = vld [vmem:[%s6259 + $0xd0] sm:$0xff]
    %v6287 = vld [vmem:[%s6259 + $0xd8] sm:$0xff]
    %v6288 = vld [vmem:[%s6259 + $0xe0] sm:$0xff]
    %v6289 = vld [vmem:[%s6259 + $0xe8] sm:$0xff]
    %v6290 = vld [vmem:[%s6259 + $0xf0] sm:$0xff]
    %v6291 = vld [vmem:[%s6259 + $0xf8] sm:$0xff]
    %v6292 = vrot.slane %v4808, 6
    %v6293 = vrot.slane %v4809, 5
    %v6294 = vsel %vm4811, %v6293, %v6292
    %v6295 = vpack.c.b16 %v6294, %v6294
    %v6329 = vunpack.c.l.b16 %v6260
    %v6330 = vunpack.c.h.b16 %v6260
    %v6331 = vunpack.c.l.b16 %v6261
    %v6332 = vunpack.c.h.b16 %v6261
    %v6333 = vunpack.c.l.b16 %v6262
    %v6334 = vunpack.c.h.b16 %v6262
    %v6335 = vunpack.c.l.b16 %v6263
    %v6336 = vunpack.c.h.b16 %v6263
    %v6337 = vunpack.c.l.b16 %v6264
    %v6338 = vunpack.c.h.b16 %v6264
    %v6339 = vunpack.c.l.b16 %v6265
    %v6340 = vunpack.c.h.b16 %v6265
    %v6341 = vunpack.c.l.b16 %v6266
    %v6342 = vunpack.c.h.b16 %v6266
    %v6343 = vunpack.c.l.b16 %v6267
    %v6344 = vunpack.c.h.b16 %v6267
    %v6345 = vunpack.c.l.b16 %v6268
    %v6346 = vunpack.c.h.b16 %v6268
    %v6347 = vunpack.c.l.b16 %v6269
    %v6348 = vunpack.c.h.b16 %v6269
    %v6349 = vunpack.c.l.b16 %v6270
    %v6350 = vunpack.c.h.b16 %v6270
    %v6351 = vunpack.c.l.b16 %v6271
    %v6352 = vunpack.c.h.b16 %v6271
    %v6353 = vunpack.c.l.b16 %v6272
    %v6354 = vunpack.c.h.b16 %v6272
    %v6355 = vunpack.c.l.b16 %v6273
    %v6356 = vunpack.c.h.b16 %v6273
    %v6357 = vunpack.c.l.b16 %v6274
    %v6358 = vunpack.c.h.b16 %v6274
    %v6359 = vunpack.c.l.b16 %v6275
    %v6360 = vunpack.c.h.b16 %v6275
    %v6361 = vunpack.c.l.b16 %v6276
    %v6362 = vunpack.c.h.b16 %v6276
    %v6363 = vunpack.c.l.b16 %v6277
    %v6364 = vunpack.c.h.b16 %v6277
    %v6365 = vunpack.c.l.b16 %v6278
    %v6366 = vunpack.c.h.b16 %v6278
    %v6367 = vunpack.c.l.b16 %v6279
    %v6368 = vunpack.c.h.b16 %v6279
    %v6369 = vunpack.c.l.b16 %v6280
    %v6370 = vunpack.c.h.b16 %v6280
    %v6371 = vunpack.c.l.b16 %v6281
    %v6372 = vunpack.c.h.b16 %v6281
    %v6373 = vunpack.c.l.b16 %v6282
    %v6374 = vunpack.c.h.b16 %v6282
    %v6375 = vunpack.c.l.b16 %v6283
    %v6376 = vunpack.c.h.b16 %v6283
    %v6377 = vunpack.c.l.b16 %v6284
    %v6378 = vunpack.c.h.b16 %v6284
    %v6379 = vunpack.c.l.b16 %v6285
    %v6380 = vunpack.c.h.b16 %v6285
    %v6381 = vunpack.c.l.b16 %v6286
    %v6382 = vunpack.c.h.b16 %v6286
    %v6383 = vunpack.c.l.b16 %v6287
    %v6384 = vunpack.c.h.b16 %v6287
    %v6385 = vunpack.c.l.b16 %v6288
    %v6386 = vunpack.c.h.b16 %v6288
    %v6387 = vunpack.c.l.b16 %v6289
    %v6388 = vunpack.c.h.b16 %v6289
    %v6389 = vunpack.c.l.b16 %v6290
    %v6390 = vunpack.c.h.b16 %v6290
    %v6391 = vunpack.c.l.b16 %v6291
    %v6392 = vunpack.c.h.b16 %v6291
    %v6393 = vpack.c.b16 %v6333, %v6329
    %v6394 = vpack.c.b16 %v6334, %v6330
    %v6395 = vpack.c.b16 %v6335, %v6331
    %v6396 = vpack.c.b16 %v6336, %v6332
    %v6397 = vpack.c.b16 %v6341, %v6337
    %v6398 = vpack.c.b16 %v6342, %v6338
    %v6399 = vpack.c.b16 %v6343, %v6339
    %v6400 = vpack.c.b16 %v6344, %v6340
    %v6401 = vpack.c.b16 %v6349, %v6345
    %v6402 = vpack.c.b16 %v6350, %v6346
    %v6403 = vpack.c.b16 %v6351, %v6347
    %v6404 = vpack.c.b16 %v6352, %v6348
    %v6405 = vpack.c.b16 %v6357, %v6353
    %v6406 = vpack.c.b16 %v6358, %v6354
    %v6407 = vpack.c.b16 %v6359, %v6355
    %v6408 = vpack.c.b16 %v6360, %v6356
    %v6409 = vpack.c.b16 %v6365, %v6361
    %v6410 = vpack.c.b16 %v6366, %v6362
    %v6411 = vpack.c.b16 %v6367, %v6363
    %v6412 = vpack.c.b16 %v6368, %v6364
    %v6413 = vpack.c.b16 %v6373, %v6369
    %v6414 = vpack.c.b16 %v6374, %v6370
    %v6415 = vpack.c.b16 %v6375, %v6371
    %v6416 = vpack.c.b16 %v6376, %v6372
    %v6417 = vpack.c.b16 %v6381, %v6377
    %v6418 = vpack.c.b16 %v6382, %v6378
    %v6419 = vpack.c.b16 %v6383, %v6379
    %v6420 = vpack.c.b16 %v6384, %v6380
    %v6421 = vpack.c.b16 %v6389, %v6385
    %v6422 = vpack.c.b16 %v6390, %v6386
    %v6423 = vpack.c.b16 %v6391, %v6387
    %v6424 = vpack.c.b16 %v6392, %v6388
    %6457 = vmatpush.bf16.msra.mxu0 %v6421
    %6458 = vmatpush.bf16.msra.mxu0 %v6417
    %6459 = vmatpush.bf16.msra.mxu0 %v6413
    %6460 = vmatpush.bf16.msra.mxu0 %v6409
    %6461 = vmatpush.bf16.msra.mxu0 %v6405
    %6462 = vmatpush.bf16.msra.mxu0 %v6401
    %6463 = vmatpush.bf16.msra.mxu0 %v6397
    %6464 = vmatpush.bf16.msra.mxu0 %v6393
    %6465 = vmatmul.bf16.gmra.mxu0 %v6295
    %v6466 = vpop.f32.mrf.mxu0
    %v6467 = vadd.f32 0.0, %v6466
    %v6468 = vpop.f32.mrf.mxu0
    %6469 = vdwg.mxu0
    %6470 = vmatpush.bf16.msra.mxu0 %v6422
    %6471 = vmatpush.bf16.msra.mxu0 %v6418
    %6472 = vmatpush.bf16.msra.mxu0 %v6414
    %6473 = vmatpush.bf16.msra.mxu0 %v6410
    %6474 = vmatpush.bf16.msra.mxu0 %v6406
    %6475 = vmatpush.bf16.msra.mxu0 %v6402
    %6476 = vmatpush.bf16.msra.mxu0 %v6398
    %6477 = vmatpush.bf16.msra.mxu0 %v6394
    %6478 = vmatmul.bf16.gmra.mxu0 %v6295
    %v6479 = vpop.f32.mrf.mxu0
    %v6480 = vadd.f32 0.0, %v6479
    %v6481 = vpop.f32.mrf.mxu0
    %6482 = vdwg.mxu0
    %6483 = vmatpush.bf16.msra.mxu0 %v6423
    %6484 = vmatpush.bf16.msra.mxu0 %v6419
    %6485 = vmatpush.bf16.msra.mxu0 %v6415
    %6486 = vmatpush.bf16.msra.mxu0 %v6411
    %6487 = vmatpush.bf16.msra.mxu0 %v6407
    %6488 = vmatpush.bf16.msra.mxu0 %v6403
    %6489 = vmatpush.bf16.msra.mxu0 %v6399
    %6490 = vmatpush.bf16.msra.mxu0 %v6395
    %6491 = vmatmul.bf16.gmra.mxu0 %v6295
    %v6492 = vpop.f32.mrf.mxu0
    %v6493 = vadd.f32 0.0, %v6492
    %v6494 = vpop.f32.mrf.mxu0
    %6495 = vdwg.mxu0
    %6496 = vmatpush.bf16.msra.mxu0 %v6424
    %6497 = vmatpush.bf16.msra.mxu0 %v6420
    %6498 = vmatpush.bf16.msra.mxu0 %v6416
    %6499 = vmatpush.bf16.msra.mxu0 %v6412
    %6500 = vmatpush.bf16.msra.mxu0 %v6408
    %6501 = vmatpush.bf16.msra.mxu0 %v6404
    %6502 = vmatpush.bf16.msra.mxu0 %v6400
    %6503 = vmatpush.bf16.msra.mxu0 %v6396
    %6504 = vmatmul.bf16.gmra.mxu0 %v6295
    %v6505 = vpop.f32.mrf.mxu0
    %v6506 = vadd.f32 0.0, %v6505
    %v6507 = vpop.f32.mrf.mxu0
    %6508 = vdwg.mxu0
    %v6509 = vadd.f32 %v6255, %v6467
    %v6510 = vadd.f32 %v6256, %v6480
    %v6511 = vadd.f32 %v6257, %v6493
    %v6512 = vadd.f32 %v6258, %v6506
    %s6513 = scalar_lea.vmem [#allocation2], 1792
    %v6514 = vld [vmem:[%s6513] sm:$0xff]
    %v6515 = vld [vmem:[%s6513 + $0x8] sm:$0xff]
    %v6516 = vld [vmem:[%s6513 + $0x10] sm:$0xff]
    %v6517 = vld [vmem:[%s6513 + $0x18] sm:$0xff]
    %v6518 = vld [vmem:[%s6513 + $0x20] sm:$0xff]
    %v6519 = vld [vmem:[%s6513 + $0x28] sm:$0xff]
    %v6520 = vld [vmem:[%s6513 + $0x30] sm:$0xff]
    %v6521 = vld [vmem:[%s6513 + $0x38] sm:$0xff]
    %v6522 = vld [vmem:[%s6513 + $0x40] sm:$0xff]
    %v6523 = vld [vmem:[%s6513 + $0x48] sm:$0xff]
    %v6524 = vld [vmem:[%s6513 + $0x50] sm:$0xff]
    %v6525 = vld [vmem:[%s6513 + $0x58] sm:$0xff]
    %v6526 = vld [vmem:[%s6513 + $0x60] sm:$0xff]
    %v6527 = vld [vmem:[%s6513 + $0x68] sm:$0xff]
    %v6528 = vld [vmem:[%s6513 + $0x70] sm:$0xff]
    %v6529 = vld [vmem:[%s6513 + $0x78] sm:$0xff]
    %v6530 = vld [vmem:[%s6513 + $0x80] sm:$0xff]
    %v6531 = vld [vmem:[%s6513 + $0x88] sm:$0xff]
    %v6532 = vld [vmem:[%s6513 + $0x90] sm:$0xff]
    %v6533 = vld [vmem:[%s6513 + $0x98] sm:$0xff]
    %v6534 = vld [vmem:[%s6513 + $0xa0] sm:$0xff]
    %v6535 = vld [vmem:[%s6513 + $0xa8] sm:$0xff]
    %v6536 = vld [vmem:[%s6513 + $0xb0] sm:$0xff]
    %v6537 = vld [vmem:[%s6513 + $0xb8] sm:$0xff]
    %v6538 = vld [vmem:[%s6513 + $0xc0] sm:$0xff]
    %v6539 = vld [vmem:[%s6513 + $0xc8] sm:$0xff]
    %v6540 = vld [vmem:[%s6513 + $0xd0] sm:$0xff]
    %v6541 = vld [vmem:[%s6513 + $0xd8] sm:$0xff]
    %v6542 = vld [vmem:[%s6513 + $0xe0] sm:$0xff]
    %v6543 = vld [vmem:[%s6513 + $0xe8] sm:$0xff]
    %v6544 = vld [vmem:[%s6513 + $0xf0] sm:$0xff]
    %v6545 = vld [vmem:[%s6513 + $0xf8] sm:$0xff]
    %v6546 = vrot.slane %v4808, 7
    %v6547 = vrot.slane %v4809, 6
    %v6548 = vsel %vm4811, %v6547, %v6546
    %v6549 = vpack.c.b16 %v6548, %v6548
    %v6583 = vunpack.c.l.b16 %v6514
    %v6584 = vunpack.c.h.b16 %v6514
    %v6585 = vunpack.c.l.b16 %v6515
    %v6586 = vunpack.c.h.b16 %v6515
    %v6587 = vunpack.c.l.b16 %v6516
    %v6588 = vunpack.c.h.b16 %v6516
    %v6589 = vunpack.c.l.b16 %v6517
    %v6590 = vunpack.c.h.b16 %v6517
    %v6591 = vunpack.c.l.b16 %v6518
    %v6592 = vunpack.c.h.b16 %v6518
    %v6593 = vunpack.c.l.b16 %v6519
    %v6594 = vunpack.c.h.b16 %v6519
    %v6595 = vunpack.c.l.b16 %v6520
    %v6596 = vunpack.c.h.b16 %v6520
    %v6597 = vunpack.c.l.b16 %v6521
    %v6598 = vunpack.c.h.b16 %v6521
    %v6599 = vunpack.c.l.b16 %v6522
    %v6600 = vunpack.c.h.b16 %v6522
    %v6601 = vunpack.c.l.b16 %v6523
    %v6602 = vunpack.c.h.b16 %v6523
    %v6603 = vunpack.c.l.b16 %v6524
    %v6604 = vunpack.c.h.b16 %v6524
    %v6605 = vunpack.c.l.b16 %v6525
    %v6606 = vunpack.c.h.b16 %v6525
    %v6607 = vunpack.c.l.b16 %v6526
    %v6608 = vunpack.c.h.b16 %v6526
    %v6609 = vunpack.c.l.b16 %v6527
    %v6610 = vunpack.c.h.b16 %v6527
    %v6611 = vunpack.c.l.b16 %v6528
    %v6612 = vunpack.c.h.b16 %v6528
    %v6613 = vunpack.c.l.b16 %v6529
    %v6614 = vunpack.c.h.b16 %v6529
    %v6615 = vunpack.c.l.b16 %v6530
    %v6616 = vunpack.c.h.b16 %v6530
    %v6617 = vunpack.c.l.b16 %v6531
    %v6618 = vunpack.c.h.b16 %v6531
    %v6619 = vunpack.c.l.b16 %v6532
    %v6620 = vunpack.c.h.b16 %v6532
    %v6621 = vunpack.c.l.b16 %v6533
    %v6622 = vunpack.c.h.b16 %v6533
    %v6623 = vunpack.c.l.b16 %v6534
    %v6624 = vunpack.c.h.b16 %v6534
    %v6625 = vunpack.c.l.b16 %v6535
    %v6626 = vunpack.c.h.b16 %v6535
    %v6627 = vunpack.c.l.b16 %v6536
    %v6628 = vunpack.c.h.b16 %v6536
    %v6629 = vunpack.c.l.b16 %v6537
    %v6630 = vunpack.c.h.b16 %v6537
    %v6631 = vunpack.c.l.b16 %v6538
    %v6632 = vunpack.c.h.b16 %v6538
    %v6633 = vunpack.c.l.b16 %v6539
    %v6634 = vunpack.c.h.b16 %v6539
    %v6635 = vunpack.c.l.b16 %v6540
    %v6636 = vunpack.c.h.b16 %v6540
    %v6637 = vunpack.c.l.b16 %v6541
    %v6638 = vunpack.c.h.b16 %v6541
    %v6639 = vunpack.c.l.b16 %v6542
    %v6640 = vunpack.c.h.b16 %v6542
    %v6641 = vunpack.c.l.b16 %v6543
    %v6642 = vunpack.c.h.b16 %v6543
    %v6643 = vunpack.c.l.b16 %v6544
    %v6644 = vunpack.c.h.b16 %v6544
    %v6645 = vunpack.c.l.b16 %v6545
    %v6646 = vunpack.c.h.b16 %v6545
    %v6647 = vpack.c.b16 %v6587, %v6583
    %v6648 = vpack.c.b16 %v6588, %v6584
    %v6649 = vpack.c.b16 %v6589, %v6585
    %v6650 = vpack.c.b16 %v6590, %v6586
    %v6651 = vpack.c.b16 %v6595, %v6591
    %v6652 = vpack.c.b16 %v6596, %v6592
    %v6653 = vpack.c.b16 %v6597, %v6593
    %v6654 = vpack.c.b16 %v6598, %v6594
    %v6655 = vpack.c.b16 %v6603, %v6599
    %v6656 = vpack.c.b16 %v6604, %v6600
    %v6657 = vpack.c.b16 %v6605, %v6601
    %v6658 = vpack.c.b16 %v6606, %v6602
    %v6659 = vpack.c.b16 %v6611, %v6607
    %v6660 = vpack.c.b16 %v6612, %v6608
    %v6661 = vpack.c.b16 %v6613, %v6609
    %v6662 = vpack.c.b16 %v6614, %v6610
    %v6663 = vpack.c.b16 %v6619, %v6615
    %v6664 = vpack.c.b16 %v6620, %v6616
    %v6665 = vpack.c.b16 %v6621, %v6617
    %v6666 = vpack.c.b16 %v6622, %v6618
    %v6667 = vpack.c.b16 %v6627, %v6623
    %v6668 = vpack.c.b16 %v6628, %v6624
    %v6669 = vpack.c.b16 %v6629, %v6625
    %v6670 = vpack.c.b16 %v6630, %v6626
    %v6671 = vpack.c.b16 %v6635, %v6631
    %v6672 = vpack.c.b16 %v6636, %v6632
    %v6673 = vpack.c.b16 %v6637, %v6633
    %v6674 = vpack.c.b16 %v6638, %v6634
    %v6675 = vpack.c.b16 %v6643, %v6639
    %v6676 = vpack.c.b16 %v6644, %v6640
    %v6677 = vpack.c.b16 %v6645, %v6641
    %v6678 = vpack.c.b16 %v6646, %v6642
    %6711 = vmatpush.bf16.msra.mxu0 %v6675
    %6712 = vmatpush.bf16.msra.mxu0 %v6671
    %6713 = vmatpush.bf16.msra.mxu0 %v6667
    %6714 = vmatpush.bf16.msra.mxu0 %v6663
    %6715 = vmatpush.bf16.msra.mxu0 %v6659
    %6716 = vmatpush.bf16.msra.mxu0 %v6655
    %6717 = vmatpush.bf16.msra.mxu0 %v6651
    %6718 = vmatpush.bf16.msra.mxu0 %v6647
    %6719 = vmatmul.bf16.gmra.mxu0 %v6549
    %v6720 = vpop.f32.mrf.mxu0
    %v6721 = vadd.f32 0.0, %v6720
    %v6722 = vpop.f32.mrf.mxu0
    %6723 = vdwg.mxu0
    %6724 = vmatpush.bf16.msra.mxu0 %v6676
    %6725 = vmatpush.bf16.msra.mxu0 %v6672
    %6726 = vmatpush.bf16.msra.mxu0 %v6668
    %6727 = vmatpush.bf16.msra.mxu0 %v6664
    %6728 = vmatpush.bf16.msra.mxu0 %v6660
    %6729 = vmatpush.bf16.msra.mxu0 %v6656
    %6730 = vmatpush.bf16.msra.mxu0 %v6652
    %6731 = vmatpush.bf16.msra.mxu0 %v6648
    %6732 = vmatmul.bf16.gmra.mxu0 %v6549
    %v6733 = vpop.f32.mrf.mxu0
    %v6734 = vadd.f32 0.0, %v6733
    %v6735 = vpop.f32.mrf.mxu0
    %6736 = vdwg.mxu0
    %6737 = vmatpush.bf16.msra.mxu0 %v6677
    %6738 = vmatpush.bf16.msra.mxu0 %v6673
    %6739 = vmatpush.bf16.msra.mxu0 %v6669
    %6740 = vmatpush.bf16.msra.mxu0 %v6665
    %6741 = vmatpush.bf16.msra.mxu0 %v6661
    %6742 = vmatpush.bf16.msra.mxu0 %v6657
    %6743 = vmatpush.bf16.msra.mxu0 %v6653
    %6744 = vmatpush.bf16.msra.mxu0 %v6649
    %6745 = vmatmul.bf16.gmra.mxu0 %v6549
    %v6746 = vpop.f32.mrf.mxu0
    %v6747 = vadd.f32 0.0, %v6746
    %v6748 = vpop.f32.mrf.mxu0
    %6749 = vdwg.mxu0
    %6750 = vmatpush.bf16.msra.mxu0 %v6678
    %6751 = vmatpush.bf16.msra.mxu0 %v6674
    %6752 = vmatpush.bf16.msra.mxu0 %v6670
    %6753 = vmatpush.bf16.msra.mxu0 %v6666
    %6754 = vmatpush.bf16.msra.mxu0 %v6662
    %6755 = vmatpush.bf16.msra.mxu0 %v6658
    %6756 = vmatpush.bf16.msra.mxu0 %v6654
    %6757 = vmatpush.bf16.msra.mxu0 %v6650
    %6758 = vmatmul.bf16.gmra.mxu0 %v6549
    %v6759 = vpop.f32.mrf.mxu0
    %v6760 = vadd.f32 0.0, %v6759
    %v6761 = vpop.f32.mrf.mxu0
    %6762 = vdwg.mxu0
    %v6763 = vadd.f32 %v6509, %v6721
    %v6764 = vadd.f32 %v6510, %v6734
    %v6765 = vadd.f32 %v6511, %v6747
    %v6766 = vadd.f32 %v6512, %v6760
    %s6767 = scalar_lea.vmem [#allocation2], 2048
    %v6768 = vld [vmem:[%s6767] sm:$0xff]
    %v6769 = vld [vmem:[%s6767 + $0x8] sm:$0xff]
    %v6770 = vld [vmem:[%s6767 + $0x10] sm:$0xff]
    %v6771 = vld [vmem:[%s6767 + $0x18] sm:$0xff]
    %v6772 = vld [vmem:[%s6767 + $0x20] sm:$0xff]
    %v6773 = vld [vmem:[%s6767 + $0x28] sm:$0xff]
    %v6774 = vld [vmem:[%s6767 + $0x30] sm:$0xff]
    %v6775 = vld [vmem:[%s6767 + $0x38] sm:$0xff]
    %v6776 = vld [vmem:[%s6767 + $0x40] sm:$0xff]
    %v6777 = vld [vmem:[%s6767 + $0x48] sm:$0xff]
    %v6778 = vld [vmem:[%s6767 + $0x50] sm:$0xff]
    %v6779 = vld [vmem:[%s6767 + $0x58] sm:$0xff]
    %v6780 = vld [vmem:[%s6767 + $0x60] sm:$0xff]
    %v6781 = vld [vmem:[%s6767 + $0x68] sm:$0xff]
    %v6782 = vld [vmem:[%s6767 + $0x70] sm:$0xff]
    %v6783 = vld [vmem:[%s6767 + $0x78] sm:$0xff]
    %v6784 = vld [vmem:[%s6767 + $0x80] sm:$0xff]
    %v6785 = vld [vmem:[%s6767 + $0x88] sm:$0xff]
    %v6786 = vld [vmem:[%s6767 + $0x90] sm:$0xff]
    %v6787 = vld [vmem:[%s6767 + $0x98] sm:$0xff]
    %v6788 = vld [vmem:[%s6767 + $0xa0] sm:$0xff]
    %v6789 = vld [vmem:[%s6767 + $0xa8] sm:$0xff]
    %v6790 = vld [vmem:[%s6767 + $0xb0] sm:$0xff]
    %v6791 = vld [vmem:[%s6767 + $0xb8] sm:$0xff]
    %v6792 = vld [vmem:[%s6767 + $0xc0] sm:$0xff]
    %v6793 = vld [vmem:[%s6767 + $0xc8] sm:$0xff]
    %v6794 = vld [vmem:[%s6767 + $0xd0] sm:$0xff]
    %v6795 = vld [vmem:[%s6767 + $0xd8] sm:$0xff]
    %v6796 = vld [vmem:[%s6767 + $0xe0] sm:$0xff]
    %v6797 = vld [vmem:[%s6767 + $0xe8] sm:$0xff]
    %v6798 = vld [vmem:[%s6767 + $0xf0] sm:$0xff]
    %v6799 = vld [vmem:[%s6767 + $0xf8] sm:$0xff]
    %v6802 = vunpack.c.l.b16 %v4734
    %v6803 = vunpack.c.l.b16 %v4736
    %v6804 = vpack.c.b16 %v6802, %v6802
    %v6805 = vpack.c.b16 %v6803, %v6803
    %v6806 = vunpack.c.l.b16 %v6804
    %v6807 = vunpack.c.l.b16 %v6805
    %v6808 = vrot.slane %v6807, 7
    %v6809 = vsel %vm4811, %v6808, %v6806
    %v6810 = vpack.c.b16 %v6809, %v6809
    %v6844 = vunpack.c.l.b16 %v6768
    %v6845 = vunpack.c.h.b16 %v6768
    %v6846 = vunpack.c.l.b16 %v6769
    %v6847 = vunpack.c.h.b16 %v6769
    %v6848 = vunpack.c.l.b16 %v6770
    %v6849 = vunpack.c.h.b16 %v6770
    %v6850 = vunpack.c.l.b16 %v6771
    %v6851 = vunpack.c.h.b16 %v6771
    %v6852 = vunpack.c.l.b16 %v6772
    %v6853 = vunpack.c.h.b16 %v6772
    %v6854 = vunpack.c.l.b16 %v6773
    %v6855 = vunpack.c.h.b16 %v6773
    %v6856 = vunpack.c.l.b16 %v6774
    %v6857 = vunpack.c.h.b16 %v6774
    %v6858 = vunpack.c.l.b16 %v6775
    %v6859 = vunpack.c.h.b16 %v6775
    %v6860 = vunpack.c.l.b16 %v6776
    %v6861 = vunpack.c.h.b16 %v6776
    %v6862 = vunpack.c.l.b16 %v6777
    %v6863 = vunpack.c.h.b16 %v6777
    %v6864 = vunpack.c.l.b16 %v6778
    %v6865 = vunpack.c.h.b16 %v6778
    %v6866 = vunpack.c.l.b16 %v6779
    %v6867 = vunpack.c.h.b16 %v6779
    %v6868 = vunpack.c.l.b16 %v6780
    %v6869 = vunpack.c.h.b16 %v6780
    %v6870 = vunpack.c.l.b16 %v6781
    %v6871 = vunpack.c.h.b16 %v6781
    %v6872 = vunpack.c.l.b16 %v6782
    %v6873 = vunpack.c.h.b16 %v6782
    %v6874 = vunpack.c.l.b16 %v6783
    %v6875 = vunpack.c.h.b16 %v6783
    %v6876 = vunpack.c.l.b16 %v6784
    %v6877 = vunpack.c.h.b16 %v6784
    %v6878 = vunpack.c.l.b16 %v6785
    %v6879 = vunpack.c.h.b16 %v6785
    %v6880 = vunpack.c.l.b16 %v6786
    %v6881 = vunpack.c.h.b16 %v6786
    %v6882 = vunpack.c.l.b16 %v6787
    %v6883 = vunpack.c.h.b16 %v6787
    %v6884 = vunpack.c.l.b16 %v6788
    %v6885 = vunpack.c.h.b16 %v6788
    %v6886 = vunpack.c.l.b16 %v6789
    %v6887 = vunpack.c.h.b16 %v6789
    %v6888 = vunpack.c.l.b16 %v6790
    %v6889 = vunpack.c.h.b16 %v6790
    %v6890 = vunpack.c.l.b16 %v6791
    %v6891 = vunpack.c.h.b16 %v6791
    %v6892 = vunpack.c.l.b16 %v6792
    %v6893 = vunpack.c.h.b16 %v6792
    %v6894 = vunpack.c.l.b16 %v6793
    %v6895 = vunpack.c.h.b16 %v6793
    %v6896 = vunpack.c.l.b16 %v6794
    %v6897 = vunpack.c.h.b16 %v6794
    %v6898 = vunpack.c.l.b16 %v6795
    %v6899 = vunpack.c.h.b16 %v6795
    %v6900 = vunpack.c.l.b16 %v6796
    %v6901 = vunpack.c.h.b16 %v6796
    %v6902 = vunpack.c.l.b16 %v6797
    %v6903 = vunpack.c.h.b16 %v6797
    %v6904 = vunpack.c.l.b16 %v6798
    %v6905 = vunpack.c.h.b16 %v6798
    %v6906 = vunpack.c.l.b16 %v6799
    %v6907 = vunpack.c.h.b16 %v6799
    %v6908 = vpack.c.b16 %v6848, %v6844
    %v6909 = vpack.c.b16 %v6849, %v6845
    %v6910 = vpack.c.b16 %v6850, %v6846
    %v6911 = vpack.c.b16 %v6851, %v6847
    %v6912 = vpack.c.b16 %v6856, %v6852
    %v6913 = vpack.c.b16 %v6857, %v6853
    %v6914 = vpack.c.b16 %v6858, %v6854
    %v6915 = vpack.c.b16 %v6859, %v6855
    %v6916 = vpack.c.b16 %v6864, %v6860
    %v6917 = vpack.c.b16 %v6865, %v6861
    %v6918 = vpack.c.b16 %v6866, %v6862
    %v6919 = vpack.c.b16 %v6867, %v6863
    %v6920 = vpack.c.b16 %v6872, %v6868
    %v6921 = vpack.c.b16 %v6873, %v6869
    %v6922 = vpack.c.b16 %v6874, %v6870
    %v6923 = vpack.c.b16 %v6875, %v6871
    %v6924 = vpack.c.b16 %v6880, %v6876
    %v6925 = vpack.c.b16 %v6881, %v6877
    %v6926 = vpack.c.b16 %v6882, %v6878
    %v6927 = vpack.c.b16 %v6883, %v6879
    %v6928 = vpack.c.b16 %v6888, %v6884
    %v6929 = vpack.c.b16 %v6889, %v6885
    %v6930 = vpack.c.b16 %v6890, %v6886
    %v6931 = vpack.c.b16 %v6891, %v6887
    %v6932 = vpack.c.b16 %v6896, %v6892
    %v6933 = vpack.c.b16 %v6897, %v6893
    %v6934 = vpack.c.b16 %v6898, %v6894
    %v6935 = vpack.c.b16 %v6899, %v6895
    %v6936 = vpack.c.b16 %v6904, %v6900
    %v6937 = vpack.c.b16 %v6905, %v6901
    %v6938 = vpack.c.b16 %v6906, %v6902
    %v6939 = vpack.c.b16 %v6907, %v6903
    %6972 = vmatpush.bf16.msra.mxu0 %v6936
    %6973 = vmatpush.bf16.msra.mxu0 %v6932
    %6974 = vmatpush.bf16.msra.mxu0 %v6928
    %6975 = vmatpush.bf16.msra.mxu0 %v6924
    %6976 = vmatpush.bf16.msra.mxu0 %v6920
    %6977 = vmatpush.bf16.msra.mxu0 %v6916
    %6978 = vmatpush.bf16.msra.mxu0 %v6912
    %6979 = vmatpush.bf16.msra.mxu0 %v6908
    %6980 = vmatmul.bf16.gmra.mxu0 %v6810
    %v6981 = vpop.f32.mrf.mxu0
    %v6982 = vadd.f32 0.0, %v6981
    %v6983 = vpop.f32.mrf.mxu0
    %6984 = vdwg.mxu0
    %6985 = vmatpush.bf16.msra.mxu0 %v6937
    %6986 = vmatpush.bf16.msra.mxu0 %v6933
    %6987 = vmatpush.bf16.msra.mxu0 %v6929
    %6988 = vmatpush.bf16.msra.mxu0 %v6925
    %6989 = vmatpush.bf16.msra.mxu0 %v6921
    %6990 = vmatpush.bf16.msra.mxu0 %v6917
    %6991 = vmatpush.bf16.msra.mxu0 %v6913
    %6992 = vmatpush.bf16.msra.mxu0 %v6909
    %6993 = vmatmul.bf16.gmra.mxu0 %v6810
    %v6994 = vpop.f32.mrf.mxu0
    %v6995 = vadd.f32 0.0, %v6994
    %v6996 = vpop.f32.mrf.mxu0
    %6997 = vdwg.mxu0
    %6998 = vmatpush.bf16.msra.mxu0 %v6938
    %6999 = vmatpush.bf16.msra.mxu0 %v6934
    %7000 = vmatpush.bf16.msra.mxu0 %v6930
    %7001 = vmatpush.bf16.msra.mxu0 %v6926
    %7002 = vmatpush.bf16.msra.mxu0 %v6922
    %7003 = vmatpush.bf16.msra.mxu0 %v6918
    %7004 = vmatpush.bf16.msra.mxu0 %v6914
    %7005 = vmatpush.bf16.msra.mxu0 %v6910
    %7006 = vmatmul.bf16.gmra.mxu0 %v6810
    %v7007 = vpop.f32.mrf.mxu0
    %v7008 = vadd.f32 0.0, %v7007
    %v7009 = vpop.f32.mrf.mxu0
    %7010 = vdwg.mxu0
    %7011 = vmatpush.bf16.msra.mxu0 %v6939
    %7012 = vmatpush.bf16.msra.mxu0 %v6935
    %7013 = vmatpush.bf16.msra.mxu0 %v6931
    %7014 = vmatpush.bf16.msra.mxu0 %v6927
    %7015 = vmatpush.bf16.msra.mxu0 %v6923
    %7016 = vmatpush.bf16.msra.mxu0 %v6919
    %7017 = vmatpush.bf16.msra.mxu0 %v6915
    %7018 = vmatpush.bf16.msra.mxu0 %v6911
    %7019 = vmatmul.bf16.gmra.mxu0 %v6810
    %v7020 = vpop.f32.mrf.mxu0
    %v7021 = vadd.f32 0.0, %v7020
    %v7022 = vpop.f32.mrf.mxu0
    %7023 = vdwg.mxu0
    %v7024 = vadd.f32 %v6763, %v6982
    %v7025 = vadd.f32 %v6764, %v6995
    %v7026 = vadd.f32 %v6765, %v7008
    %v7027 = vadd.f32 %v6766, %v7021
    %s7028 = scalar_lea.vmem [#allocation2], 2304
    %v7029 = vld [vmem:[%s7028] sm:$0xff]
    %v7030 = vld [vmem:[%s7028 + $0x8] sm:$0xff]
    %v7031 = vld [vmem:[%s7028 + $0x10] sm:$0xff]
    %v7032 = vld [vmem:[%s7028 + $0x18] sm:$0xff]
    %v7033 = vld [vmem:[%s7028 + $0x20] sm:$0xff]
    %v7034 = vld [vmem:[%s7028 + $0x28] sm:$0xff]
    %v7035 = vld [vmem:[%s7028 + $0x30] sm:$0xff]
    %v7036 = vld [vmem:[%s7028 + $0x38] sm:$0xff]
    %v7037 = vld [vmem:[%s7028 + $0x40] sm:$0xff]
    %v7038 = vld [vmem:[%s7028 + $0x48] sm:$0xff]
    %v7039 = vld [vmem:[%s7028 + $0x50] sm:$0xff]
    %v7040 = vld [vmem:[%s7028 + $0x58] sm:$0xff]
    %v7041 = vld [vmem:[%s7028 + $0x60] sm:$0xff]
    %v7042 = vld [vmem:[%s7028 + $0x68] sm:$0xff]
    %v7043 = vld [vmem:[%s7028 + $0x70] sm:$0xff]
    %v7044 = vld [vmem:[%s7028 + $0x78] sm:$0xff]
    %v7045 = vld [vmem:[%s7028 + $0x80] sm:$0xff]
    %v7046 = vld [vmem:[%s7028 + $0x88] sm:$0xff]
    %v7047 = vld [vmem:[%s7028 + $0x90] sm:$0xff]
    %v7048 = vld [vmem:[%s7028 + $0x98] sm:$0xff]
    %v7049 = vld [vmem:[%s7028 + $0xa0] sm:$0xff]
    %v7050 = vld [vmem:[%s7028 + $0xa8] sm:$0xff]
    %v7051 = vld [vmem:[%s7028 + $0xb0] sm:$0xff]
    %v7052 = vld [vmem:[%s7028 + $0xb8] sm:$0xff]
    %v7053 = vld [vmem:[%s7028 + $0xc0] sm:$0xff]
    %v7054 = vld [vmem:[%s7028 + $0xc8] sm:$0xff]
    %v7055 = vld [vmem:[%s7028 + $0xd0] sm:$0xff]
    %v7056 = vld [vmem:[%s7028 + $0xd8] sm:$0xff]
    %v7057 = vld [vmem:[%s7028 + $0xe0] sm:$0xff]
    %v7058 = vld [vmem:[%s7028 + $0xe8] sm:$0xff]
    %v7059 = vld [vmem:[%s7028 + $0xf0] sm:$0xff]
    %v7060 = vld [vmem:[%s7028 + $0xf8] sm:$0xff]
    %v7061 = vrot.slane %v6806, 1
    %v7062 = vsel %vm4811, %v6807, %v7061
    %v7063 = vpack.c.b16 %v7062, %v7062
    %v7097 = vunpack.c.l.b16 %v7029
    %v7098 = vunpack.c.h.b16 %v7029
    %v7099 = vunpack.c.l.b16 %v7030
    %v7100 = vunpack.c.h.b16 %v7030
    %v7101 = vunpack.c.l.b16 %v7031
    %v7102 = vunpack.c.h.b16 %v7031
    %v7103 = vunpack.c.l.b16 %v7032
    %v7104 = vunpack.c.h.b16 %v7032
    %v7105 = vunpack.c.l.b16 %v7033
    %v7106 = vunpack.c.h.b16 %v7033
    %v7107 = vunpack.c.l.b16 %v7034
    %v7108 = vunpack.c.h.b16 %v7034
    %v7109 = vunpack.c.l.b16 %v7035
    %v7110 = vunpack.c.h.b16 %v7035
    %v7111 = vunpack.c.l.b16 %v7036
    %v7112 = vunpack.c.h.b16 %v7036
    %v7113 = vunpack.c.l.b16 %v7037
    %v7114 = vunpack.c.h.b16 %v7037
    %v7115 = vunpack.c.l.b16 %v7038
    %v7116 = vunpack.c.h.b16 %v7038
    %v7117 = vunpack.c.l.b16 %v7039
    %v7118 = vunpack.c.h.b16 %v7039
    %v7119 = vunpack.c.l.b16 %v7040
    %v7120 = vunpack.c.h.b16 %v7040
    %v7121 = vunpack.c.l.b16 %v7041
    %v7122 = vunpack.c.h.b16 %v7041
    %v7123 = vunpack.c.l.b16 %v7042
    %v7124 = vunpack.c.h.b16 %v7042
    %v7125 = vunpack.c.l.b16 %v7043
    %v7126 = vunpack.c.h.b16 %v7043
    %v7127 = vunpack.c.l.b16 %v7044
    %v7128 = vunpack.c.h.b16 %v7044
    %v7129 = vunpack.c.l.b16 %v7045
    %v7130 = vunpack.c.h.b16 %v7045
    %v7131 = vunpack.c.l.b16 %v7046
    %v7132 = vunpack.c.h.b16 %v7046
    %v7133 = vunpack.c.l.b16 %v7047
    %v7134 = vunpack.c.h.b16 %v7047
    %v7135 = vunpack.c.l.b16 %v7048
    %v7136 = vunpack.c.h.b16 %v7048
    %v7137 = vunpack.c.l.b16 %v7049
    %v7138 = vunpack.c.h.b16 %v7049
    %v7139 = vunpack.c.l.b16 %v7050
    %v7140 = vunpack.c.h.b16 %v7050
    %v7141 = vunpack.c.l.b16 %v7051
    %v7142 = vunpack.c.h.b16 %v7051
    %v7143 = vunpack.c.l.b16 %v7052
    %v7144 = vunpack.c.h.b16 %v7052
    %v7145 = vunpack.c.l.b16 %v7053
    %v7146 = vunpack.c.h.b16 %v7053
    %v7147 = vunpack.c.l.b16 %v7054
    %v7148 = vunpack.c.h.b16 %v7054
    %v7149 = vunpack.c.l.b16 %v7055
    %v7150 = vunpack.c.h.b16 %v7055
    %v7151 = vunpack.c.l.b16 %v7056
    %v7152 = vunpack.c.h.b16 %v7056
    %v7153 = vunpack.c.l.b16 %v7057
    %v7154 = vunpack.c.h.b16 %v7057
    %v7155 = vunpack.c.l.b16 %v7058
    %v7156 = vunpack.c.h.b16 %v7058
    %v7157 = vunpack.c.l.b16 %v7059
    %v7158 = vunpack.c.h.b16 %v7059
    %v7159 = vunpack.c.l.b16 %v7060
    %v7160 = vunpack.c.h.b16 %v7060
    %v7161 = vpack.c.b16 %v7101, %v7097
    %v7162 = vpack.c.b16 %v7102, %v7098
    %v7163 = vpack.c.b16 %v7103, %v7099
    %v7164 = vpack.c.b16 %v7104, %v7100
    %v7165 = vpack.c.b16 %v7109, %v7105
    %v7166 = vpack.c.b16 %v7110, %v7106
    %v7167 = vpack.c.b16 %v7111, %v7107
    %v7168 = vpack.c.b16 %v7112, %v7108
    %v7169 = vpack.c.b16 %v7117, %v7113
    %v7170 = vpack.c.b16 %v7118, %v7114
    %v7171 = vpack.c.b16 %v7119, %v7115
    %v7172 = vpack.c.b16 %v7120, %v7116
    %v7173 = vpack.c.b16 %v7125, %v7121
    %v7174 = vpack.c.b16 %v7126, %v7122
    %v7175 = vpack.c.b16 %v7127, %v7123
    %v7176 = vpack.c.b16 %v7128, %v7124
    %v7177 = vpack.c.b16 %v7133, %v7129
    %v7178 = vpack.c.b16 %v7134, %v7130
    %v7179 = vpack.c.b16 %v7135, %v7131
    %v7180 = vpack.c.b16 %v7136, %v7132
    %v7181 = vpack.c.b16 %v7141, %v7137
    %v7182 = vpack.c.b16 %v7142, %v7138
    %v7183 = vpack.c.b16 %v7143, %v7139
    %v7184 = vpack.c.b16 %v7144, %v7140
    %v7185 = vpack.c.b16 %v7149, %v7145
    %v7186 = vpack.c.b16 %v7150, %v7146
    %v7187 = vpack.c.b16 %v7151, %v7147
    %v7188 = vpack.c.b16 %v7152, %v7148
    %v7189 = vpack.c.b16 %v7157, %v7153
    %v7190 = vpack.c.b16 %v7158, %v7154
    %v7191 = vpack.c.b16 %v7159, %v7155
    %v7192 = vpack.c.b16 %v7160, %v7156
    %7225 = vmatpush.bf16.msra.mxu0 %v7189
    %7226 = vmatpush.bf16.msra.mxu0 %v7185
    %7227 = vmatpush.bf16.msra.mxu0 %v7181
    %7228 = vmatpush.bf16.msra.mxu0 %v7177
    %7229 = vmatpush.bf16.msra.mxu0 %v7173
    %7230 = vmatpush.bf16.msra.mxu0 %v7169
    %7231 = vmatpush.bf16.msra.mxu0 %v7165
    %7232 = vmatpush.bf16.msra.mxu0 %v7161
    %7233 = vmatmul.bf16.gmra.mxu0 %v7063
    %v7234 = vpop.f32.mrf.mxu0
    %v7235 = vadd.f32 0.0, %v7234
    %v7236 = vpop.f32.mrf.mxu0
    %7237 = vdwg.mxu0
    %7238 = vmatpush.bf16.msra.mxu0 %v7190
    %7239 = vmatpush.bf16.msra.mxu0 %v7186
    %7240 = vmatpush.bf16.msra.mxu0 %v7182
    %7241 = vmatpush.bf16.msra.mxu0 %v7178
    %7242 = vmatpush.bf16.msra.mxu0 %v7174
    %7243 = vmatpush.bf16.msra.mxu0 %v7170
    %7244 = vmatpush.bf16.msra.mxu0 %v7166
    %7245 = vmatpush.bf16.msra.mxu0 %v7162
    %7246 = vmatmul.bf16.gmra.mxu0 %v7063
    %v7247 = vpop.f32.mrf.mxu0
    %v7248 = vadd.f32 0.0, %v7247
    %v7249 = vpop.f32.mrf.mxu0
    %7250 = vdwg.mxu0
    %7251 = vmatpush.bf16.msra.mxu0 %v7191
    %7252 = vmatpush.bf16.msra.mxu0 %v7187
    %7253 = vmatpush.bf16.msra.mxu0 %v7183
    %7254 = vmatpush.bf16.msra.mxu0 %v7179
    %7255 = vmatpush.bf16.msra.mxu0 %v7175
    %7256 = vmatpush.bf16.msra.mxu0 %v7171
    %7257 = vmatpush.bf16.msra.mxu0 %v7167
    %7258 = vmatpush.bf16.msra.mxu0 %v7163
    %7259 = vmatmul.bf16.gmra.mxu0 %v7063
    %v7260 = vpop.f32.mrf.mxu0
    %v7261 = vadd.f32 0.0, %v7260
    %v7262 = vpop.f32.mrf.mxu0
    %7263 = vdwg.mxu0
    %7264 = vmatpush.bf16.msra.mxu0 %v7192
    %7265 = vmatpush.bf16.msra.mxu0 %v7188
    %7266 = vmatpush.bf16.msra.mxu0 %v7184
    %7267 = vmatpush.bf16.msra.mxu0 %v7180
    %7268 = vmatpush.bf16.msra.mxu0 %v7176
    %7269 = vmatpush.bf16.msra.mxu0 %v7172
    %7270 = vmatpush.bf16.msra.mxu0 %v7168
    %7271 = vmatpush.bf16.msra.mxu0 %v7164
    %7272 = vmatmul.bf16.gmra.mxu0 %v7063
    %v7273 = vpop.f32.mrf.mxu0
    %v7274 = vadd.f32 0.0, %v7273
    %v7275 = vpop.f32.mrf.mxu0
    %7276 = vdwg.mxu0
    %v7277 = vadd.f32 %v7024, %v7235
    %v7278 = vadd.f32 %v7025, %v7248
    %v7279 = vadd.f32 %v7026, %v7261
    %v7280 = vadd.f32 %v7027, %v7274
    %s7281 = scalar_lea.vmem [#allocation2], 2560
    %v7282 = vld [vmem:[%s7281] sm:$0xff]
    %v7283 = vld [vmem:[%s7281 + $0x8] sm:$0xff]
    %v7284 = vld [vmem:[%s7281 + $0x10] sm:$0xff]
    %v7285 = vld [vmem:[%s7281 + $0x18] sm:$0xff]
    %v7286 = vld [vmem:[%s7281 + $0x20] sm:$0xff]
    %v7287 = vld [vmem:[%s7281 + $0x28] sm:$0xff]
    %v7288 = vld [vmem:[%s7281 + $0x30] sm:$0xff]
    %v7289 = vld [vmem:[%s7281 + $0x38] sm:$0xff]
    %v7290 = vld [vmem:[%s7281 + $0x40] sm:$0xff]
    %v7291 = vld [vmem:[%s7281 + $0x48] sm:$0xff]
    %v7292 = vld [vmem:[%s7281 + $0x50] sm:$0xff]
    %v7293 = vld [vmem:[%s7281 + $0x58] sm:$0xff]
    %v7294 = vld [vmem:[%s7281 + $0x60] sm:$0xff]
    %v7295 = vld [vmem:[%s7281 + $0x68] sm:$0xff]
    %v7296 = vld [vmem:[%s7281 + $0x70] sm:$0xff]
    %v7297 = vld [vmem:[%s7281 + $0x78] sm:$0xff]
    %v7298 = vld [vmem:[%s7281 + $0x80] sm:$0xff]
    %v7299 = vld [vmem:[%s7281 + $0x88] sm:$0xff]
    %v7300 = vld [vmem:[%s7281 + $0x90] sm:$0xff]
    %v7301 = vld [vmem:[%s7281 + $0x98] sm:$0xff]
    %v7302 = vld [vmem:[%s7281 + $0xa0] sm:$0xff]
    %v7303 = vld [vmem:[%s7281 + $0xa8] sm:$0xff]
    %v7304 = vld [vmem:[%s7281 + $0xb0] sm:$0xff]
    %v7305 = vld [vmem:[%s7281 + $0xb8] sm:$0xff]
    %v7306 = vld [vmem:[%s7281 + $0xc0] sm:$0xff]
    %v7307 = vld [vmem:[%s7281 + $0xc8] sm:$0xff]
    %v7308 = vld [vmem:[%s7281 + $0xd0] sm:$0xff]
    %v7309 = vld [vmem:[%s7281 + $0xd8] sm:$0xff]
    %v7310 = vld [vmem:[%s7281 + $0xe0] sm:$0xff]
    %v7311 = vld [vmem:[%s7281 + $0xe8] sm:$0xff]
    %v7312 = vld [vmem:[%s7281 + $0xf0] sm:$0xff]
    %v7313 = vld [vmem:[%s7281 + $0xf8] sm:$0xff]
    %v7314 = vrot.slane %v6806, 2
    %v7315 = vrot.slane %v6807, 1
    %v7316 = vsel %vm4811, %v7315, %v7314
    %v7317 = vpack.c.b16 %v7316, %v7316
    %v7351 = vunpack.c.l.b16 %v7282
    %v7352 = vunpack.c.h.b16 %v7282
    %v7353 = vunpack.c.l.b16 %v7283
    %v7354 = vunpack.c.h.b16 %v7283
    %v7355 = vunpack.c.l.b16 %v7284
    %v7356 = vunpack.c.h.b16 %v7284
    %v7357 = vunpack.c.l.b16 %v7285
    %v7358 = vunpack.c.h.b16 %v7285
    %v7359 = vunpack.c.l.b16 %v7286
    %v7360 = vunpack.c.h.b16 %v7286
    %v7361 = vunpack.c.l.b16 %v7287
    %v7362 = vunpack.c.h.b16 %v7287
    %v7363 = vunpack.c.l.b16 %v7288
    %v7364 = vunpack.c.h.b16 %v7288
    %v7365 = vunpack.c.l.b16 %v7289
    %v7366 = vunpack.c.h.b16 %v7289
    %v7367 = vunpack.c.l.b16 %v7290
    %v7368 = vunpack.c.h.b16 %v7290
    %v7369 = vunpack.c.l.b16 %v7291
    %v7370 = vunpack.c.h.b16 %v7291
    %v7371 = vunpack.c.l.b16 %v7292
    %v7372 = vunpack.c.h.b16 %v7292
    %v7373 = vunpack.c.l.b16 %v7293
    %v7374 = vunpack.c.h.b16 %v7293
    %v7375 = vunpack.c.l.b16 %v7294
    %v7376 = vunpack.c.h.b16 %v7294
    %v7377 = vunpack.c.l.b16 %v7295
    %v7378 = vunpack.c.h.b16 %v7295
    %v7379 = vunpack.c.l.b16 %v7296
    %v7380 = vunpack.c.h.b16 %v7296
    %v7381 = vunpack.c.l.b16 %v7297
    %v7382 = vunpack.c.h.b16 %v7297
    %v7383 = vunpack.c.l.b16 %v7298
    %v7384 = vunpack.c.h.b16 %v7298
    %v7385 = vunpack.c.l.b16 %v7299
    %v7386 = vunpack.c.h.b16 %v7299
    %v7387 = vunpack.c.l.b16 %v7300
    %v7388 = vunpack.c.h.b16 %v7300
    %v7389 = vunpack.c.l.b16 %v7301
    %v7390 = vunpack.c.h.b16 %v7301
    %v7391 = vunpack.c.l.b16 %v7302
    %v7392 = vunpack.c.h.b16 %v7302
    %v7393 = vunpack.c.l.b16 %v7303
    %v7394 = vunpack.c.h.b16 %v7303
    %v7395 = vunpack.c.l.b16 %v7304
    %v7396 = vunpack.c.h.b16 %v7304
    %v7397 = vunpack.c.l.b16 %v7305
    %v7398 = vunpack.c.h.b16 %v7305
    %v7399 = vunpack.c.l.b16 %v7306
    %v7400 = vunpack.c.h.b16 %v7306
    %v7401 = vunpack.c.l.b16 %v7307
    %v7402 = vunpack.c.h.b16 %v7307
    %v7403 = vunpack.c.l.b16 %v7308
    %v7404 = vunpack.c.h.b16 %v7308
    %v7405 = vunpack.c.l.b16 %v7309
    %v7406 = vunpack.c.h.b16 %v7309
    %v7407 = vunpack.c.l.b16 %v7310
    %v7408 = vunpack.c.h.b16 %v7310
    %v7409 = vunpack.c.l.b16 %v7311
    %v7410 = vunpack.c.h.b16 %v7311
    %v7411 = vunpack.c.l.b16 %v7312
    %v7412 = vunpack.c.h.b16 %v7312
    %v7413 = vunpack.c.l.b16 %v7313
    %v7414 = vunpack.c.h.b16 %v7313
    %v7415 = vpack.c.b16 %v7355, %v7351
    %v7416 = vpack.c.b16 %v7356, %v7352
    %v7417 = vpack.c.b16 %v7357, %v7353
    %v7418 = vpack.c.b16 %v7358, %v7354
    %v7419 = vpack.c.b16 %v7363, %v7359
    %v7420 = vpack.c.b16 %v7364, %v7360
    %v7421 = vpack.c.b16 %v7365, %v7361
    %v7422 = vpack.c.b16 %v7366, %v7362
    %v7423 = vpack.c.b16 %v7371, %v7367
    %v7424 = vpack.c.b16 %v7372, %v7368
    %v7425 = vpack.c.b16 %v7373, %v7369
    %v7426 = vpack.c.b16 %v7374, %v7370
    %v7427 = vpack.c.b16 %v7379, %v7375
    %v7428 = vpack.c.b16 %v7380, %v7376
    %v7429 = vpack.c.b16 %v7381, %v7377
    %v7430 = vpack.c.b16 %v7382, %v7378
    %v7431 = vpack.c.b16 %v7387, %v7383
    %v7432 = vpack.c.b16 %v7388, %v7384
    %v7433 = vpack.c.b16 %v7389, %v7385
    %v7434 = vpack.c.b16 %v7390, %v7386
    %v7435 = vpack.c.b16 %v7395, %v7391
    %v7436 = vpack.c.b16 %v7396, %v7392
    %v7437 = vpack.c.b16 %v7397, %v7393
    %v7438 = vpack.c.b16 %v7398, %v7394
    %v7439 = vpack.c.b16 %v7403, %v7399
    %v7440 = vpack.c.b16 %v7404, %v7400
    %v7441 = vpack.c.b16 %v7405, %v7401
    %v7442 = vpack.c.b16 %v7406, %v7402
    %v7443 = vpack.c.b16 %v7411, %v7407
    %v7444 = vpack.c.b16 %v7412, %v7408
    %v7445 = vpack.c.b16 %v7413, %v7409
    %v7446 = vpack.c.b16 %v7414, %v7410
    %7479 = vmatpush.bf16.msra.mxu0 %v7443
    %7480 = vmatpush.bf16.msra.mxu0 %v7439
    %7481 = vmatpush.bf16.msra.mxu0 %v7435
    %7482 = vmatpush.bf16.msra.mxu0 %v7431
    %7483 = vmatpush.bf16.msra.mxu0 %v7427
    %7484 = vmatpush.bf16.msra.mxu0 %v7423
    %7485 = vmatpush.bf16.msra.mxu0 %v7419
    %7486 = vmatpush.bf16.msra.mxu0 %v7415
    %7487 = vmatmul.bf16.gmra.mxu0 %v7317
    %v7488 = vpop.f32.mrf.mxu0
    %v7489 = vadd.f32 0.0, %v7488
    %v7490 = vpop.f32.mrf.mxu0
    %7491 = vdwg.mxu0
    %7492 = vmatpush.bf16.msra.mxu0 %v7444
    %7493 = vmatpush.bf16.msra.mxu0 %v7440
    %7494 = vmatpush.bf16.msra.mxu0 %v7436
    %7495 = vmatpush.bf16.msra.mxu0 %v7432
    %7496 = vmatpush.bf16.msra.mxu0 %v7428
    %7497 = vmatpush.bf16.msra.mxu0 %v7424
    %7498 = vmatpush.bf16.msra.mxu0 %v7420
    %7499 = vmatpush.bf16.msra.mxu0 %v7416
    %7500 = vmatmul.bf16.gmra.mxu0 %v7317
    %v7501 = vpop.f32.mrf.mxu0
    %v7502 = vadd.f32 0.0, %v7501
    %v7503 = vpop.f32.mrf.mxu0
    %7504 = vdwg.mxu0
    %7505 = vmatpush.bf16.msra.mxu0 %v7445
    %7506 = vmatpush.bf16.msra.mxu0 %v7441
    %7507 = vmatpush.bf16.msra.mxu0 %v7437
    %7508 = vmatpush.bf16.msra.mxu0 %v7433
    %7509 = vmatpush.bf16.msra.mxu0 %v7429
    %7510 = vmatpush.bf16.msra.mxu0 %v7425
    %7511 = vmatpush.bf16.msra.mxu0 %v7421
    %7512 = vmatpush.bf16.msra.mxu0 %v7417
    %7513 = vmatmul.bf16.gmra.mxu0 %v7317
    %v7514 = vpop.f32.mrf.mxu0
    %v7515 = vadd.f32 0.0, %v7514
    %v7516 = vpop.f32.mrf.mxu0
    %7517 = vdwg.mxu0
    %7518 = vmatpush.bf16.msra.mxu0 %v7446
    %7519 = vmatpush.bf16.msra.mxu0 %v7442
    %7520 = vmatpush.bf16.msra.mxu0 %v7438
    %7521 = vmatpush.bf16.msra.mxu0 %v7434
    %7522 = vmatpush.bf16.msra.mxu0 %v7430
    %7523 = vmatpush.bf16.msra.mxu0 %v7426
    %7524 = vmatpush.bf16.msra.mxu0 %v7422
    %7525 = vmatpush.bf16.msra.mxu0 %v7418
    %7526 = vmatmul.bf16.gmra.mxu0 %v7317
    %v7527 = vpop.f32.mrf.mxu0
    %v7528 = vadd.f32 0.0, %v7527
    %v7529 = vpop.f32.mrf.mxu0
    %7530 = vdwg.mxu0
    %v7531 = vadd.f32 %v7277, %v7489
    %v7532 = vadd.f32 %v7278, %v7502
    %v7533 = vadd.f32 %v7279, %v7515
    %v7534 = vadd.f32 %v7280, %v7528
    %s7535 = scalar_lea.vmem [#allocation2], 2816
    %v7536 = vld [vmem:[%s7535] sm:$0xff]
    %v7537 = vld [vmem:[%s7535 + $0x8] sm:$0xff]
    %v7538 = vld [vmem:[%s7535 + $0x10] sm:$0xff]
    %v7539 = vld [vmem:[%s7535 + $0x18] sm:$0xff]
    %v7540 = vld [vmem:[%s7535 + $0x20] sm:$0xff]
    %v7541 = vld [vmem:[%s7535 + $0x28] sm:$0xff]
    %v7542 = vld [vmem:[%s7535 + $0x30] sm:$0xff]
    %v7543 = vld [vmem:[%s7535 + $0x38] sm:$0xff]
    %v7544 = vld [vmem:[%s7535 + $0x40] sm:$0xff]
    %v7545 = vld [vmem:[%s7535 + $0x48] sm:$0xff]
    %v7546 = vld [vmem:[%s7535 + $0x50] sm:$0xff]
    %v7547 = vld [vmem:[%s7535 + $0x58] sm:$0xff]
    %v7548 = vld [vmem:[%s7535 + $0x60] sm:$0xff]
    %v7549 = vld [vmem:[%s7535 + $0x68] sm:$0xff]
    %v7550 = vld [vmem:[%s7535 + $0x70] sm:$0xff]
    %v7551 = vld [vmem:[%s7535 + $0x78] sm:$0xff]
    %v7552 = vld [vmem:[%s7535 + $0x80] sm:$0xff]
    %v7553 = vld [vmem:[%s7535 + $0x88] sm:$0xff]
    %v7554 = vld [vmem:[%s7535 + $0x90] sm:$0xff]
    %v7555 = vld [vmem:[%s7535 + $0x98] sm:$0xff]
    %v7556 = vld [vmem:[%s7535 + $0xa0] sm:$0xff]
    %v7557 = vld [vmem:[%s7535 + $0xa8] sm:$0xff]
    %v7558 = vld [vmem:[%s7535 + $0xb0] sm:$0xff]
    %v7559 = vld [vmem:[%s7535 + $0xb8] sm:$0xff]
    %v7560 = vld [vmem:[%s7535 + $0xc0] sm:$0xff]
    %v7561 = vld [vmem:[%s7535 + $0xc8] sm:$0xff]
    %v7562 = vld [vmem:[%s7535 + $0xd0] sm:$0xff]
    %v7563 = vld [vmem:[%s7535 + $0xd8] sm:$0xff]
    %v7564 = vld [vmem:[%s7535 + $0xe0] sm:$0xff]
    %v7565 = vld [vmem:[%s7535 + $0xe8] sm:$0xff]
    %v7566 = vld [vmem:[%s7535 + $0xf0] sm:$0xff]
    %v7567 = vld [vmem:[%s7535 + $0xf8] sm:$0xff]
    %v7568 = vrot.slane %v6806, 3
    %v7569 = vrot.slane %v6807, 2
    %v7570 = vsel %vm4811, %v7569, %v7568
    %v7571 = vpack.c.b16 %v7570, %v7570
    %v7605 = vunpack.c.l.b16 %v7536
    %v7606 = vunpack.c.h.b16 %v7536
    %v7607 = vunpack.c.l.b16 %v7537
    %v7608 = vunpack.c.h.b16 %v7537
    %v7609 = vunpack.c.l.b16 %v7538
    %v7610 = vunpack.c.h.b16 %v7538
    %v7611 = vunpack.c.l.b16 %v7539
    %v7612 = vunpack.c.h.b16 %v7539
    %v7613 = vunpack.c.l.b16 %v7540
    %v7614 = vunpack.c.h.b16 %v7540
    %v7615 = vunpack.c.l.b16 %v7541
    %v7616 = vunpack.c.h.b16 %v7541
    %v7617 = vunpack.c.l.b16 %v7542
    %v7618 = vunpack.c.h.b16 %v7542
    %v7619 = vunpack.c.l.b16 %v7543
    %v7620 = vunpack.c.h.b16 %v7543
    %v7621 = vunpack.c.l.b16 %v7544
    %v7622 = vunpack.c.h.b16 %v7544
    %v7623 = vunpack.c.l.b16 %v7545
    %v7624 = vunpack.c.h.b16 %v7545
    %v7625 = vunpack.c.l.b16 %v7546
    %v7626 = vunpack.c.h.b16 %v7546
    %v7627 = vunpack.c.l.b16 %v7547
    %v7628 = vunpack.c.h.b16 %v7547
    %v7629 = vunpack.c.l.b16 %v7548
    %v7630 = vunpack.c.h.b16 %v7548
    %v7631 = vunpack.c.l.b16 %v7549
    %v7632 = vunpack.c.h.b16 %v7549
    %v7633 = vunpack.c.l.b16 %v7550
    %v7634 = vunpack.c.h.b16 %v7550
    %v7635 = vunpack.c.l.b16 %v7551
    %v7636 = vunpack.c.h.b16 %v7551
    %v7637 = vunpack.c.l.b16 %v7552
    %v7638 = vunpack.c.h.b16 %v7552
    %v7639 = vunpack.c.l.b16 %v7553
    %v7640 = vunpack.c.h.b16 %v7553
    %v7641 = vunpack.c.l.b16 %v7554
    %v7642 = vunpack.c.h.b16 %v7554
    %v7643 = vunpack.c.l.b16 %v7555
    %v7644 = vunpack.c.h.b16 %v7555
    %v7645 = vunpack.c.l.b16 %v7556
    %v7646 = vunpack.c.h.b16 %v7556
    %v7647 = vunpack.c.l.b16 %v7557
    %v7648 = vunpack.c.h.b16 %v7557
    %v7649 = vunpack.c.l.b16 %v7558
    %v7650 = vunpack.c.h.b16 %v7558
    %v7651 = vunpack.c.l.b16 %v7559
    %v7652 = vunpack.c.h.b16 %v7559
    %v7653 = vunpack.c.l.b16 %v7560
    %v7654 = vunpack.c.h.b16 %v7560
    %v7655 = vunpack.c.l.b16 %v7561
    %v7656 = vunpack.c.h.b16 %v7561
    %v7657 = vunpack.c.l.b16 %v7562
    %v7658 = vunpack.c.h.b16 %v7562
    %v7659 = vunpack.c.l.b16 %v7563
    %v7660 = vunpack.c.h.b16 %v7563
    %v7661 = vunpack.c.l.b16 %v7564
    %v7662 = vunpack.c.h.b16 %v7564
    %v7663 = vunpack.c.l.b16 %v7565
    %v7664 = vunpack.c.h.b16 %v7565
    %v7665 = vunpack.c.l.b16 %v7566
    %v7666 = vunpack.c.h.b16 %v7566
    %v7667 = vunpack.c.l.b16 %v7567
    %v7668 = vunpack.c.h.b16 %v7567
    %v7669 = vpack.c.b16 %v7609, %v7605
    %v7670 = vpack.c.b16 %v7610, %v7606
    %v7671 = vpack.c.b16 %v7611, %v7607
    %v7672 = vpack.c.b16 %v7612, %v7608
    %v7673 = vpack.c.b16 %v7617, %v7613
    %v7674 = vpack.c.b16 %v7618, %v7614
    %v7675 = vpack.c.b16 %v7619, %v7615
    %v7676 = vpack.c.b16 %v7620, %v7616
    %v7677 = vpack.c.b16 %v7625, %v7621
    %v7678 = vpack.c.b16 %v7626, %v7622
    %v7679 = vpack.c.b16 %v7627, %v7623
    %v7680 = vpack.c.b16 %v7628, %v7624
    %v7681 = vpack.c.b16 %v7633, %v7629
    %v7682 = vpack.c.b16 %v7634, %v7630
    %v7683 = vpack.c.b16 %v7635, %v7631
    %v7684 = vpack.c.b16 %v7636, %v7632
    %v7685 = vpack.c.b16 %v7641, %v7637
    %v7686 = vpack.c.b16 %v7642, %v7638
    %v7687 = vpack.c.b16 %v7643, %v7639
    %v7688 = vpack.c.b16 %v7644, %v7640
    %v7689 = vpack.c.b16 %v7649, %v7645
    %v7690 = vpack.c.b16 %v7650, %v7646
    %v7691 = vpack.c.b16 %v7651, %v7647
    %v7692 = vpack.c.b16 %v7652, %v7648
    %v7693 = vpack.c.b16 %v7657, %v7653
    %v7694 = vpack.c.b16 %v7658, %v7654
    %v7695 = vpack.c.b16 %v7659, %v7655
    %v7696 = vpack.c.b16 %v7660, %v7656
    %v7697 = vpack.c.b16 %v7665, %v7661
    %v7698 = vpack.c.b16 %v7666, %v7662
    %v7699 = vpack.c.b16 %v7667, %v7663
    %v7700 = vpack.c.b16 %v7668, %v7664
    %7733 = vmatpush.bf16.msra.mxu0 %v7697
    %7734 = vmatpush.bf16.msra.mxu0 %v7693
    %7735 = vmatpush.bf16.msra.mxu0 %v7689
    %7736 = vmatpush.bf16.msra.mxu0 %v7685
    %7737 = vmatpush.bf16.msra.mxu0 %v7681
    %7738 = vmatpush.bf16.msra.mxu0 %v7677
    %7739 = vmatpush.bf16.msra.mxu0 %v7673
    %7740 = vmatpush.bf16.msra.mxu0 %v7669
    %7741 = vmatmul.bf16.gmra.mxu0 %v7571
    %v7742 = vpop.f32.mrf.mxu0
    %v7743 = vadd.f32 0.0, %v7742
    %v7744 = vpop.f32.mrf.mxu0
    %7745 = vdwg.mxu0
    %7746 = vmatpush.bf16.msra.mxu0 %v7698
    %7747 = vmatpush.bf16.msra.mxu0 %v7694
    %7748 = vmatpush.bf16.msra.mxu0 %v7690
    %7749 = vmatpush.bf16.msra.mxu0 %v7686
    %7750 = vmatpush.bf16.msra.mxu0 %v7682
    %7751 = vmatpush.bf16.msra.mxu0 %v7678
    %7752 = vmatpush.bf16.msra.mxu0 %v7674
    %7753 = vmatpush.bf16.msra.mxu0 %v7670
    %7754 = vmatmul.bf16.gmra.mxu0 %v7571
    %v7755 = vpop.f32.mrf.mxu0
    %v7756 = vadd.f32 0.0, %v7755
    %v7757 = vpop.f32.mrf.mxu0
    %7758 = vdwg.mxu0
    %7759 = vmatpush.bf16.msra.mxu0 %v7699
    %7760 = vmatpush.bf16.msra.mxu0 %v7695
    %7761 = vmatpush.bf16.msra.mxu0 %v7691
    %7762 = vmatpush.bf16.msra.mxu0 %v7687
    %7763 = vmatpush.bf16.msra.mxu0 %v7683
    %7764 = vmatpush.bf16.msra.mxu0 %v7679
    %7765 = vmatpush.bf16.msra.mxu0 %v7675
    %7766 = vmatpush.bf16.msra.mxu0 %v7671
    %7767 = vmatmul.bf16.gmra.mxu0 %v7571
    %v7768 = vpop.f32.mrf.mxu0
    %v7769 = vadd.f32 0.0, %v7768
    %v7770 = vpop.f32.mrf.mxu0
    %7771 = vdwg.mxu0
    %7772 = vmatpush.bf16.msra.mxu0 %v7700
    %7773 = vmatpush.bf16.msra.mxu0 %v7696
    %7774 = vmatpush.bf16.msra.mxu0 %v7692
    %7775 = vmatpush.bf16.msra.mxu0 %v7688
    %7776 = vmatpush.bf16.msra.mxu0 %v7684
    %7777 = vmatpush.bf16.msra.mxu0 %v7680
    %7778 = vmatpush.bf16.msra.mxu0 %v7676
    %7779 = vmatpush.bf16.msra.mxu0 %v7672
    %7780 = vmatmul.bf16.gmra.mxu0 %v7571
    %v7781 = vpop.f32.mrf.mxu0
    %v7782 = vadd.f32 0.0, %v7781
    %v7783 = vpop.f32.mrf.mxu0
    %7784 = vdwg.mxu0
    %v7785 = vadd.f32 %v7531, %v7743
    %v7786 = vadd.f32 %v7532, %v7756
    %v7787 = vadd.f32 %v7533, %v7769
    %v7788 = vadd.f32 %v7534, %v7782
    %s7789 = scalar_lea.vmem [#allocation2], 3072
    %v7790 = vld [vmem:[%s7789] sm:$0xff]
    %v7791 = vld [vmem:[%s7789 + $0x8] sm:$0xff]
    %v7792 = vld [vmem:[%s7789 + $0x10] sm:$0xff]
    %v7793 = vld [vmem:[%s7789 + $0x18] sm:$0xff]
    %v7794 = vld [vmem:[%s7789 + $0x20] sm:$0xff]
    %v7795 = vld [vmem:[%s7789 + $0x28] sm:$0xff]
    %v7796 = vld [vmem:[%s7789 + $0x30] sm:$0xff]
    %v7797 = vld [vmem:[%s7789 + $0x38] sm:$0xff]
    %v7798 = vld [vmem:[%s7789 + $0x40] sm:$0xff]
    %v7799 = vld [vmem:[%s7789 + $0x48] sm:$0xff]
    %v7800 = vld [vmem:[%s7789 + $0x50] sm:$0xff]
    %v7801 = vld [vmem:[%s7789 + $0x58] sm:$0xff]
    %v7802 = vld [vmem:[%s7789 + $0x60] sm:$0xff]
    %v7803 = vld [vmem:[%s7789 + $0x68] sm:$0xff]
    %v7804 = vld [vmem:[%s7789 + $0x70] sm:$0xff]
    %v7805 = vld [vmem:[%s7789 + $0x78] sm:$0xff]
    %v7806 = vld [vmem:[%s7789 + $0x80] sm:$0xff]
    %v7807 = vld [vmem:[%s7789 + $0x88] sm:$0xff]
    %v7808 = vld [vmem:[%s7789 + $0x90] sm:$0xff]
    %v7809 = vld [vmem:[%s7789 + $0x98] sm:$0xff]
    %v7810 = vld [vmem:[%s7789 + $0xa0] sm:$0xff]
    %v7811 = vld [vmem:[%s7789 + $0xa8] sm:$0xff]
    %v7812 = vld [vmem:[%s7789 + $0xb0] sm:$0xff]
    %v7813 = vld [vmem:[%s7789 + $0xb8] sm:$0xff]
    %v7814 = vld [vmem:[%s7789 + $0xc0] sm:$0xff]
    %v7815 = vld [vmem:[%s7789 + $0xc8] sm:$0xff]
    %v7816 = vld [vmem:[%s7789 + $0xd0] sm:$0xff]
    %v7817 = vld [vmem:[%s7789 + $0xd8] sm:$0xff]
    %v7818 = vld [vmem:[%s7789 + $0xe0] sm:$0xff]
    %v7819 = vld [vmem:[%s7789 + $0xe8] sm:$0xff]
    %v7820 = vld [vmem:[%s7789 + $0xf0] sm:$0xff]
    %v7821 = vld [vmem:[%s7789 + $0xf8] sm:$0xff]
    %v7822 = vrot.slane %v6806, 4
    %v7823 = vrot.slane %v6807, 3
    %v7824 = vsel %vm4811, %v7823, %v7822
    %v7825 = vpack.c.b16 %v7824, %v7824
    %v7859 = vunpack.c.l.b16 %v7790
    %v7860 = vunpack.c.h.b16 %v7790
    %v7861 = vunpack.c.l.b16 %v7791
    %v7862 = vunpack.c.h.b16 %v7791
    %v7863 = vunpack.c.l.b16 %v7792
    %v7864 = vunpack.c.h.b16 %v7792
    %v7865 = vunpack.c.l.b16 %v7793
    %v7866 = vunpack.c.h.b16 %v7793
    %v7867 = vunpack.c.l.b16 %v7794
    %v7868 = vunpack.c.h.b16 %v7794
    %v7869 = vunpack.c.l.b16 %v7795
    %v7870 = vunpack.c.h.b16 %v7795
    %v7871 = vunpack.c.l.b16 %v7796
    %v7872 = vunpack.c.h.b16 %v7796
    %v7873 = vunpack.c.l.b16 %v7797
    %v7874 = vunpack.c.h.b16 %v7797
    %v7875 = vunpack.c.l.b16 %v7798
    %v7876 = vunpack.c.h.b16 %v7798
    %v7877 = vunpack.c.l.b16 %v7799
    %v7878 = vunpack.c.h.b16 %v7799
    %v7879 = vunpack.c.l.b16 %v7800
    %v7880 = vunpack.c.h.b16 %v7800
    %v7881 = vunpack.c.l.b16 %v7801
    %v7882 = vunpack.c.h.b16 %v7801
    %v7883 = vunpack.c.l.b16 %v7802
    %v7884 = vunpack.c.h.b16 %v7802
    %v7885 = vunpack.c.l.b16 %v7803
    %v7886 = vunpack.c.h.b16 %v7803
    %v7887 = vunpack.c.l.b16 %v7804
    %v7888 = vunpack.c.h.b16 %v7804
    %v7889 = vunpack.c.l.b16 %v7805
    %v7890 = vunpack.c.h.b16 %v7805
    %v7891 = vunpack.c.l.b16 %v7806
    %v7892 = vunpack.c.h.b16 %v7806
    %v7893 = vunpack.c.l.b16 %v7807
    %v7894 = vunpack.c.h.b16 %v7807
    %v7895 = vunpack.c.l.b16 %v7808
    %v7896 = vunpack.c.h.b16 %v7808
    %v7897 = vunpack.c.l.b16 %v7809
    %v7898 = vunpack.c.h.b16 %v7809
    %v7899 = vunpack.c.l.b16 %v7810
    %v7900 = vunpack.c.h.b16 %v7810
    %v7901 = vunpack.c.l.b16 %v7811
    %v7902 = vunpack.c.h.b16 %v7811
    %v7903 = vunpack.c.l.b16 %v7812
    %v7904 = vunpack.c.h.b16 %v7812
    %v7905 = vunpack.c.l.b16 %v7813
    %v7906 = vunpack.c.h.b16 %v7813
    %v7907 = vunpack.c.l.b16 %v7814
    %v7908 = vunpack.c.h.b16 %v7814
    %v7909 = vunpack.c.l.b16 %v7815
    %v7910 = vunpack.c.h.b16 %v7815
    %v7911 = vunpack.c.l.b16 %v7816
    %v7912 = vunpack.c.h.b16 %v7816
    %v7913 = vunpack.c.l.b16 %v7817
    %v7914 = vunpack.c.h.b16 %v7817
    %v7915 = vunpack.c.l.b16 %v7818
    %v7916 = vunpack.c.h.b16 %v7818
    %v7917 = vunpack.c.l.b16 %v7819
    %v7918 = vunpack.c.h.b16 %v7819
    %v7919 = vunpack.c.l.b16 %v7820
    %v7920 = vunpack.c.h.b16 %v7820
    %v7921 = vunpack.c.l.b16 %v7821
    %v7922 = vunpack.c.h.b16 %v7821
    %v7923 = vpack.c.b16 %v7863, %v7859
    %v7924 = vpack.c.b16 %v7864, %v7860
    %v7925 = vpack.c.b16 %v7865, %v7861
    %v7926 = vpack.c.b16 %v7866, %v7862
    %v7927 = vpack.c.b16 %v7871, %v7867
    %v7928 = vpack.c.b16 %v7872, %v7868
    %v7929 = vpack.c.b16 %v7873, %v7869
    %v7930 = vpack.c.b16 %v7874, %v7870
    %v7931 = vpack.c.b16 %v7879, %v7875
    %v7932 = vpack.c.b16 %v7880, %v7876
    %v7933 = vpack.c.b16 %v7881, %v7877
    %v7934 = vpack.c.b16 %v7882, %v7878
    %v7935 = vpack.c.b16 %v7887, %v7883
    %v7936 = vpack.c.b16 %v7888, %v7884
    %v7937 = vpack.c.b16 %v7889, %v7885
    %v7938 = vpack.c.b16 %v7890, %v7886
    %v7939 = vpack.c.b16 %v7895, %v7891
    %v7940 = vpack.c.b16 %v7896, %v7892
    %v7941 = vpack.c.b16 %v7897, %v7893
    %v7942 = vpack.c.b16 %v7898, %v7894
    %v7943 = vpack.c.b16 %v7903, %v7899
    %v7944 = vpack.c.b16 %v7904, %v7900
    %v7945 = vpack.c.b16 %v7905, %v7901
    %v7946 = vpack.c.b16 %v7906, %v7902
    %v7947 = vpack.c.b16 %v7911, %v7907
    %v7948 = vpack.c.b16 %v7912, %v7908
    %v7949 = vpack.c.b16 %v7913, %v7909
    %v7950 = vpack.c.b16 %v7914, %v7910
    %v7951 = vpack.c.b16 %v7919, %v7915
    %v7952 = vpack.c.b16 %v7920, %v7916
    %v7953 = vpack.c.b16 %v7921, %v7917
    %v7954 = vpack.c.b16 %v7922, %v7918
    %7987 = vmatpush.bf16.msra.mxu0 %v7951
    %7988 = vmatpush.bf16.msra.mxu0 %v7947
    %7989 = vmatpush.bf16.msra.mxu0 %v7943
    %7990 = vmatpush.bf16.msra.mxu0 %v7939
    %7991 = vmatpush.bf16.msra.mxu0 %v7935
    %7992 = vmatpush.bf16.msra.mxu0 %v7931
    %7993 = vmatpush.bf16.msra.mxu0 %v7927
    %7994 = vmatpush.bf16.msra.mxu0 %v7923
    %7995 = vmatmul.bf16.gmra.mxu0 %v7825
    %v7996 = vpop.f32.mrf.mxu0
    %v7997 = vadd.f32 0.0, %v7996
    %v7998 = vpop.f32.mrf.mxu0
    %7999 = vdwg.mxu0
    %8000 = vmatpush.bf16.msra.mxu0 %v7952
    %8001 = vmatpush.bf16.msra.mxu0 %v7948
    %8002 = vmatpush.bf16.msra.mxu0 %v7944
    %8003 = vmatpush.bf16.msra.mxu0 %v7940
    %8004 = vmatpush.bf16.msra.mxu0 %v7936
    %8005 = vmatpush.bf16.msra.mxu0 %v7932
    %8006 = vmatpush.bf16.msra.mxu0 %v7928
    %8007 = vmatpush.bf16.msra.mxu0 %v7924
    %8008 = vmatmul.bf16.gmra.mxu0 %v7825
    %v8009 = vpop.f32.mrf.mxu0
    %v8010 = vadd.f32 0.0, %v8009
    %v8011 = vpop.f32.mrf.mxu0
    %8012 = vdwg.mxu0
    %8013 = vmatpush.bf16.msra.mxu0 %v7953
    %8014 = vmatpush.bf16.msra.mxu0 %v7949
    %8015 = vmatpush.bf16.msra.mxu0 %v7945
    %8016 = vmatpush.bf16.msra.mxu0 %v7941
    %8017 = vmatpush.bf16.msra.mxu0 %v7937
    %8018 = vmatpush.bf16.msra.mxu0 %v7933
    %8019 = vmatpush.bf16.msra.mxu0 %v7929
    %8020 = vmatpush.bf16.msra.mxu0 %v7925
    %8021 = vmatmul.bf16.gmra.mxu0 %v7825
    %v8022 = vpop.f32.mrf.mxu0
    %v8023 = vadd.f32 0.0, %v8022
    %v8024 = vpop.f32.mrf.mxu0
    %8025 = vdwg.mxu0
    %8026 = vmatpush.bf16.msra.mxu0 %v7954
    %8027 = vmatpush.bf16.msra.mxu0 %v7950
    %8028 = vmatpush.bf16.msra.mxu0 %v7946
    %8029 = vmatpush.bf16.msra.mxu0 %v7942
    %8030 = vmatpush.bf16.msra.mxu0 %v7938
    %8031 = vmatpush.bf16.msra.mxu0 %v7934
    %8032 = vmatpush.bf16.msra.mxu0 %v7930
    %8033 = vmatpush.bf16.msra.mxu0 %v7926
    %8034 = vmatmul.bf16.gmra.mxu0 %v7825
    %v8035 = vpop.f32.mrf.mxu0
    %v8036 = vadd.f32 0.0, %v8035
    %v8037 = vpop.f32.mrf.mxu0
    %8038 = vdwg.mxu0
    %v8039 = vadd.f32 %v7785, %v7997
    %v8040 = vadd.f32 %v7786, %v8010
    %v8041 = vadd.f32 %v7787, %v8023
    %v8042 = vadd.f32 %v7788, %v8036
    %s8043 = scalar_lea.vmem [#allocation2], 3328
    %v8044 = vld [vmem:[%s8043] sm:$0xff]
    %v8045 = vld [vmem:[%s8043 + $0x8] sm:$0xff]
    %v8046 = vld [vmem:[%s8043 + $0x10] sm:$0xff]
    %v8047 = vld [vmem:[%s8043 + $0x18] sm:$0xff]
    %v8048 = vld [vmem:[%s8043 + $0x20] sm:$0xff]
    %v8049 = vld [vmem:[%s8043 + $0x28] sm:$0xff]
    %v8050 = vld [vmem:[%s8043 + $0x30] sm:$0xff]
    %v8051 = vld [vmem:[%s8043 + $0x38] sm:$0xff]
    %v8052 = vld [vmem:[%s8043 + $0x40] sm:$0xff]
    %v8053 = vld [vmem:[%s8043 + $0x48] sm:$0xff]
    %v8054 = vld [vmem:[%s8043 + $0x50] sm:$0xff]
    %v8055 = vld [vmem:[%s8043 + $0x58] sm:$0xff]
    %v8056 = vld [vmem:[%s8043 + $0x60] sm:$0xff]
    %v8057 = vld [vmem:[%s8043 + $0x68] sm:$0xff]
    %v8058 = vld [vmem:[%s8043 + $0x70] sm:$0xff]
    %v8059 = vld [vmem:[%s8043 + $0x78] sm:$0xff]
    %v8060 = vld [vmem:[%s8043 + $0x80] sm:$0xff]
    %v8061 = vld [vmem:[%s8043 + $0x88] sm:$0xff]
    %v8062 = vld [vmem:[%s8043 + $0x90] sm:$0xff]
    %v8063 = vld [vmem:[%s8043 + $0x98] sm:$0xff]
    %v8064 = vld [vmem:[%s8043 + $0xa0] sm:$0xff]
    %v8065 = vld [vmem:[%s8043 + $0xa8] sm:$0xff]
    %v8066 = vld [vmem:[%s8043 + $0xb0] sm:$0xff]
    %v8067 = vld [vmem:[%s8043 + $0xb8] sm:$0xff]
    %v8068 = vld [vmem:[%s8043 + $0xc0] sm:$0xff]
    %v8069 = vld [vmem:[%s8043 + $0xc8] sm:$0xff]
    %v8070 = vld [vmem:[%s8043 + $0xd0] sm:$0xff]
    %v8071 = vld [vmem:[%s8043 + $0xd8] sm:$0xff]
    %v8072 = vld [vmem:[%s8043 + $0xe0] sm:$0xff]
    %v8073 = vld [vmem:[%s8043 + $0xe8] sm:$0xff]
    %v8074 = vld [vmem:[%s8043 + $0xf0] sm:$0xff]
    %v8075 = vld [vmem:[%s8043 + $0xf8] sm:$0xff]
    %v8076 = vrot.slane %v6806, 5
    %v8077 = vrot.slane %v6807, 4
    %v8078 = vsel %vm4811, %v8077, %v8076
    %v8079 = vpack.c.b16 %v8078, %v8078
    %v8113 = vunpack.c.l.b16 %v8044
    %v8114 = vunpack.c.h.b16 %v8044
    %v8115 = vunpack.c.l.b16 %v8045
    %v8116 = vunpack.c.h.b16 %v8045
    %v8117 = vunpack.c.l.b16 %v8046
    %v8118 = vunpack.c.h.b16 %v8046
    %v8119 = vunpack.c.l.b16 %v8047
    %v8120 = vunpack.c.h.b16 %v8047
    %v8121 = vunpack.c.l.b16 %v8048
    %v8122 = vunpack.c.h.b16 %v8048
    %v8123 = vunpack.c.l.b16 %v8049
    %v8124 = vunpack.c.h.b16 %v8049
    %v8125 = vunpack.c.l.b16 %v8050
    %v8126 = vunpack.c.h.b16 %v8050
    %v8127 = vunpack.c.l.b16 %v8051
    %v8128 = vunpack.c.h.b16 %v8051
    %v8129 = vunpack.c.l.b16 %v8052
    %v8130 = vunpack.c.h.b16 %v8052
    %v8131 = vunpack.c.l.b16 %v8053
    %v8132 = vunpack.c.h.b16 %v8053
    %v8133 = vunpack.c.l.b16 %v8054
    %v8134 = vunpack.c.h.b16 %v8054
    %v8135 = vunpack.c.l.b16 %v8055
    %v8136 = vunpack.c.h.b16 %v8055
    %v8137 = vunpack.c.l.b16 %v8056
    %v8138 = vunpack.c.h.b16 %v8056
    %v8139 = vunpack.c.l.b16 %v8057
    %v8140 = vunpack.c.h.b16 %v8057
    %v8141 = vunpack.c.l.b16 %v8058
    %v8142 = vunpack.c.h.b16 %v8058
    %v8143 = vunpack.c.l.b16 %v8059
    %v8144 = vunpack.c.h.b16 %v8059
    %v8145 = vunpack.c.l.b16 %v8060
    %v8146 = vunpack.c.h.b16 %v8060
    %v8147 = vunpack.c.l.b16 %v8061
    %v8148 = vunpack.c.h.b16 %v8061
    %v8149 = vunpack.c.l.b16 %v8062
    %v8150 = vunpack.c.h.b16 %v8062
    %v8151 = vunpack.c.l.b16 %v8063
    %v8152 = vunpack.c.h.b16 %v8063
    %v8153 = vunpack.c.l.b16 %v8064
    %v8154 = vunpack.c.h.b16 %v8064
    %v8155 = vunpack.c.l.b16 %v8065
    %v8156 = vunpack.c.h.b16 %v8065
    %v8157 = vunpack.c.l.b16 %v8066
    %v8158 = vunpack.c.h.b16 %v8066
    %v8159 = vunpack.c.l.b16 %v8067
    %v8160 = vunpack.c.h.b16 %v8067
    %v8161 = vunpack.c.l.b16 %v8068
    %v8162 = vunpack.c.h.b16 %v8068
    %v8163 = vunpack.c.l.b16 %v8069
    %v8164 = vunpack.c.h.b16 %v8069
    %v8165 = vunpack.c.l.b16 %v8070
    %v8166 = vunpack.c.h.b16 %v8070
    %v8167 = vunpack.c.l.b16 %v8071
    %v8168 = vunpack.c.h.b16 %v8071
    %v8169 = vunpack.c.l.b16 %v8072
    %v8170 = vunpack.c.h.b16 %v8072
    %v8171 = vunpack.c.l.b16 %v8073
    %v8172 = vunpack.c.h.b16 %v8073
    %v8173 = vunpack.c.l.b16 %v8074
    %v8174 = vunpack.c.h.b16 %v8074
    %v8175 = vunpack.c.l.b16 %v8075
    %v8176 = vunpack.c.h.b16 %v8075
    %v8177 = vpack.c.b16 %v8117, %v8113
    %v8178 = vpack.c.b16 %v8118, %v8114
    %v8179 = vpack.c.b16 %v8119, %v8115
    %v8180 = vpack.c.b16 %v8120, %v8116
    %v8181 = vpack.c.b16 %v8125, %v8121
    %v8182 = vpack.c.b16 %v8126, %v8122
    %v8183 = vpack.c.b16 %v8127, %v8123
    %v8184 = vpack.c.b16 %v8128, %v8124
    %v8185 = vpack.c.b16 %v8133, %v8129
    %v8186 = vpack.c.b16 %v8134, %v8130
    %v8187 = vpack.c.b16 %v8135, %v8131
    %v8188 = vpack.c.b16 %v8136, %v8132
    %v8189 = vpack.c.b16 %v8141, %v8137
    %v8190 = vpack.c.b16 %v8142, %v8138
    %v8191 = vpack.c.b16 %v8143, %v8139
    %v8192 = vpack.c.b16 %v8144, %v8140
    %v8193 = vpack.c.b16 %v8149, %v8145
    %v8194 = vpack.c.b16 %v8150, %v8146
    %v8195 = vpack.c.b16 %v8151, %v8147
    %v8196 = vpack.c.b16 %v8152, %v8148
    %v8197 = vpack.c.b16 %v8157, %v8153
    %v8198 = vpack.c.b16 %v8158, %v8154
    %v8199 = vpack.c.b16 %v8159, %v8155
    %v8200 = vpack.c.b16 %v8160, %v8156
    %v8201 = vpack.c.b16 %v8165, %v8161
    %v8202 = vpack.c.b16 %v8166, %v8162
    %v8203 = vpack.c.b16 %v8167, %v8163
    %v8204 = vpack.c.b16 %v8168, %v8164
    %v8205 = vpack.c.b16 %v8173, %v8169
    %v8206 = vpack.c.b16 %v8174, %v8170
    %v8207 = vpack.c.b16 %v8175, %v8171
    %v8208 = vpack.c.b16 %v8176, %v8172
    %8241 = vmatpush.bf16.msra.mxu0 %v8205
    %8242 = vmatpush.bf16.msra.mxu0 %v8201
    %8243 = vmatpush.bf16.msra.mxu0 %v8197
    %8244 = vmatpush.bf16.msra.mxu0 %v8193
    %8245 = vmatpush.bf16.msra.mxu0 %v8189
    %8246 = vmatpush.bf16.msra.mxu0 %v8185
    %8247 = vmatpush.bf16.msra.mxu0 %v8181
    %8248 = vmatpush.bf16.msra.mxu0 %v8177
    %8249 = vmatmul.bf16.gmra.mxu0 %v8079
    %v8250 = vpop.f32.mrf.mxu0
    %v8251 = vadd.f32 0.0, %v8250
    %v8252 = vpop.f32.mrf.mxu0
    %8253 = vdwg.mxu0
    %8254 = vmatpush.bf16.msra.mxu0 %v8206
    %8255 = vmatpush.bf16.msra.mxu0 %v8202
    %8256 = vmatpush.bf16.msra.mxu0 %v8198
    %8257 = vmatpush.bf16.msra.mxu0 %v8194
    %8258 = vmatpush.bf16.msra.mxu0 %v8190
    %8259 = vmatpush.bf16.msra.mxu0 %v8186
    %8260 = vmatpush.bf16.msra.mxu0 %v8182
    %8261 = vmatpush.bf16.msra.mxu0 %v8178
    %8262 = vmatmul.bf16.gmra.mxu0 %v8079
    %v8263 = vpop.f32.mrf.mxu0
    %v8264 = vadd.f32 0.0, %v8263
    %v8265 = vpop.f32.mrf.mxu0
    %8266 = vdwg.mxu0
    %8267 = vmatpush.bf16.msra.mxu0 %v8207
    %8268 = vmatpush.bf16.msra.mxu0 %v8203
    %8269 = vmatpush.bf16.msra.mxu0 %v8199
    %8270 = vmatpush.bf16.msra.mxu0 %v8195
    %8271 = vmatpush.bf16.msra.mxu0 %v8191
    %8272 = vmatpush.bf16.msra.mxu0 %v8187
    %8273 = vmatpush.bf16.msra.mxu0 %v8183
    %8274 = vmatpush.bf16.msra.mxu0 %v8179
    %8275 = vmatmul.bf16.gmra.mxu0 %v8079
    %v8276 = vpop.f32.mrf.mxu0
    %v8277 = vadd.f32 0.0, %v8276
    %v8278 = vpop.f32.mrf.mxu0
    %8279 = vdwg.mxu0
    %8280 = vmatpush.bf16.msra.mxu0 %v8208
    %8281 = vmatpush.bf16.msra.mxu0 %v8204
    %8282 = vmatpush.bf16.msra.mxu0 %v8200
    %8283 = vmatpush.bf16.msra.mxu0 %v8196
    %8284 = vmatpush.bf16.msra.mxu0 %v8192
    %8285 = vmatpush.bf16.msra.mxu0 %v8188
    %8286 = vmatpush.bf16.msra.mxu0 %v8184
    %8287 = vmatpush.bf16.msra.mxu0 %v8180
    %8288 = vmatmul.bf16.gmra.mxu0 %v8079
    %v8289 = vpop.f32.mrf.mxu0
    %v8290 = vadd.f32 0.0, %v8289
    %v8291 = vpop.f32.mrf.mxu0
    %8292 = vdwg.mxu0
    %v8293 = vadd.f32 %v8039, %v8251
    %v8294 = vadd.f32 %v8040, %v8264
    %v8295 = vadd.f32 %v8041, %v8277
    %v8296 = vadd.f32 %v8042, %v8290
    %s8297 = scalar_lea.vmem [#allocation2], 3584
    %v8298 = vld [vmem:[%s8297] sm:$0xff]
    %v8299 = vld [vmem:[%s8297 + $0x8] sm:$0xff]
    %v8300 = vld [vmem:[%s8297 + $0x10] sm:$0xff]
    %v8301 = vld [vmem:[%s8297 + $0x18] sm:$0xff]
    %v8302 = vld [vmem:[%s8297 + $0x20] sm:$0xff]
    %v8303 = vld [vmem:[%s8297 + $0x28] sm:$0xff]
    %v8304 = vld [vmem:[%s8297 + $0x30] sm:$0xff]
    %v8305 = vld [vmem:[%s8297 + $0x38] sm:$0xff]
    %v8306 = vld [vmem:[%s8297 + $0x40] sm:$0xff]
    %v8307 = vld [vmem:[%s8297 + $0x48] sm:$0xff]
    %v8308 = vld [vmem:[%s8297 + $0x50] sm:$0xff]
    %v8309 = vld [vmem:[%s8297 + $0x58] sm:$0xff]
    %v8310 = vld [vmem:[%s8297 + $0x60] sm:$0xff]
    %v8311 = vld [vmem:[%s8297 + $0x68] sm:$0xff]
    %v8312 = vld [vmem:[%s8297 + $0x70] sm:$0xff]
    %v8313 = vld [vmem:[%s8297 + $0x78] sm:$0xff]
    %v8314 = vld [vmem:[%s8297 + $0x80] sm:$0xff]
    %v8315 = vld [vmem:[%s8297 + $0x88] sm:$0xff]
    %v8316 = vld [vmem:[%s8297 + $0x90] sm:$0xff]
    %v8317 = vld [vmem:[%s8297 + $0x98] sm:$0xff]
    %v8318 = vld [vmem:[%s8297 + $0xa0] sm:$0xff]
    %v8319 = vld [vmem:[%s8297 + $0xa8] sm:$0xff]
    %v8320 = vld [vmem:[%s8297 + $0xb0] sm:$0xff]
    %v8321 = vld [vmem:[%s8297 + $0xb8] sm:$0xff]
    %v8322 = vld [vmem:[%s8297 + $0xc0] sm:$0xff]
    %v8323 = vld [vmem:[%s8297 + $0xc8] sm:$0xff]
    %v8324 = vld [vmem:[%s8297 + $0xd0] sm:$0xff]
    %v8325 = vld [vmem:[%s8297 + $0xd8] sm:$0xff]
    %v8326 = vld [vmem:[%s8297 + $0xe0] sm:$0xff]
    %v8327 = vld [vmem:[%s8297 + $0xe8] sm:$0xff]
    %v8328 = vld [vmem:[%s8297 + $0xf0] sm:$0xff]
    %v8329 = vld [vmem:[%s8297 + $0xf8] sm:$0xff]
    %v8330 = vrot.slane %v6806, 6
    %v8331 = vrot.slane %v6807, 5
    %v8332 = vsel %vm4811, %v8331, %v8330
    %v8333 = vpack.c.b16 %v8332, %v8332
    %v8367 = vunpack.c.l.b16 %v8298
    %v8368 = vunpack.c.h.b16 %v8298
    %v8369 = vunpack.c.l.b16 %v8299
    %v8370 = vunpack.c.h.b16 %v8299
    %v8371 = vunpack.c.l.b16 %v8300
    %v8372 = vunpack.c.h.b16 %v8300
    %v8373 = vunpack.c.l.b16 %v8301
    %v8374 = vunpack.c.h.b16 %v8301
    %v8375 = vunpack.c.l.b16 %v8302
    %v8376 = vunpack.c.h.b16 %v8302
    %v8377 = vunpack.c.l.b16 %v8303
    %v8378 = vunpack.c.h.b16 %v8303
    %v8379 = vunpack.c.l.b16 %v8304
    %v8380 = vunpack.c.h.b16 %v8304
    %v8381 = vunpack.c.l.b16 %v8305
    %v8382 = vunpack.c.h.b16 %v8305
    %v8383 = vunpack.c.l.b16 %v8306
    %v8384 = vunpack.c.h.b16 %v8306
    %v8385 = vunpack.c.l.b16 %v8307
    %v8386 = vunpack.c.h.b16 %v8307
    %v8387 = vunpack.c.l.b16 %v8308
    %v8388 = vunpack.c.h.b16 %v8308
    %v8389 = vunpack.c.l.b16 %v8309
    %v8390 = vunpack.c.h.b16 %v8309
    %v8391 = vunpack.c.l.b16 %v8310
    %v8392 = vunpack.c.h.b16 %v8310
    %v8393 = vunpack.c.l.b16 %v8311
    %v8394 = vunpack.c.h.b16 %v8311
    %v8395 = vunpack.c.l.b16 %v8312
    %v8396 = vunpack.c.h.b16 %v8312
    %v8397 = vunpack.c.l.b16 %v8313
    %v8398 = vunpack.c.h.b16 %v8313
    %v8399 = vunpack.c.l.b16 %v8314
    %v8400 = vunpack.c.h.b16 %v8314
    %v8401 = vunpack.c.l.b16 %v8315
    %v8402 = vunpack.c.h.b16 %v8315
    %v8403 = vunpack.c.l.b16 %v8316
    %v8404 = vunpack.c.h.b16 %v8316
    %v8405 = vunpack.c.l.b16 %v8317
    %v8406 = vunpack.c.h.b16 %v8317
    %v8407 = vunpack.c.l.b16 %v8318
    %v8408 = vunpack.c.h.b16 %v8318
    %v8409 = vunpack.c.l.b16 %v8319
    %v8410 = vunpack.c.h.b16 %v8319
    %v8411 = vunpack.c.l.b16 %v8320
    %v8412 = vunpack.c.h.b16 %v8320
    %v8413 = vunpack.c.l.b16 %v8321
    %v8414 = vunpack.c.h.b16 %v8321
    %v8415 = vunpack.c.l.b16 %v8322
    %v8416 = vunpack.c.h.b16 %v8322
    %v8417 = vunpack.c.l.b16 %v8323
    %v8418 = vunpack.c.h.b16 %v8323
    %v8419 = vunpack.c.l.b16 %v8324
    %v8420 = vunpack.c.h.b16 %v8324
    %v8421 = vunpack.c.l.b16 %v8325
    %v8422 = vunpack.c.h.b16 %v8325
    %v8423 = vunpack.c.l.b16 %v8326
    %v8424 = vunpack.c.h.b16 %v8326
    %v8425 = vunpack.c.l.b16 %v8327
    %v8426 = vunpack.c.h.b16 %v8327
    %v8427 = vunpack.c.l.b16 %v8328
    %v8428 = vunpack.c.h.b16 %v8328
    %v8429 = vunpack.c.l.b16 %v8329
    %v8430 = vunpack.c.h.b16 %v8329
    %v8431 = vpack.c.b16 %v8371, %v8367
    %v8432 = vpack.c.b16 %v8372, %v8368
    %v8433 = vpack.c.b16 %v8373, %v8369
    %v8434 = vpack.c.b16 %v8374, %v8370
    %v8435 = vpack.c.b16 %v8379, %v8375
    %v8436 = vpack.c.b16 %v8380, %v8376
    %v8437 = vpack.c.b16 %v8381, %v8377
    %v8438 = vpack.c.b16 %v8382, %v8378
    %v8439 = vpack.c.b16 %v8387, %v8383
    %v8440 = vpack.c.b16 %v8388, %v8384
    %v8441 = vpack.c.b16 %v8389, %v8385
    %v8442 = vpack.c.b16 %v8390, %v8386
    %v8443 = vpack.c.b16 %v8395, %v8391
    %v8444 = vpack.c.b16 %v8396, %v8392
    %v8445 = vpack.c.b16 %v8397, %v8393
    %v8446 = vpack.c.b16 %v8398, %v8394
    %v8447 = vpack.c.b16 %v8403, %v8399
    %v8448 = vpack.c.b16 %v8404, %v8400
    %v8449 = vpack.c.b16 %v8405, %v8401
    %v8450 = vpack.c.b16 %v8406, %v8402
    %v8451 = vpack.c.b16 %v8411, %v8407
    %v8452 = vpack.c.b16 %v8412, %v8408
    %v8453 = vpack.c.b16 %v8413, %v8409
    %v8454 = vpack.c.b16 %v8414, %v8410
    %v8455 = vpack.c.b16 %v8419, %v8415
    %v8456 = vpack.c.b16 %v8420, %v8416
    %v8457 = vpack.c.b16 %v8421, %v8417
    %v8458 = vpack.c.b16 %v8422, %v8418
    %v8459 = vpack.c.b16 %v8427, %v8423
    %v8460 = vpack.c.b16 %v8428, %v8424
    %v8461 = vpack.c.b16 %v8429, %v8425
    %v8462 = vpack.c.b16 %v8430, %v8426
    %8495 = vmatpush.bf16.msra.mxu0 %v8459
    %8496 = vmatpush.bf16.msra.mxu0 %v8455
    %8497 = vmatpush.bf16.msra.mxu0 %v8451
    %8498 = vmatpush.bf16.msra.mxu0 %v8447
    %8499 = vmatpush.bf16.msra.mxu0 %v8443
    %8500 = vmatpush.bf16.msra.mxu0 %v8439
    %8501 = vmatpush.bf16.msra.mxu0 %v8435
    %8502 = vmatpush.bf16.msra.mxu0 %v8431
    %8503 = vmatmul.bf16.gmra.mxu0 %v8333
    %v8504 = vpop.f32.mrf.mxu0
    %v8505 = vadd.f32 0.0, %v8504
    %v8506 = vpop.f32.mrf.mxu0
    %8507 = vdwg.mxu0
    %8508 = vmatpush.bf16.msra.mxu0 %v8460
    %8509 = vmatpush.bf16.msra.mxu0 %v8456
    %8510 = vmatpush.bf16.msra.mxu0 %v8452
    %8511 = vmatpush.bf16.msra.mxu0 %v8448
    %8512 = vmatpush.bf16.msra.mxu0 %v8444
    %8513 = vmatpush.bf16.msra.mxu0 %v8440
    %8514 = vmatpush.bf16.msra.mxu0 %v8436
    %8515 = vmatpush.bf16.msra.mxu0 %v8432
    %8516 = vmatmul.bf16.gmra.mxu0 %v8333
    %v8517 = vpop.f32.mrf.mxu0
    %v8518 = vadd.f32 0.0, %v8517
    %v8519 = vpop.f32.mrf.mxu0
    %8520 = vdwg.mxu0
    %8521 = vmatpush.bf16.msra.mxu0 %v8461
    %8522 = vmatpush.bf16.msra.mxu0 %v8457
    %8523 = vmatpush.bf16.msra.mxu0 %v8453
    %8524 = vmatpush.bf16.msra.mxu0 %v8449
    %8525 = vmatpush.bf16.msra.mxu0 %v8445
    %8526 = vmatpush.bf16.msra.mxu0 %v8441
    %8527 = vmatpush.bf16.msra.mxu0 %v8437
    %8528 = vmatpush.bf16.msra.mxu0 %v8433
    %8529 = vmatmul.bf16.gmra.mxu0 %v8333
    %v8530 = vpop.f32.mrf.mxu0
    %v8531 = vadd.f32 0.0, %v8530
    %v8532 = vpop.f32.mrf.mxu0
    %8533 = vdwg.mxu0
    %8534 = vmatpush.bf16.msra.mxu0 %v8462
    %8535 = vmatpush.bf16.msra.mxu0 %v8458
    %8536 = vmatpush.bf16.msra.mxu0 %v8454
    %8537 = vmatpush.bf16.msra.mxu0 %v8450
    %8538 = vmatpush.bf16.msra.mxu0 %v8446
    %8539 = vmatpush.bf16.msra.mxu0 %v8442
    %8540 = vmatpush.bf16.msra.mxu0 %v8438
    %8541 = vmatpush.bf16.msra.mxu0 %v8434
    %8542 = vmatmul.bf16.gmra.mxu0 %v8333
    %v8543 = vpop.f32.mrf.mxu0
    %v8544 = vadd.f32 0.0, %v8543
    %v8545 = vpop.f32.mrf.mxu0
    %8546 = vdwg.mxu0
    %v8547 = vadd.f32 %v8293, %v8505
    %v8548 = vadd.f32 %v8294, %v8518
    %v8549 = vadd.f32 %v8295, %v8531
    %v8550 = vadd.f32 %v8296, %v8544
    %s8551 = scalar_lea.vmem [#allocation2], 3840
    %v8552 = vld [vmem:[%s8551] sm:$0xff]
    %v8553 = vld [vmem:[%s8551 + $0x8] sm:$0xff]
    %v8554 = vld [vmem:[%s8551 + $0x10] sm:$0xff]
    %v8555 = vld [vmem:[%s8551 + $0x18] sm:$0xff]
    %v8556 = vld [vmem:[%s8551 + $0x20] sm:$0xff]
    %v8557 = vld [vmem:[%s8551 + $0x28] sm:$0xff]
    %v8558 = vld [vmem:[%s8551 + $0x30] sm:$0xff]
    %v8559 = vld [vmem:[%s8551 + $0x38] sm:$0xff]
    %v8560 = vld [vmem:[%s8551 + $0x40] sm:$0xff]
    %v8561 = vld [vmem:[%s8551 + $0x48] sm:$0xff]
    %v8562 = vld [vmem:[%s8551 + $0x50] sm:$0xff]
    %v8563 = vld [vmem:[%s8551 + $0x58] sm:$0xff]
    %v8564 = vld [vmem:[%s8551 + $0x60] sm:$0xff]
    %v8565 = vld [vmem:[%s8551 + $0x68] sm:$0xff]
    %v8566 = vld [vmem:[%s8551 + $0x70] sm:$0xff]
    %v8567 = vld [vmem:[%s8551 + $0x78] sm:$0xff]
    %v8568 = vld [vmem:[%s8551 + $0x80] sm:$0xff]
    %v8569 = vld [vmem:[%s8551 + $0x88] sm:$0xff]
    %v8570 = vld [vmem:[%s8551 + $0x90] sm:$0xff]
    %v8571 = vld [vmem:[%s8551 + $0x98] sm:$0xff]
    %v8572 = vld [vmem:[%s8551 + $0xa0] sm:$0xff]
    %v8573 = vld [vmem:[%s8551 + $0xa8] sm:$0xff]
    %v8574 = vld [vmem:[%s8551 + $0xb0] sm:$0xff]
    %v8575 = vld [vmem:[%s8551 + $0xb8] sm:$0xff]
    %v8576 = vld [vmem:[%s8551 + $0xc0] sm:$0xff]
    %v8577 = vld [vmem:[%s8551 + $0xc8] sm:$0xff]
    %v8578 = vld [vmem:[%s8551 + $0xd0] sm:$0xff]
    %v8579 = vld [vmem:[%s8551 + $0xd8] sm:$0xff]
    %v8580 = vld [vmem:[%s8551 + $0xe0] sm:$0xff]
    %v8581 = vld [vmem:[%s8551 + $0xe8] sm:$0xff]
    %v8582 = vld [vmem:[%s8551 + $0xf0] sm:$0xff]
    %v8583 = vld [vmem:[%s8551 + $0xf8] sm:$0xff]
    %v8584 = vrot.slane %v6806, 7
    %v8585 = vrot.slane %v6807, 6
    %v8586 = vsel %vm4811, %v8585, %v8584
    %v8587 = vpack.c.b16 %v8586, %v8586
    %v8621 = vunpack.c.l.b16 %v8552
    %v8622 = vunpack.c.h.b16 %v8552
    %v8623 = vunpack.c.l.b16 %v8553
    %v8624 = vunpack.c.h.b16 %v8553
    %v8625 = vunpack.c.l.b16 %v8554
    %v8626 = vunpack.c.h.b16 %v8554
    %v8627 = vunpack.c.l.b16 %v8555
    %v8628 = vunpack.c.h.b16 %v8555
    %v8629 = vunpack.c.l.b16 %v8556
    %v8630 = vunpack.c.h.b16 %v8556
    %v8631 = vunpack.c.l.b16 %v8557
    %v8632 = vunpack.c.h.b16 %v8557
    %v8633 = vunpack.c.l.b16 %v8558
    %v8634 = vunpack.c.h.b16 %v8558
    %v8635 = vunpack.c.l.b16 %v8559
    %v8636 = vunpack.c.h.b16 %v8559
    %v8637 = vunpack.c.l.b16 %v8560
    %v8638 = vunpack.c.h.b16 %v8560
    %v8639 = vunpack.c.l.b16 %v8561
    %v8640 = vunpack.c.h.b16 %v8561
    %v8641 = vunpack.c.l.b16 %v8562
    %v8642 = vunpack.c.h.b16 %v8562
    %v8643 = vunpack.c.l.b16 %v8563
    %v8644 = vunpack.c.h.b16 %v8563
    %v8645 = vunpack.c.l.b16 %v8564
    %v8646 = vunpack.c.h.b16 %v8564
    %v8647 = vunpack.c.l.b16 %v8565
    %v8648 = vunpack.c.h.b16 %v8565
    %v8649 = vunpack.c.l.b16 %v8566
    %v8650 = vunpack.c.h.b16 %v8566
    %v8651 = vunpack.c.l.b16 %v8567
    %v8652 = vunpack.c.h.b16 %v8567
    %v8653 = vunpack.c.l.b16 %v8568
    %v8654 = vunpack.c.h.b16 %v8568
    %v8655 = vunpack.c.l.b16 %v8569
    %v8656 = vunpack.c.h.b16 %v8569
    %v8657 = vunpack.c.l.b16 %v8570
    %v8658 = vunpack.c.h.b16 %v8570
    %v8659 = vunpack.c.l.b16 %v8571
    %v8660 = vunpack.c.h.b16 %v8571
    %v8661 = vunpack.c.l.b16 %v8572
    %v8662 = vunpack.c.h.b16 %v8572
    %v8663 = vunpack.c.l.b16 %v8573
    %v8664 = vunpack.c.h.b16 %v8573
    %v8665 = vunpack.c.l.b16 %v8574
    %v8666 = vunpack.c.h.b16 %v8574
    %v8667 = vunpack.c.l.b16 %v8575
    %v8668 = vunpack.c.h.b16 %v8575
    %v8669 = vunpack.c.l.b16 %v8576
    %v8670 = vunpack.c.h.b16 %v8576
    %v8671 = vunpack.c.l.b16 %v8577
    %v8672 = vunpack.c.h.b16 %v8577
    %v8673 = vunpack.c.l.b16 %v8578
    %v8674 = vunpack.c.h.b16 %v8578
    %v8675 = vunpack.c.l.b16 %v8579
    %v8676 = vunpack.c.h.b16 %v8579
    %v8677 = vunpack.c.l.b16 %v8580
    %v8678 = vunpack.c.h.b16 %v8580
    %v8679 = vunpack.c.l.b16 %v8581
    %v8680 = vunpack.c.h.b16 %v8581
    %v8681 = vunpack.c.l.b16 %v8582
    %v8682 = vunpack.c.h.b16 %v8582
    %v8683 = vunpack.c.l.b16 %v8583
    %v8684 = vunpack.c.h.b16 %v8583
    %v8685 = vpack.c.b16 %v8625, %v8621
    %v8686 = vpack.c.b16 %v8626, %v8622
    %v8687 = vpack.c.b16 %v8627, %v8623
    %v8688 = vpack.c.b16 %v8628, %v8624
    %v8689 = vpack.c.b16 %v8633, %v8629
    %v8690 = vpack.c.b16 %v8634, %v8630
    %v8691 = vpack.c.b16 %v8635, %v8631
    %v8692 = vpack.c.b16 %v8636, %v8632
    %v8693 = vpack.c.b16 %v8641, %v8637
    %v8694 = vpack.c.b16 %v8642, %v8638
    %v8695 = vpack.c.b16 %v8643, %v8639
    %v8696 = vpack.c.b16 %v8644, %v8640
    %v8697 = vpack.c.b16 %v8649, %v8645
    %v8698 = vpack.c.b16 %v8650, %v8646
    %v8699 = vpack.c.b16 %v8651, %v8647
    %v8700 = vpack.c.b16 %v8652, %v8648
    %v8701 = vpack.c.b16 %v8657, %v8653
    %v8702 = vpack.c.b16 %v8658, %v8654
    %v8703 = vpack.c.b16 %v8659, %v8655
    %v8704 = vpack.c.b16 %v8660, %v8656
    %v8705 = vpack.c.b16 %v8665, %v8661
    %v8706 = vpack.c.b16 %v8666, %v8662
    %v8707 = vpack.c.b16 %v8667, %v8663
    %v8708 = vpack.c.b16 %v8668, %v8664
    %v8709 = vpack.c.b16 %v8673, %v8669
    %v8710 = vpack.c.b16 %v8674, %v8670
    %v8711 = vpack.c.b16 %v8675, %v8671
    %v8712 = vpack.c.b16 %v8676, %v8672
    %v8713 = vpack.c.b16 %v8681, %v8677
    %v8714 = vpack.c.b16 %v8682, %v8678
    %v8715 = vpack.c.b16 %v8683, %v8679
    %v8716 = vpack.c.b16 %v8684, %v8680
    %8749 = vmatpush.bf16.msra.mxu0 %v8713
    %8750 = vmatpush.bf16.msra.mxu0 %v8709
    %8751 = vmatpush.bf16.msra.mxu0 %v8705
    %8752 = vmatpush.bf16.msra.mxu0 %v8701
    %8753 = vmatpush.bf16.msra.mxu0 %v8697
    %8754 = vmatpush.bf16.msra.mxu0 %v8693
    %8755 = vmatpush.bf16.msra.mxu0 %v8689
    %8756 = vmatpush.bf16.msra.mxu0 %v8685
    %8757 = vmatmul.bf16.gmra.mxu0 %v8587
    %v8758 = vpop.f32.mrf.mxu0
    %v8759 = vadd.f32 0.0, %v8758
    %v8760 = vpop.f32.mrf.mxu0
    %8761 = vdwg.mxu0
    %8762 = vmatpush.bf16.msra.mxu0 %v8714
    %8763 = vmatpush.bf16.msra.mxu0 %v8710
    %8764 = vmatpush.bf16.msra.mxu0 %v8706
    %8765 = vmatpush.bf16.msra.mxu0 %v8702
    %8766 = vmatpush.bf16.msra.mxu0 %v8698
    %8767 = vmatpush.bf16.msra.mxu0 %v8694
    %8768 = vmatpush.bf16.msra.mxu0 %v8690
    %8769 = vmatpush.bf16.msra.mxu0 %v8686
    %8770 = vmatmul.bf16.gmra.mxu0 %v8587
    %v8771 = vpop.f32.mrf.mxu0
    %v8772 = vadd.f32 0.0, %v8771
    %v8773 = vpop.f32.mrf.mxu0
    %8774 = vdwg.mxu0
    %8775 = vmatpush.bf16.msra.mxu0 %v8715
    %8776 = vmatpush.bf16.msra.mxu0 %v8711
    %8777 = vmatpush.bf16.msra.mxu0 %v8707
    %8778 = vmatpush.bf16.msra.mxu0 %v8703
    %8779 = vmatpush.bf16.msra.mxu0 %v8699
    %8780 = vmatpush.bf16.msra.mxu0 %v8695
    %8781 = vmatpush.bf16.msra.mxu0 %v8691
    %8782 = vmatpush.bf16.msra.mxu0 %v8687
    %8783 = vmatmul.bf16.gmra.mxu0 %v8587
    %v8784 = vpop.f32.mrf.mxu0
    %v8785 = vadd.f32 0.0, %v8784
    %v8786 = vpop.f32.mrf.mxu0
    %8787 = vdwg.mxu0
    %8788 = vmatpush.bf16.msra.mxu0 %v8716
    %8789 = vmatpush.bf16.msra.mxu0 %v8712
    %8790 = vmatpush.bf16.msra.mxu0 %v8708
    %8791 = vmatpush.bf16.msra.mxu0 %v8704
    %8792 = vmatpush.bf16.msra.mxu0 %v8700
    %8793 = vmatpush.bf16.msra.mxu0 %v8696
    %8794 = vmatpush.bf16.msra.mxu0 %v8692
    %8795 = vmatpush.bf16.msra.mxu0 %v8688
    %8796 = vmatmul.bf16.gmra.mxu0 %v8587
    %v8797 = vpop.f32.mrf.mxu0
    %v8798 = vadd.f32 0.0, %v8797
    %v8799 = vpop.f32.mrf.mxu0
    %8800 = vdwg.mxu0
    %v8801 = vadd.f32 %v8547, %v8759
    %v8802 = vadd.f32 %v8548, %v8772
    %v8803 = vadd.f32 %v8549, %v8785
    %v8804 = vadd.f32 %v8550, %v8798
    %v8805 = vld [vmem:[#allocation30] sm:$0xf]
    %v8807 = vperm.slane %v8805, 0
    %v8808 = vperm.slane %v8805, 1
    %v8809 = vperm.slane %v8805, 2
    %v8810 = vperm.slane %v8805, 3
    %v8815 = vadd.f32 %v8801, %v8807
    %v8816 = vadd.f32 %v8802, %v8808
    %v8817 = vadd.f32 %v8803, %v8809
    %v8818 = vadd.f32 %v8804, %v8810
    %v8819 = vmul.f32 %v8815, 0.5
    %v8820 = vmul.f32 %v8816, 0.5
    %v8821 = vmul.f32 %v8817, 0.5
    %v8822 = vmul.f32 %v8818, 0.5
    %v8823 = vmul.f32 %v8815, 0.044715
    %v8824 = vmul.f32 %v8816, 0.044715
    %v8825 = vmul.f32 %v8817, 0.044715
    %v8826 = vmul.f32 %v8818, 0.044715
    %v8827 = vmul.f32 %v8823, %v8815
    %v8828 = vmul.f32 %v8824, %v8816
    %v8829 = vmul.f32 %v8825, %v8817
    %v8830 = vmul.f32 %v8826, %v8818
    %v8831 = vmul.f32 %v8827, %v8815
    %v8832 = vmul.f32 %v8828, %v8816
    %v8833 = vmul.f32 %v8829, %v8817
    %v8834 = vmul.f32 %v8830, %v8818
    %v8835 = vadd.f32 %v8815, %v8831
    %v8836 = vadd.f32 %v8816, %v8832
    %v8837 = vadd.f32 %v8817, %v8833
    %v8838 = vadd.f32 %v8818, %v8834
    %v8839 = vmul.f32 %v8835, 0.7978846
    %v8840 = vmul.f32 %v8836, 0.7978846
    %v8841 = vmul.f32 %v8837, 0.7978846
    %v8842 = vmul.f32 %v8838, 0.7978846
    %v8843 = vtanh.pop %v8839
    %v8844 = vtanh.pop %v8840
    %v8845 = vtanh.pop %v8841
    %v8846 = vtanh.pop %v8842
    %v8847 = vadd.f32 %v8843, 1.0
    %v8848 = vadd.f32 %v8844, 1.0
    %v8849 = vadd.f32 %v8845, 1.0
    %v8850 = vadd.f32 %v8846, 1.0
    %v8851 = vmul.f32 %v8819, %v8847
    %v8852 = vmul.f32 %v8820, %v8848
    %v8853 = vmul.f32 %v8821, %v8849
    %v8854 = vmul.f32 %v8822, %v8850
    %v8855 = vpack.c.bf16 %v8851, %v8851
    %v8856 = vpack.c.bf16 %v8852, %v8852
    %v8857 = vpack.c.bf16 %v8853, %v8853
    %v8858 = vpack.c.bf16 %v8854, %v8854
    %v8859 = vld [vmem:[#allocation32] sm:$0xff]
    %v8860 = vld [vmem:[#allocation32 + $0x8] sm:$0xff]
    %v8861 = vld [vmem:[#allocation32 + $0x10] sm:$0xff]
    %v8862 = vld [vmem:[#allocation32 + $0x18] sm:$0xff]
    %v8863 = vld [vmem:[#allocation32 + $0x20] sm:$0xff]
    %v8864 = vld [vmem:[#allocation32 + $0x28] sm:$0xff]
    %v8865 = vld [vmem:[#allocation32 + $0x30] sm:$0xff]
    %v8866 = vld [vmem:[#allocation32 + $0x38] sm:$0xff]
    %v8867 = vld [vmem:[#allocation32 + $0x40] sm:$0xff]
    %v8868 = vld [vmem:[#allocation32 + $0x48] sm:$0xff]
    %v8869 = vld [vmem:[#allocation32 + $0x50] sm:$0xff]
    %v8870 = vld [vmem:[#allocation32 + $0x58] sm:$0xff]
    %v8871 = vld [vmem:[#allocation32 + $0x60] sm:$0xff]
    %v8872 = vld [vmem:[#allocation32 + $0x68] sm:$0xff]
    %v8873 = vld [vmem:[#allocation32 + $0x70] sm:$0xff]
    %v8874 = vld [vmem:[#allocation32 + $0x78] sm:$0xff]
    %v8875 = vld [vmem:[#allocation32 + $0x80] sm:$0xff]
    %v8876 = vld [vmem:[#allocation32 + $0x88] sm:$0xff]
    %v8877 = vld [vmem:[#allocation32 + $0x90] sm:$0xff]
    %v8878 = vld [vmem:[#allocation32 + $0x98] sm:$0xff]
    %v8879 = vld [vmem:[#allocation32 + $0xa0] sm:$0xff]
    %v8880 = vld [vmem:[#allocation32 + $0xa8] sm:$0xff]
    %v8881 = vld [vmem:[#allocation32 + $0xb0] sm:$0xff]
    %v8882 = vld [vmem:[#allocation32 + $0xb8] sm:$0xff]
    %v8883 = vld [vmem:[#allocation32 + $0xc0] sm:$0xff]
    %v8884 = vld [vmem:[#allocation32 + $0xc8] sm:$0xff]
    %v8885 = vld [vmem:[#allocation32 + $0xd0] sm:$0xff]
    %v8886 = vld [vmem:[#allocation32 + $0xd8] sm:$0xff]
    %v8887 = vld [vmem:[#allocation32 + $0xe0] sm:$0xff]
    %v8888 = vld [vmem:[#allocation32 + $0xe8] sm:$0xff]
    %v8889 = vld [vmem:[#allocation32 + $0xf0] sm:$0xff]
    %v8890 = vld [vmem:[#allocation32 + $0xf8] sm:$0xff]
    %v8891 = vld [vmem:[#allocation32 + $0x100] sm:$0xff]
    %v8892 = vld [vmem:[#allocation32 + $0x108] sm:$0xff]
    %v8893 = vld [vmem:[#allocation32 + $0x110] sm:$0xff]
    %v8894 = vld [vmem:[#allocation32 + $0x118] sm:$0xff]
    %v8895 = vld [vmem:[#allocation32 + $0x120] sm:$0xff]
    %v8896 = vld [vmem:[#allocation32 + $0x128] sm:$0xff]
    %v8897 = vld [vmem:[#allocation32 + $0x130] sm:$0xff]
    %v8898 = vld [vmem:[#allocation32 + $0x138] sm:$0xff]
    %v8899 = vld [vmem:[#allocation32 + $0x140] sm:$0xff]
    %v8900 = vld [vmem:[#allocation32 + $0x148] sm:$0xff]
    %v8901 = vld [vmem:[#allocation32 + $0x150] sm:$0xff]
    %v8902 = vld [vmem:[#allocation32 + $0x158] sm:$0xff]
    %v8903 = vld [vmem:[#allocation32 + $0x160] sm:$0xff]
    %v8904 = vld [vmem:[#allocation32 + $0x168] sm:$0xff]
    %v8905 = vld [vmem:[#allocation32 + $0x170] sm:$0xff]
    %v8906 = vld [vmem:[#allocation32 + $0x178] sm:$0xff]
    %v8907 = vld [vmem:[#allocation32 + $0x180] sm:$0xff]
    %v8908 = vld [vmem:[#allocation32 + $0x188] sm:$0xff]
    %v8909 = vld [vmem:[#allocation32 + $0x190] sm:$0xff]
    %v8910 = vld [vmem:[#allocation32 + $0x198] sm:$0xff]
    %v8911 = vld [vmem:[#allocation32 + $0x1a0] sm:$0xff]
    %v8912 = vld [vmem:[#allocation32 + $0x1a8] sm:$0xff]
    %v8913 = vld [vmem:[#allocation32 + $0x1b0] sm:$0xff]
    %v8914 = vld [vmem:[#allocation32 + $0x1b8] sm:$0xff]
    %v8915 = vld [vmem:[#allocation32 + $0x1c0] sm:$0xff]
    %v8916 = vld [vmem:[#allocation32 + $0x1c8] sm:$0xff]
    %v8917 = vld [vmem:[#allocation32 + $0x1d0] sm:$0xff]
    %v8918 = vld [vmem:[#allocation32 + $0x1d8] sm:$0xff]
    %v8919 = vld [vmem:[#allocation32 + $0x1e0] sm:$0xff]
    %v8920 = vld [vmem:[#allocation32 + $0x1e8] sm:$0xff]
    %v8921 = vld [vmem:[#allocation32 + $0x1f0] sm:$0xff]
    %v8922 = vld [vmem:[#allocation32 + $0x1f8] sm:$0xff]
    %v8923 = vld [vmem:[#allocation33] sm:$0x3]
    %v8925 = vperm.slane %v8923, 0
    %v8926 = vperm.slane %v8923, 1
    %v8993 = vunpack.c.l.b16 %v8859
    %v8994 = vunpack.c.h.b16 %v8859
    %v8995 = vunpack.c.l.b16 %v8860
    %v8996 = vunpack.c.h.b16 %v8860
    %v8997 = vunpack.c.l.b16 %v8861
    %v8998 = vunpack.c.h.b16 %v8861
    %v8999 = vunpack.c.l.b16 %v8862
    %v9000 = vunpack.c.h.b16 %v8862
    %v9001 = vunpack.c.l.b16 %v8863
    %v9002 = vunpack.c.h.b16 %v8863
    %v9003 = vunpack.c.l.b16 %v8864
    %v9004 = vunpack.c.h.b16 %v8864
    %v9005 = vunpack.c.l.b16 %v8865
    %v9006 = vunpack.c.h.b16 %v8865
    %v9007 = vunpack.c.l.b16 %v8866
    %v9008 = vunpack.c.h.b16 %v8866
    %v9009 = vunpack.c.l.b16 %v8867
    %v9010 = vunpack.c.h.b16 %v8867
    %v9011 = vunpack.c.l.b16 %v8868
    %v9012 = vunpack.c.h.b16 %v8868
    %v9013 = vunpack.c.l.b16 %v8869
    %v9014 = vunpack.c.h.b16 %v8869
    %v9015 = vunpack.c.l.b16 %v8870
    %v9016 = vunpack.c.h.b16 %v8870
    %v9017 = vunpack.c.l.b16 %v8871
    %v9018 = vunpack.c.h.b16 %v8871
    %v9019 = vunpack.c.l.b16 %v8872
    %v9020 = vunpack.c.h.b16 %v8872
    %v9021 = vunpack.c.l.b16 %v8873
    %v9022 = vunpack.c.h.b16 %v8873
    %v9023 = vunpack.c.l.b16 %v8874
    %v9024 = vunpack.c.h.b16 %v8874
    %v9025 = vunpack.c.l.b16 %v8875
    %v9026 = vunpack.c.h.b16 %v8875
    %v9027 = vunpack.c.l.b16 %v8876
    %v9028 = vunpack.c.h.b16 %v8876
    %v9029 = vunpack.c.l.b16 %v8877
    %v9030 = vunpack.c.h.b16 %v8877
    %v9031 = vunpack.c.l.b16 %v8878
    %v9032 = vunpack.c.h.b16 %v8878
    %v9033 = vunpack.c.l.b16 %v8879
    %v9034 = vunpack.c.h.b16 %v8879
    %v9035 = vunpack.c.l.b16 %v8880
    %v9036 = vunpack.c.h.b16 %v8880
    %v9037 = vunpack.c.l.b16 %v8881
    %v9038 = vunpack.c.h.b16 %v8881
    %v9039 = vunpack.c.l.b16 %v8882
    %v9040 = vunpack.c.h.b16 %v8882
    %v9041 = vunpack.c.l.b16 %v8883
    %v9042 = vunpack.c.h.b16 %v8883
    %v9043 = vunpack.c.l.b16 %v8884
    %v9044 = vunpack.c.h.b16 %v8884
    %v9045 = vunpack.c.l.b16 %v8885
    %v9046 = vunpack.c.h.b16 %v8885
    %v9047 = vunpack.c.l.b16 %v8886
    %v9048 = vunpack.c.h.b16 %v8886
    %v9049 = vunpack.c.l.b16 %v8887
    %v9050 = vunpack.c.h.b16 %v8887
    %v9051 = vunpack.c.l.b16 %v8888
    %v9052 = vunpack.c.h.b16 %v8888
    %v9053 = vunpack.c.l.b16 %v8889
    %v9054 = vunpack.c.h.b16 %v8889
    %v9055 = vunpack.c.l.b16 %v8890
    %v9056 = vunpack.c.h.b16 %v8890
    %v9057 = vunpack.c.l.b16 %v8891
    %v9058 = vunpack.c.h.b16 %v8891
    %v9059 = vunpack.c.l.b16 %v8892
    %v9060 = vunpack.c.h.b16 %v8892
    %v9061 = vunpack.c.l.b16 %v8893
    %v9062 = vunpack.c.h.b16 %v8893
    %v9063 = vunpack.c.l.b16 %v8894
    %v9064 = vunpack.c.h.b16 %v8894
    %v9065 = vunpack.c.l.b16 %v8895
    %v9066 = vunpack.c.h.b16 %v8895
    %v9067 = vunpack.c.l.b16 %v8896
    %v9068 = vunpack.c.h.b16 %v8896
    %v9069 = vunpack.c.l.b16 %v8897
    %v9070 = vunpack.c.h.b16 %v8897
    %v9071 = vunpack.c.l.b16 %v8898
    %v9072 = vunpack.c.h.b16 %v8898
    %v9073 = vunpack.c.l.b16 %v8899
    %v9074 = vunpack.c.h.b16 %v8899
    %v9075 = vunpack.c.l.b16 %v8900
    %v9076 = vunpack.c.h.b16 %v8900
    %v9077 = vunpack.c.l.b16 %v8901
    %v9078 = vunpack.c.h.b16 %v8901
    %v9079 = vunpack.c.l.b16 %v8902
    %v9080 = vunpack.c.h.b16 %v8902
    %v9081 = vunpack.c.l.b16 %v8903
    %v9082 = vunpack.c.h.b16 %v8903
    %v9083 = vunpack.c.l.b16 %v8904
    %v9084 = vunpack.c.h.b16 %v8904
    %v9085 = vunpack.c.l.b16 %v8905
    %v9086 = vunpack.c.h.b16 %v8905
    %v9087 = vunpack.c.l.b16 %v8906
    %v9088 = vunpack.c.h.b16 %v8906
    %v9089 = vunpack.c.l.b16 %v8907
    %v9090 = vunpack.c.h.b16 %v8907
    %v9091 = vunpack.c.l.b16 %v8908
    %v9092 = vunpack.c.h.b16 %v8908
    %v9093 = vunpack.c.l.b16 %v8909
    %v9094 = vunpack.c.h.b16 %v8909
    %v9095 = vunpack.c.l.b16 %v8910
    %v9096 = vunpack.c.h.b16 %v8910
    %v9097 = vunpack.c.l.b16 %v8911
    %v9098 = vunpack.c.h.b16 %v8911
    %v9099 = vunpack.c.l.b16 %v8912
    %v9100 = vunpack.c.h.b16 %v8912
    %v9101 = vunpack.c.l.b16 %v8913
    %v9102 = vunpack.c.h.b16 %v8913
    %v9103 = vunpack.c.l.b16 %v8914
    %v9104 = vunpack.c.h.b16 %v8914
    %v9105 = vunpack.c.l.b16 %v8915
    %v9106 = vunpack.c.h.b16 %v8915
    %v9107 = vunpack.c.l.b16 %v8916
    %v9108 = vunpack.c.h.b16 %v8916
    %v9109 = vunpack.c.l.b16 %v8917
    %v9110 = vunpack.c.h.b16 %v8917
    %v9111 = vunpack.c.l.b16 %v8918
    %v9112 = vunpack.c.h.b16 %v8918
    %v9113 = vunpack.c.l.b16 %v8919
    %v9114 = vunpack.c.h.b16 %v8919
    %v9115 = vunpack.c.l.b16 %v8920
    %v9116 = vunpack.c.h.b16 %v8920
    %v9117 = vunpack.c.l.b16 %v8921
    %v9118 = vunpack.c.h.b16 %v8921
    %v9119 = vunpack.c.l.b16 %v8922
    %v9120 = vunpack.c.h.b16 %v8922
    %v9121 = vpack.c.b16 %v8995, %v8993
    %v9122 = vpack.c.b16 %v8996, %v8994
    %v9123 = vpack.c.b16 %v8999, %v8997
    %v9124 = vpack.c.b16 %v9000, %v8998
    %v9125 = vpack.c.b16 %v9003, %v9001
    %v9126 = vpack.c.b16 %v9004, %v9002
    %v9127 = vpack.c.b16 %v9007, %v9005
    %v9128 = vpack.c.b16 %v9008, %v9006
    %v9129 = vpack.c.b16 %v9011, %v9009
    %v9130 = vpack.c.b16 %v9012, %v9010
    %v9131 = vpack.c.b16 %v9015, %v9013
    %v9132 = vpack.c.b16 %v9016, %v9014
    %v9133 = vpack.c.b16 %v9019, %v9017
    %v9134 = vpack.c.b16 %v9020, %v9018
    %v9135 = vpack.c.b16 %v9023, %v9021
    %v9136 = vpack.c.b16 %v9024, %v9022
    %v9137 = vpack.c.b16 %v9027, %v9025
    %v9138 = vpack.c.b16 %v9028, %v9026
    %v9139 = vpack.c.b16 %v9031, %v9029
    %v9140 = vpack.c.b16 %v9032, %v9030
    %v9141 = vpack.c.b16 %v9035, %v9033
    %v9142 = vpack.c.b16 %v9036, %v9034
    %v9143 = vpack.c.b16 %v9039, %v9037
    %v9144 = vpack.c.b16 %v9040, %v9038
    %v9145 = vpack.c.b16 %v9043, %v9041
    %v9146 = vpack.c.b16 %v9044, %v9042
    %v9147 = vpack.c.b16 %v9047, %v9045
    %v9148 = vpack.c.b16 %v9048, %v9046
    %v9149 = vpack.c.b16 %v9051, %v9049
    %v9150 = vpack.c.b16 %v9052, %v9050
    %v9151 = vpack.c.b16 %v9055, %v9053
    %v9152 = vpack.c.b16 %v9056, %v9054
    %v9153 = vpack.c.b16 %v9059, %v9057
    %v9154 = vpack.c.b16 %v9060, %v9058
    %v9155 = vpack.c.b16 %v9063, %v9061
    %v9156 = vpack.c.b16 %v9064, %v9062
    %v9157 = vpack.c.b16 %v9067, %v9065
    %v9158 = vpack.c.b16 %v9068, %v9066
    %v9159 = vpack.c.b16 %v9071, %v9069
    %v9160 = vpack.c.b16 %v9072, %v9070
    %v9161 = vpack.c.b16 %v9075, %v9073
    %v9162 = vpack.c.b16 %v9076, %v9074
    %v9163 = vpack.c.b16 %v9079, %v9077
    %v9164 = vpack.c.b16 %v9080, %v9078
    %v9165 = vpack.c.b16 %v9083, %v9081
    %v9166 = vpack.c.b16 %v9084, %v9082
    %v9167 = vpack.c.b16 %v9087, %v9085
    %v9168 = vpack.c.b16 %v9088, %v9086
    %v9169 = vpack.c.b16 %v9091, %v9089
    %v9170 = vpack.c.b16 %v9092, %v9090
    %v9171 = vpack.c.b16 %v9095, %v9093
    %v9172 = vpack.c.b16 %v9096, %v9094
    %v9173 = vpack.c.b16 %v9099, %v9097
    %v9174 = vpack.c.b16 %v9100, %v9098
    %v9175 = vpack.c.b16 %v9103, %v9101
    %v9176 = vpack.c.b16 %v9104, %v9102
    %v9177 = vpack.c.b16 %v9107, %v9105
    %v9178 = vpack.c.b16 %v9108, %v9106
    %v9179 = vpack.c.b16 %v9111, %v9109
    %v9180 = vpack.c.b16 %v9112, %v9110
    %v9181 = vpack.c.b16 %v9115, %v9113
    %v9182 = vpack.c.b16 %v9116, %v9114
    %v9183 = vpack.c.b16 %v9119, %v9117
    %v9184 = vpack.c.b16 %v9120, %v9118
    %9249 = vmatpush.bf16.msra.mxu0 %v9135
    %9250 = vmatpush.bf16.msra.mxu0 %v9133
    %9251 = vmatpush.bf16.msra.mxu0 %v9131
    %9252 = vmatpush.bf16.msra.mxu0 %v9129
    %9253 = vmatpush.bf16.msra.mxu0 %v9127
    %9254 = vmatpush.bf16.msra.mxu0 %v9125
    %9255 = vmatpush.bf16.msra.mxu0 %v9123
    %9256 = vmatpush.bf16.msra.mxu0 %v9121
    %9257 = vmatmul.bf16.gmra.mxu0 %v8855
    %v9258 = vpop.f32.mrf.mxu0
    %v9259 = vadd.f32 %v8925, %v9258
    %v9260 = vpop.f32.mrf.mxu0
    %9261 = vdwg.mxu0
    %9262 = vmatpush.bf16.msra.mxu0 %v9151
    %9263 = vmatpush.bf16.msra.mxu0 %v9149
    %9264 = vmatpush.bf16.msra.mxu0 %v9147
    %9265 = vmatpush.bf16.msra.mxu0 %v9145
    %9266 = vmatpush.bf16.msra.mxu0 %v9143
    %9267 = vmatpush.bf16.msra.mxu0 %v9141
    %9268 = vmatpush.bf16.msra.mxu0 %v9139
    %9269 = vmatpush.bf16.msra.mxu0 %v9137
    %9270 = vmatmul.bf16.gmra.mxu0 %v8856
    %v9271 = vpop.f32.mrf.mxu0
    %v9272 = vadd.f32 %v9259, %v9271
    %v9273 = vpop.f32.mrf.mxu0
    %9274 = vdwg.mxu0
    %9275 = vmatpush.bf16.msra.mxu0 %v9167
    %9276 = vmatpush.bf16.msra.mxu0 %v9165
    %9277 = vmatpush.bf16.msra.mxu0 %v9163
    %9278 = vmatpush.bf16.msra.mxu0 %v9161
    %9279 = vmatpush.bf16.msra.mxu0 %v9159
    %9280 = vmatpush.bf16.msra.mxu0 %v9157
    %9281 = vmatpush.bf16.msra.mxu0 %v9155
    %9282 = vmatpush.bf16.msra.mxu0 %v9153
    %9283 = vmatmul.bf16.gmra.mxu0 %v8857
    %v9284 = vpop.f32.mrf.mxu0
    %v9285 = vadd.f32 %v9272, %v9284
    %v9286 = vpop.f32.mrf.mxu0
    %9287 = vdwg.mxu0
    %9288 = vmatpush.bf16.msra.mxu0 %v9183
    %9289 = vmatpush.bf16.msra.mxu0 %v9181
    %9290 = vmatpush.bf16.msra.mxu0 %v9179
    %9291 = vmatpush.bf16.msra.mxu0 %v9177
    %9292 = vmatpush.bf16.msra.mxu0 %v9175
    %9293 = vmatpush.bf16.msra.mxu0 %v9173
    %9294 = vmatpush.bf16.msra.mxu0 %v9171
    %9295 = vmatpush.bf16.msra.mxu0 %v9169
    %9296 = vmatmul.bf16.gmra.mxu0 %v8858
    %v9297 = vpop.f32.mrf.mxu0
    %v9298 = vadd.f32 %v9285, %v9297
    %v9299 = vpop.f32.mrf.mxu0
    %9300 = vdwg.mxu0
    %9301 = vmatpush.bf16.msra.mxu0 %v9136
    %9302 = vmatpush.bf16.msra.mxu0 %v9134
    %9303 = vmatpush.bf16.msra.mxu0 %v9132
    %9304 = vmatpush.bf16.msra.mxu0 %v9130
    %9305 = vmatpush.bf16.msra.mxu0 %v9128
    %9306 = vmatpush.bf16.msra.mxu0 %v9126
    %9307 = vmatpush.bf16.msra.mxu0 %v9124
    %9308 = vmatpush.bf16.msra.mxu0 %v9122
    %9309 = vmatmul.bf16.gmra.mxu0 %v8855
    %v9310 = vpop.f32.mrf.mxu0
    %v9311 = vadd.f32 %v8926, %v9310
    %v9312 = vpop.f32.mrf.mxu0
    %9313 = vdwg.mxu0
    %9314 = vmatpush.bf16.msra.mxu0 %v9152
    %9315 = vmatpush.bf16.msra.mxu0 %v9150
    %9316 = vmatpush.bf16.msra.mxu0 %v9148
    %9317 = vmatpush.bf16.msra.mxu0 %v9146
    %9318 = vmatpush.bf16.msra.mxu0 %v9144
    %9319 = vmatpush.bf16.msra.mxu0 %v9142
    %9320 = vmatpush.bf16.msra.mxu0 %v9140
    %9321 = vmatpush.bf16.msra.mxu0 %v9138
    %9322 = vmatmul.bf16.gmra.mxu0 %v8856
    %v9323 = vpop.f32.mrf.mxu0
    %v9324 = vadd.f32 %v9311, %v9323
    %v9325 = vpop.f32.mrf.mxu0
    %9326 = vdwg.mxu0
    %9327 = vmatpush.bf16.msra.mxu0 %v9168
    %9328 = vmatpush.bf16.msra.mxu0 %v9166
    %9329 = vmatpush.bf16.msra.mxu0 %v9164
    %9330 = vmatpush.bf16.msra.mxu0 %v9162
    %9331 = vmatpush.bf16.msra.mxu0 %v9160
    %9332 = vmatpush.bf16.msra.mxu0 %v9158
    %9333 = vmatpush.bf16.msra.mxu0 %v9156
    %9334 = vmatpush.bf16.msra.mxu0 %v9154
    %9335 = vmatmul.bf16.gmra.mxu0 %v8857
    %v9336 = vpop.f32.mrf.mxu0
    %v9337 = vadd.f32 %v9324, %v9336
    %v9338 = vpop.f32.mrf.mxu0
    %9339 = vdwg.mxu0
    %9340 = vmatpush.bf16.msra.mxu0 %v9184
    %9341 = vmatpush.bf16.msra.mxu0 %v9182
    %9342 = vmatpush.bf16.msra.mxu0 %v9180
    %9343 = vmatpush.bf16.msra.mxu0 %v9178
    %9344 = vmatpush.bf16.msra.mxu0 %v9176
    %9345 = vmatpush.bf16.msra.mxu0 %v9174
    %9346 = vmatpush.bf16.msra.mxu0 %v9172
    %9347 = vmatpush.bf16.msra.mxu0 %v9170
    %9348 = vmatmul.bf16.gmra.mxu0 %v8858
    %v9349 = vpop.f32.mrf.mxu0
    %v9350 = vadd.f32 %v9337, %v9349
    %v9351 = vpop.f32.mrf.mxu0
    %9352 = vdwg.mxu0
    %v9353 = vmul.f32 %v9298, 0.5
    %v9354 = vmul.f32 %v9350, 0.5
    %v9355 = vmul.f32 %v9298, 0.044715
    %v9356 = vmul.f32 %v9350, 0.044715
    %v9357 = vmul.f32 %v9355, %v9298
    %v9358 = vmul.f32 %v9356, %v9350
    %v9359 = vmul.f32 %v9357, %v9298
    %v9360 = vmul.f32 %v9358, %v9350
    %v9361 = vadd.f32 %v9298, %v9359
    %v9362 = vadd.f32 %v9350, %v9360
    %v9363 = vmul.f32 %v9361, 0.7978846
    %v9364 = vmul.f32 %v9362, 0.7978846
    %v9365 = vtanh.pop %v9363
    %v9366 = vtanh.pop %v9364
    %v9367 = vadd.f32 %v9365, 1.0
    %v9368 = vadd.f32 %v9366, 1.0
    %v9369 = vmul.f32 %v9353, %v9367
    %v9370 = vmul.f32 %v9354, %v9368
    %v9371 = vpack.c.bf16 %v9369, %v9369
    %v9372 = vpack.c.bf16 %v9370, %v9370
    %v9373 = vld [vmem:[%s22] sm:$0xf]
    %v9374 = vld [vmem:[%s22 + $0x4] sm:$0xf]
    %v9375 = vld [vmem:[%s22 + $0x8] sm:$0xf]
    %v9376 = vld [vmem:[%s22 + $0xc] sm:$0xf]
    %v9377 = vld [vmem:[%s22 + $0x10] sm:$0xf]
    %v9378 = vld [vmem:[%s22 + $0x14] sm:$0xf]
    %v9379 = vld [vmem:[%s22 + $0x18] sm:$0xf]
    %v9380 = vld [vmem:[%s22 + $0x1c] sm:$0xf]
    %v9381 = vld [vmem:[%s22 + $0x20] sm:$0xf]
    %v9382 = vld [vmem:[%s22 + $0x24] sm:$0xf]
    %v9383 = vld [vmem:[%s22 + $0x28] sm:$0xf]
    %v9384 = vld [vmem:[%s22 + $0x2c] sm:$0xf]
    %v9385 = vld [vmem:[%s22 + $0x30] sm:$0xf]
    %v9386 = vld [vmem:[%s22 + $0x34] sm:$0xf]
    %v9387 = vld [vmem:[%s22 + $0x38] sm:$0xf]
    %v9388 = vld [vmem:[%s22 + $0x3c] sm:$0xf]
    %v9389 = vld [vmem:[%s22 + $0x40] sm:$0xf]
    %v9390 = vld [vmem:[%s22 + $0x44] sm:$0xf]
    %v9391 = vld [vmem:[%s22 + $0x48] sm:$0xf]
    %v9392 = vld [vmem:[%s22 + $0x4c] sm:$0xf]
    %v9393 = vld [vmem:[%s22 + $0x50] sm:$0xf]
    %v9394 = vld [vmem:[%s22 + $0x54] sm:$0xf]
    %v9395 = vld [vmem:[%s22 + $0x58] sm:$0xf]
    %v9396 = vld [vmem:[%s22 + $0x5c] sm:$0xf]
    %v9397 = vld [vmem:[%s22 + $0x60] sm:$0xf]
    %v9398 = vld [vmem:[%s22 + $0x64] sm:$0xf]
    %v9399 = vld [vmem:[%s22 + $0x68] sm:$0xf]
    %v9400 = vld [vmem:[%s22 + $0x6c] sm:$0xf]
    %v9401 = vld [vmem:[%s22 + $0x70] sm:$0xf]
    %v9402 = vld [vmem:[%s22 + $0x74] sm:$0xf]
    %v9403 = vld [vmem:[%s22 + $0x78] sm:$0xf]
    %v9404 = vld [vmem:[%s22 + $0x7c] sm:$0xf]
    %v9405 = vld [vmem:[#allocation35] sm:$0x1]
    %v9407 = vperm.slane %v9405, 0
    %v9441 = vunpack.c.l.b16 %v9373
    %v9442 = vunpack.c.l.b16 %v9374
    %v9443 = vunpack.c.l.b16 %v9375
    %v9444 = vunpack.c.l.b16 %v9376
    %v9445 = vunpack.c.l.b16 %v9377
    %v9446 = vunpack.c.l.b16 %v9378
    %v9447 = vunpack.c.l.b16 %v9379
    %v9448 = vunpack.c.l.b16 %v9380
    %v9449 = vunpack.c.l.b16 %v9381
    %v9450 = vunpack.c.l.b16 %v9382
    %v9451 = vunpack.c.l.b16 %v9383
    %v9452 = vunpack.c.l.b16 %v9384
    %v9453 = vunpack.c.l.b16 %v9385
    %v9454 = vunpack.c.l.b16 %v9386
    %v9455 = vunpack.c.l.b16 %v9387
    %v9456 = vunpack.c.l.b16 %v9388
    %v9457 = vunpack.c.l.b16 %v9389
    %v9458 = vunpack.c.l.b16 %v9390
    %v9459 = vunpack.c.l.b16 %v9391
    %v9460 = vunpack.c.l.b16 %v9392
    %v9461 = vunpack.c.l.b16 %v9393
    %v9462 = vunpack.c.l.b16 %v9394
    %v9463 = vunpack.c.l.b16 %v9395
    %v9464 = vunpack.c.l.b16 %v9396
    %v9465 = vunpack.c.l.b16 %v9397
    %v9466 = vunpack.c.l.b16 %v9398
    %v9467 = vunpack.c.l.b16 %v9399
    %v9468 = vunpack.c.l.b16 %v9400
    %v9469 = vunpack.c.l.b16 %v9401
    %v9470 = vunpack.c.l.b16 %v9402
    %v9471 = vunpack.c.l.b16 %v9403
    %v9472 = vunpack.c.l.b16 %v9404
    %v9473 = vpack.c.b16 %v9442, %v9441
    %v9474 = vpack.c.b16 %v9444, %v9443
    %v9475 = vpack.c.b16 %v9446, %v9445
    %v9476 = vpack.c.b16 %v9448, %v9447
    %v9477 = vpack.c.b16 %v9450, %v9449
    %v9478 = vpack.c.b16 %v9452, %v9451
    %v9479 = vpack.c.b16 %v9454, %v9453
    %v9480 = vpack.c.b16 %v9456, %v9455
    %v9481 = vpack.c.b16 %v9458, %v9457
    %v9482 = vpack.c.b16 %v9460, %v9459
    %v9483 = vpack.c.b16 %v9462, %v9461
    %v9484 = vpack.c.b16 %v9464, %v9463
    %v9485 = vpack.c.b16 %v9466, %v9465
    %v9486 = vpack.c.b16 %v9468, %v9467
    %v9487 = vpack.c.b16 %v9470, %v9469
    %v9488 = vpack.c.b16 %v9472, %v9471
    %9505 = vmatpush.bf16.msra.mxu0 %v9480
    %9506 = vmatpush.bf16.msra.mxu0 %v9479
    %9507 = vmatpush.bf16.msra.mxu0 %v9478
    %9508 = vmatpush.bf16.msra.mxu0 %v9477
    %9509 = vmatpush.bf16.msra.mxu0 %v9476
    %9510 = vmatpush.bf16.msra.mxu0 %v9475
    %9511 = vmatpush.bf16.msra.mxu0 %v9474
    %9512 = vmatpush.bf16.msra.mxu0 %v9473
    %9513 = vmatmul.bf16.gmra.mxu0 %v9371
    %v9514 = vpop.f32.mrf.mxu0
    %v9515 = vadd.f32 %v9407, %v9514
    %v9516 = vpop.f32.mrf.mxu0
    %9517 = vdwg.mxu0
    %9518 = vmatpush.bf16.msra.mxu0 %v9488
    %9519 = vmatpush.bf16.msra.mxu0 %v9487
    %9520 = vmatpush.bf16.msra.mxu0 %v9486
    %9521 = vmatpush.bf16.msra.mxu0 %v9485
    %9522 = vmatpush.bf16.msra.mxu0 %v9484
    %9523 = vmatpush.bf16.msra.mxu0 %v9483
    %9524 = vmatpush.bf16.msra.mxu0 %v9482
    %9525 = vmatpush.bf16.msra.mxu0 %v9481
    %9526 = vmatmul.bf16.gmra.mxu0 %v9372
    %v9527 = vpop.f32.mrf.mxu0
    %v9528 = vadd.f32 %v9515, %v9527
    %v9529 = vpop.f32.mrf.mxu0
    %9530 = vdwg.mxu0
    %vm9531 = vcmask 123904
    %9532 = vst.msk [vmem:[%s24] sm:$0x3] %vm9531, %v9528
    // Predicated region
    $region182: #{attention_pnp_forward.1} parent=1 // pred_check
      _
    $region183: #{attention_pnp_forward.1} parent=1 // pred_check_branch
      %9534 = sbr.rel (0) target = $region185
    $region184: #{attention_pnp_forward.1} parent=1 // pred_region
      _
    $region185: #{attention_pnp_forward.1} parent=1 // pred_fallthru
      _
    // Predicated region
    $region186: #{attention_pnp_forward.1} parent=1 // pred_check
      _
    $region187: #{attention_pnp_forward.1} parent=1 // pred_check_branch
      %9536 = sbr.rel (0) target = $region189
    $region188: #{attention_pnp_forward.1} parent=1 // pred_region
      _
    $region189: #{attention_pnp_forward.1} parent=1 // pred_fallthru
      _
    // Predicated region
    $region190: #{attention_pnp_forward.1} parent=1 // pred_check
      _
    $region191: #{attention_pnp_forward.1} parent=1 // pred_check_branch
      %9538 = sbr.rel (0) target = $region193
    $region192: #{attention_pnp_forward.1} parent=1 // pred_region
      _
    $region193: #{attention_pnp_forward.1} parent=1 // pred_fallthru
      _
    // Predicated region
    $region194: #{attention_pnp_forward.1} parent=1 // pred_check
      _
    $region195: #{attention_pnp_forward.1} parent=1 // pred_check_branch
      %9540 = sbr.rel (0) target = $region197
    $region196: #{attention_pnp_forward.1} parent=1 // pred_region
      _
    $region197: #{attention_pnp_forward.1} parent=1 // pred_fallthru
      _
    %9541 = vsyncpa [#allocation5], 1
    %9542 = vsyncpa [#allocation7], 1
    %9543 = vsyncpa [#allocation10], 1
    %9544 = vsyncpa [#allocation13], 1
    %9545 = vsyncpa [#allocation16], 1
    %9546 = vsyncpa [#allocation19], 1
    %9547 = vsyncpa [#allocation22], 1
    %9548 = vsyncpa [#allocation25], 1
    %9549 = vsyncpa [#allocation28], 1
    %9550 = vsyncpa [#allocation31], 1
    %9551 = vsyncpa [#allocation34], 1
  %9552 = vsyncmov [#allocation3]
  %s9553 = vpop.sfrf %9552
  %p9554 = scmp.eq.s32.totalorder %s9553, 0
  %p9555 = pneg %p9554
  %9557 = shalt.err (%p9555)

</llo_original>
